<compile_context>
chip_gen: v7x
topology: tpu7x:2x2x1
jax: 0.10.0
libtpu: 0.0.40
codegen_flags: <defaults>
</compile_context>

<pallas_src>
import functools

import numpy as np

import jax
import jax.numpy as jnp
from jax.experimental import pallas as pl
from jax.experimental.pallas import tpu as pltpu

PROPRIO_SIZE = 48
LANES = 128


def _conv_out(d, k, s):
    return (d - k) // s + 1


# ----------------------------------------------------------------------------
# Fused forward kernel.  Everything lives in VMEM; only 2D matmuls, aligned
# static row slices, adds and ReLUs - no reshape/transpose/gather in-kernel.
#
# Input row layout of `patches_ref` (built by the wrapper):
#   row = ((off2 * 9 + off3) * n3p + o3) * B + b
# where off2 in [0,16) is the conv2 kernel offset, off3 in [0,9) the conv3
# kernel offset, o3 in [0,n3) the conv3 output position (padded to n3p rows),
# and b the batch index.  With this layout each conv is a sum of matmuls over
# contiguous, 8-aligned row blocks.
# ----------------------------------------------------------------------------
def _fused_forward_kernel(patches_ref, prop_ref, w1_ref, w2_ref, w3_ref,
                          wfc_ref, wm0i_ref, wm0p_ref, wrest_ref, wout_ref,
                          bias_ref, out_ref, *, batch, n3, n3p, n_mlp_rest):
    f32 = jnp.float32
    bf16 = jnp.bfloat16

    def relu(v):
        return jnp.maximum(v, 0.0)

    # conv1: all expanded patch rows at once.  (16*9*n3p*B, 64) @ (64, 128)
    y1 = jnp.dot(patches_ref[...], w1_ref[...], preferred_element_type=f32)
    y1 = relu(y1 + bias_ref[0:1, :]).astype(bf16)

    # conv2: sum over the 16 (dh2, dw2) kernel offsets (aligned row blocks).
    blk2 = 9 * n3p * batch
    acc2 = jnp.dot(y1[0:blk2, :], w2_ref[0], preferred_element_type=f32)
    for off2 in range(1, 16):
        acc2 = acc2 + jnp.dot(y1[off2 * blk2:(off2 + 1) * blk2, :],
                              w2_ref[off2], preferred_element_type=f32)
    y2 = relu(acc2 + bias_ref[1:2, :]).astype(bf16)          # (9*n3p*B, 128)

    # conv3: sum over the 9 (dh3, dw3) kernel offsets.  Only the first n3*B
    # rows of each n3p*B block are real conv3 output positions; the padded
    # rows are finite garbage and never read.  No ReLU (matches SimpleCNN).
    blk3 = n3p * batch
    rows3 = n3 * batch
    acc3 = jnp.dot(y2[0:rows3, :], w3_ref[0], preferred_element_type=f32)
    for off3 in range(1, 9):
        acc3 = acc3 + jnp.dot(y2[off3 * blk3:off3 * blk3 + rows3, :],
                              w3_ref[off3], preferred_element_type=f32)
    y3 = (acc3 + bias_ref[2:3, :]).astype(bf16)              # (n3*B, 128)

    # CNN fc: the torch NCHW flatten is folded into per-position weight blocks.
    accf = jnp.dot(y3[0:batch, :], wfc_ref[0], preferred_element_type=f32)
    for o3 in range(1, n3):
        accf = accf + jnp.dot(y3[o3 * batch:(o3 + 1) * batch, :],
                              wfc_ref[o3], preferred_element_type=f32)
    enc = relu(accf + bias_ref[3:4, :]).astype(bf16)         # (B, 128)

    # MLP layer 0: concat([image_enc, proprio]) @ W == enc @ W_img + prop @ W_prop.
    h = (jnp.dot(enc, wm0i_ref[...], preferred_element_type=f32)
         + jnp.dot(prop_ref[...], wm0p_ref[...], preferred_element_type=f32)
         + bias_ref[4:5, :])
    h = relu(h).astype(bf16)

    # Remaining MLP layers (Linear + ReLU each).
    for l in range(n_mlp_rest):
        h = relu(jnp.dot(h, wrest_ref[l], preferred_element_type=f32)
                 + bias_ref[6 + l:7 + l, :]).astype(bf16)

    # rnn_linear (no activation).
    out = jnp.dot(h, wout_ref[...], preferred_element_type=f32) + bias_ref[5:6, :]
    out_ref[...] = out.astype(out_ref.dtype)


# ----------------------------------------------------------------------------
# Parameter construction (deterministic, synthetic, torch layouts).
# ----------------------------------------------------------------------------
def init_params(key, image_size, cnn_out_size, rnn_hidden_size, rnn_out_size, rnn_layers):
    H, W = image_size
    h1o, w1o = _conv_out(H, 8, 4), _conv_out(W, 8, 4)
    h2o, w2o = _conv_out(h1o, 4, 2), _conv_out(w1o, 4, 2)
    h3o, w3o = _conv_out(h2o, 3, 1), _conv_out(w2o, 3, 1)
    flat = 32 * h3o * w3o

    keys = jax.random.split(key, 8 + rnn_layers)
    s = 0.05

    def lin(k, fan_in, fan_out):  # stored as (in, out) for x @ w
        return (s * jax.random.normal(k, (fan_in, fan_out), jnp.float32),
                s * jax.random.normal(jax.random.fold_in(k, 1), (fan_out,), jnp.float32))

    params = {
        # habitat-style SimpleCNN: conv(1->32,k8,s4)+ReLU, conv(32->64,k4,s2)+ReLU,
        # conv(64->32,k3,s1), Flatten, Linear(flat->cnn_out_size)+ReLU
        "conv1_w": s * jax.random.normal(keys[0], (32, 1, 8, 8), jnp.float32),
        "conv1_b": s * jax.random.normal(keys[1], (32,), jnp.float32),
        "conv2_w": s * jax.random.normal(keys[2], (64, 32, 4, 4), jnp.float32),
        "conv2_b": s * jax.random.normal(keys[3], (64,), jnp.float32),
        "conv3_w": s * jax.random.normal(keys[4], (32, 64, 3, 3), jnp.float32),
        "conv3_b": s * jax.random.normal(keys[5], (32,), jnp.float32),
    }
    params["cnn_fc_w"], params["cnn_fc_b"] = lin(keys[6], flat, cnn_out_size)

    mlp = []
    prev = cnn_out_size + PROPRIO_SIZE
    for i in range(rnn_layers):
        mlp.append(lin(keys[7 + i], prev, rnn_hidden_size))
        prev = rnn_hidden_size
    params["mlp"] = mlp

    params["rnn_linear_w"], params["rnn_linear_b"] = lin(
        keys[7 + rnn_layers], rnn_hidden_size, rnn_out_size)
    return params


def _build_expand_matrix(h1o, w1o, w3o, n3, n3p):
    """0/1 matrix replicating conv1 patch rows into (off2, off3, o3) order."""
    n1 = h1o * w1o
    expand = np.zeros((16 * 9 * n3p, n1), np.float32)
    for off2 in range(16):
        dh2, dw2 = divmod(off2, 4)
        for off3 in range(9):
            dh3, dw3 = divmod(off3, 3)
            for o3 in range(n3):
                h3, w3 = divmod(o3, w3o)
                h1 = 2 * (h3 + dh3) + dh2
                w1 = 2 * (w3 + dw3) + dw2
                expand[(off2 * 9 + off3) * n3p + o3, h1 * w1o + w1] = 1.0
    return expand


def prepare_params(tp, image_size, cnn_out_size, rnn_hidden_size, rnn_out_size, rnn_layers):
    """Convert torch-layout params into lane-padded, kernel-ready tensors."""
    H, W = image_size
    assert H % 4 == 0 and W % 4 == 0
    assert tp["conv1_w"].shape[1] == 1, "depth image expected (Cin == 1)"
    assert max(cnn_out_size, rnn_hidden_size, rnn_out_size, PROPRIO_SIZE) <= LANES

    h1o, w1o = _conv_out(H, 8, 4), _conv_out(W, 8, 4)
    h2o, w2o = _conv_out(h1o, 4, 2), _conv_out(w1o, 4, 2)
    h3o, w3o = _conv_out(h2o, 3, 1), _conv_out(w2o, 3, 1)
    n3 = h3o * w3o
    n3p = ((n3 + 7) // 8) * 8
    n_rest = rnn_layers - 1
    bf16 = jnp.bfloat16

    def pad2(a):
        a = jnp.asarray(a, jnp.float32)
        return jnp.zeros((LANES, LANES), jnp.float32).at[:a.shape[0], :a.shape[1]].set(a)

    # conv1 weight, rows permuted to match the wrapper's space-to-depth patch order:
    # patch element k' = (dbh*2 + dbw)*16 + i*4 + j  <->  image offset (4*dbh+i, 4*dbw+j).
    w1_k = jnp.transpose(tp["conv1_w"], (2, 3, 1, 0)).reshape(64, 32)  # row = ig*8 + jg
    inv_perm = np.zeros(64, np.int32)
    for q in range(4):
        dbh, dbw = divmod(q, 2)
        for i in range(4):
            for j in range(4):
                inv_perm[q * 16 + i * 4 + j] = (4 * dbh + i) * 8 + (4 * dbw + j)
    w1_k = w1_k[inv_perm]
    w1p = jnp.zeros((64, LANES), jnp.float32).at[:, :32].set(w1_k).astype(bf16)

    w2_k = jnp.transpose(tp["conv2_w"], (2, 3, 1, 0))   # (4, 4, 32, 64)
    w2_stack = jnp.stack([pad2(w2_k[o // 4, o % 4]) for o in range(16)]).astype(bf16)
    w3_k = jnp.transpose(tp["conv3_w"], (2, 3, 1, 0))   # (3, 3, 64, 32)
    w3_stack = jnp.stack([pad2(w3_k[o // 3, o % 3]) for o in range(9)]).astype(bf16)

    # cnn fc: fold the NCHW flatten (index = c*n3 + o3) into per-o3 weight blocks.
    fc_w = tp["cnn_fc_w"]                               # (32*n3, cnn_out_size)
    wfc_stack = jnp.stack([pad2(fc_w[o3::n3, :]) for o3 in range(n3)]).astype(bf16)

    # MLP layer 0: split the concat([image_enc, prop]) weight.
    m0_w, m0_b = tp["mlp"][0]
    wm0_img = pad2(m0_w[:cnn_out_size]).astype(bf16)
    wm0_prop = pad2(m0_w[cnn_out_size:]).astype(bf16)
    if n_rest > 0:
        wm_rest = jnp.stack([pad2(w) for (w, _) in tp["mlp"][1:]]).astype(bf16)
    else:
        wm_rest = jnp.zeros((1, LANES, LANES), bf16)    # unused dummy

    w_out = pad2(tp["rnn_linear_w"]).astype(bf16)

    n_bias = ((6 + max(n_rest, 0) + 7) // 8) * 8
    biases = jnp.zeros((n_bias, LANES), jnp.float32)
    biases = biases.at[0, :32].set(tp["conv1_b"])
    biases = biases.at[1, :64].set(tp["conv2_b"])
    biases = biases.at[2, :32].set(tp["conv3_b"])
    biases = biases.at[3, :cnn_out_size].set(tp["cnn_fc_b"])
    biases = biases.at[4, :rnn_hidden_size].set(m0_b)
    biases = biases.at[5, :rnn_out_size].set(tp["rnn_linear_b"])
    for l, (_, bl) in enumerate(tp["mlp"][1:]):
        biases = biases.at[6 + l, :rnn_hidden_size].set(bl)

    expand = jnp.asarray(_build_expand_matrix(h1o, w1o, w3o, n3, n3p))

    kparams = {"w1": w1p, "w2": w2_stack, "w3": w3_stack, "wfc": wfc_stack,
               "wm0_img": wm0_img, "wm0_prop": wm0_prop, "wm_rest": wm_rest,
               "w_out": w_out, "biases": biases, "expand": expand}
    meta = dict(image_size=image_size, h1o=h1o, w1o=w1o, n3=n3, n3p=n3p,
                n_mlp_rest=n_rest, rnn_out_size=rnn_out_size)
    return kparams, meta


# ----------------------------------------------------------------------------
# CNNRNN.forward (tensor-observation branch, no_rnn=True)
# ----------------------------------------------------------------------------
def cnn_rnn_forward(kparams, observations, masks, *, meta):
    del masks  # only used by the LSTM path (no_rnn=False)
    B = observations.shape[0]
    H, W = meta["image_size"]
    h1o, w1o = meta["h1o"], meta["w1o"]
    n1 = h1o * w1o

    obs = observations[:, :-1]
    prop = obs[:, :PROPRIO_SIZE]
    images = obs[:, PROPRIO_SIZE + 187:].reshape(B, H, W)

    # conv1 im2col via space-to-depth (stride 4) + a 2x2 block concat; the patch
    # ordering permutation is baked into kparams["w1"].
    bh, bw = H // 4, W // 4
    blocks = images.reshape(B, bh, 4, bw, 4).transpose(0, 1, 3, 2, 4).reshape(B, bh, bw, 16)
    p1 = jnp.concatenate(
        [blocks[:, :h1o, :w1o], blocks[:, :h1o, 1:w1o + 1],
         blocks[:, 1:h1o + 1, :w1o], blocks[:, 1:h1o + 1, 1:w1o + 1]], axis=-1)

    # Replicate patches into the kernel's (off2, off3, o3, b) row order with one
    # constant 0/1 matmul (no gathers) so the kernel only sees aligned row blocks.
    p1t = p1.reshape(B, n1, 64).transpose(1, 0, 2).reshape(n1, B * 64)
    patches = jnp.dot(kparams["expand"], p1t).reshape(-1, 64).astype(jnp.bfloat16)

    prop_p = jnp.zeros((B, LANES), jnp.bfloat16)
    prop_p = prop_p.at[:, :PROPRIO_SIZE].set(prop.astype(jnp.bfloat16))

    vmem = pl.BlockSpec(memory_space=pltpu.MemorySpace.VMEM)
    out = pl.pallas_call(
        functools.partial(_fused_forward_kernel, batch=B, n3=meta["n3"],
                          n3p=meta["n3p"], n_mlp_rest=meta["n_mlp_rest"]),
        out_shape=jax.ShapeDtypeStruct((B, LANES), jnp.float32),
        in_specs=[vmem] * 11,
        out_specs=vmem,
    )(patches, prop_p, kparams["w1"], kparams["w2"], kparams["w3"],
      kparams["wfc"], kparams["wm0_img"], kparams["wm0_prop"],
      kparams["wm_rest"], kparams["w_out"], kparams["biases"])

    return out[:, :meta["rnn_out_size"]]


if __name__ == "__main__":
    image_size = (48, 48)
    cnn_out_size = 32
    rnn_hidden_size = 64
    rnn_out_size = 16
    rnn_layers = 2
    batch = 2

    # observations layout: [proprio(48) | scan(187) | depth image (48*48) | extra(1)]
    obs_dim = PROPRIO_SIZE + 187 + image_size[0] * image_size[1] * 1 + 1

    key = jax.random.PRNGKey(0)
    k_obs, k_par = jax.random.split(key)
    observations = jax.random.normal(k_obs, (batch, obs_dim), dtype=jnp.float32)
    masks = jnp.ones((batch, 1), dtype=jnp.float32)

    torch_params = init_params(k_par, image_size, cnn_out_size, rnn_hidden_size,
                               rnn_out_size, rnn_layers)
    kparams, meta = prepare_params(torch_params, image_size, cnn_out_size,
                                   rnn_hidden_size, rnn_out_size, rnn_layers)

    fwd = jax.jit(functools.partial(cnn_rnn_forward, meta=meta))
    out = fwd(kparams, observations, masks)
    out = jax.block_until_ready(out)
    assert out.shape == (batch, rnn_out_size), out.shape
    assert bool(jnp.all(jnp.isfinite(out)))
    print("KERNEL_OK")
</pallas_src>

<mosaic_0001>
module attributes {stable_mosaic.version = 11 : i64} {
  func.func @_fused_forward_kernel(%arg0: memref<2304x64xbf16, #tpu.memory_space<vmem>>, %arg1: memref<2x128xbf16, #tpu.memory_space<vmem>>, %arg2: memref<64x128xbf16, #tpu.memory_space<vmem>>, %arg3: memref<16x128x128xbf16, #tpu.memory_space<vmem>>, %arg4: memref<9x128x128xbf16, #tpu.memory_space<vmem>>, %arg5: memref<4x128x128xbf16, #tpu.memory_space<vmem>>, %arg6: memref<128x128xbf16, #tpu.memory_space<vmem>>, %arg7: memref<128x128xbf16, #tpu.memory_space<vmem>>, %arg8: memref<1x128x128xbf16, #tpu.memory_space<vmem>>, %arg9: memref<128x128xbf16, #tpu.memory_space<vmem>>, %arg10: memref<8x128xf32, #tpu.memory_space<vmem>>, %arg11: memref<2x128xf32, #tpu.memory_space<vmem>>) attributes {dimension_semantics = [], scalar_prefetch = 0 : i64, scratch_operands = 0 : i64, tpu.core_type = #tpu.core_type<tc>} {
    %c0 = arith.constant 0 : index
    %c0_0 = arith.constant 0 : index
    %0 = vector.load %arg0[%c0, %c0_0] : memref<2304x64xbf16, #tpu.memory_space<vmem>>, vector<2304x64xbf16>
    %c0_1 = arith.constant 0 : index
    %c0_2 = arith.constant 0 : index
    %1 = vector.load %arg2[%c0_1, %c0_2] : memref<64x128xbf16, #tpu.memory_space<vmem>>, vector<64x128xbf16>
    %cst = arith.constant dense<0.000000e+00> : vector<2304x128xf32>
    %2 = tpu.matmul %0, %1, %cst {dimension_numbers = #tpu.dot_dimension_numbers<[1], [0], [0], [1], [0, 0, 1, 1], [], []>} : vector<2304x64xbf16>, vector<64x128xbf16>, vector<2304x128xf32> -> vector<2304x128xf32>
    %c0_3 = arith.constant 0 : index
    %c0_4 = arith.constant 0 : index
    %3 = vector.load %arg10[%c0_3, %c0_4] : memref<8x128xf32, #tpu.memory_space<vmem>>, vector<1x128xf32>
    %4 = vector.broadcast %3 : vector<1x128xf32> to vector<2304x128xf32>
    %5 = arith.addf %2, %4 : vector<2304x128xf32>
    %cst_5 = arith.constant 0.000000e+00 : f32
    %6 = vector.broadcast %cst_5 : f32 to vector<2304x128xf32>
    %7 = arith.maximumf %5, %6 : vector<2304x128xf32>
    %8 = arith.truncf %7 : vector<2304x128xf32> to vector<2304x128xbf16>
    %9 = vector.extract_strided_slice %8 {offsets = [0, 0], sizes = [144, 128], strides = [1, 1]} : vector<2304x128xbf16> to vector<144x128xbf16>
    %c0_6 = arith.constant 0 : index
    %c0_7 = arith.constant 0 : index
    %c0_8 = arith.constant 0 : index
    %10 = vector.load %arg3[%c0_6, %c0_7, %c0_8] : memref<16x128x128xbf16, #tpu.memory_space<vmem>>, vector<1x128x128xbf16>
    %11 = vector.shape_cast %10 : vector<1x128x128xbf16> to vector<128x128xbf16>
    %cst_9 = arith.constant dense<0.000000e+00> : vector<144x128xf32>
    %12 = tpu.matmul %9, %11, %cst_9 {dimension_numbers = #tpu.dot_dimension_numbers<[1], [0], [0], [1], [0, 0, 1, 1], [], []>} : vector<144x128xbf16>, vector<128x128xbf16>, vector<144x128xf32> -> vector<144x128xf32>
    %13 = vector.extract_strided_slice %8 {offsets = [144, 0], sizes = [144, 128], strides = [1, 1]} : vector<2304x128xbf16> to vector<144x128xbf16>
    %c1 = arith.constant 1 : index
    %c0_10 = arith.constant 0 : index
    %c0_11 = arith.constant 0 : index
    %14 = vector.load %arg3[%c1, %c0_10, %c0_11] : memref<16x128x128xbf16, #tpu.memory_space<vmem>>, vector<1x128x128xbf16>
    %15 = vector.shape_cast %14 : vector<1x128x128xbf16> to vector<128x128xbf16>
    %cst_12 = arith.constant dense<0.000000e+00> : vector<144x128xf32>
    %16 = tpu.matmul %13, %15, %cst_12 {dimension_numbers = #tpu.dot_dimension_numbers<[1], [0], [0], [1], [0, 0, 1, 1], [], []>} : vector<144x128xbf16>, vector<128x128xbf16>, vector<144x128xf32> -> vector<144x128xf32>
    %17 = arith.addf %12, %16 : vector<144x128xf32>
    %18 = vector.extract_strided_slice %8 {offsets = [288, 0], sizes = [144, 128], strides = [1, 1]} : vector<2304x128xbf16> to vector<144x128xbf16>
    %c2 = arith.constant 2 : index
    %c0_13 = arith.constant 0 : index
    %c0_14 = arith.constant 0 : index
    %19 = vector.load %arg3[%c2, %c0_13, %c0_14] : memref<16x128x128xbf16, #tpu.memory_space<vmem>>, vector<1x128x128xbf16>
    %20 = vector.shape_cast %19 : vector<1x128x128xbf16> to vector<128x128xbf16>
    %cst_15 = arith.constant dense<0.000000e+00> : vector<144x128xf32>
    %21 = tpu.matmul %18, %20, %cst_15 {dimension_numbers = #tpu.dot_dimension_numbers<[1], [0], [0], [1], [0, 0, 1, 1], [], []>} : vector<144x128xbf16>, vector<128x128xbf16>, vector<144x128xf32> -> vector<144x128xf32>
    %22 = arith.addf %17, %21 : vector<144x128xf32>
    %23 = vector.extract_strided_slice %8 {offsets = [432, 0], sizes = [144, 128], strides = [1, 1]} : vector<2304x128xbf16> to vector<144x128xbf16>
    %c3 = arith.constant 3 : index
    %c0_16 = arith.constant 0 : index
    %c0_17 = arith.constant 0 : index
    %24 = vector.load %arg3[%c3, %c0_16, %c0_17] : memref<16x128x128xbf16, #tpu.memory_space<vmem>>, vector<1x128x128xbf16>
    %25 = vector.shape_cast %24 : vector<1x128x128xbf16> to vector<128x128xbf16>
    %cst_18 = arith.constant dense<0.000000e+00> : vector<144x128xf32>
    %26 = tpu.matmul %23, %25, %cst_18 {dimension_numbers = #tpu.dot_dimension_numbers<[1], [0], [0], [1], [0, 0, 1, 1], [], []>} : vector<144x128xbf16>, vector<128x128xbf16>, vector<144x128xf32> -> vector<144x128xf32>
    %27 = arith.addf %22, %26 : vector<144x128xf32>
    %28 = vector.extract_strided_slice %8 {offsets = [576, 0], sizes = [144, 128], strides = [1, 1]} : vector<2304x128xbf16> to vector<144x128xbf16>
    %c4 = arith.constant 4 : index
    %c0_19 = arith.constant 0 : index
    %c0_20 = arith.constant 0 : index
    %29 = vector.load %arg3[%c4, %c0_19, %c0_20] : memref<16x128x128xbf16, #tpu.memory_space<vmem>>, vector<1x128x128xbf16>
    %30 = vector.shape_cast %29 : vector<1x128x128xbf16> to vector<128x128xbf16>
    %cst_21 = arith.constant dense<0.000000e+00> : vector<144x128xf32>
    %31 = tpu.matmul %28, %30, %cst_21 {dimension_numbers = #tpu.dot_dimension_numbers<[1], [0], [0], [1], [0, 0, 1, 1], [], []>} : vector<144x128xbf16>, vector<128x128xbf16>, vector<144x128xf32> -> vector<144x128xf32>
    %32 = arith.addf %27, %31 : vector<144x128xf32>
    %33 = vector.extract_strided_slice %8 {offsets = [720, 0], sizes = [144, 128], strides = [1, 1]} : vector<2304x128xbf16> to vector<144x128xbf16>
    %c5 = arith.constant 5 : index
    %c0_22 = arith.constant 0 : index
    %c0_23 = arith.constant 0 : index
    %34 = vector.load %arg3[%c5, %c0_22, %c0_23] : memref<16x128x128xbf16, #tpu.memory_space<vmem>>, vector<1x128x128xbf16>
    %35 = vector.shape_cast %34 : vector<1x128x128xbf16> to vector<128x128xbf16>
    %cst_24 = arith.constant dense<0.000000e+00> : vector<144x128xf32>
    %36 = tpu.matmul %33, %35, %cst_24 {dimension_numbers = #tpu.dot_dimension_numbers<[1], [0], [0], [1], [0, 0, 1, 1], [], []>} : vector<144x128xbf16>, vector<128x128xbf16>, vector<144x128xf32> -> vector<144x128xf32>
    %37 = arith.addf %32, %36 : vector<144x128xf32>
    %38 = vector.extract_strided_slice %8 {offsets = [864, 0], sizes = [144, 128], strides = [1, 1]} : vector<2304x128xbf16> to vector<144x128xbf16>
    %c6 = arith.constant 6 : index
    %c0_25 = arith.constant 0 : index
    %c0_26 = arith.constant 0 : index
    %39 = vector.load %arg3[%c6, %c0_25, %c0_26] : memref<16x128x128xbf16, #tpu.memory_space<vmem>>, vector<1x128x128xbf16>
    %40 = vector.shape_cast %39 : vector<1x128x128xbf16> to vector<128x128xbf16>
    %cst_27 = arith.constant dense<0.000000e+00> : vector<144x128xf32>
    %41 = tpu.matmul %38, %40, %cst_27 {dimension_numbers = #tpu.dot_dimension_numbers<[1], [0], [0], [1], [0, 0, 1, 1], [], []>} : vector<144x128xbf16>, vector<128x128xbf16>, vector<144x128xf32> -> vector<144x128xf32>
    %42 = arith.addf %37, %41 : vector<144x128xf32>
    %43 = vector.extract_strided_slice %8 {offsets = [1008, 0], sizes = [144, 128], strides = [1, 1]} : vector<2304x128xbf16> to vector<144x128xbf16>
    %c7 = arith.constant 7 : index
    %c0_28 = arith.constant 0 : index
    %c0_29 = arith.constant 0 : index
    %44 = vector.load %arg3[%c7, %c0_28, %c0_29] : memref<16x128x128xbf16, #tpu.memory_space<vmem>>, vector<1x128x128xbf16>
    %45 = vector.shape_cast %44 : vector<1x128x128xbf16> to vector<128x128xbf16>
    %cst_30 = arith.constant dense<0.000000e+00> : vector<144x128xf32>
    %46 = tpu.matmul %43, %45, %cst_30 {dimension_numbers = #tpu.dot_dimension_numbers<[1], [0], [0], [1], [0, 0, 1, 1], [], []>} : vector<144x128xbf16>, vector<128x128xbf16>, vector<144x128xf32> -> vector<144x128xf32>
    %47 = arith.addf %42, %46 : vector<144x128xf32>
    %48 = vector.extract_strided_slice %8 {offsets = [1152, 0], sizes = [144, 128], strides = [1, 1]} : vector<2304x128xbf16> to vector<144x128xbf16>
    %c8 = arith.constant 8 : index
    %c0_31 = arith.constant 0 : index
    %c0_32 = arith.constant 0 : index
    %49 = vector.load %arg3[%c8, %c0_31, %c0_32] : memref<16x128x128xbf16, #tpu.memory_space<vmem>>, vector<1x128x128xbf16>
    %50 = vector.shape_cast %49 : vector<1x128x128xbf16> to vector<128x128xbf16>
    %cst_33 = arith.constant dense<0.000000e+00> : vector<144x128xf32>
    %51 = tpu.matmul %48, %50, %cst_33 {dimension_numbers = #tpu.dot_dimension_numbers<[1], [0], [0], [1], [0, 0, 1, 1], [], []>} : vector<144x128xbf16>, vector<128x128xbf16>, vector<144x128xf32> -> vector<144x128xf32>
    %52 = arith.addf %47, %51 : vector<144x128xf32>
    %53 = vector.extract_strided_slice %8 {offsets = [1296, 0], sizes = [144, 128], strides = [1, 1]} : vector<2304x128xbf16> to vector<144x128xbf16>
    %c9 = arith.constant 9 : index
    %c0_34 = arith.constant 0 : index
    %c0_35 = arith.constant 0 : index
    %54 = vector.load %arg3[%c9, %c0_34, %c0_35] : memref<16x128x128xbf16, #tpu.memory_space<vmem>>, vector<1x128x128xbf16>
    %55 = vector.shape_cast %54 : vector<1x128x128xbf16> to vector<128x128xbf16>
    %cst_36 = arith.constant dense<0.000000e+00> : vector<144x128xf32>
    %56 = tpu.matmul %53, %55, %cst_36 {dimension_numbers = #tpu.dot_dimension_numbers<[1], [0], [0], [1], [0, 0, 1, 1], [], []>} : vector<144x128xbf16>, vector<128x128xbf16>, vector<144x128xf32> -> vector<144x128xf32>
    %57 = arith.addf %52, %56 : vector<144x128xf32>
    %58 = vector.extract_strided_slice %8 {offsets = [1440, 0], sizes = [144, 128], strides = [1, 1]} : vector<2304x128xbf16> to vector<144x128xbf16>
    %c10 = arith.constant 10 : index
    %c0_37 = arith.constant 0 : index
    %c0_38 = arith.constant 0 : index
    %59 = vector.load %arg3[%c10, %c0_37, %c0_38] : memref<16x128x128xbf16, #tpu.memory_space<vmem>>, vector<1x128x128xbf16>
    %60 = vector.shape_cast %59 : vector<1x128x128xbf16> to vector<128x128xbf16>
    %cst_39 = arith.constant dense<0.000000e+00> : vector<144x128xf32>
    %61 = tpu.matmul %58, %60, %cst_39 {dimension_numbers = #tpu.dot_dimension_numbers<[1], [0], [0], [1], [0, 0, 1, 1], [], []>} : vector<144x128xbf16>, vector<128x128xbf16>, vector<144x128xf32> -> vector<144x128xf32>
    %62 = arith.addf %57, %61 : vector<144x128xf32>
    %63 = vector.extract_strided_slice %8 {offsets = [1584, 0], sizes = [144, 128], strides = [1, 1]} : vector<2304x128xbf16> to vector<144x128xbf16>
    %c11 = arith.constant 11 : index
    %c0_40 = arith.constant 0 : index
    %c0_41 = arith.constant 0 : index
    %64 = vector.load %arg3[%c11, %c0_40, %c0_41] : memref<16x128x128xbf16, #tpu.memory_space<vmem>>, vector<1x128x128xbf16>
    %65 = vector.shape_cast %64 : vector<1x128x128xbf16> to vector<128x128xbf16>
    %cst_42 = arith.constant dense<0.000000e+00> : vector<144x128xf32>
    %66 = tpu.matmul %63, %65, %cst_42 {dimension_numbers = #tpu.dot_dimension_numbers<[1], [0], [0], [1], [0, 0, 1, 1], [], []>} : vector<144x128xbf16>, vector<128x128xbf16>, vector<144x128xf32> -> vector<144x128xf32>
    %67 = arith.addf %62, %66 : vector<144x128xf32>
    %68 = vector.extract_strided_slice %8 {offsets = [1728, 0], sizes = [144, 128], strides = [1, 1]} : vector<2304x128xbf16> to vector<144x128xbf16>
    %c12 = arith.constant 12 : index
    %c0_43 = arith.constant 0 : index
    %c0_44 = arith.constant 0 : index
    %69 = vector.load %arg3[%c12, %c0_43, %c0_44] : memref<16x128x128xbf16, #tpu.memory_space<vmem>>, vector<1x128x128xbf16>
    %70 = vector.shape_cast %69 : vector<1x128x128xbf16> to vector<128x128xbf16>
    %cst_45 = arith.constant dense<0.000000e+00> : vector<144x128xf32>
    %71 = tpu.matmul %68, %70, %cst_45 {dimension_numbers = #tpu.dot_dimension_numbers<[1], [0], [0], [1], [0, 0, 1, 1], [], []>} : vector<144x128xbf16>, vector<128x128xbf16>, vector<144x128xf32> -> vector<144x128xf32>
    %72 = arith.addf %67, %71 : vector<144x128xf32>
    %73 = vector.extract_strided_slice %8 {offsets = [1872, 0], sizes = [144, 128], strides = [1, 1]} : vector<2304x128xbf16> to vector<144x128xbf16>
    %c13 = arith.constant 13 : index
    %c0_46 = arith.constant 0 : index
    %c0_47 = arith.constant 0 : index
    %74 = vector.load %arg3[%c13, %c0_46, %c0_47] : memref<16x128x128xbf16, #tpu.memory_space<vmem>>, vector<1x128x128xbf16>
    %75 = vector.shape_cast %74 : vector<1x128x128xbf16> to vector<128x128xbf16>
    %cst_48 = arith.constant dense<0.000000e+00> : vector<144x128xf32>
    %76 = tpu.matmul %73, %75, %cst_48 {dimension_numbers = #tpu.dot_dimension_numbers<[1], [0], [0], [1], [0, 0, 1, 1], [], []>} : vector<144x128xbf16>, vector<128x128xbf16>, vector<144x128xf32> -> vector<144x128xf32>
    %77 = arith.addf %72, %76 : vector<144x128xf32>
    %78 = vector.extract_strided_slice %8 {offsets = [2016, 0], sizes = [144, 128], strides = [1, 1]} : vector<2304x128xbf16> to vector<144x128xbf16>
    %c14 = arith.constant 14 : index
    %c0_49 = arith.constant 0 : index
    %c0_50 = arith.constant 0 : index
    %79 = vector.load %arg3[%c14, %c0_49, %c0_50] : memref<16x128x128xbf16, #tpu.memory_space<vmem>>, vector<1x128x128xbf16>
    %80 = vector.shape_cast %79 : vector<1x128x128xbf16> to vector<128x128xbf16>
    %cst_51 = arith.constant dense<0.000000e+00> : vector<144x128xf32>
    %81 = tpu.matmul %78, %80, %cst_51 {dimension_numbers = #tpu.dot_dimension_numbers<[1], [0], [0], [1], [0, 0, 1, 1], [], []>} : vector<144x128xbf16>, vector<128x128xbf16>, vector<144x128xf32> -> vector<144x128xf32>
    %82 = arith.addf %77, %81 : vector<144x128xf32>
    %83 = vector.extract_strided_slice %8 {offsets = [2160, 0], sizes = [144, 128], strides = [1, 1]} : vector<2304x128xbf16> to vector<144x128xbf16>
    %c15 = arith.constant 15 : index
    %c0_52 = arith.constant 0 : index
    %c0_53 = arith.constant 0 : index
    %84 = vector.load %arg3[%c15, %c0_52, %c0_53] : memref<16x128x128xbf16, #tpu.memory_space<vmem>>, vector<1x128x128xbf16>
    %85 = vector.shape_cast %84 : vector<1x128x128xbf16> to vector<128x128xbf16>
    %cst_54 = arith.constant dense<0.000000e+00> : vector<144x128xf32>
    %86 = tpu.matmul %83, %85, %cst_54 {dimension_numbers = #tpu.dot_dimension_numbers<[1], [0], [0], [1], [0, 0, 1, 1], [], []>} : vector<144x128xbf16>, vector<128x128xbf16>, vector<144x128xf32> -> vector<144x128xf32>
    %87 = arith.addf %82, %86 : vector<144x128xf32>
    %c1_55 = arith.constant 1 : index
    %c0_56 = arith.constant 0 : index
    %88 = vector.load %arg10[%c1_55, %c0_56] : memref<8x128xf32, #tpu.memory_space<vmem>>, vector<1x128xf32>
    %89 = vector.broadcast %88 : vector<1x128xf32> to vector<144x128xf32>
    %90 = arith.addf %87, %89 : vector<144x128xf32>
    %cst_57 = arith.constant 0.000000e+00 : f32
    %91 = vector.broadcast %cst_57 : f32 to vector<144x128xf32>
    %92 = arith.maximumf %90, %91 : vector<144x128xf32>
    %93 = arith.truncf %92 : vector<144x128xf32> to vector<144x128xbf16>
    %94 = vector.extract_strided_slice %93 {offsets = [0, 0], sizes = [8, 128], strides = [1, 1]} : vector<144x128xbf16> to vector<8x128xbf16>
    %c0_58 = arith.constant 0 : index
    %c0_59 = arith.constant 0 : index
    %c0_60 = arith.constant 0 : index
    %95 = vector.load %arg4[%c0_58, %c0_59, %c0_60] : memref<9x128x128xbf16, #tpu.memory_space<vmem>>, vector<1x128x128xbf16>
    %96 = vector.shape_cast %95 : vector<1x128x128xbf16> to vector<128x128xbf16>
    %cst_61 = arith.constant dense<0.000000e+00> : vector<8x128xf32>
    %97 = tpu.matmul %94, %96, %cst_61 {dimension_numbers = #tpu.dot_dimension_numbers<[1], [0], [0], [1], [0, 0, 1, 1], [], []>} : vector<8x128xbf16>, vector<128x128xbf16>, vector<8x128xf32> -> vector<8x128xf32>
    %98 = vector.extract_strided_slice %93 {offsets = [16, 0], sizes = [8, 128], strides = [1, 1]} : vector<144x128xbf16> to vector<8x128xbf16>
    %c1_62 = arith.constant 1 : index
    %c0_63 = arith.constant 0 : index
    %c0_64 = arith.constant 0 : index
    %99 = vector.load %arg4[%c1_62, %c0_63, %c0_64] : memref<9x128x128xbf16, #tpu.memory_space<vmem>>, vector<1x128x128xbf16>
    %100 = vector.shape_cast %99 : vector<1x128x128xbf16> to vector<128x128xbf16>
    %cst_65 = arith.constant dense<0.000000e+00> : vector<8x128xf32>
    %101 = tpu.matmul %98, %100, %cst_65 {dimension_numbers = #tpu.dot_dimension_numbers<[1], [0], [0], [1], [0, 0, 1, 1], [], []>} : vector<8x128xbf16>, vector<128x128xbf16>, vector<8x128xf32> -> vector<8x128xf32>
    %102 = arith.addf %97, %101 : vector<8x128xf32>
    %103 = vector.extract_strided_slice %93 {offsets = [32, 0], sizes = [8, 128], strides = [1, 1]} : vector<144x128xbf16> to vector<8x128xbf16>
    %c2_66 = arith.constant 2 : index
    %c0_67 = arith.constant 0 : index
    %c0_68 = arith.constant 0 : index
    %104 = vector.load %arg4[%c2_66, %c0_67, %c0_68] : memref<9x128x128xbf16, #tpu.memory_space<vmem>>, vector<1x128x128xbf16>
    %105 = vector.shape_cast %104 : vector<1x128x128xbf16> to vector<128x128xbf16>
    %cst_69 = arith.constant dense<0.000000e+00> : vector<8x128xf32>
    %106 = tpu.matmul %103, %105, %cst_69 {dimension_numbers = #tpu.dot_dimension_numbers<[1], [0], [0], [1], [0, 0, 1, 1], [], []>} : vector<8x128xbf16>, vector<128x128xbf16>, vector<8x128xf32> -> vector<8x128xf32>
    %107 = arith.addf %102, %106 : vector<8x128xf32>
    %108 = vector.extract_strided_slice %93 {offsets = [48, 0], sizes = [8, 128], strides = [1, 1]} : vector<144x128xbf16> to vector<8x128xbf16>
    %c3_70 = arith.constant 3 : index
    %c0_71 = arith.constant 0 : index
    %c0_72 = arith.constant 0 : index
    %109 = vector.load %arg4[%c3_70, %c0_71, %c0_72] : memref<9x128x128xbf16, #tpu.memory_space<vmem>>, vector<1x128x128xbf16>
    %110 = vector.shape_cast %109 : vector<1x128x128xbf16> to vector<128x128xbf16>
    %cst_73 = arith.constant dense<0.000000e+00> : vector<8x128xf32>
    %111 = tpu.matmul %108, %110, %cst_73 {dimension_numbers = #tpu.dot_dimension_numbers<[1], [0], [0], [1], [0, 0, 1, 1], [], []>} : vector<8x128xbf16>, vector<128x128xbf16>, vector<8x128xf32> -> vector<8x128xf32>
    %112 = arith.addf %107, %111 : vector<8x128xf32>
    %113 = vector.extract_strided_slice %93 {offsets = [64, 0], sizes = [8, 128], strides = [1, 1]} : vector<144x128xbf16> to vector<8x128xbf16>
    %c4_74 = arith.constant 4 : index
    %c0_75 = arith.constant 0 : index
    %c0_76 = arith.constant 0 : index
    %114 = vector.load %arg4[%c4_74, %c0_75, %c0_76] : memref<9x128x128xbf16, #tpu.memory_space<vmem>>, vector<1x128x128xbf16>
    %115 = vector.shape_cast %114 : vector<1x128x128xbf16> to vector<128x128xbf16>
    %cst_77 = arith.constant dense<0.000000e+00> : vector<8x128xf32>
    %116 = tpu.matmul %113, %115, %cst_77 {dimension_numbers = #tpu.dot_dimension_numbers<[1], [0], [0], [1], [0, 0, 1, 1], [], []>} : vector<8x128xbf16>, vector<128x128xbf16>, vector<8x128xf32> -> vector<8x128xf32>
    %117 = arith.addf %112, %116 : vector<8x128xf32>
    %118 = vector.extract_strided_slice %93 {offsets = [80, 0], sizes = [8, 128], strides = [1, 1]} : vector<144x128xbf16> to vector<8x128xbf16>
    %c5_78 = arith.constant 5 : index
    %c0_79 = arith.constant 0 : index
    %c0_80 = arith.constant 0 : index
    %119 = vector.load %arg4[%c5_78, %c0_79, %c0_80] : memref<9x128x128xbf16, #tpu.memory_space<vmem>>, vector<1x128x128xbf16>
    %120 = vector.shape_cast %119 : vector<1x128x128xbf16> to vector<128x128xbf16>
    %cst_81 = arith.constant dense<0.000000e+00> : vector<8x128xf32>
    %121 = tpu.matmul %118, %120, %cst_81 {dimension_numbers = #tpu.dot_dimension_numbers<[1], [0], [0], [1], [0, 0, 1, 1], [], []>} : vector<8x128xbf16>, vector<128x128xbf16>, vector<8x128xf32> -> vector<8x128xf32>
    %122 = arith.addf %117, %121 : vector<8x128xf32>
    %123 = vector.extract_strided_slice %93 {offsets = [96, 0], sizes = [8, 128], strides = [1, 1]} : vector<144x128xbf16> to vector<8x128xbf16>
    %c6_82 = arith.constant 6 : index
    %c0_83 = arith.constant 0 : index
    %c0_84 = arith.constant 0 : index
    %124 = vector.load %arg4[%c6_82, %c0_83, %c0_84] : memref<9x128x128xbf16, #tpu.memory_space<vmem>>, vector<1x128x128xbf16>
    %125 = vector.shape_cast %124 : vector<1x128x128xbf16> to vector<128x128xbf16>
    %cst_85 = arith.constant dense<0.000000e+00> : vector<8x128xf32>
    %126 = tpu.matmul %123, %125, %cst_85 {dimension_numbers = #tpu.dot_dimension_numbers<[1], [0], [0], [1], [0, 0, 1, 1], [], []>} : vector<8x128xbf16>, vector<128x128xbf16>, vector<8x128xf32> -> vector<8x128xf32>
    %127 = arith.addf %122, %126 : vector<8x128xf32>
    %128 = vector.extract_strided_slice %93 {offsets = [112, 0], sizes = [8, 128], strides = [1, 1]} : vector<144x128xbf16> to vector<8x128xbf16>
    %c7_86 = arith.constant 7 : index
    %c0_87 = arith.constant 0 : index
    %c0_88 = arith.constant 0 : index
    %129 = vector.load %arg4[%c7_86, %c0_87, %c0_88] : memref<9x128x128xbf16, #tpu.memory_space<vmem>>, vector<1x128x128xbf16>
    %130 = vector.shape_cast %129 : vector<1x128x128xbf16> to vector<128x128xbf16>
    %cst_89 = arith.constant dense<0.000000e+00> : vector<8x128xf32>
    %131 = tpu.matmul %128, %130, %cst_89 {dimension_numbers = #tpu.dot_dimension_numbers<[1], [0], [0], [1], [0, 0, 1, 1], [], []>} : vector<8x128xbf16>, vector<128x128xbf16>, vector<8x128xf32> -> vector<8x128xf32>
    %132 = arith.addf %127, %131 : vector<8x128xf32>
    %133 = vector.extract_strided_slice %93 {offsets = [128, 0], sizes = [8, 128], strides = [1, 1]} : vector<144x128xbf16> to vector<8x128xbf16>
    %c8_90 = arith.constant 8 : index
    %c0_91 = arith.constant 0 : index
    %c0_92 = arith.constant 0 : index
    %134 = vector.load %arg4[%c8_90, %c0_91, %c0_92] : memref<9x128x128xbf16, #tpu.memory_space<vmem>>, vector<1x128x128xbf16>
    %135 = vector.shape_cast %134 : vector<1x128x128xbf16> to vector<128x128xbf16>
    %cst_93 = arith.constant dense<0.000000e+00> : vector<8x128xf32>
    %136 = tpu.matmul %133, %135, %cst_93 {dimension_numbers = #tpu.dot_dimension_numbers<[1], [0], [0], [1], [0, 0, 1, 1], [], []>} : vector<8x128xbf16>, vector<128x128xbf16>, vector<8x128xf32> -> vector<8x128xf32>
    %137 = arith.addf %132, %136 : vector<8x128xf32>
    %c2_94 = arith.constant 2 : index
    %c0_95 = arith.constant 0 : index
    %138 = vector.load %arg10[%c2_94, %c0_95] : memref<8x128xf32, #tpu.memory_space<vmem>>, vector<1x128xf32>
    %139 = vector.broadcast %138 : vector<1x128xf32> to vector<8x128xf32>
    %140 = arith.addf %137, %139 : vector<8x128xf32>
    %141 = arith.truncf %140 : vector<8x128xf32> to vector<8x128xbf16>
    %142 = vector.extract_strided_slice %141 {offsets = [0, 0], sizes = [2, 128], strides = [1, 1]} : vector<8x128xbf16> to vector<2x128xbf16>
    %c0_96 = arith.constant 0 : index
    %c0_97 = arith.constant 0 : index
    %c0_98 = arith.constant 0 : index
    %143 = vector.load %arg5[%c0_96, %c0_97, %c0_98] : memref<4x128x128xbf16, #tpu.memory_space<vmem>>, vector<1x128x128xbf16>
    %144 = vector.shape_cast %143 : vector<1x128x128xbf16> to vector<128x128xbf16>
    %cst_99 = arith.constant dense<0.000000e+00> : vector<2x128xf32>
    %145 = tpu.matmul %142, %144, %cst_99 {dimension_numbers = #tpu.dot_dimension_numbers<[1], [0], [0], [1], [0, 0, 1, 1], [], []>} : vector<2x128xbf16>, vector<128x128xbf16>, vector<2x128xf32> -> vector<2x128xf32>
    %146 = vector.extract_strided_slice %141 {offsets = [2, 0], sizes = [2, 128], strides = [1, 1]} : vector<8x128xbf16> to vector<2x128xbf16>
    %c1_100 = arith.constant 1 : index
    %c0_101 = arith.constant 0 : index
    %c0_102 = arith.constant 0 : index
    %147 = vector.load %arg5[%c1_100, %c0_101, %c0_102] : memref<4x128x128xbf16, #tpu.memory_space<vmem>>, vector<1x128x128xbf16>
    %148 = vector.shape_cast %147 : vector<1x128x128xbf16> to vector<128x128xbf16>
    %cst_103 = arith.constant dense<0.000000e+00> : vector<2x128xf32>
    %149 = tpu.matmul %146, %148, %cst_103 {dimension_numbers = #tpu.dot_dimension_numbers<[1], [0], [0], [1], [0, 0, 1, 1], [], []>} : vector<2x128xbf16>, vector<128x128xbf16>, vector<2x128xf32> -> vector<2x128xf32>
    %150 = arith.addf %145, %149 : vector<2x128xf32>
    %151 = vector.extract_strided_slice %141 {offsets = [4, 0], sizes = [2, 128], strides = [1, 1]} : vector<8x128xbf16> to vector<2x128xbf16>
    %c2_104 = arith.constant 2 : index
    %c0_105 = arith.constant 0 : index
    %c0_106 = arith.constant 0 : index
    %152 = vector.load %arg5[%c2_104, %c0_105, %c0_106] : memref<4x128x128xbf16, #tpu.memory_space<vmem>>, vector<1x128x128xbf16>
    %153 = vector.shape_cast %152 : vector<1x128x128xbf16> to vector<128x128xbf16>
    %cst_107 = arith.constant dense<0.000000e+00> : vector<2x128xf32>
    %154 = tpu.matmul %151, %153, %cst_107 {dimension_numbers = #tpu.dot_dimension_numbers<[1], [0], [0], [1], [0, 0, 1, 1], [], []>} : vector<2x128xbf16>, vector<128x128xbf16>, vector<2x128xf32> -> vector<2x128xf32>
    %155 = arith.addf %150, %154 : vector<2x128xf32>
    %156 = vector.extract_strided_slice %141 {offsets = [6, 0], sizes = [2, 128], strides = [1, 1]} : vector<8x128xbf16> to vector<2x128xbf16>
    %c3_108 = arith.constant 3 : index
    %c0_109 = arith.constant 0 : index
    %c0_110 = arith.constant 0 : index
    %157 = vector.load %arg5[%c3_108, %c0_109, %c0_110] : memref<4x128x128xbf16, #tpu.memory_space<vmem>>, vector<1x128x128xbf16>
    %158 = vector.shape_cast %157 : vector<1x128x128xbf16> to vector<128x128xbf16>
    %cst_111 = arith.constant dense<0.000000e+00> : vector<2x128xf32>
    %159 = tpu.matmul %156, %158, %cst_111 {dimension_numbers = #tpu.dot_dimension_numbers<[1], [0], [0], [1], [0, 0, 1, 1], [], []>} : vector<2x128xbf16>, vector<128x128xbf16>, vector<2x128xf32> -> vector<2x128xf32>
    %160 = arith.addf %155, %159 : vector<2x128xf32>
    %c3_112 = arith.constant 3 : index
    %c0_113 = arith.constant 0 : index
    %161 = vector.load %arg10[%c3_112, %c0_113] : memref<8x128xf32, #tpu.memory_space<vmem>>, vector<1x128xf32>
    %162 = vector.broadcast %161 : vector<1x128xf32> to vector<2x128xf32>
    %163 = arith.addf %160, %162 : vector<2x128xf32>
    %cst_114 = arith.constant 0.000000e+00 : f32
    %164 = vector.broadcast %cst_114 : f32 to vector<2x128xf32>
    %165 = arith.maximumf %163, %164 : vector<2x128xf32>
    %166 = arith.truncf %165 : vector<2x128xf32> to vector<2x128xbf16>
    %c0_115 = arith.constant 0 : index
    %c0_116 = arith.constant 0 : index
    %167 = vector.load %arg6[%c0_115, %c0_116] : memref<128x128xbf16, #tpu.memory_space<vmem>>, vector<128x128xbf16>
    %cst_117 = arith.constant dense<0.000000e+00> : vector<2x128xf32>
    %168 = tpu.matmul %166, %167, %cst_117 {dimension_numbers = #tpu.dot_dimension_numbers<[1], [0], [0], [1], [0, 0, 1, 1], [], []>} : vector<2x128xbf16>, vector<128x128xbf16>, vector<2x128xf32> -> vector<2x128xf32>
    %c0_118 = arith.constant 0 : index
    %c0_119 = arith.constant 0 : index
    %169 = vector.load %arg1[%c0_118, %c0_119] : memref<2x128xbf16, #tpu.memory_space<vmem>>, vector<2x128xbf16>
    %c0_120 = arith.constant 0 : index
    %c0_121 = arith.constant 0 : index
    %170 = vector.load %arg7[%c0_120, %c0_121] : memref<128x128xbf16, #tpu.memory_space<vmem>>, vector<128x128xbf16>
    %cst_122 = arith.constant dense<0.000000e+00> : vector<2x128xf32>
    %171 = tpu.matmul %169, %170, %cst_122 {dimension_numbers = #tpu.dot_dimension_numbers<[1], [0], [0], [1], [0, 0, 1, 1], [], []>} : vector<2x128xbf16>, vector<128x128xbf16>, vector<2x128xf32> -> vector<2x128xf32>
    %172 = arith.addf %168, %171 : vector<2x128xf32>
    %c4_123 = arith.constant 4 : index
    %c0_124 = arith.constant 0 : index
    %173 = vector.load %arg10[%c4_123, %c0_124] : memref<8x128xf32, #tpu.memory_space<vmem>>, vector<1x128xf32>
    %174 = vector.broadcast %173 : vector<1x128xf32> to vector<2x128xf32>
    %175 = arith.addf %172, %174 : vector<2x128xf32>
    %cst_125 = arith.constant 0.000000e+00 : f32
    %176 = vector.broadcast %cst_125 : f32 to vector<2x128xf32>
    %177 = arith.maximumf %175, %176 : vector<2x128xf32>
    %178 = arith.truncf %177 : vector<2x128xf32> to vector<2x128xbf16>
    %c0_126 = arith.constant 0 : index
    %c0_127 = arith.constant 0 : index
    %c0_128 = arith.constant 0 : index
    %179 = vector.load %arg8[%c0_126, %c0_127, %c0_128] : memref<1x128x128xbf16, #tpu.memory_space<vmem>>, vector<1x128x128xbf16>
    %180 = vector.shape_cast %179 : vector<1x128x128xbf16> to vector<128x128xbf16>
    %cst_129 = arith.constant dense<0.000000e+00> : vector<2x128xf32>
    %181 = tpu.matmul %178, %180, %cst_129 {dimension_numbers = #tpu.dot_dimension_numbers<[1], [0], [0], [1], [0, 0, 1, 1], [], []>} : vector<2x128xbf16>, vector<128x128xbf16>, vector<2x128xf32> -> vector<2x128xf32>
    %c6_130 = arith.constant 6 : index
    %c0_131 = arith.constant 0 : index
    %182 = vector.load %arg10[%c6_130, %c0_131] : memref<8x128xf32, #tpu.memory_space<vmem>>, vector<1x128xf32>
    %183 = vector.broadcast %182 : vector<1x128xf32> to vector<2x128xf32>
    %184 = arith.addf %181, %183 : vector<2x128xf32>
    %cst_132 = arith.constant 0.000000e+00 : f32
    %185 = vector.broadcast %cst_132 : f32 to vector<2x128xf32>
    %186 = arith.maximumf %184, %185 : vector<2x128xf32>
    %187 = arith.truncf %186 : vector<2x128xf32> to vector<2x128xbf16>
    %c0_133 = arith.constant 0 : index
    %c0_134 = arith.constant 0 : index
    %188 = vector.load %arg9[%c0_133, %c0_134] : memref<128x128xbf16, #tpu.memory_space<vmem>>, vector<128x128xbf16>
    %cst_135 = arith.constant dense<0.000000e+00> : vector<2x128xf32>
    %189 = tpu.matmul %187, %188, %cst_135 {dimension_numbers = #tpu.dot_dimension_numbers<[1], [0], [0], [1], [0, 0, 1, 1], [], []>} : vector<2x128xbf16>, vector<128x128xbf16>, vector<2x128xf32> -> vector<2x128xf32>
    %c5_136 = arith.constant 5 : index
    %c0_137 = arith.constant 0 : index
    %190 = vector.load %arg10[%c5_136, %c0_137] : memref<8x128xf32, #tpu.memory_space<vmem>>, vector<1x128xf32>
    %191 = vector.broadcast %190 : vector<1x128xf32> to vector<2x128xf32>
    %192 = arith.addf %189, %191 : vector<2x128xf32>
    %c0_138 = arith.constant 0 : index
    %c0_139 = arith.constant 0 : index
    %193 = vector.load %arg11[%c0_138, %c0_139] : memref<2x128xf32, #tpu.memory_space<vmem>>, vector<2x128xf32>
    tpu.vector_store %arg11[%c0_138, %c0_139], %192 {strides = array<i32>} : memref<2x128xf32, #tpu.memory_space<vmem>>, vector<2x128xf32>,
    return
  }
}

</mosaic_0001>

<llo_original>
// kernel: cnn_rnn_forward.1
$region0: #{cnn_rnn_forward.1}
  #allocation0 [shape = 'u32[]', space=smem, size = 0x4, offset = 0x4, fixed_abs, tag = 'smem constant byte address 0x4 - core index']
  #allocation1 [shape = 'u32[144,128]{1,0:T(1,128)}', space=vmem, size = 0x12000, scoped, tag = 'internal scratch']
  %s0 = inlined_call_operand.vmem [shape: bf16[2304,64], index: 0, kind: input, shape index: {}]
  %s1 = inlined_call_operand.vmem [shape: bf16[2,128], index: 1, kind: input, shape index: {}]
  %s2 = inlined_call_operand.vmem [shape: bf16[64,128], index: 2, kind: input, shape index: {}]
  %s3 = inlined_call_operand.vmem [shape: bf16[16,128,128], index: 3, kind: input, shape index: {}]
  %s4 = inlined_call_operand.vmem [shape: bf16[9,128,128], index: 4, kind: input, shape index: {}]
  %s5 = inlined_call_operand.vmem [shape: bf16[4,128,128], index: 5, kind: input, shape index: {}]
  %s6 = inlined_call_operand.vmem [shape: bf16[128,128], index: 6, kind: input, shape index: {}]
  %s7 = inlined_call_operand.vmem [shape: bf16[128,128], index: 7, kind: input, shape index: {}]
  %s8 = inlined_call_operand.vmem [shape: bf16[1,128,128], index: 8, kind: input, shape index: {}]
  %s9 = inlined_call_operand.vmem [shape: bf16[128,128], index: 9, kind: input, shape index: {}]
  %s10 = inlined_call_operand.vmem [shape: f32[8,128], index: 10, kind: input, shape index: {}]
  %s11 = inlined_call_operand.hbm [shape: f32[2,128], index: 11, kind: output, shape index: {}]
  %s12 = sld [smem:[#allocation0]]
  $region54: #{cnn_rnn_forward.1} parent=0
    _
  %s14 = ssub.s32 1, %s12
  %s15 = scalar_select 0, %s14, %s12
  $region1: #{cnn_rnn_forward.1} parent=0
    #allocation2 [shape = 'u8[1024]{0}', space=vmem, size = 0x400, scoped, tag = 'output window, operand 0, single buffered']
    #allocation3 [shape = 's32[1]{0}', space=sflag, size = 0x4, scoped, tag = 'scoped memory for cnn_rnn_forward.1']
    %16 = vsyncpa [#allocation3], 0
    // Predicated region
    $region2: #{cnn_rnn_forward.1} parent=1 // pred_check
      _
    $region3: #{cnn_rnn_forward.1} parent=1 // pred_check_branch
      %18 = sbr.rel (0) target = $region5
    $region4: #{cnn_rnn_forward.1} parent=1 // pred_region
      _
    $region5: #{cnn_rnn_forward.1} parent=1 // pred_fallthru
      _
    // Predicated region
    $region6: #{cnn_rnn_forward.1} parent=1 // pred_check
      _
    $region7: #{cnn_rnn_forward.1} parent=1 // pred_check_branch
      %20 = sbr.rel (0) target = $region9
    $region8: #{cnn_rnn_forward.1} parent=1 // pred_region
      _
    $region9: #{cnn_rnn_forward.1} parent=1 // pred_fallthru
      _
    // Predicated region
    $region10: #{cnn_rnn_forward.1} parent=1 // pred_check
      _
    $region11: #{cnn_rnn_forward.1} parent=1 // pred_check_branch
      %22 = sbr.rel (0) target = $region13
    $region12: #{cnn_rnn_forward.1} parent=1 // pred_region
      _
    $region13: #{cnn_rnn_forward.1} parent=1 // pred_fallthru
      _
    // Predicated region
    $region14: #{cnn_rnn_forward.1} parent=1 // pred_check
      _
    $region15: #{cnn_rnn_forward.1} parent=1 // pred_check_branch
      %24 = sbr.rel (0) target = $region17
    $region16: #{cnn_rnn_forward.1} parent=1 // pred_region
      _
    $region17: #{cnn_rnn_forward.1} parent=1 // pred_fallthru
      _
    // Predicated region
    $region18: #{cnn_rnn_forward.1} parent=1 // pred_check
      _
    $region19: #{cnn_rnn_forward.1} parent=1 // pred_check_branch
      %26 = sbr.rel (0) target = $region21
    $region20: #{cnn_rnn_forward.1} parent=1 // pred_region
      _
    $region21: #{cnn_rnn_forward.1} parent=1 // pred_fallthru
      _
    // Predicated region
    $region22: #{cnn_rnn_forward.1} parent=1 // pred_check
      _
    $region23: #{cnn_rnn_forward.1} parent=1 // pred_check_branch
      %28 = sbr.rel (0) target = $region25
    $region24: #{cnn_rnn_forward.1} parent=1 // pred_region
      _
    $region25: #{cnn_rnn_forward.1} parent=1 // pred_fallthru
      _
    // Predicated region
    $region26: #{cnn_rnn_forward.1} parent=1 // pred_check
      _
    $region27: #{cnn_rnn_forward.1} parent=1 // pred_check_branch
      %30 = sbr.rel (0) target = $region29
    $region28: #{cnn_rnn_forward.1} parent=1 // pred_region
      _
    $region29: #{cnn_rnn_forward.1} parent=1 // pred_fallthru
      _
    // Predicated region
    $region30: #{cnn_rnn_forward.1} parent=1 // pred_check
      _
    $region31: #{cnn_rnn_forward.1} parent=1 // pred_check_branch
      %32 = sbr.rel (0) target = $region33
    $region32: #{cnn_rnn_forward.1} parent=1 // pred_region
      _
    $region33: #{cnn_rnn_forward.1} parent=1 // pred_fallthru
      _
    // Predicated region
    $region34: #{cnn_rnn_forward.1} parent=1 // pred_check
      _
    $region35: #{cnn_rnn_forward.1} parent=1 // pred_check_branch
      %34 = sbr.rel (0) target = $region37
    $region36: #{cnn_rnn_forward.1} parent=1 // pred_region
      _
    $region37: #{cnn_rnn_forward.1} parent=1 // pred_fallthru
      _
    // Predicated region
    $region38: #{cnn_rnn_forward.1} parent=1 // pred_check
      _
    $region39: #{cnn_rnn_forward.1} parent=1 // pred_check_branch
      %36 = sbr.rel (0) target = $region41
    $region40: #{cnn_rnn_forward.1} parent=1 // pred_region
      _
    $region41: #{cnn_rnn_forward.1} parent=1 // pred_fallthru
      _
    // Predicated region
    $region42: #{cnn_rnn_forward.1} parent=1 // pred_check
      _
    $region43: #{cnn_rnn_forward.1} parent=1 // pred_check_branch
      %38 = sbr.rel (0) target = $region45
    $region44: #{cnn_rnn_forward.1} parent=1 // pred_region
      _
    $region45: #{cnn_rnn_forward.1} parent=1 // pred_fallthru
      _
    %v40 = vld [vmem:[%s0] sm:$0xf]
    %v41 = vld [vmem:[%s0 + $0x4] sm:$0xf]
    %v42 = vld [vmem:[%s0 + $0x8] sm:$0xf]
    %v43 = vld [vmem:[%s0 + $0xc] sm:$0xf]
    %v44 = vld [vmem:[%s0 + $0x10] sm:$0xf]
    %v45 = vld [vmem:[%s0 + $0x14] sm:$0xf]
    %v46 = vld [vmem:[%s0 + $0x18] sm:$0xf]
    %v47 = vld [vmem:[%s0 + $0x1c] sm:$0xf]
    %v48 = vld [vmem:[%s0 + $0x20] sm:$0xf]
    %v49 = vld [vmem:[%s0 + $0x24] sm:$0xf]
    %v50 = vld [vmem:[%s0 + $0x28] sm:$0xf]
    %v51 = vld [vmem:[%s0 + $0x2c] sm:$0xf]
    %v52 = vld [vmem:[%s0 + $0x30] sm:$0xf]
    %v53 = vld [vmem:[%s0 + $0x34] sm:$0xf]
    %v54 = vld [vmem:[%s0 + $0x38] sm:$0xf]
    %v55 = vld [vmem:[%s0 + $0x3c] sm:$0xf]
    %v56 = vld [vmem:[%s0 + $0x40] sm:$0xf]
    %v57 = vld [vmem:[%s0 + $0x44] sm:$0xf]
    %v58 = vld [vmem:[%s0 + $0x48] sm:$0xf]
    %v59 = vld [vmem:[%s0 + $0x4c] sm:$0xf]
    %v60 = vld [vmem:[%s0 + $0x50] sm:$0xf]
    %v61 = vld [vmem:[%s0 + $0x54] sm:$0xf]
    %v62 = vld [vmem:[%s0 + $0x58] sm:$0xf]
    %v63 = vld [vmem:[%s0 + $0x5c] sm:$0xf]
    %v64 = vld [vmem:[%s0 + $0x60] sm:$0xf]
    %v65 = vld [vmem:[%s0 + $0x64] sm:$0xf]
    %v66 = vld [vmem:[%s0 + $0x68] sm:$0xf]
    %v67 = vld [vmem:[%s0 + $0x6c] sm:$0xf]
    %v68 = vld [vmem:[%s0 + $0x70] sm:$0xf]
    %v69 = vld [vmem:[%s0 + $0x74] sm:$0xf]
    %v70 = vld [vmem:[%s0 + $0x78] sm:$0xf]
    %v71 = vld [vmem:[%s0 + $0x7c] sm:$0xf]
    %v72 = vld [vmem:[%s0 + $0x80] sm:$0xf]
    %v73 = vld [vmem:[%s0 + $0x84] sm:$0xf]
    %v74 = vld [vmem:[%s0 + $0x88] sm:$0xf]
    %v75 = vld [vmem:[%s0 + $0x8c] sm:$0xf]
    %v76 = vld [vmem:[%s0 + $0x90] sm:$0xf]
    %v77 = vld [vmem:[%s0 + $0x94] sm:$0xf]
    %v78 = vld [vmem:[%s0 + $0x98] sm:$0xf]
    %v79 = vld [vmem:[%s0 + $0x9c] sm:$0xf]
    %v80 = vld [vmem:[%s0 + $0xa0] sm:$0xf]
    %v81 = vld [vmem:[%s0 + $0xa4] sm:$0xf]
    %v82 = vld [vmem:[%s0 + $0xa8] sm:$0xf]
    %v83 = vld [vmem:[%s0 + $0xac] sm:$0xf]
    %v84 = vld [vmem:[%s0 + $0xb0] sm:$0xf]
    %v85 = vld [vmem:[%s0 + $0xb4] sm:$0xf]
    %v86 = vld [vmem:[%s0 + $0xb8] sm:$0xf]
    %v87 = vld [vmem:[%s0 + $0xbc] sm:$0xf]
    %v88 = vld [vmem:[%s0 + $0xc0] sm:$0xf]
    %v89 = vld [vmem:[%s0 + $0xc4] sm:$0xf]
    %v90 = vld [vmem:[%s0 + $0xc8] sm:$0xf]
    %v91 = vld [vmem:[%s0 + $0xcc] sm:$0xf]
    %v92 = vld [vmem:[%s0 + $0xd0] sm:$0xf]
    %v93 = vld [vmem:[%s0 + $0xd4] sm:$0xf]
    %v94 = vld [vmem:[%s0 + $0xd8] sm:$0xf]
    %v95 = vld [vmem:[%s0 + $0xdc] sm:$0xf]
    %v96 = vld [vmem:[%s0 + $0xe0] sm:$0xf]
    %v97 = vld [vmem:[%s0 + $0xe4] sm:$0xf]
    %v98 = vld [vmem:[%s0 + $0xe8] sm:$0xf]
    %v99 = vld [vmem:[%s0 + $0xec] sm:$0xf]
    %v100 = vld [vmem:[%s0 + $0xf0] sm:$0xf]
    %v101 = vld [vmem:[%s0 + $0xf4] sm:$0xf]
    %v102 = vld [vmem:[%s0 + $0xf8] sm:$0xf]
    %v103 = vld [vmem:[%s0 + $0xfc] sm:$0xf]
    %v104 = vld [vmem:[%s0 + $0x100] sm:$0xf]
    %v105 = vld [vmem:[%s0 + $0x104] sm:$0xf]
    %v106 = vld [vmem:[%s0 + $0x108] sm:$0xf]
    %v107 = vld [vmem:[%s0 + $0x10c] sm:$0xf]
    %v108 = vld [vmem:[%s0 + $0x110] sm:$0xf]
    %v109 = vld [vmem:[%s0 + $0x114] sm:$0xf]
    %v110 = vld [vmem:[%s0 + $0x118] sm:$0xf]
    %v111 = vld [vmem:[%s0 + $0x11c] sm:$0xf]
    %v112 = vld [vmem:[%s0 + $0x120] sm:$0xf]
    %v113 = vld [vmem:[%s0 + $0x124] sm:$0xf]
    %v114 = vld [vmem:[%s0 + $0x128] sm:$0xf]
    %v115 = vld [vmem:[%s0 + $0x12c] sm:$0xf]
    %v116 = vld [vmem:[%s0 + $0x130] sm:$0xf]
    %v117 = vld [vmem:[%s0 + $0x134] sm:$0xf]
    %v118 = vld [vmem:[%s0 + $0x138] sm:$0xf]
    %v119 = vld [vmem:[%s0 + $0x13c] sm:$0xf]
    %v120 = vld [vmem:[%s0 + $0x140] sm:$0xf]
    %v121 = vld [vmem:[%s0 + $0x144] sm:$0xf]
    %v122 = vld [vmem:[%s0 + $0x148] sm:$0xf]
    %v123 = vld [vmem:[%s0 + $0x14c] sm:$0xf]
    %v124 = vld [vmem:[%s0 + $0x150] sm:$0xf]
    %v125 = vld [vmem:[%s0 + $0x154] sm:$0xf]
    %v126 = vld [vmem:[%s0 + $0x158] sm:$0xf]
    %v127 = vld [vmem:[%s0 + $0x15c] sm:$0xf]
    %v128 = vld [vmem:[%s0 + $0x160] sm:$0xf]
    %v129 = vld [vmem:[%s0 + $0x164] sm:$0xf]
    %v130 = vld [vmem:[%s0 + $0x168] sm:$0xf]
    %v131 = vld [vmem:[%s0 + $0x16c] sm:$0xf]
    %v132 = vld [vmem:[%s0 + $0x170] sm:$0xf]
    %v133 = vld [vmem:[%s0 + $0x174] sm:$0xf]
    %v134 = vld [vmem:[%s0 + $0x178] sm:$0xf]
    %v135 = vld [vmem:[%s0 + $0x17c] sm:$0xf]
    %v136 = vld [vmem:[%s0 + $0x180] sm:$0xf]
    %v137 = vld [vmem:[%s0 + $0x184] sm:$0xf]
    %v138 = vld [vmem:[%s0 + $0x188] sm:$0xf]
    %v139 = vld [vmem:[%s0 + $0x18c] sm:$0xf]
    %v140 = vld [vmem:[%s0 + $0x190] sm:$0xf]
    %v141 = vld [vmem:[%s0 + $0x194] sm:$0xf]
    %v142 = vld [vmem:[%s0 + $0x198] sm:$0xf]
    %v143 = vld [vmem:[%s0 + $0x19c] sm:$0xf]
    %v144 = vld [vmem:[%s0 + $0x1a0] sm:$0xf]
    %v145 = vld [vmem:[%s0 + $0x1a4] sm:$0xf]
    %v146 = vld [vmem:[%s0 + $0x1a8] sm:$0xf]
    %v147 = vld [vmem:[%s0 + $0x1ac] sm:$0xf]
    %v148 = vld [vmem:[%s0 + $0x1b0] sm:$0xf]
    %v149 = vld [vmem:[%s0 + $0x1b4] sm:$0xf]
    %v150 = vld [vmem:[%s0 + $0x1b8] sm:$0xf]
    %v151 = vld [vmem:[%s0 + $0x1bc] sm:$0xf]
    %v152 = vld [vmem:[%s0 + $0x1c0] sm:$0xf]
    %v153 = vld [vmem:[%s0 + $0x1c4] sm:$0xf]
    %v154 = vld [vmem:[%s0 + $0x1c8] sm:$0xf]
    %v155 = vld [vmem:[%s0 + $0x1cc] sm:$0xf]
    %v156 = vld [vmem:[%s0 + $0x1d0] sm:$0xf]
    %v157 = vld [vmem:[%s0 + $0x1d4] sm:$0xf]
    %v158 = vld [vmem:[%s0 + $0x1d8] sm:$0xf]
    %v159 = vld [vmem:[%s0 + $0x1dc] sm:$0xf]
    %v160 = vld [vmem:[%s0 + $0x1e0] sm:$0xf]
    %v161 = vld [vmem:[%s0 + $0x1e4] sm:$0xf]
    %v162 = vld [vmem:[%s0 + $0x1e8] sm:$0xf]
    %v163 = vld [vmem:[%s0 + $0x1ec] sm:$0xf]
    %v164 = vld [vmem:[%s0 + $0x1f0] sm:$0xf]
    %v165 = vld [vmem:[%s0 + $0x1f4] sm:$0xf]
    %v166 = vld [vmem:[%s0 + $0x1f8] sm:$0xf]
    %v167 = vld [vmem:[%s0 + $0x1fc] sm:$0xf]
    %v168 = vld [vmem:[%s0 + $0x200] sm:$0xf]
    %v169 = vld [vmem:[%s0 + $0x204] sm:$0xf]
    %v170 = vld [vmem:[%s0 + $0x208] sm:$0xf]
    %v171 = vld [vmem:[%s0 + $0x20c] sm:$0xf]
    %v172 = vld [vmem:[%s0 + $0x210] sm:$0xf]
    %v173 = vld [vmem:[%s0 + $0x214] sm:$0xf]
    %v174 = vld [vmem:[%s0 + $0x218] sm:$0xf]
    %v175 = vld [vmem:[%s0 + $0x21c] sm:$0xf]
    %v176 = vld [vmem:[%s0 + $0x220] sm:$0xf]
    %v177 = vld [vmem:[%s0 + $0x224] sm:$0xf]
    %v178 = vld [vmem:[%s0 + $0x228] sm:$0xf]
    %v179 = vld [vmem:[%s0 + $0x22c] sm:$0xf]
    %v180 = vld [vmem:[%s0 + $0x230] sm:$0xf]
    %v181 = vld [vmem:[%s0 + $0x234] sm:$0xf]
    %v182 = vld [vmem:[%s0 + $0x238] sm:$0xf]
    %v183 = vld [vmem:[%s0 + $0x23c] sm:$0xf]
    %v184 = vld [vmem:[%s0 + $0x240] sm:$0xf]
    %v185 = vld [vmem:[%s0 + $0x244] sm:$0xf]
    %v186 = vld [vmem:[%s0 + $0x248] sm:$0xf]
    %v187 = vld [vmem:[%s0 + $0x24c] sm:$0xf]
    %v188 = vld [vmem:[%s0 + $0x250] sm:$0xf]
    %v189 = vld [vmem:[%s0 + $0x254] sm:$0xf]
    %v190 = vld [vmem:[%s0 + $0x258] sm:$0xf]
    %v191 = vld [vmem:[%s0 + $0x25c] sm:$0xf]
    %v192 = vld [vmem:[%s0 + $0x260] sm:$0xf]
    %v193 = vld [vmem:[%s0 + $0x264] sm:$0xf]
    %v194 = vld [vmem:[%s0 + $0x268] sm:$0xf]
    %v195 = vld [vmem:[%s0 + $0x26c] sm:$0xf]
    %v196 = vld [vmem:[%s0 + $0x270] sm:$0xf]
    %v197 = vld [vmem:[%s0 + $0x274] sm:$0xf]
    %v198 = vld [vmem:[%s0 + $0x278] sm:$0xf]
    %v199 = vld [vmem:[%s0 + $0x27c] sm:$0xf]
    %v200 = vld [vmem:[%s0 + $0x280] sm:$0xf]
    %v201 = vld [vmem:[%s0 + $0x284] sm:$0xf]
    %v202 = vld [vmem:[%s0 + $0x288] sm:$0xf]
    %v203 = vld [vmem:[%s0 + $0x28c] sm:$0xf]
    %v204 = vld [vmem:[%s0 + $0x290] sm:$0xf]
    %v205 = vld [vmem:[%s0 + $0x294] sm:$0xf]
    %v206 = vld [vmem:[%s0 + $0x298] sm:$0xf]
    %v207 = vld [vmem:[%s0 + $0x29c] sm:$0xf]
    %v208 = vld [vmem:[%s0 + $0x2a0] sm:$0xf]
    %v209 = vld [vmem:[%s0 + $0x2a4] sm:$0xf]
    %v210 = vld [vmem:[%s0 + $0x2a8] sm:$0xf]
    %v211 = vld [vmem:[%s0 + $0x2ac] sm:$0xf]
    %v212 = vld [vmem:[%s0 + $0x2b0] sm:$0xf]
    %v213 = vld [vmem:[%s0 + $0x2b4] sm:$0xf]
    %v214 = vld [vmem:[%s0 + $0x2b8] sm:$0xf]
    %v215 = vld [vmem:[%s0 + $0x2bc] sm:$0xf]
    %v216 = vld [vmem:[%s0 + $0x2c0] sm:$0xf]
    %v217 = vld [vmem:[%s0 + $0x2c4] sm:$0xf]
    %v218 = vld [vmem:[%s0 + $0x2c8] sm:$0xf]
    %v219 = vld [vmem:[%s0 + $0x2cc] sm:$0xf]
    %v220 = vld [vmem:[%s0 + $0x2d0] sm:$0xf]
    %v221 = vld [vmem:[%s0 + $0x2d4] sm:$0xf]
    %v222 = vld [vmem:[%s0 + $0x2d8] sm:$0xf]
    %v223 = vld [vmem:[%s0 + $0x2dc] sm:$0xf]
    %v224 = vld [vmem:[%s0 + $0x2e0] sm:$0xf]
    %v225 = vld [vmem:[%s0 + $0x2e4] sm:$0xf]
    %v226 = vld [vmem:[%s0 + $0x2e8] sm:$0xf]
    %v227 = vld [vmem:[%s0 + $0x2ec] sm:$0xf]
    %v228 = vld [vmem:[%s0 + $0x2f0] sm:$0xf]
    %v229 = vld [vmem:[%s0 + $0x2f4] sm:$0xf]
    %v230 = vld [vmem:[%s0 + $0x2f8] sm:$0xf]
    %v231 = vld [vmem:[%s0 + $0x2fc] sm:$0xf]
    %v232 = vld [vmem:[%s0 + $0x300] sm:$0xf]
    %v233 = vld [vmem:[%s0 + $0x304] sm:$0xf]
    %v234 = vld [vmem:[%s0 + $0x308] sm:$0xf]
    %v235 = vld [vmem:[%s0 + $0x30c] sm:$0xf]
    %v236 = vld [vmem:[%s0 + $0x310] sm:$0xf]
    %v237 = vld [vmem:[%s0 + $0x314] sm:$0xf]
    %v238 = vld [vmem:[%s0 + $0x318] sm:$0xf]
    %v239 = vld [vmem:[%s0 + $0x31c] sm:$0xf]
    %v240 = vld [vmem:[%s0 + $0x320] sm:$0xf]
    %v241 = vld [vmem:[%s0 + $0x324] sm:$0xf]
    %v242 = vld [vmem:[%s0 + $0x328] sm:$0xf]
    %v243 = vld [vmem:[%s0 + $0x32c] sm:$0xf]
    %v244 = vld [vmem:[%s0 + $0x330] sm:$0xf]
    %v245 = vld [vmem:[%s0 + $0x334] sm:$0xf]
    %v246 = vld [vmem:[%s0 + $0x338] sm:$0xf]
    %v247 = vld [vmem:[%s0 + $0x33c] sm:$0xf]
    %v248 = vld [vmem:[%s0 + $0x340] sm:$0xf]
    %v249 = vld [vmem:[%s0 + $0x344] sm:$0xf]
    %v250 = vld [vmem:[%s0 + $0x348] sm:$0xf]
    %v251 = vld [vmem:[%s0 + $0x34c] sm:$0xf]
    %v252 = vld [vmem:[%s0 + $0x350] sm:$0xf]
    %v253 = vld [vmem:[%s0 + $0x354] sm:$0xf]
    %v254 = vld [vmem:[%s0 + $0x358] sm:$0xf]
    %v255 = vld [vmem:[%s0 + $0x35c] sm:$0xf]
    %v256 = vld [vmem:[%s0 + $0x360] sm:$0xf]
    %v257 = vld [vmem:[%s0 + $0x364] sm:$0xf]
    %v258 = vld [vmem:[%s0 + $0x368] sm:$0xf]
    %v259 = vld [vmem:[%s0 + $0x36c] sm:$0xf]
    %v260 = vld [vmem:[%s0 + $0x370] sm:$0xf]
    %v261 = vld [vmem:[%s0 + $0x374] sm:$0xf]
    %v262 = vld [vmem:[%s0 + $0x378] sm:$0xf]
    %v263 = vld [vmem:[%s0 + $0x37c] sm:$0xf]
    %v264 = vld [vmem:[%s0 + $0x380] sm:$0xf]
    %v265 = vld [vmem:[%s0 + $0x384] sm:$0xf]
    %v266 = vld [vmem:[%s0 + $0x388] sm:$0xf]
    %v267 = vld [vmem:[%s0 + $0x38c] sm:$0xf]
    %v268 = vld [vmem:[%s0 + $0x390] sm:$0xf]
    %v269 = vld [vmem:[%s0 + $0x394] sm:$0xf]
    %v270 = vld [vmem:[%s0 + $0x398] sm:$0xf]
    %v271 = vld [vmem:[%s0 + $0x39c] sm:$0xf]
    %v272 = vld [vmem:[%s0 + $0x3a0] sm:$0xf]
    %v273 = vld [vmem:[%s0 + $0x3a4] sm:$0xf]
    %v274 = vld [vmem:[%s0 + $0x3a8] sm:$0xf]
    %v275 = vld [vmem:[%s0 + $0x3ac] sm:$0xf]
    %v276 = vld [vmem:[%s0 + $0x3b0] sm:$0xf]
    %v277 = vld [vmem:[%s0 + $0x3b4] sm:$0xf]
    %v278 = vld [vmem:[%s0 + $0x3b8] sm:$0xf]
    %v279 = vld [vmem:[%s0 + $0x3bc] sm:$0xf]
    %v280 = vld [vmem:[%s0 + $0x3c0] sm:$0xf]
    %v281 = vld [vmem:[%s0 + $0x3c4] sm:$0xf]
    %v282 = vld [vmem:[%s0 + $0x3c8] sm:$0xf]
    %v283 = vld [vmem:[%s0 + $0x3cc] sm:$0xf]
    %v284 = vld [vmem:[%s0 + $0x3d0] sm:$0xf]
    %v285 = vld [vmem:[%s0 + $0x3d4] sm:$0xf]
    %v286 = vld [vmem:[%s0 + $0x3d8] sm:$0xf]
    %v287 = vld [vmem:[%s0 + $0x3dc] sm:$0xf]
    %v288 = vld [vmem:[%s0 + $0x3e0] sm:$0xf]
    %v289 = vld [vmem:[%s0 + $0x3e4] sm:$0xf]
    %v290 = vld [vmem:[%s0 + $0x3e8] sm:$0xf]
    %v291 = vld [vmem:[%s0 + $0x3ec] sm:$0xf]
    %v292 = vld [vmem:[%s0 + $0x3f0] sm:$0xf]
    %v293 = vld [vmem:[%s0 + $0x3f4] sm:$0xf]
    %v294 = vld [vmem:[%s0 + $0x3f8] sm:$0xf]
    %v295 = vld [vmem:[%s0 + $0x3fc] sm:$0xf]
    %v296 = vld [vmem:[%s0 + $0x400] sm:$0xf]
    %v297 = vld [vmem:[%s0 + $0x404] sm:$0xf]
    %v298 = vld [vmem:[%s0 + $0x408] sm:$0xf]
    %v299 = vld [vmem:[%s0 + $0x40c] sm:$0xf]
    %v300 = vld [vmem:[%s0 + $0x410] sm:$0xf]
    %v301 = vld [vmem:[%s0 + $0x414] sm:$0xf]
    %v302 = vld [vmem:[%s0 + $0x418] sm:$0xf]
    %v303 = vld [vmem:[%s0 + $0x41c] sm:$0xf]
    %v304 = vld [vmem:[%s0 + $0x420] sm:$0xf]
    %v305 = vld [vmem:[%s0 + $0x424] sm:$0xf]
    %v306 = vld [vmem:[%s0 + $0x428] sm:$0xf]
    %v307 = vld [vmem:[%s0 + $0x42c] sm:$0xf]
    %v308 = vld [vmem:[%s0 + $0x430] sm:$0xf]
    %v309 = vld [vmem:[%s0 + $0x434] sm:$0xf]
    %v310 = vld [vmem:[%s0 + $0x438] sm:$0xf]
    %v311 = vld [vmem:[%s0 + $0x43c] sm:$0xf]
    %v312 = vld [vmem:[%s0 + $0x440] sm:$0xf]
    %v313 = vld [vmem:[%s0 + $0x444] sm:$0xf]
    %v314 = vld [vmem:[%s0 + $0x448] sm:$0xf]
    %v315 = vld [vmem:[%s0 + $0x44c] sm:$0xf]
    %v316 = vld [vmem:[%s0 + $0x450] sm:$0xf]
    %v317 = vld [vmem:[%s0 + $0x454] sm:$0xf]
    %v318 = vld [vmem:[%s0 + $0x458] sm:$0xf]
    %v319 = vld [vmem:[%s0 + $0x45c] sm:$0xf]
    %v320 = vld [vmem:[%s0 + $0x460] sm:$0xf]
    %v321 = vld [vmem:[%s0 + $0x464] sm:$0xf]
    %v322 = vld [vmem:[%s0 + $0x468] sm:$0xf]
    %v323 = vld [vmem:[%s0 + $0x46c] sm:$0xf]
    %v324 = vld [vmem:[%s0 + $0x470] sm:$0xf]
    %v325 = vld [vmem:[%s0 + $0x474] sm:$0xf]
    %v326 = vld [vmem:[%s0 + $0x478] sm:$0xf]
    %v327 = vld [vmem:[%s0 + $0x47c] sm:$0xf]
    %v328 = vld [vmem:[%s2] sm:$0xf]
    %v329 = vld [vmem:[%s2 + $0x4] sm:$0xf]
    %v330 = vld [vmem:[%s2 + $0x8] sm:$0xf]
    %v331 = vld [vmem:[%s2 + $0xc] sm:$0xf]
    %v332 = vld [vmem:[%s2 + $0x10] sm:$0xf]
    %v333 = vld [vmem:[%s2 + $0x14] sm:$0xf]
    %v334 = vld [vmem:[%s2 + $0x18] sm:$0xf]
    %v335 = vld [vmem:[%s2 + $0x1c] sm:$0xf]
    %v336 = vld [vmem:[%s10] sm:$0x1]
    %v337 = vlaneseq
    %v338 = vshrl.u32 %v337, 7
    %v339 = vsub.s32 0, %v338
    %v340 = vrot.slane %v336, %v339
    %v629 = vunpack.c.l.b16 %v40
    %v630 = vunpack.c.l.b16 %v41
    %v631 = vunpack.c.l.b16 %v42
    %v632 = vunpack.c.l.b16 %v43
    %v633 = vunpack.c.l.b16 %v44
    %v634 = vunpack.c.l.b16 %v45
    %v635 = vunpack.c.l.b16 %v46
    %v636 = vunpack.c.l.b16 %v47
    %v637 = vunpack.c.l.b16 %v48
    %v638 = vunpack.c.l.b16 %v49
    %v639 = vunpack.c.l.b16 %v50
    %v640 = vunpack.c.l.b16 %v51
    %v641 = vunpack.c.l.b16 %v52
    %v642 = vunpack.c.l.b16 %v53
    %v643 = vunpack.c.l.b16 %v54
    %v644 = vunpack.c.l.b16 %v55
    %v645 = vunpack.c.l.b16 %v56
    %v646 = vunpack.c.l.b16 %v57
    %v647 = vunpack.c.l.b16 %v58
    %v648 = vunpack.c.l.b16 %v59
    %v649 = vunpack.c.l.b16 %v60
    %v650 = vunpack.c.l.b16 %v61
    %v651 = vunpack.c.l.b16 %v62
    %v652 = vunpack.c.l.b16 %v63
    %v653 = vunpack.c.l.b16 %v64
    %v654 = vunpack.c.l.b16 %v65
    %v655 = vunpack.c.l.b16 %v66
    %v656 = vunpack.c.l.b16 %v67
    %v657 = vunpack.c.l.b16 %v68
    %v658 = vunpack.c.l.b16 %v69
    %v659 = vunpack.c.l.b16 %v70
    %v660 = vunpack.c.l.b16 %v71
    %v661 = vunpack.c.l.b16 %v72
    %v662 = vunpack.c.l.b16 %v73
    %v663 = vunpack.c.l.b16 %v74
    %v664 = vunpack.c.l.b16 %v75
    %v665 = vunpack.c.l.b16 %v76
    %v666 = vunpack.c.l.b16 %v77
    %v667 = vunpack.c.l.b16 %v78
    %v668 = vunpack.c.l.b16 %v79
    %v669 = vunpack.c.l.b16 %v80
    %v670 = vunpack.c.l.b16 %v81
    %v671 = vunpack.c.l.b16 %v82
    %v672 = vunpack.c.l.b16 %v83
    %v673 = vunpack.c.l.b16 %v84
    %v674 = vunpack.c.l.b16 %v85
    %v675 = vunpack.c.l.b16 %v86
    %v676 = vunpack.c.l.b16 %v87
    %v677 = vunpack.c.l.b16 %v88
    %v678 = vunpack.c.l.b16 %v89
    %v679 = vunpack.c.l.b16 %v90
    %v680 = vunpack.c.l.b16 %v91
    %v681 = vunpack.c.l.b16 %v92
    %v682 = vunpack.c.l.b16 %v93
    %v683 = vunpack.c.l.b16 %v94
    %v684 = vunpack.c.l.b16 %v95
    %v685 = vunpack.c.l.b16 %v96
    %v686 = vunpack.c.l.b16 %v97
    %v687 = vunpack.c.l.b16 %v98
    %v688 = vunpack.c.l.b16 %v99
    %v689 = vunpack.c.l.b16 %v100
    %v690 = vunpack.c.l.b16 %v101
    %v691 = vunpack.c.l.b16 %v102
    %v692 = vunpack.c.l.b16 %v103
    %v693 = vunpack.c.l.b16 %v104
    %v694 = vunpack.c.l.b16 %v105
    %v695 = vunpack.c.l.b16 %v106
    %v696 = vunpack.c.l.b16 %v107
    %v697 = vunpack.c.l.b16 %v108
    %v698 = vunpack.c.l.b16 %v109
    %v699 = vunpack.c.l.b16 %v110
    %v700 = vunpack.c.l.b16 %v111
    %v701 = vunpack.c.l.b16 %v112
    %v702 = vunpack.c.l.b16 %v113
    %v703 = vunpack.c.l.b16 %v114
    %v704 = vunpack.c.l.b16 %v115
    %v705 = vunpack.c.l.b16 %v116
    %v706 = vunpack.c.l.b16 %v117
    %v707 = vunpack.c.l.b16 %v118
    %v708 = vunpack.c.l.b16 %v119
    %v709 = vunpack.c.l.b16 %v120
    %v710 = vunpack.c.l.b16 %v121
    %v711 = vunpack.c.l.b16 %v122
    %v712 = vunpack.c.l.b16 %v123
    %v713 = vunpack.c.l.b16 %v124
    %v714 = vunpack.c.l.b16 %v125
    %v715 = vunpack.c.l.b16 %v126
    %v716 = vunpack.c.l.b16 %v127
    %v717 = vunpack.c.l.b16 %v128
    %v718 = vunpack.c.l.b16 %v129
    %v719 = vunpack.c.l.b16 %v130
    %v720 = vunpack.c.l.b16 %v131
    %v721 = vunpack.c.l.b16 %v132
    %v722 = vunpack.c.l.b16 %v133
    %v723 = vunpack.c.l.b16 %v134
    %v724 = vunpack.c.l.b16 %v135
    %v725 = vunpack.c.l.b16 %v136
    %v726 = vunpack.c.l.b16 %v137
    %v727 = vunpack.c.l.b16 %v138
    %v728 = vunpack.c.l.b16 %v139
    %v729 = vunpack.c.l.b16 %v140
    %v730 = vunpack.c.l.b16 %v141
    %v731 = vunpack.c.l.b16 %v142
    %v732 = vunpack.c.l.b16 %v143
    %v733 = vunpack.c.l.b16 %v144
    %v734 = vunpack.c.l.b16 %v145
    %v735 = vunpack.c.l.b16 %v146
    %v736 = vunpack.c.l.b16 %v147
    %v737 = vunpack.c.l.b16 %v148
    %v738 = vunpack.c.l.b16 %v149
    %v739 = vunpack.c.l.b16 %v150
    %v740 = vunpack.c.l.b16 %v151
    %v741 = vunpack.c.l.b16 %v152
    %v742 = vunpack.c.l.b16 %v153
    %v743 = vunpack.c.l.b16 %v154
    %v744 = vunpack.c.l.b16 %v155
    %v745 = vunpack.c.l.b16 %v156
    %v746 = vunpack.c.l.b16 %v157
    %v747 = vunpack.c.l.b16 %v158
    %v748 = vunpack.c.l.b16 %v159
    %v749 = vunpack.c.l.b16 %v160
    %v750 = vunpack.c.l.b16 %v161
    %v751 = vunpack.c.l.b16 %v162
    %v752 = vunpack.c.l.b16 %v163
    %v753 = vunpack.c.l.b16 %v164
    %v754 = vunpack.c.l.b16 %v165
    %v755 = vunpack.c.l.b16 %v166
    %v756 = vunpack.c.l.b16 %v167
    %v757 = vunpack.c.l.b16 %v168
    %v758 = vunpack.c.l.b16 %v169
    %v759 = vunpack.c.l.b16 %v170
    %v760 = vunpack.c.l.b16 %v171
    %v761 = vunpack.c.l.b16 %v172
    %v762 = vunpack.c.l.b16 %v173
    %v763 = vunpack.c.l.b16 %v174
    %v764 = vunpack.c.l.b16 %v175
    %v765 = vunpack.c.l.b16 %v176
    %v766 = vunpack.c.l.b16 %v177
    %v767 = vunpack.c.l.b16 %v178
    %v768 = vunpack.c.l.b16 %v179
    %v769 = vunpack.c.l.b16 %v180
    %v770 = vunpack.c.l.b16 %v181
    %v771 = vunpack.c.l.b16 %v182
    %v772 = vunpack.c.l.b16 %v183
    %v773 = vunpack.c.l.b16 %v184
    %v774 = vunpack.c.l.b16 %v185
    %v775 = vunpack.c.l.b16 %v186
    %v776 = vunpack.c.l.b16 %v187
    %v777 = vunpack.c.l.b16 %v188
    %v778 = vunpack.c.l.b16 %v189
    %v779 = vunpack.c.l.b16 %v190
    %v780 = vunpack.c.l.b16 %v191
    %v781 = vunpack.c.l.b16 %v192
    %v782 = vunpack.c.l.b16 %v193
    %v783 = vunpack.c.l.b16 %v194
    %v784 = vunpack.c.l.b16 %v195
    %v785 = vunpack.c.l.b16 %v196
    %v786 = vunpack.c.l.b16 %v197
    %v787 = vunpack.c.l.b16 %v198
    %v788 = vunpack.c.l.b16 %v199
    %v789 = vunpack.c.l.b16 %v200
    %v790 = vunpack.c.l.b16 %v201
    %v791 = vunpack.c.l.b16 %v202
    %v792 = vunpack.c.l.b16 %v203
    %v793 = vunpack.c.l.b16 %v204
    %v794 = vunpack.c.l.b16 %v205
    %v795 = vunpack.c.l.b16 %v206
    %v796 = vunpack.c.l.b16 %v207
    %v797 = vunpack.c.l.b16 %v208
    %v798 = vunpack.c.l.b16 %v209
    %v799 = vunpack.c.l.b16 %v210
    %v800 = vunpack.c.l.b16 %v211
    %v801 = vunpack.c.l.b16 %v212
    %v802 = vunpack.c.l.b16 %v213
    %v803 = vunpack.c.l.b16 %v214
    %v804 = vunpack.c.l.b16 %v215
    %v805 = vunpack.c.l.b16 %v216
    %v806 = vunpack.c.l.b16 %v217
    %v807 = vunpack.c.l.b16 %v218
    %v808 = vunpack.c.l.b16 %v219
    %v809 = vunpack.c.l.b16 %v220
    %v810 = vunpack.c.l.b16 %v221
    %v811 = vunpack.c.l.b16 %v222
    %v812 = vunpack.c.l.b16 %v223
    %v813 = vunpack.c.l.b16 %v224
    %v814 = vunpack.c.l.b16 %v225
    %v815 = vunpack.c.l.b16 %v226
    %v816 = vunpack.c.l.b16 %v227
    %v817 = vunpack.c.l.b16 %v228
    %v818 = vunpack.c.l.b16 %v229
    %v819 = vunpack.c.l.b16 %v230
    %v820 = vunpack.c.l.b16 %v231
    %v821 = vunpack.c.l.b16 %v232
    %v822 = vunpack.c.l.b16 %v233
    %v823 = vunpack.c.l.b16 %v234
    %v824 = vunpack.c.l.b16 %v235
    %v825 = vunpack.c.l.b16 %v236
    %v826 = vunpack.c.l.b16 %v237
    %v827 = vunpack.c.l.b16 %v238
    %v828 = vunpack.c.l.b16 %v239
    %v829 = vunpack.c.l.b16 %v240
    %v830 = vunpack.c.l.b16 %v241
    %v831 = vunpack.c.l.b16 %v242
    %v832 = vunpack.c.l.b16 %v243
    %v833 = vunpack.c.l.b16 %v244
    %v834 = vunpack.c.l.b16 %v245
    %v835 = vunpack.c.l.b16 %v246
    %v836 = vunpack.c.l.b16 %v247
    %v837 = vunpack.c.l.b16 %v248
    %v838 = vunpack.c.l.b16 %v249
    %v839 = vunpack.c.l.b16 %v250
    %v840 = vunpack.c.l.b16 %v251
    %v841 = vunpack.c.l.b16 %v252
    %v842 = vunpack.c.l.b16 %v253
    %v843 = vunpack.c.l.b16 %v254
    %v844 = vunpack.c.l.b16 %v255
    %v845 = vunpack.c.l.b16 %v256
    %v846 = vunpack.c.l.b16 %v257
    %v847 = vunpack.c.l.b16 %v258
    %v848 = vunpack.c.l.b16 %v259
    %v849 = vunpack.c.l.b16 %v260
    %v850 = vunpack.c.l.b16 %v261
    %v851 = vunpack.c.l.b16 %v262
    %v852 = vunpack.c.l.b16 %v263
    %v853 = vunpack.c.l.b16 %v264
    %v854 = vunpack.c.l.b16 %v265
    %v855 = vunpack.c.l.b16 %v266
    %v856 = vunpack.c.l.b16 %v267
    %v857 = vunpack.c.l.b16 %v268
    %v858 = vunpack.c.l.b16 %v269
    %v859 = vunpack.c.l.b16 %v270
    %v860 = vunpack.c.l.b16 %v271
    %v861 = vunpack.c.l.b16 %v272
    %v862 = vunpack.c.l.b16 %v273
    %v863 = vunpack.c.l.b16 %v274
    %v864 = vunpack.c.l.b16 %v275
    %v865 = vunpack.c.l.b16 %v276
    %v866 = vunpack.c.l.b16 %v277
    %v867 = vunpack.c.l.b16 %v278
    %v868 = vunpack.c.l.b16 %v279
    %v869 = vunpack.c.l.b16 %v280
    %v870 = vunpack.c.l.b16 %v281
    %v871 = vunpack.c.l.b16 %v282
    %v872 = vunpack.c.l.b16 %v283
    %v873 = vunpack.c.l.b16 %v284
    %v874 = vunpack.c.l.b16 %v285
    %v875 = vunpack.c.l.b16 %v286
    %v876 = vunpack.c.l.b16 %v287
    %v877 = vunpack.c.l.b16 %v288
    %v878 = vunpack.c.l.b16 %v289
    %v879 = vunpack.c.l.b16 %v290
    %v880 = vunpack.c.l.b16 %v291
    %v881 = vunpack.c.l.b16 %v292
    %v882 = vunpack.c.l.b16 %v293
    %v883 = vunpack.c.l.b16 %v294
    %v884 = vunpack.c.l.b16 %v295
    %v885 = vunpack.c.l.b16 %v296
    %v886 = vunpack.c.l.b16 %v297
    %v887 = vunpack.c.l.b16 %v298
    %v888 = vunpack.c.l.b16 %v299
    %v889 = vunpack.c.l.b16 %v300
    %v890 = vunpack.c.l.b16 %v301
    %v891 = vunpack.c.l.b16 %v302
    %v892 = vunpack.c.l.b16 %v303
    %v893 = vunpack.c.l.b16 %v304
    %v894 = vunpack.c.l.b16 %v305
    %v895 = vunpack.c.l.b16 %v306
    %v896 = vunpack.c.l.b16 %v307
    %v897 = vunpack.c.l.b16 %v308
    %v898 = vunpack.c.l.b16 %v309
    %v899 = vunpack.c.l.b16 %v310
    %v900 = vunpack.c.l.b16 %v311
    %v901 = vunpack.c.l.b16 %v312
    %v902 = vunpack.c.l.b16 %v313
    %v903 = vunpack.c.l.b16 %v314
    %v904 = vunpack.c.l.b16 %v315
    %v905 = vunpack.c.l.b16 %v316
    %v906 = vunpack.c.l.b16 %v317
    %v907 = vunpack.c.l.b16 %v318
    %v908 = vunpack.c.l.b16 %v319
    %v909 = vunpack.c.l.b16 %v320
    %v910 = vunpack.c.l.b16 %v321
    %v911 = vunpack.c.l.b16 %v322
    %v912 = vunpack.c.l.b16 %v323
    %v913 = vunpack.c.l.b16 %v324
    %v914 = vunpack.c.l.b16 %v325
    %v915 = vunpack.c.l.b16 %v326
    %v916 = vunpack.c.l.b16 %v327
    %v917 = vpack.c.b16 %v630, %v629
    %v918 = vpack.c.b16 %v632, %v631
    %v919 = vpack.c.b16 %v634, %v633
    %v920 = vpack.c.b16 %v636, %v635
    %v921 = vpack.c.b16 %v638, %v637
    %v922 = vpack.c.b16 %v640, %v639
    %v923 = vpack.c.b16 %v642, %v641
    %v924 = vpack.c.b16 %v644, %v643
    %v925 = vpack.c.b16 %v646, %v645
    %v926 = vpack.c.b16 %v648, %v647
    %v927 = vpack.c.b16 %v650, %v649
    %v928 = vpack.c.b16 %v652, %v651
    %v929 = vpack.c.b16 %v654, %v653
    %v930 = vpack.c.b16 %v656, %v655
    %v931 = vpack.c.b16 %v658, %v657
    %v932 = vpack.c.b16 %v660, %v659
    %v933 = vpack.c.b16 %v662, %v661
    %v934 = vpack.c.b16 %v664, %v663
    %v935 = vpack.c.b16 %v666, %v665
    %v936 = vpack.c.b16 %v668, %v667
    %v937 = vpack.c.b16 %v670, %v669
    %v938 = vpack.c.b16 %v672, %v671
    %v939 = vpack.c.b16 %v674, %v673
    %v940 = vpack.c.b16 %v676, %v675
    %v941 = vpack.c.b16 %v678, %v677
    %v942 = vpack.c.b16 %v680, %v679
    %v943 = vpack.c.b16 %v682, %v681
    %v944 = vpack.c.b16 %v684, %v683
    %v945 = vpack.c.b16 %v686, %v685
    %v946 = vpack.c.b16 %v688, %v687
    %v947 = vpack.c.b16 %v690, %v689
    %v948 = vpack.c.b16 %v692, %v691
    %v949 = vpack.c.b16 %v694, %v693
    %v950 = vpack.c.b16 %v696, %v695
    %v951 = vpack.c.b16 %v698, %v697
    %v952 = vpack.c.b16 %v700, %v699
    %v953 = vpack.c.b16 %v702, %v701
    %v954 = vpack.c.b16 %v704, %v703
    %v955 = vpack.c.b16 %v706, %v705
    %v956 = vpack.c.b16 %v708, %v707
    %v957 = vpack.c.b16 %v710, %v709
    %v958 = vpack.c.b16 %v712, %v711
    %v959 = vpack.c.b16 %v714, %v713
    %v960 = vpack.c.b16 %v716, %v715
    %v961 = vpack.c.b16 %v718, %v717
    %v962 = vpack.c.b16 %v720, %v719
    %v963 = vpack.c.b16 %v722, %v721
    %v964 = vpack.c.b16 %v724, %v723
    %v965 = vpack.c.b16 %v726, %v725
    %v966 = vpack.c.b16 %v728, %v727
    %v967 = vpack.c.b16 %v730, %v729
    %v968 = vpack.c.b16 %v732, %v731
    %v969 = vpack.c.b16 %v734, %v733
    %v970 = vpack.c.b16 %v736, %v735
    %v971 = vpack.c.b16 %v738, %v737
    %v972 = vpack.c.b16 %v740, %v739
    %v973 = vpack.c.b16 %v742, %v741
    %v974 = vpack.c.b16 %v744, %v743
    %v975 = vpack.c.b16 %v746, %v745
    %v976 = vpack.c.b16 %v748, %v747
    %v977 = vpack.c.b16 %v750, %v749
    %v978 = vpack.c.b16 %v752, %v751
    %v979 = vpack.c.b16 %v754, %v753
    %v980 = vpack.c.b16 %v756, %v755
    %v981 = vpack.c.b16 %v758, %v757
    %v982 = vpack.c.b16 %v760, %v759
    %v983 = vpack.c.b16 %v762, %v761
    %v984 = vpack.c.b16 %v764, %v763
    %v985 = vpack.c.b16 %v766, %v765
    %v986 = vpack.c.b16 %v768, %v767
    %v987 = vpack.c.b16 %v770, %v769
    %v988 = vpack.c.b16 %v772, %v771
    %v989 = vpack.c.b16 %v774, %v773
    %v990 = vpack.c.b16 %v776, %v775
    %v991 = vpack.c.b16 %v778, %v777
    %v992 = vpack.c.b16 %v780, %v779
    %v993 = vpack.c.b16 %v782, %v781
    %v994 = vpack.c.b16 %v784, %v783
    %v995 = vpack.c.b16 %v786, %v785
    %v996 = vpack.c.b16 %v788, %v787
    %v997 = vpack.c.b16 %v790, %v789
    %v998 = vpack.c.b16 %v792, %v791
    %v999 = vpack.c.b16 %v794, %v793
    %v1000 = vpack.c.b16 %v796, %v795
    %v1001 = vpack.c.b16 %v798, %v797
    %v1002 = vpack.c.b16 %v800, %v799
    %v1003 = vpack.c.b16 %v802, %v801
    %v1004 = vpack.c.b16 %v804, %v803
    %v1005 = vpack.c.b16 %v806, %v805
    %v1006 = vpack.c.b16 %v808, %v807
    %v1007 = vpack.c.b16 %v810, %v809
    %v1008 = vpack.c.b16 %v812, %v811
    %v1009 = vpack.c.b16 %v814, %v813
    %v1010 = vpack.c.b16 %v816, %v815
    %v1011 = vpack.c.b16 %v818, %v817
    %v1012 = vpack.c.b16 %v820, %v819
    %v1013 = vpack.c.b16 %v822, %v821
    %v1014 = vpack.c.b16 %v824, %v823
    %v1015 = vpack.c.b16 %v826, %v825
    %v1016 = vpack.c.b16 %v828, %v827
    %v1017 = vpack.c.b16 %v830, %v829
    %v1018 = vpack.c.b16 %v832, %v831
    %v1019 = vpack.c.b16 %v834, %v833
    %v1020 = vpack.c.b16 %v836, %v835
    %v1021 = vpack.c.b16 %v838, %v837
    %v1022 = vpack.c.b16 %v840, %v839
    %v1023 = vpack.c.b16 %v842, %v841
    %v1024 = vpack.c.b16 %v844, %v843
    %v1025 = vpack.c.b16 %v846, %v845
    %v1026 = vpack.c.b16 %v848, %v847
    %v1027 = vpack.c.b16 %v850, %v849
    %v1028 = vpack.c.b16 %v852, %v851
    %v1029 = vpack.c.b16 %v854, %v853
    %v1030 = vpack.c.b16 %v856, %v855
    %v1031 = vpack.c.b16 %v858, %v857
    %v1032 = vpack.c.b16 %v860, %v859
    %v1033 = vpack.c.b16 %v862, %v861
    %v1034 = vpack.c.b16 %v864, %v863
    %v1035 = vpack.c.b16 %v866, %v865
    %v1036 = vpack.c.b16 %v868, %v867
    %v1037 = vpack.c.b16 %v870, %v869
    %v1038 = vpack.c.b16 %v872, %v871
    %v1039 = vpack.c.b16 %v874, %v873
    %v1040 = vpack.c.b16 %v876, %v875
    %v1041 = vpack.c.b16 %v878, %v877
    %v1042 = vpack.c.b16 %v880, %v879
    %v1043 = vpack.c.b16 %v882, %v881
    %v1044 = vpack.c.b16 %v884, %v883
    %v1045 = vpack.c.b16 %v886, %v885
    %v1046 = vpack.c.b16 %v888, %v887
    %v1047 = vpack.c.b16 %v890, %v889
    %v1048 = vpack.c.b16 %v892, %v891
    %v1049 = vpack.c.b16 %v894, %v893
    %v1050 = vpack.c.b16 %v896, %v895
    %v1051 = vpack.c.b16 %v898, %v897
    %v1052 = vpack.c.b16 %v900, %v899
    %v1053 = vpack.c.b16 %v902, %v901
    %v1054 = vpack.c.b16 %v904, %v903
    %v1055 = vpack.c.b16 %v906, %v905
    %v1056 = vpack.c.b16 %v908, %v907
    %v1057 = vpack.c.b16 %v910, %v909
    %v1058 = vpack.c.b16 %v912, %v911
    %v1059 = vpack.c.b16 %v914, %v913
    %v1060 = vpack.c.b16 %v916, %v915
    %v1069 = vunpack.c.l.b16 %v328
    %v1070 = vunpack.c.l.b16 %v329
    %v1071 = vunpack.c.l.b16 %v330
    %v1072 = vunpack.c.l.b16 %v331
    %v1073 = vunpack.c.l.b16 %v332
    %v1074 = vunpack.c.l.b16 %v333
    %v1075 = vunpack.c.l.b16 %v334
    %v1076 = vunpack.c.l.b16 %v335
    %v1077 = vpack.c.b16 %v1070, %v1069
    %v1078 = vpack.c.b16 %v1072, %v1071
    %v1079 = vpack.c.b16 %v1074, %v1073
    %v1080 = vpack.c.b16 %v1076, %v1075
    %vm1085 = vcmask 523264
    %v1087 = vsel %vm1085, %v917, 0
    %v1090 = vsel %vm1085, %v918, 0
    %v1093 = vsel %vm1085, %v919, 0
    %v1096 = vsel %vm1085, %v920, 0
    %v1099 = vsel %vm1085, %v921, 0
    %v1102 = vsel %vm1085, %v922, 0
    %v1105 = vsel %vm1085, %v923, 0
    %v1108 = vsel %vm1085, %v924, 0
    %v1111 = vsel %vm1085, %v925, 0
    %v1114 = vsel %vm1085, %v926, 0
    %v1117 = vsel %vm1085, %v927, 0
    %v1120 = vsel %vm1085, %v928, 0
    %v1123 = vsel %vm1085, %v929, 0
    %v1126 = vsel %vm1085, %v930, 0
    %v1129 = vsel %vm1085, %v931, 0
    %v1132 = vsel %vm1085, %v932, 0
    %v1135 = vsel %vm1085, %v933, 0
    %v1138 = vsel %vm1085, %v934, 0
    %v1141 = vsel %vm1085, %v935, 0
    %v1144 = vsel %vm1085, %v936, 0
    %v1147 = vsel %vm1085, %v937, 0
    %v1150 = vsel %vm1085, %v938, 0
    %v1153 = vsel %vm1085, %v939, 0
    %v1156 = vsel %vm1085, %v940, 0
    %v1159 = vsel %vm1085, %v941, 0
    %v1162 = vsel %vm1085, %v942, 0
    %v1165 = vsel %vm1085, %v943, 0
    %v1168 = vsel %vm1085, %v944, 0
    %v1171 = vsel %vm1085, %v945, 0
    %v1174 = vsel %vm1085, %v946, 0
    %v1177 = vsel %vm1085, %v947, 0
    %v1180 = vsel %vm1085, %v948, 0
    %v1183 = vsel %vm1085, %v949, 0
    %v1186 = vsel %vm1085, %v950, 0
    %v1189 = vsel %vm1085, %v951, 0
    %v1192 = vsel %vm1085, %v952, 0
    %v1195 = vsel %vm1085, %v953, 0
    %v1198 = vsel %vm1085, %v954, 0
    %v1201 = vsel %vm1085, %v955, 0
    %v1204 = vsel %vm1085, %v956, 0
    %v1207 = vsel %vm1085, %v957, 0
    %v1210 = vsel %vm1085, %v958, 0
    %v1213 = vsel %vm1085, %v959, 0
    %v1216 = vsel %vm1085, %v960, 0
    %v1219 = vsel %vm1085, %v961, 0
    %v1222 = vsel %vm1085, %v962, 0
    %v1225 = vsel %vm1085, %v963, 0
    %v1228 = vsel %vm1085, %v964, 0
    %v1231 = vsel %vm1085, %v965, 0
    %v1234 = vsel %vm1085, %v966, 0
    %v1237 = vsel %vm1085, %v967, 0
    %v1240 = vsel %vm1085, %v968, 0
    %v1243 = vsel %vm1085, %v969, 0
    %v1246 = vsel %vm1085, %v970, 0
    %v1249 = vsel %vm1085, %v971, 0
    %v1252 = vsel %vm1085, %v972, 0
    %v1255 = vsel %vm1085, %v973, 0
    %v1258 = vsel %vm1085, %v974, 0
    %v1261 = vsel %vm1085, %v975, 0
    %v1264 = vsel %vm1085, %v976, 0
    %v1267 = vsel %vm1085, %v977, 0
    %v1270 = vsel %vm1085, %v978, 0
    %v1273 = vsel %vm1085, %v979, 0
    %v1276 = vsel %vm1085, %v980, 0
    %v1279 = vsel %vm1085, %v981, 0
    %v1282 = vsel %vm1085, %v982, 0
    %v1285 = vsel %vm1085, %v983, 0
    %v1288 = vsel %vm1085, %v984, 0
    %v1291 = vsel %vm1085, %v985, 0
    %v1294 = vsel %vm1085, %v986, 0
    %v1297 = vsel %vm1085, %v987, 0
    %v1300 = vsel %vm1085, %v988, 0
    %v1303 = vsel %vm1085, %v989, 0
    %v1306 = vsel %vm1085, %v990, 0
    %v1309 = vsel %vm1085, %v991, 0
    %v1312 = vsel %vm1085, %v992, 0
    %v1315 = vsel %vm1085, %v993, 0
    %v1318 = vsel %vm1085, %v994, 0
    %v1321 = vsel %vm1085, %v995, 0
    %v1324 = vsel %vm1085, %v996, 0
    %v1327 = vsel %vm1085, %v997, 0
    %v1330 = vsel %vm1085, %v998, 0
    %v1333 = vsel %vm1085, %v999, 0
    %v1336 = vsel %vm1085, %v1000, 0
    %v1339 = vsel %vm1085, %v1001, 0
    %v1342 = vsel %vm1085, %v1002, 0
    %v1345 = vsel %vm1085, %v1003, 0
    %v1348 = vsel %vm1085, %v1004, 0
    %v1351 = vsel %vm1085, %v1005, 0
    %v1354 = vsel %vm1085, %v1006, 0
    %v1357 = vsel %vm1085, %v1007, 0
    %v1360 = vsel %vm1085, %v1008, 0
    %v1363 = vsel %vm1085, %v1009, 0
    %v1366 = vsel %vm1085, %v1010, 0
    %v1369 = vsel %vm1085, %v1011, 0
    %v1372 = vsel %vm1085, %v1012, 0
    %v1375 = vsel %vm1085, %v1013, 0
    %v1378 = vsel %vm1085, %v1014, 0
    %v1381 = vsel %vm1085, %v1015, 0
    %v1384 = vsel %vm1085, %v1016, 0
    %v1387 = vsel %vm1085, %v1017, 0
    %v1390 = vsel %vm1085, %v1018, 0
    %v1393 = vsel %vm1085, %v1019, 0
    %v1396 = vsel %vm1085, %v1020, 0
    %v1399 = vsel %vm1085, %v1021, 0
    %v1402 = vsel %vm1085, %v1022, 0
    %v1405 = vsel %vm1085, %v1023, 0
    %v1408 = vsel %vm1085, %v1024, 0
    %v1411 = vsel %vm1085, %v1025, 0
    %v1414 = vsel %vm1085, %v1026, 0
    %v1417 = vsel %vm1085, %v1027, 0
    %v1420 = vsel %vm1085, %v1028, 0
    %v1423 = vsel %vm1085, %v1029, 0
    %v1426 = vsel %vm1085, %v1030, 0
    %v1429 = vsel %vm1085, %v1031, 0
    %v1432 = vsel %vm1085, %v1032, 0
    %v1435 = vsel %vm1085, %v1033, 0
    %v1438 = vsel %vm1085, %v1034, 0
    %v1441 = vsel %vm1085, %v1035, 0
    %v1444 = vsel %vm1085, %v1036, 0
    %v1447 = vsel %vm1085, %v1037, 0
    %v1450 = vsel %vm1085, %v1038, 0
    %v1453 = vsel %vm1085, %v1039, 0
    %v1456 = vsel %vm1085, %v1040, 0
    %v1459 = vsel %vm1085, %v1041, 0
    %v1462 = vsel %vm1085, %v1042, 0
    %v1465 = vsel %vm1085, %v1043, 0
    %v1468 = vsel %vm1085, %v1044, 0
    %v1471 = vsel %vm1085, %v1045, 0
    %v1474 = vsel %vm1085, %v1046, 0
    %v1477 = vsel %vm1085, %v1047, 0
    %v1480 = vsel %vm1085, %v1048, 0
    %v1483 = vsel %vm1085, %v1049, 0
    %v1486 = vsel %vm1085, %v1050, 0
    %v1489 = vsel %vm1085, %v1051, 0
    %v1492 = vsel %vm1085, %v1052, 0
    %v1495 = vsel %vm1085, %v1053, 0
    %v1498 = vsel %vm1085, %v1054, 0
    %v1501 = vsel %vm1085, %v1055, 0
    %v1504 = vsel %vm1085, %v1056, 0
    %v1507 = vsel %vm1085, %v1057, 0
    %v1510 = vsel %vm1085, %v1058, 0
    %v1513 = vsel %vm1085, %v1059, 0
    %v1516 = vsel %vm1085, %v1060, 0
    %1518 = vmatprep.subr.bf16.mxu0 0
    %1519 = vmatpush1.bf16.msra.mxu0 %v1077
    %1520 = vmatprep.subr.bf16.mxu0 0
    %1521 = vmatpush1.bf16.msra.mxu0 %v1078
    %1522 = vmatprep.subr.bf16.mxu0 0
    %1523 = vmatpush1.bf16.msra.mxu0 %v1079
    %1524 = vmatprep.subr.bf16.mxu0 0
    %1525 = vmatpush1.bf16.msra.mxu0 %v1080
    %1526 = vmatprep.subr.bf16.mxu0 0
    %1527 = vmatpush1.bf16.msra.mxu0 0
    %1528 = vmatprep.subr.bf16.mxu0 0
    %1529 = vmatpush1.bf16.msra.mxu0 0
    %1530 = vmatprep.subr.bf16.mxu0 0
    %1531 = vmatpush1.bf16.msra.mxu0 0
    %1532 = vmatprep.subr.bf16.mxu0 0
    %1533 = vmatpush1.bf16.msra.mxu0 0
    %1534 = vmatprep.subr.bf16.mxu0 0
    %1535 = vmatpush1.bf16.msra.mxu0 0
    %1536 = vmatprep.subr.bf16.mxu0 0
    %1537 = vmatpush1.bf16.msra.mxu0 0
    %1538 = vmatprep.subr.bf16.mxu0 0
    %1539 = vmatpush1.bf16.msra.mxu0 0
    %1540 = vmatprep.subr.bf16.mxu0 0
    %1541 = vmatpush1.bf16.msra.mxu0 0
    %1542 = vmatprep.subr.bf16.mxu0 0
    %1543 = vmatpush1.bf16.msra.mxu0 0
    %1544 = vmatprep.subr.bf16.mxu0 0
    %1545 = vmatpush1.bf16.msra.mxu0 0
    %1546 = vmatprep.subr.bf16.mxu0 0
    %1547 = vmatpush1.bf16.msra.mxu0 0
    %1548 = vmatprep.subr.bf16.mxu0 0
    %1549 = vmatpush1.bf16.msra.mxu0 0
    %1550 = vmatprep.mubr.bf16.mxu0 0
    %1551 = vmatmul.mubr.bf16.gmra.mrb[0].mxu0 %v1087
    %v1552 = vpop.f32.mrb[0].mxu0
    %v1553 = vadd.f32 %v340, %v1552
    %v1554 = vpop.f32.mrb[0].mxu0
    %v1555 = vpop.f32.mrb[0].mxu0
    %v1556 = vadd.f32 %v340, %v1555
    %v1557 = vpop.f32.mrb[0].mxu0
    %1558 = vmatprep.mubr.bf16.mxu0 0
    %1559 = vmatmul.mubr.bf16.gmra.mrb[0].mxu0 %v1090
    %v1560 = vpop.f32.mrb[0].mxu0
    %v1561 = vadd.f32 %v340, %v1560
    %v1562 = vpop.f32.mrb[0].mxu0
    %v1563 = vpop.f32.mrb[0].mxu0
    %v1564 = vadd.f32 %v340, %v1563
    %v1565 = vpop.f32.mrb[0].mxu0
    %1566 = vmatprep.mubr.bf16.mxu0 0
    %1567 = vmatmul.mubr.bf16.gmra.mrb[0].mxu0 %v1093
    %v1568 = vpop.f32.mrb[0].mxu0
    %v1569 = vadd.f32 %v340, %v1568
    %v1570 = vpop.f32.mrb[0].mxu0
    %v1571 = vpop.f32.mrb[0].mxu0
    %v1572 = vadd.f32 %v340, %v1571
    %v1573 = vpop.f32.mrb[0].mxu0
    %1574 = vmatprep.mubr.bf16.mxu0 0
    %1575 = vmatmul.mubr.bf16.gmra.mrb[0].mxu0 %v1096
    %v1576 = vpop.f32.mrb[0].mxu0
    %v1577 = vadd.f32 %v340, %v1576
    %v1578 = vpop.f32.mrb[0].mxu0
    %v1579 = vpop.f32.mrb[0].mxu0
    %v1580 = vadd.f32 %v340, %v1579
    %v1581 = vpop.f32.mrb[0].mxu0
    %1582 = vmatprep.mubr.bf16.mxu0 0
    %1583 = vmatmul.mubr.bf16.gmra.mrb[0].mxu0 %v1099
    %v1584 = vpop.f32.mrb[0].mxu0
    %v1585 = vadd.f32 %v340, %v1584
    %v1586 = vpop.f32.mrb[0].mxu0
    %v1587 = vpop.f32.mrb[0].mxu0
    %v1588 = vadd.f32 %v340, %v1587
    %v1589 = vpop.f32.mrb[0].mxu0
    %1590 = vmatprep.mubr.bf16.mxu0 0
    %1591 = vmatmul.mubr.bf16.gmra.mrb[0].mxu0 %v1102
    %v1592 = vpop.f32.mrb[0].mxu0
    %v1593 = vadd.f32 %v340, %v1592
    %v1594 = vpop.f32.mrb[0].mxu0
    %v1595 = vpop.f32.mrb[0].mxu0
    %v1596 = vadd.f32 %v340, %v1595
    %v1597 = vpop.f32.mrb[0].mxu0
    %1598 = vmatprep.mubr.bf16.mxu0 0
    %1599 = vmatmul.mubr.bf16.gmra.mrb[0].mxu0 %v1105
    %v1600 = vpop.f32.mrb[0].mxu0
    %v1601 = vadd.f32 %v340, %v1600
    %v1602 = vpop.f32.mrb[0].mxu0
    %v1603 = vpop.f32.mrb[0].mxu0
    %v1604 = vadd.f32 %v340, %v1603
    %v1605 = vpop.f32.mrb[0].mxu0
    %1606 = vmatprep.mubr.bf16.mxu0 0
    %1607 = vmatmul.mubr.bf16.gmra.mrb[0].mxu0 %v1108
    %v1608 = vpop.f32.mrb[0].mxu0
    %v1609 = vadd.f32 %v340, %v1608
    %v1610 = vpop.f32.mrb[0].mxu0
    %v1611 = vpop.f32.mrb[0].mxu0
    %v1612 = vadd.f32 %v340, %v1611
    %v1613 = vpop.f32.mrb[0].mxu0
    %1614 = vmatprep.mubr.bf16.mxu0 0
    %1615 = vmatmul.mubr.bf16.gmra.mrb[0].mxu0 %v1111
    %v1616 = vpop.f32.mrb[0].mxu0
    %v1617 = vadd.f32 %v340, %v1616
    %v1618 = vpop.f32.mrb[0].mxu0
    %v1619 = vpop.f32.mrb[0].mxu0
    %v1620 = vadd.f32 %v340, %v1619
    %v1621 = vpop.f32.mrb[0].mxu0
    %1622 = vmatprep.mubr.bf16.mxu0 0
    %1623 = vmatmul.mubr.bf16.gmra.mrb[0].mxu0 %v1114
    %v1624 = vpop.f32.mrb[0].mxu0
    %v1625 = vadd.f32 %v340, %v1624
    %v1626 = vpop.f32.mrb[0].mxu0
    %v1627 = vpop.f32.mrb[0].mxu0
    %v1628 = vadd.f32 %v340, %v1627
    %v1629 = vpop.f32.mrb[0].mxu0
    %1630 = vmatprep.mubr.bf16.mxu0 0
    %1631 = vmatmul.mubr.bf16.gmra.mrb[0].mxu0 %v1117
    %v1632 = vpop.f32.mrb[0].mxu0
    %v1633 = vadd.f32 %v340, %v1632
    %v1634 = vpop.f32.mrb[0].mxu0
    %v1635 = vpop.f32.mrb[0].mxu0
    %v1636 = vadd.f32 %v340, %v1635
    %v1637 = vpop.f32.mrb[0].mxu0
    %1638 = vmatprep.mubr.bf16.mxu0 0
    %1639 = vmatmul.mubr.bf16.gmra.mrb[0].mxu0 %v1120
    %v1640 = vpop.f32.mrb[0].mxu0
    %v1641 = vadd.f32 %v340, %v1640
    %v1642 = vpop.f32.mrb[0].mxu0
    %v1643 = vpop.f32.mrb[0].mxu0
    %v1644 = vadd.f32 %v340, %v1643
    %v1645 = vpop.f32.mrb[0].mxu0
    %1646 = vmatprep.mubr.bf16.mxu0 0
    %1647 = vmatmul.mubr.bf16.gmra.mrb[0].mxu0 %v1123
    %v1648 = vpop.f32.mrb[0].mxu0
    %v1649 = vadd.f32 %v340, %v1648
    %v1650 = vpop.f32.mrb[0].mxu0
    %v1651 = vpop.f32.mrb[0].mxu0
    %v1652 = vadd.f32 %v340, %v1651
    %v1653 = vpop.f32.mrb[0].mxu0
    %1654 = vmatprep.mubr.bf16.mxu0 0
    %1655 = vmatmul.mubr.bf16.gmra.mrb[0].mxu0 %v1126
    %v1656 = vpop.f32.mrb[0].mxu0
    %v1657 = vadd.f32 %v340, %v1656
    %v1658 = vpop.f32.mrb[0].mxu0
    %v1659 = vpop.f32.mrb[0].mxu0
    %v1660 = vadd.f32 %v340, %v1659
    %v1661 = vpop.f32.mrb[0].mxu0
    %1662 = vmatprep.mubr.bf16.mxu0 0
    %1663 = vmatmul.mubr.bf16.gmra.mrb[0].mxu0 %v1129
    %v1664 = vpop.f32.mrb[0].mxu0
    %v1665 = vadd.f32 %v340, %v1664
    %v1666 = vpop.f32.mrb[0].mxu0
    %v1667 = vpop.f32.mrb[0].mxu0
    %v1668 = vadd.f32 %v340, %v1667
    %v1669 = vpop.f32.mrb[0].mxu0
    %1670 = vmatprep.mubr.bf16.mxu0 0
    %1671 = vmatmul.mubr.bf16.gmra.mrb[0].mxu0 %v1132
    %v1672 = vpop.f32.mrb[0].mxu0
    %v1673 = vadd.f32 %v340, %v1672
    %v1674 = vpop.f32.mrb[0].mxu0
    %v1675 = vpop.f32.mrb[0].mxu0
    %v1676 = vadd.f32 %v340, %v1675
    %v1677 = vpop.f32.mrb[0].mxu0
    %1678 = vmatprep.mubr.bf16.mxu0 0
    %1679 = vmatmul.mubr.bf16.gmra.mrb[0].mxu0 %v1135
    %v1680 = vpop.f32.mrb[0].mxu0
    %v1681 = vadd.f32 %v340, %v1680
    %v1682 = vpop.f32.mrb[0].mxu0
    %v1683 = vpop.f32.mrb[0].mxu0
    %v1684 = vadd.f32 %v340, %v1683
    %v1685 = vpop.f32.mrb[0].mxu0
    %1686 = vmatprep.mubr.bf16.mxu0 0
    %1687 = vmatmul.mubr.bf16.gmra.mrb[0].mxu0 %v1138
    %v1688 = vpop.f32.mrb[0].mxu0
    %v1689 = vadd.f32 %v340, %v1688
    %v1690 = vpop.f32.mrb[0].mxu0
    %v1691 = vpop.f32.mrb[0].mxu0
    %v1692 = vadd.f32 %v340, %v1691
    %v1693 = vpop.f32.mrb[0].mxu0
    %1694 = vmatprep.mubr.bf16.mxu0 0
    %1695 = vmatmul.mubr.bf16.gmra.mrb[0].mxu0 %v1141
    %v1696 = vpop.f32.mrb[0].mxu0
    %v1697 = vadd.f32 %v340, %v1696
    %v1698 = vpop.f32.mrb[0].mxu0
    %v1699 = vpop.f32.mrb[0].mxu0
    %v1700 = vadd.f32 %v340, %v1699
    %v1701 = vpop.f32.mrb[0].mxu0
    %1702 = vmatprep.mubr.bf16.mxu0 0
    %1703 = vmatmul.mubr.bf16.gmra.mrb[0].mxu0 %v1144
    %v1704 = vpop.f32.mrb[0].mxu0
    %v1705 = vadd.f32 %v340, %v1704
    %v1706 = vpop.f32.mrb[0].mxu0
    %v1707 = vpop.f32.mrb[0].mxu0
    %v1708 = vadd.f32 %v340, %v1707
    %v1709 = vpop.f32.mrb[0].mxu0
    %1710 = vmatprep.mubr.bf16.mxu0 0
    %1711 = vmatmul.mubr.bf16.gmra.mrb[0].mxu0 %v1147
    %v1712 = vpop.f32.mrb[0].mxu0
    %v1713 = vadd.f32 %v340, %v1712
    %v1714 = vpop.f32.mrb[0].mxu0
    %v1715 = vpop.f32.mrb[0].mxu0
    %v1716 = vadd.f32 %v340, %v1715
    %v1717 = vpop.f32.mrb[0].mxu0
    %1718 = vmatprep.mubr.bf16.mxu0 0
    %1719 = vmatmul.mubr.bf16.gmra.mrb[0].mxu0 %v1150
    %v1720 = vpop.f32.mrb[0].mxu0
    %v1721 = vadd.f32 %v340, %v1720
    %v1722 = vpop.f32.mrb[0].mxu0
    %v1723 = vpop.f32.mrb[0].mxu0
    %v1724 = vadd.f32 %v340, %v1723
    %v1725 = vpop.f32.mrb[0].mxu0
    %1726 = vmatprep.mubr.bf16.mxu0 0
    %1727 = vmatmul.mubr.bf16.gmra.mrb[0].mxu0 %v1153
    %v1728 = vpop.f32.mrb[0].mxu0
    %v1729 = vadd.f32 %v340, %v1728
    %v1730 = vpop.f32.mrb[0].mxu0
    %v1731 = vpop.f32.mrb[0].mxu0
    %v1732 = vadd.f32 %v340, %v1731
    %v1733 = vpop.f32.mrb[0].mxu0
    %1734 = vmatprep.mubr.bf16.mxu0 0
    %1735 = vmatmul.mubr.bf16.gmra.mrb[0].mxu0 %v1156
    %v1736 = vpop.f32.mrb[0].mxu0
    %v1737 = vadd.f32 %v340, %v1736
    %v1738 = vpop.f32.mrb[0].mxu0
    %v1739 = vpop.f32.mrb[0].mxu0
    %v1740 = vadd.f32 %v340, %v1739
    %v1741 = vpop.f32.mrb[0].mxu0
    %1742 = vmatprep.mubr.bf16.mxu0 0
    %1743 = vmatmul.mubr.bf16.gmra.mrb[0].mxu0 %v1159
    %v1744 = vpop.f32.mrb[0].mxu0
    %v1745 = vadd.f32 %v340, %v1744
    %v1746 = vpop.f32.mrb[0].mxu0
    %v1747 = vpop.f32.mrb[0].mxu0
    %v1748 = vadd.f32 %v340, %v1747
    %v1749 = vpop.f32.mrb[0].mxu0
    %1750 = vmatprep.mubr.bf16.mxu0 0
    %1751 = vmatmul.mubr.bf16.gmra.mrb[0].mxu0 %v1162
    %v1752 = vpop.f32.mrb[0].mxu0
    %v1753 = vadd.f32 %v340, %v1752
    %v1754 = vpop.f32.mrb[0].mxu0
    %v1755 = vpop.f32.mrb[0].mxu0
    %v1756 = vadd.f32 %v340, %v1755
    %v1757 = vpop.f32.mrb[0].mxu0
    %1758 = vmatprep.mubr.bf16.mxu0 0
    %1759 = vmatmul.mubr.bf16.gmra.mrb[0].mxu0 %v1165
    %v1760 = vpop.f32.mrb[0].mxu0
    %v1761 = vadd.f32 %v340, %v1760
    %v1762 = vpop.f32.mrb[0].mxu0
    %v1763 = vpop.f32.mrb[0].mxu0
    %v1764 = vadd.f32 %v340, %v1763
    %v1765 = vpop.f32.mrb[0].mxu0
    %1766 = vmatprep.mubr.bf16.mxu0 0
    %1767 = vmatmul.mubr.bf16.gmra.mrb[0].mxu0 %v1168
    %v1768 = vpop.f32.mrb[0].mxu0
    %v1769 = vadd.f32 %v340, %v1768
    %v1770 = vpop.f32.mrb[0].mxu0
    %v1771 = vpop.f32.mrb[0].mxu0
    %v1772 = vadd.f32 %v340, %v1771
    %v1773 = vpop.f32.mrb[0].mxu0
    %1774 = vmatprep.mubr.bf16.mxu0 0
    %1775 = vmatmul.mubr.bf16.gmra.mrb[0].mxu0 %v1171
    %v1776 = vpop.f32.mrb[0].mxu0
    %v1777 = vadd.f32 %v340, %v1776
    %v1778 = vpop.f32.mrb[0].mxu0
    %v1779 = vpop.f32.mrb[0].mxu0
    %v1780 = vadd.f32 %v340, %v1779
    %v1781 = vpop.f32.mrb[0].mxu0
    %1782 = vmatprep.mubr.bf16.mxu0 0
    %1783 = vmatmul.mubr.bf16.gmra.mrb[0].mxu0 %v1174
    %v1784 = vpop.f32.mrb[0].mxu0
    %v1785 = vadd.f32 %v340, %v1784
    %v1786 = vpop.f32.mrb[0].mxu0
    %v1787 = vpop.f32.mrb[0].mxu0
    %v1788 = vadd.f32 %v340, %v1787
    %v1789 = vpop.f32.mrb[0].mxu0
    %1790 = vmatprep.mubr.bf16.mxu0 0
    %1791 = vmatmul.mubr.bf16.gmra.mrb[0].mxu0 %v1177
    %v1792 = vpop.f32.mrb[0].mxu0
    %v1793 = vadd.f32 %v340, %v1792
    %v1794 = vpop.f32.mrb[0].mxu0
    %v1795 = vpop.f32.mrb[0].mxu0
    %v1796 = vadd.f32 %v340, %v1795
    %v1797 = vpop.f32.mrb[0].mxu0
    %1798 = vmatprep.mubr.bf16.mxu0 0
    %1799 = vmatmul.mubr.bf16.gmra.mrb[0].mxu0 %v1180
    %v1800 = vpop.f32.mrb[0].mxu0
    %v1801 = vadd.f32 %v340, %v1800
    %v1802 = vpop.f32.mrb[0].mxu0
    %v1803 = vpop.f32.mrb[0].mxu0
    %v1804 = vadd.f32 %v340, %v1803
    %v1805 = vpop.f32.mrb[0].mxu0
    %1806 = vmatprep.mubr.bf16.mxu0 0
    %1807 = vmatmul.mubr.bf16.gmra.mrb[0].mxu0 %v1183
    %v1808 = vpop.f32.mrb[0].mxu0
    %v1809 = vadd.f32 %v340, %v1808
    %v1810 = vpop.f32.mrb[0].mxu0
    %v1811 = vpop.f32.mrb[0].mxu0
    %v1812 = vadd.f32 %v340, %v1811
    %v1813 = vpop.f32.mrb[0].mxu0
    %1814 = vmatprep.mubr.bf16.mxu0 0
    %1815 = vmatmul.mubr.bf16.gmra.mrb[0].mxu0 %v1186
    %v1816 = vpop.f32.mrb[0].mxu0
    %v1817 = vadd.f32 %v340, %v1816
    %v1818 = vpop.f32.mrb[0].mxu0
    %v1819 = vpop.f32.mrb[0].mxu0
    %v1820 = vadd.f32 %v340, %v1819
    %v1821 = vpop.f32.mrb[0].mxu0
    %1822 = vmatprep.mubr.bf16.mxu0 0
    %1823 = vmatmul.mubr.bf16.gmra.mrb[0].mxu0 %v1189
    %v1824 = vpop.f32.mrb[0].mxu0
    %v1825 = vadd.f32 %v340, %v1824
    %v1826 = vpop.f32.mrb[0].mxu0
    %v1827 = vpop.f32.mrb[0].mxu0
    %v1828 = vadd.f32 %v340, %v1827
    %v1829 = vpop.f32.mrb[0].mxu0
    %1830 = vmatprep.mubr.bf16.mxu0 0
    %1831 = vmatmul.mubr.bf16.gmra.mrb[0].mxu0 %v1192
    %v1832 = vpop.f32.mrb[0].mxu0
    %v1833 = vadd.f32 %v340, %v1832
    %v1834 = vpop.f32.mrb[0].mxu0
    %v1835 = vpop.f32.mrb[0].mxu0
    %v1836 = vadd.f32 %v340, %v1835
    %v1837 = vpop.f32.mrb[0].mxu0
    %1838 = vmatprep.mubr.bf16.mxu0 0
    %1839 = vmatmul.mubr.bf16.gmra.mrb[0].mxu0 %v1195
    %v1840 = vpop.f32.mrb[0].mxu0
    %v1841 = vadd.f32 %v340, %v1840
    %v1842 = vpop.f32.mrb[0].mxu0
    %v1843 = vpop.f32.mrb[0].mxu0
    %v1844 = vadd.f32 %v340, %v1843
    %v1845 = vpop.f32.mrb[0].mxu0
    %1846 = vmatprep.mubr.bf16.mxu0 0
    %1847 = vmatmul.mubr.bf16.gmra.mrb[0].mxu0 %v1198
    %v1848 = vpop.f32.mrb[0].mxu0
    %v1849 = vadd.f32 %v340, %v1848
    %v1850 = vpop.f32.mrb[0].mxu0
    %v1851 = vpop.f32.mrb[0].mxu0
    %v1852 = vadd.f32 %v340, %v1851
    %v1853 = vpop.f32.mrb[0].mxu0
    %1854 = vmatprep.mubr.bf16.mxu0 0
    %1855 = vmatmul.mubr.bf16.gmra.mrb[0].mxu0 %v1201
    %v1856 = vpop.f32.mrb[0].mxu0
    %v1857 = vadd.f32 %v340, %v1856
    %v1858 = vpop.f32.mrb[0].mxu0
    %v1859 = vpop.f32.mrb[0].mxu0
    %v1860 = vadd.f32 %v340, %v1859
    %v1861 = vpop.f32.mrb[0].mxu0
    %1862 = vmatprep.mubr.bf16.mxu0 0
    %1863 = vmatmul.mubr.bf16.gmra.mrb[0].mxu0 %v1204
    %v1864 = vpop.f32.mrb[0].mxu0
    %v1865 = vadd.f32 %v340, %v1864
    %v1866 = vpop.f32.mrb[0].mxu0
    %v1867 = vpop.f32.mrb[0].mxu0
    %v1868 = vadd.f32 %v340, %v1867
    %v1869 = vpop.f32.mrb[0].mxu0
    %1870 = vmatprep.mubr.bf16.mxu0 0
    %1871 = vmatmul.mubr.bf16.gmra.mrb[0].mxu0 %v1207
    %v1872 = vpop.f32.mrb[0].mxu0
    %v1873 = vadd.f32 %v340, %v1872
    %v1874 = vpop.f32.mrb[0].mxu0
    %v1875 = vpop.f32.mrb[0].mxu0
    %v1876 = vadd.f32 %v340, %v1875
    %v1877 = vpop.f32.mrb[0].mxu0
    %1878 = vmatprep.mubr.bf16.mxu0 0
    %1879 = vmatmul.mubr.bf16.gmra.mrb[0].mxu0 %v1210
    %v1880 = vpop.f32.mrb[0].mxu0
    %v1881 = vadd.f32 %v340, %v1880
    %v1882 = vpop.f32.mrb[0].mxu0
    %v1883 = vpop.f32.mrb[0].mxu0
    %v1884 = vadd.f32 %v340, %v1883
    %v1885 = vpop.f32.mrb[0].mxu0
    %1886 = vmatprep.mubr.bf16.mxu0 0
    %1887 = vmatmul.mubr.bf16.gmra.mrb[0].mxu0 %v1213
    %v1888 = vpop.f32.mrb[0].mxu0
    %v1889 = vadd.f32 %v340, %v1888
    %v1890 = vpop.f32.mrb[0].mxu0
    %v1891 = vpop.f32.mrb[0].mxu0
    %v1892 = vadd.f32 %v340, %v1891
    %v1893 = vpop.f32.mrb[0].mxu0
    %1894 = vmatprep.mubr.bf16.mxu0 0
    %1895 = vmatmul.mubr.bf16.gmra.mrb[0].mxu0 %v1216
    %v1896 = vpop.f32.mrb[0].mxu0
    %v1897 = vadd.f32 %v340, %v1896
    %v1898 = vpop.f32.mrb[0].mxu0
    %v1899 = vpop.f32.mrb[0].mxu0
    %v1900 = vadd.f32 %v340, %v1899
    %v1901 = vpop.f32.mrb[0].mxu0
    %1902 = vmatprep.mubr.bf16.mxu0 0
    %1903 = vmatmul.mubr.bf16.gmra.mrb[0].mxu0 %v1219
    %v1904 = vpop.f32.mrb[0].mxu0
    %v1905 = vadd.f32 %v340, %v1904
    %v1906 = vpop.f32.mrb[0].mxu0
    %v1907 = vpop.f32.mrb[0].mxu0
    %v1908 = vadd.f32 %v340, %v1907
    %v1909 = vpop.f32.mrb[0].mxu0
    %1910 = vmatprep.mubr.bf16.mxu0 0
    %1911 = vmatmul.mubr.bf16.gmra.mrb[0].mxu0 %v1222
    %v1912 = vpop.f32.mrb[0].mxu0
    %v1913 = vadd.f32 %v340, %v1912
    %v1914 = vpop.f32.mrb[0].mxu0
    %v1915 = vpop.f32.mrb[0].mxu0
    %v1916 = vadd.f32 %v340, %v1915
    %v1917 = vpop.f32.mrb[0].mxu0
    %1918 = vmatprep.mubr.bf16.mxu0 0
    %1919 = vmatmul.mubr.bf16.gmra.mrb[0].mxu0 %v1225
    %v1920 = vpop.f32.mrb[0].mxu0
    %v1921 = vadd.f32 %v340, %v1920
    %v1922 = vpop.f32.mrb[0].mxu0
    %v1923 = vpop.f32.mrb[0].mxu0
    %v1924 = vadd.f32 %v340, %v1923
    %v1925 = vpop.f32.mrb[0].mxu0
    %1926 = vmatprep.mubr.bf16.mxu0 0
    %1927 = vmatmul.mubr.bf16.gmra.mrb[0].mxu0 %v1228
    %v1928 = vpop.f32.mrb[0].mxu0
    %v1929 = vadd.f32 %v340, %v1928
    %v1930 = vpop.f32.mrb[0].mxu0
    %v1931 = vpop.f32.mrb[0].mxu0
    %v1932 = vadd.f32 %v340, %v1931
    %v1933 = vpop.f32.mrb[0].mxu0
    %1934 = vmatprep.mubr.bf16.mxu0 0
    %1935 = vmatmul.mubr.bf16.gmra.mrb[0].mxu0 %v1231
    %v1936 = vpop.f32.mrb[0].mxu0
    %v1937 = vadd.f32 %v340, %v1936
    %v1938 = vpop.f32.mrb[0].mxu0
    %v1939 = vpop.f32.mrb[0].mxu0
    %v1940 = vadd.f32 %v340, %v1939
    %v1941 = vpop.f32.mrb[0].mxu0
    %1942 = vmatprep.mubr.bf16.mxu0 0
    %1943 = vmatmul.mubr.bf16.gmra.mrb[0].mxu0 %v1234
    %v1944 = vpop.f32.mrb[0].mxu0
    %v1945 = vadd.f32 %v340, %v1944
    %v1946 = vpop.f32.mrb[0].mxu0
    %v1947 = vpop.f32.mrb[0].mxu0
    %v1948 = vadd.f32 %v340, %v1947
    %v1949 = vpop.f32.mrb[0].mxu0
    %1950 = vmatprep.mubr.bf16.mxu0 0
    %1951 = vmatmul.mubr.bf16.gmra.mrb[0].mxu0 %v1237
    %v1952 = vpop.f32.mrb[0].mxu0
    %v1953 = vadd.f32 %v340, %v1952
    %v1954 = vpop.f32.mrb[0].mxu0
    %v1955 = vpop.f32.mrb[0].mxu0
    %v1956 = vadd.f32 %v340, %v1955
    %v1957 = vpop.f32.mrb[0].mxu0
    %1958 = vmatprep.mubr.bf16.mxu0 0
    %1959 = vmatmul.mubr.bf16.gmra.mrb[0].mxu0 %v1240
    %v1960 = vpop.f32.mrb[0].mxu0
    %v1961 = vadd.f32 %v340, %v1960
    %v1962 = vpop.f32.mrb[0].mxu0
    %v1963 = vpop.f32.mrb[0].mxu0
    %v1964 = vadd.f32 %v340, %v1963
    %v1965 = vpop.f32.mrb[0].mxu0
    %1966 = vmatprep.mubr.bf16.mxu0 0
    %1967 = vmatmul.mubr.bf16.gmra.mrb[0].mxu0 %v1243
    %v1968 = vpop.f32.mrb[0].mxu0
    %v1969 = vadd.f32 %v340, %v1968
    %v1970 = vpop.f32.mrb[0].mxu0
    %v1971 = vpop.f32.mrb[0].mxu0
    %v1972 = vadd.f32 %v340, %v1971
    %v1973 = vpop.f32.mrb[0].mxu0
    %1974 = vmatprep.mubr.bf16.mxu0 0
    %1975 = vmatmul.mubr.bf16.gmra.mrb[0].mxu0 %v1246
    %v1976 = vpop.f32.mrb[0].mxu0
    %v1977 = vadd.f32 %v340, %v1976
    %v1978 = vpop.f32.mrb[0].mxu0
    %v1979 = vpop.f32.mrb[0].mxu0
    %v1980 = vadd.f32 %v340, %v1979
    %v1981 = vpop.f32.mrb[0].mxu0
    %1982 = vmatprep.mubr.bf16.mxu0 0
    %1983 = vmatmul.mubr.bf16.gmra.mrb[0].mxu0 %v1249
    %v1984 = vpop.f32.mrb[0].mxu0
    %v1985 = vadd.f32 %v340, %v1984
    %v1986 = vpop.f32.mrb[0].mxu0
    %v1987 = vpop.f32.mrb[0].mxu0
    %v1988 = vadd.f32 %v340, %v1987
    %v1989 = vpop.f32.mrb[0].mxu0
    %1990 = vmatprep.mubr.bf16.mxu0 0
    %1991 = vmatmul.mubr.bf16.gmra.mrb[0].mxu0 %v1252
    %v1992 = vpop.f32.mrb[0].mxu0
    %v1993 = vadd.f32 %v340, %v1992
    %v1994 = vpop.f32.mrb[0].mxu0
    %v1995 = vpop.f32.mrb[0].mxu0
    %v1996 = vadd.f32 %v340, %v1995
    %v1997 = vpop.f32.mrb[0].mxu0
    %1998 = vmatprep.mubr.bf16.mxu0 0
    %1999 = vmatmul.mubr.bf16.gmra.mrb[0].mxu0 %v1255
    %v2000 = vpop.f32.mrb[0].mxu0
    %v2001 = vadd.f32 %v340, %v2000
    %v2002 = vpop.f32.mrb[0].mxu0
    %v2003 = vpop.f32.mrb[0].mxu0
    %v2004 = vadd.f32 %v340, %v2003
    %v2005 = vpop.f32.mrb[0].mxu0
    %2006 = vmatprep.mubr.bf16.mxu0 0
    %2007 = vmatmul.mubr.bf16.gmra.mrb[0].mxu0 %v1258
    %v2008 = vpop.f32.mrb[0].mxu0
    %v2009 = vadd.f32 %v340, %v2008
    %v2010 = vpop.f32.mrb[0].mxu0
    %v2011 = vpop.f32.mrb[0].mxu0
    %v2012 = vadd.f32 %v340, %v2011
    %v2013 = vpop.f32.mrb[0].mxu0
    %2014 = vmatprep.mubr.bf16.mxu0 0
    %2015 = vmatmul.mubr.bf16.gmra.mrb[0].mxu0 %v1261
    %v2016 = vpop.f32.mrb[0].mxu0
    %v2017 = vadd.f32 %v340, %v2016
    %v2018 = vpop.f32.mrb[0].mxu0
    %v2019 = vpop.f32.mrb[0].mxu0
    %v2020 = vadd.f32 %v340, %v2019
    %v2021 = vpop.f32.mrb[0].mxu0
    %2022 = vmatprep.mubr.bf16.mxu0 0
    %2023 = vmatmul.mubr.bf16.gmra.mrb[0].mxu0 %v1264
    %v2024 = vpop.f32.mrb[0].mxu0
    %v2025 = vadd.f32 %v340, %v2024
    %v2026 = vpop.f32.mrb[0].mxu0
    %v2027 = vpop.f32.mrb[0].mxu0
    %v2028 = vadd.f32 %v340, %v2027
    %v2029 = vpop.f32.mrb[0].mxu0
    %2030 = vmatprep.mubr.bf16.mxu0 0
    %2031 = vmatmul.mubr.bf16.gmra.mrb[0].mxu0 %v1267
    %v2032 = vpop.f32.mrb[0].mxu0
    %v2033 = vadd.f32 %v340, %v2032
    %v2034 = vpop.f32.mrb[0].mxu0
    %v2035 = vpop.f32.mrb[0].mxu0
    %v2036 = vadd.f32 %v340, %v2035
    %v2037 = vpop.f32.mrb[0].mxu0
    %2038 = vmatprep.mubr.bf16.mxu0 0
    %2039 = vmatmul.mubr.bf16.gmra.mrb[0].mxu0 %v1270
    %v2040 = vpop.f32.mrb[0].mxu0
    %v2041 = vadd.f32 %v340, %v2040
    %v2042 = vpop.f32.mrb[0].mxu0
    %v2043 = vpop.f32.mrb[0].mxu0
    %v2044 = vadd.f32 %v340, %v2043
    %v2045 = vpop.f32.mrb[0].mxu0
    %2046 = vmatprep.mubr.bf16.mxu0 0
    %2047 = vmatmul.mubr.bf16.gmra.mrb[0].mxu0 %v1273
    %v2048 = vpop.f32.mrb[0].mxu0
    %v2049 = vadd.f32 %v340, %v2048
    %v2050 = vpop.f32.mrb[0].mxu0
    %v2051 = vpop.f32.mrb[0].mxu0
    %v2052 = vadd.f32 %v340, %v2051
    %v2053 = vpop.f32.mrb[0].mxu0
    %2054 = vmatprep.mubr.bf16.mxu0 0
    %2055 = vmatmul.mubr.bf16.gmra.mrb[0].mxu0 %v1276
    %v2056 = vpop.f32.mrb[0].mxu0
    %v2057 = vadd.f32 %v340, %v2056
    %v2058 = vpop.f32.mrb[0].mxu0
    %v2059 = vpop.f32.mrb[0].mxu0
    %v2060 = vadd.f32 %v340, %v2059
    %v2061 = vpop.f32.mrb[0].mxu0
    %2062 = vmatprep.mubr.bf16.mxu0 0
    %2063 = vmatmul.mubr.bf16.gmra.mrb[0].mxu0 %v1279
    %v2064 = vpop.f32.mrb[0].mxu0
    %v2065 = vadd.f32 %v340, %v2064
    %v2066 = vpop.f32.mrb[0].mxu0
    %v2067 = vpop.f32.mrb[0].mxu0
    %v2068 = vadd.f32 %v340, %v2067
    %v2069 = vpop.f32.mrb[0].mxu0
    %2070 = vmatprep.mubr.bf16.mxu0 0
    %2071 = vmatmul.mubr.bf16.gmra.mrb[0].mxu0 %v1282
    %v2072 = vpop.f32.mrb[0].mxu0
    %v2073 = vadd.f32 %v340, %v2072
    %v2074 = vpop.f32.mrb[0].mxu0
    %v2075 = vpop.f32.mrb[0].mxu0
    %v2076 = vadd.f32 %v340, %v2075
    %v2077 = vpop.f32.mrb[0].mxu0
    %2078 = vmatprep.mubr.bf16.mxu0 0
    %2079 = vmatmul.mubr.bf16.gmra.mrb[0].mxu0 %v1285
    %v2080 = vpop.f32.mrb[0].mxu0
    %v2081 = vadd.f32 %v340, %v2080
    %v2082 = vpop.f32.mrb[0].mxu0
    %v2083 = vpop.f32.mrb[0].mxu0
    %v2084 = vadd.f32 %v340, %v2083
    %v2085 = vpop.f32.mrb[0].mxu0
    %2086 = vmatprep.mubr.bf16.mxu0 0
    %2087 = vmatmul.mubr.bf16.gmra.mrb[0].mxu0 %v1288
    %v2088 = vpop.f32.mrb[0].mxu0
    %v2089 = vadd.f32 %v340, %v2088
    %v2090 = vpop.f32.mrb[0].mxu0
    %v2091 = vpop.f32.mrb[0].mxu0
    %v2092 = vadd.f32 %v340, %v2091
    %v2093 = vpop.f32.mrb[0].mxu0
    %2094 = vmatprep.mubr.bf16.mxu0 0
    %2095 = vmatmul.mubr.bf16.gmra.mrb[0].mxu0 %v1291
    %v2096 = vpop.f32.mrb[0].mxu0
    %v2097 = vadd.f32 %v340, %v2096
    %v2098 = vpop.f32.mrb[0].mxu0
    %v2099 = vpop.f32.mrb[0].mxu0
    %v2100 = vadd.f32 %v340, %v2099
    %v2101 = vpop.f32.mrb[0].mxu0
    %2102 = vmatprep.mubr.bf16.mxu0 0
    %2103 = vmatmul.mubr.bf16.gmra.mrb[0].mxu0 %v1294
    %v2104 = vpop.f32.mrb[0].mxu0
    %v2105 = vadd.f32 %v340, %v2104
    %v2106 = vpop.f32.mrb[0].mxu0
    %v2107 = vpop.f32.mrb[0].mxu0
    %v2108 = vadd.f32 %v340, %v2107
    %v2109 = vpop.f32.mrb[0].mxu0
    %2110 = vmatprep.mubr.bf16.mxu0 0
    %2111 = vmatmul.mubr.bf16.gmra.mrb[0].mxu0 %v1297
    %v2112 = vpop.f32.mrb[0].mxu0
    %v2113 = vadd.f32 %v340, %v2112
    %v2114 = vpop.f32.mrb[0].mxu0
    %v2115 = vpop.f32.mrb[0].mxu0
    %v2116 = vadd.f32 %v340, %v2115
    %v2117 = vpop.f32.mrb[0].mxu0
    %2118 = vmatprep.mubr.bf16.mxu0 0
    %2119 = vmatmul.mubr.bf16.gmra.mrb[0].mxu0 %v1300
    %v2120 = vpop.f32.mrb[0].mxu0
    %v2121 = vadd.f32 %v340, %v2120
    %v2122 = vpop.f32.mrb[0].mxu0
    %v2123 = vpop.f32.mrb[0].mxu0
    %v2124 = vadd.f32 %v340, %v2123
    %v2125 = vpop.f32.mrb[0].mxu0
    %2126 = vmatprep.mubr.bf16.mxu0 0
    %2127 = vmatmul.mubr.bf16.gmra.mrb[0].mxu0 %v1303
    %v2128 = vpop.f32.mrb[0].mxu0
    %v2129 = vadd.f32 %v340, %v2128
    %v2130 = vpop.f32.mrb[0].mxu0
    %v2131 = vpop.f32.mrb[0].mxu0
    %v2132 = vadd.f32 %v340, %v2131
    %v2133 = vpop.f32.mrb[0].mxu0
    %2134 = vmatprep.mubr.bf16.mxu0 0
    %2135 = vmatmul.mubr.bf16.gmra.mrb[0].mxu0 %v1306
    %v2136 = vpop.f32.mrb[0].mxu0
    %v2137 = vadd.f32 %v340, %v2136
    %v2138 = vpop.f32.mrb[0].mxu0
    %v2139 = vpop.f32.mrb[0].mxu0
    %v2140 = vadd.f32 %v340, %v2139
    %v2141 = vpop.f32.mrb[0].mxu0
    %2142 = vmatprep.mubr.bf16.mxu0 0
    %2143 = vmatmul.mubr.bf16.gmra.mrb[0].mxu0 %v1309
    %v2144 = vpop.f32.mrb[0].mxu0
    %v2145 = vadd.f32 %v340, %v2144
    %v2146 = vpop.f32.mrb[0].mxu0
    %v2147 = vpop.f32.mrb[0].mxu0
    %v2148 = vadd.f32 %v340, %v2147
    %v2149 = vpop.f32.mrb[0].mxu0
    %2150 = vmatprep.mubr.bf16.mxu0 0
    %2151 = vmatmul.mubr.bf16.gmra.mrb[0].mxu0 %v1312
    %v2152 = vpop.f32.mrb[0].mxu0
    %v2153 = vadd.f32 %v340, %v2152
    %v2154 = vpop.f32.mrb[0].mxu0
    %v2155 = vpop.f32.mrb[0].mxu0
    %v2156 = vadd.f32 %v340, %v2155
    %v2157 = vpop.f32.mrb[0].mxu0
    %2158 = vmatprep.mubr.bf16.mxu0 0
    %2159 = vmatmul.mubr.bf16.gmra.mrb[0].mxu0 %v1315
    %v2160 = vpop.f32.mrb[0].mxu0
    %v2161 = vadd.f32 %v340, %v2160
    %v2162 = vpop.f32.mrb[0].mxu0
    %v2163 = vpop.f32.mrb[0].mxu0
    %v2164 = vadd.f32 %v340, %v2163
    %v2165 = vpop.f32.mrb[0].mxu0
    %2166 = vmatprep.mubr.bf16.mxu0 0
    %2167 = vmatmul.mubr.bf16.gmra.mrb[0].mxu0 %v1318
    %v2168 = vpop.f32.mrb[0].mxu0
    %v2169 = vadd.f32 %v340, %v2168
    %v2170 = vpop.f32.mrb[0].mxu0
    %v2171 = vpop.f32.mrb[0].mxu0
    %v2172 = vadd.f32 %v340, %v2171
    %v2173 = vpop.f32.mrb[0].mxu0
    %2174 = vmatprep.mubr.bf16.mxu0 0
    %2175 = vmatmul.mubr.bf16.gmra.mrb[0].mxu0 %v1321
    %v2176 = vpop.f32.mrb[0].mxu0
    %v2177 = vadd.f32 %v340, %v2176
    %v2178 = vpop.f32.mrb[0].mxu0
    %v2179 = vpop.f32.mrb[0].mxu0
    %v2180 = vadd.f32 %v340, %v2179
    %v2181 = vpop.f32.mrb[0].mxu0
    %2182 = vmatprep.mubr.bf16.mxu0 0
    %2183 = vmatmul.mubr.bf16.gmra.mrb[0].mxu0 %v1324
    %v2184 = vpop.f32.mrb[0].mxu0
    %v2185 = vadd.f32 %v340, %v2184
    %v2186 = vpop.f32.mrb[0].mxu0
    %v2187 = vpop.f32.mrb[0].mxu0
    %v2188 = vadd.f32 %v340, %v2187
    %v2189 = vpop.f32.mrb[0].mxu0
    %2190 = vmatprep.mubr.bf16.mxu0 0
    %2191 = vmatmul.mubr.bf16.gmra.mrb[0].mxu0 %v1327
    %v2192 = vpop.f32.mrb[0].mxu0
    %v2193 = vadd.f32 %v340, %v2192
    %v2194 = vpop.f32.mrb[0].mxu0
    %v2195 = vpop.f32.mrb[0].mxu0
    %v2196 = vadd.f32 %v340, %v2195
    %v2197 = vpop.f32.mrb[0].mxu0
    %2198 = vmatprep.mubr.bf16.mxu0 0
    %2199 = vmatmul.mubr.bf16.gmra.mrb[0].mxu0 %v1330
    %v2200 = vpop.f32.mrb[0].mxu0
    %v2201 = vadd.f32 %v340, %v2200
    %v2202 = vpop.f32.mrb[0].mxu0
    %v2203 = vpop.f32.mrb[0].mxu0
    %v2204 = vadd.f32 %v340, %v2203
    %v2205 = vpop.f32.mrb[0].mxu0
    %2206 = vmatprep.mubr.bf16.mxu0 0
    %2207 = vmatmul.mubr.bf16.gmra.mrb[0].mxu0 %v1333
    %v2208 = vpop.f32.mrb[0].mxu0
    %v2209 = vadd.f32 %v340, %v2208
    %v2210 = vpop.f32.mrb[0].mxu0
    %v2211 = vpop.f32.mrb[0].mxu0
    %v2212 = vadd.f32 %v340, %v2211
    %v2213 = vpop.f32.mrb[0].mxu0
    %2214 = vmatprep.mubr.bf16.mxu0 0
    %2215 = vmatmul.mubr.bf16.gmra.mrb[0].mxu0 %v1336
    %v2216 = vpop.f32.mrb[0].mxu0
    %v2217 = vadd.f32 %v340, %v2216
    %v2218 = vpop.f32.mrb[0].mxu0
    %v2219 = vpop.f32.mrb[0].mxu0
    %v2220 = vadd.f32 %v340, %v2219
    %v2221 = vpop.f32.mrb[0].mxu0
    %2222 = vmatprep.mubr.bf16.mxu0 0
    %2223 = vmatmul.mubr.bf16.gmra.mrb[0].mxu0 %v1339
    %v2224 = vpop.f32.mrb[0].mxu0
    %v2225 = vadd.f32 %v340, %v2224
    %v2226 = vpop.f32.mrb[0].mxu0
    %v2227 = vpop.f32.mrb[0].mxu0
    %v2228 = vadd.f32 %v340, %v2227
    %v2229 = vpop.f32.mrb[0].mxu0
    %2230 = vmatprep.mubr.bf16.mxu0 0
    %2231 = vmatmul.mubr.bf16.gmra.mrb[0].mxu0 %v1342
    %v2232 = vpop.f32.mrb[0].mxu0
    %v2233 = vadd.f32 %v340, %v2232
    %v2234 = vpop.f32.mrb[0].mxu0
    %v2235 = vpop.f32.mrb[0].mxu0
    %v2236 = vadd.f32 %v340, %v2235
    %v2237 = vpop.f32.mrb[0].mxu0
    %2238 = vmatprep.mubr.bf16.mxu0 0
    %2239 = vmatmul.mubr.bf16.gmra.mrb[0].mxu0 %v1345
    %v2240 = vpop.f32.mrb[0].mxu0
    %v2241 = vadd.f32 %v340, %v2240
    %v2242 = vpop.f32.mrb[0].mxu0
    %v2243 = vpop.f32.mrb[0].mxu0
    %v2244 = vadd.f32 %v340, %v2243
    %v2245 = vpop.f32.mrb[0].mxu0
    %2246 = vmatprep.mubr.bf16.mxu0 0
    %2247 = vmatmul.mubr.bf16.gmra.mrb[0].mxu0 %v1348
    %v2248 = vpop.f32.mrb[0].mxu0
    %v2249 = vadd.f32 %v340, %v2248
    %v2250 = vpop.f32.mrb[0].mxu0
    %v2251 = vpop.f32.mrb[0].mxu0
    %v2252 = vadd.f32 %v340, %v2251
    %v2253 = vpop.f32.mrb[0].mxu0
    %2254 = vmatprep.mubr.bf16.mxu0 0
    %2255 = vmatmul.mubr.bf16.gmra.mrb[0].mxu0 %v1351
    %v2256 = vpop.f32.mrb[0].mxu0
    %v2257 = vadd.f32 %v340, %v2256
    %v2258 = vpop.f32.mrb[0].mxu0
    %v2259 = vpop.f32.mrb[0].mxu0
    %v2260 = vadd.f32 %v340, %v2259
    %v2261 = vpop.f32.mrb[0].mxu0
    %2262 = vmatprep.mubr.bf16.mxu0 0
    %2263 = vmatmul.mubr.bf16.gmra.mrb[0].mxu0 %v1354
    %v2264 = vpop.f32.mrb[0].mxu0
    %v2265 = vadd.f32 %v340, %v2264
    %v2266 = vpop.f32.mrb[0].mxu0
    %v2267 = vpop.f32.mrb[0].mxu0
    %v2268 = vadd.f32 %v340, %v2267
    %v2269 = vpop.f32.mrb[0].mxu0
    %2270 = vmatprep.mubr.bf16.mxu0 0
    %2271 = vmatmul.mubr.bf16.gmra.mrb[0].mxu0 %v1357
    %v2272 = vpop.f32.mrb[0].mxu0
    %v2273 = vadd.f32 %v340, %v2272
    %v2274 = vpop.f32.mrb[0].mxu0
    %v2275 = vpop.f32.mrb[0].mxu0
    %v2276 = vadd.f32 %v340, %v2275
    %v2277 = vpop.f32.mrb[0].mxu0
    %2278 = vmatprep.mubr.bf16.mxu0 0
    %2279 = vmatmul.mubr.bf16.gmra.mrb[0].mxu0 %v1360
    %v2280 = vpop.f32.mrb[0].mxu0
    %v2281 = vadd.f32 %v340, %v2280
    %v2282 = vpop.f32.mrb[0].mxu0
    %v2283 = vpop.f32.mrb[0].mxu0
    %v2284 = vadd.f32 %v340, %v2283
    %v2285 = vpop.f32.mrb[0].mxu0
    %2286 = vmatprep.mubr.bf16.mxu0 0
    %2287 = vmatmul.mubr.bf16.gmra.mrb[0].mxu0 %v1363
    %v2288 = vpop.f32.mrb[0].mxu0
    %v2289 = vadd.f32 %v340, %v2288
    %v2290 = vpop.f32.mrb[0].mxu0
    %v2291 = vpop.f32.mrb[0].mxu0
    %v2292 = vadd.f32 %v340, %v2291
    %v2293 = vpop.f32.mrb[0].mxu0
    %2294 = vmatprep.mubr.bf16.mxu0 0
    %2295 = vmatmul.mubr.bf16.gmra.mrb[0].mxu0 %v1366
    %v2296 = vpop.f32.mrb[0].mxu0
    %v2297 = vadd.f32 %v340, %v2296
    %v2298 = vpop.f32.mrb[0].mxu0
    %v2299 = vpop.f32.mrb[0].mxu0
    %v2300 = vadd.f32 %v340, %v2299
    %v2301 = vpop.f32.mrb[0].mxu0
    %2302 = vmatprep.mubr.bf16.mxu0 0
    %2303 = vmatmul.mubr.bf16.gmra.mrb[0].mxu0 %v1369
    %v2304 = vpop.f32.mrb[0].mxu0
    %v2305 = vadd.f32 %v340, %v2304
    %v2306 = vpop.f32.mrb[0].mxu0
    %v2307 = vpop.f32.mrb[0].mxu0
    %v2308 = vadd.f32 %v340, %v2307
    %v2309 = vpop.f32.mrb[0].mxu0
    %2310 = vmatprep.mubr.bf16.mxu0 0
    %2311 = vmatmul.mubr.bf16.gmra.mrb[0].mxu0 %v1372
    %v2312 = vpop.f32.mrb[0].mxu0
    %v2313 = vadd.f32 %v340, %v2312
    %v2314 = vpop.f32.mrb[0].mxu0
    %v2315 = vpop.f32.mrb[0].mxu0
    %v2316 = vadd.f32 %v340, %v2315
    %v2317 = vpop.f32.mrb[0].mxu0
    %2318 = vmatprep.mubr.bf16.mxu0 0
    %2319 = vmatmul.mubr.bf16.gmra.mrb[0].mxu0 %v1375
    %v2320 = vpop.f32.mrb[0].mxu0
    %v2321 = vadd.f32 %v340, %v2320
    %v2322 = vpop.f32.mrb[0].mxu0
    %v2323 = vpop.f32.mrb[0].mxu0
    %v2324 = vadd.f32 %v340, %v2323
    %v2325 = vpop.f32.mrb[0].mxu0
    %2326 = vmatprep.mubr.bf16.mxu0 0
    %2327 = vmatmul.mubr.bf16.gmra.mrb[0].mxu0 %v1378
    %v2328 = vpop.f32.mrb[0].mxu0
    %v2329 = vadd.f32 %v340, %v2328
    %v2330 = vpop.f32.mrb[0].mxu0
    %v2331 = vpop.f32.mrb[0].mxu0
    %v2332 = vadd.f32 %v340, %v2331
    %v2333 = vpop.f32.mrb[0].mxu0
    %2334 = vmatprep.mubr.bf16.mxu0 0
    %2335 = vmatmul.mubr.bf16.gmra.mrb[0].mxu0 %v1381
    %v2336 = vpop.f32.mrb[0].mxu0
    %v2337 = vadd.f32 %v340, %v2336
    %v2338 = vpop.f32.mrb[0].mxu0
    %v2339 = vpop.f32.mrb[0].mxu0
    %v2340 = vadd.f32 %v340, %v2339
    %v2341 = vpop.f32.mrb[0].mxu0
    %2342 = vmatprep.mubr.bf16.mxu0 0
    %2343 = vmatmul.mubr.bf16.gmra.mrb[0].mxu0 %v1384
    %v2344 = vpop.f32.mrb[0].mxu0
    %v2345 = vadd.f32 %v340, %v2344
    %v2346 = vpop.f32.mrb[0].mxu0
    %v2347 = vpop.f32.mrb[0].mxu0
    %v2348 = vadd.f32 %v340, %v2347
    %v2349 = vpop.f32.mrb[0].mxu0
    %2350 = vmatprep.mubr.bf16.mxu0 0
    %2351 = vmatmul.mubr.bf16.gmra.mrb[0].mxu0 %v1387
    %v2352 = vpop.f32.mrb[0].mxu0
    %v2353 = vadd.f32 %v340, %v2352
    %v2354 = vpop.f32.mrb[0].mxu0
    %v2355 = vpop.f32.mrb[0].mxu0
    %v2356 = vadd.f32 %v340, %v2355
    %v2357 = vpop.f32.mrb[0].mxu0
    %2358 = vmatprep.mubr.bf16.mxu0 0
    %2359 = vmatmul.mubr.bf16.gmra.mrb[0].mxu0 %v1390
    %v2360 = vpop.f32.mrb[0].mxu0
    %v2361 = vadd.f32 %v340, %v2360
    %v2362 = vpop.f32.mrb[0].mxu0
    %v2363 = vpop.f32.mrb[0].mxu0
    %v2364 = vadd.f32 %v340, %v2363
    %v2365 = vpop.f32.mrb[0].mxu0
    %2366 = vmatprep.mubr.bf16.mxu0 0
    %2367 = vmatmul.mubr.bf16.gmra.mrb[0].mxu0 %v1393
    %v2368 = vpop.f32.mrb[0].mxu0
    %v2369 = vadd.f32 %v340, %v2368
    %v2370 = vpop.f32.mrb[0].mxu0
    %v2371 = vpop.f32.mrb[0].mxu0
    %v2372 = vadd.f32 %v340, %v2371
    %v2373 = vpop.f32.mrb[0].mxu0
    %2374 = vmatprep.mubr.bf16.mxu0 0
    %2375 = vmatmul.mubr.bf16.gmra.mrb[0].mxu0 %v1396
    %v2376 = vpop.f32.mrb[0].mxu0
    %v2377 = vadd.f32 %v340, %v2376
    %v2378 = vpop.f32.mrb[0].mxu0
    %v2379 = vpop.f32.mrb[0].mxu0
    %v2380 = vadd.f32 %v340, %v2379
    %v2381 = vpop.f32.mrb[0].mxu0
    %2382 = vmatprep.mubr.bf16.mxu0 0
    %2383 = vmatmul.mubr.bf16.gmra.mrb[0].mxu0 %v1399
    %v2384 = vpop.f32.mrb[0].mxu0
    %v2385 = vadd.f32 %v340, %v2384
    %v2386 = vpop.f32.mrb[0].mxu0
    %v2387 = vpop.f32.mrb[0].mxu0
    %v2388 = vadd.f32 %v340, %v2387
    %v2389 = vpop.f32.mrb[0].mxu0
    %2390 = vmatprep.mubr.bf16.mxu0 0
    %2391 = vmatmul.mubr.bf16.gmra.mrb[0].mxu0 %v1402
    %v2392 = vpop.f32.mrb[0].mxu0
    %v2393 = vadd.f32 %v340, %v2392
    %v2394 = vpop.f32.mrb[0].mxu0
    %v2395 = vpop.f32.mrb[0].mxu0
    %v2396 = vadd.f32 %v340, %v2395
    %v2397 = vpop.f32.mrb[0].mxu0
    %2398 = vmatprep.mubr.bf16.mxu0 0
    %2399 = vmatmul.mubr.bf16.gmra.mrb[0].mxu0 %v1405
    %v2400 = vpop.f32.mrb[0].mxu0
    %v2401 = vadd.f32 %v340, %v2400
    %v2402 = vpop.f32.mrb[0].mxu0
    %v2403 = vpop.f32.mrb[0].mxu0
    %v2404 = vadd.f32 %v340, %v2403
    %v2405 = vpop.f32.mrb[0].mxu0
    %2406 = vmatprep.mubr.bf16.mxu0 0
    %2407 = vmatmul.mubr.bf16.gmra.mrb[0].mxu0 %v1408
    %v2408 = vpop.f32.mrb[0].mxu0
    %v2409 = vadd.f32 %v340, %v2408
    %v2410 = vpop.f32.mrb[0].mxu0
    %v2411 = vpop.f32.mrb[0].mxu0
    %v2412 = vadd.f32 %v340, %v2411
    %v2413 = vpop.f32.mrb[0].mxu0
    %2414 = vmatprep.mubr.bf16.mxu0 0
    %2415 = vmatmul.mubr.bf16.gmra.mrb[0].mxu0 %v1411
    %v2416 = vpop.f32.mrb[0].mxu0
    %v2417 = vadd.f32 %v340, %v2416
    %v2418 = vpop.f32.mrb[0].mxu0
    %v2419 = vpop.f32.mrb[0].mxu0
    %v2420 = vadd.f32 %v340, %v2419
    %v2421 = vpop.f32.mrb[0].mxu0
    %2422 = vmatprep.mubr.bf16.mxu0 0
    %2423 = vmatmul.mubr.bf16.gmra.mrb[0].mxu0 %v1414
    %v2424 = vpop.f32.mrb[0].mxu0
    %v2425 = vadd.f32 %v340, %v2424
    %v2426 = vpop.f32.mrb[0].mxu0
    %v2427 = vpop.f32.mrb[0].mxu0
    %v2428 = vadd.f32 %v340, %v2427
    %v2429 = vpop.f32.mrb[0].mxu0
    %2430 = vmatprep.mubr.bf16.mxu0 0
    %2431 = vmatmul.mubr.bf16.gmra.mrb[0].mxu0 %v1417
    %v2432 = vpop.f32.mrb[0].mxu0
    %v2433 = vadd.f32 %v340, %v2432
    %v2434 = vpop.f32.mrb[0].mxu0
    %v2435 = vpop.f32.mrb[0].mxu0
    %v2436 = vadd.f32 %v340, %v2435
    %v2437 = vpop.f32.mrb[0].mxu0
    %2438 = vmatprep.mubr.bf16.mxu0 0
    %2439 = vmatmul.mubr.bf16.gmra.mrb[0].mxu0 %v1420
    %v2440 = vpop.f32.mrb[0].mxu0
    %v2441 = vadd.f32 %v340, %v2440
    %v2442 = vpop.f32.mrb[0].mxu0
    %v2443 = vpop.f32.mrb[0].mxu0
    %v2444 = vadd.f32 %v340, %v2443
    %v2445 = vpop.f32.mrb[0].mxu0
    %2446 = vmatprep.mubr.bf16.mxu0 0
    %2447 = vmatmul.mubr.bf16.gmra.mrb[0].mxu0 %v1423
    %v2448 = vpop.f32.mrb[0].mxu0
    %v2449 = vadd.f32 %v340, %v2448
    %v2450 = vpop.f32.mrb[0].mxu0
    %v2451 = vpop.f32.mrb[0].mxu0
    %v2452 = vadd.f32 %v340, %v2451
    %v2453 = vpop.f32.mrb[0].mxu0
    %2454 = vmatprep.mubr.bf16.mxu0 0
    %2455 = vmatmul.mubr.bf16.gmra.mrb[0].mxu0 %v1426
    %v2456 = vpop.f32.mrb[0].mxu0
    %v2457 = vadd.f32 %v340, %v2456
    %v2458 = vpop.f32.mrb[0].mxu0
    %v2459 = vpop.f32.mrb[0].mxu0
    %v2460 = vadd.f32 %v340, %v2459
    %v2461 = vpop.f32.mrb[0].mxu0
    %2462 = vmatprep.mubr.bf16.mxu0 0
    %2463 = vmatmul.mubr.bf16.gmra.mrb[0].mxu0 %v1429
    %v2464 = vpop.f32.mrb[0].mxu0
    %v2465 = vadd.f32 %v340, %v2464
    %v2466 = vpop.f32.mrb[0].mxu0
    %v2467 = vpop.f32.mrb[0].mxu0
    %v2468 = vadd.f32 %v340, %v2467
    %v2469 = vpop.f32.mrb[0].mxu0
    %2470 = vmatprep.mubr.bf16.mxu0 0
    %2471 = vmatmul.mubr.bf16.gmra.mrb[0].mxu0 %v1432
    %v2472 = vpop.f32.mrb[0].mxu0
    %v2473 = vadd.f32 %v340, %v2472
    %v2474 = vpop.f32.mrb[0].mxu0
    %v2475 = vpop.f32.mrb[0].mxu0
    %v2476 = vadd.f32 %v340, %v2475
    %v2477 = vpop.f32.mrb[0].mxu0
    %2478 = vmatprep.mubr.bf16.mxu0 0
    %2479 = vmatmul.mubr.bf16.gmra.mrb[0].mxu0 %v1435
    %v2480 = vpop.f32.mrb[0].mxu0
    %v2481 = vadd.f32 %v340, %v2480
    %v2482 = vpop.f32.mrb[0].mxu0
    %v2483 = vpop.f32.mrb[0].mxu0
    %v2484 = vadd.f32 %v340, %v2483
    %v2485 = vpop.f32.mrb[0].mxu0
    %2486 = vmatprep.mubr.bf16.mxu0 0
    %2487 = vmatmul.mubr.bf16.gmra.mrb[0].mxu0 %v1438
    %v2488 = vpop.f32.mrb[0].mxu0
    %v2489 = vadd.f32 %v340, %v2488
    %v2490 = vpop.f32.mrb[0].mxu0
    %v2491 = vpop.f32.mrb[0].mxu0
    %v2492 = vadd.f32 %v340, %v2491
    %v2493 = vpop.f32.mrb[0].mxu0
    %2494 = vmatprep.mubr.bf16.mxu0 0
    %2495 = vmatmul.mubr.bf16.gmra.mrb[0].mxu0 %v1441
    %v2496 = vpop.f32.mrb[0].mxu0
    %v2497 = vadd.f32 %v340, %v2496
    %v2498 = vpop.f32.mrb[0].mxu0
    %v2499 = vpop.f32.mrb[0].mxu0
    %v2500 = vadd.f32 %v340, %v2499
    %v2501 = vpop.f32.mrb[0].mxu0
    %2502 = vmatprep.mubr.bf16.mxu0 0
    %2503 = vmatmul.mubr.bf16.gmra.mrb[0].mxu0 %v1444
    %v2504 = vpop.f32.mrb[0].mxu0
    %v2505 = vadd.f32 %v340, %v2504
    %v2506 = vpop.f32.mrb[0].mxu0
    %v2507 = vpop.f32.mrb[0].mxu0
    %v2508 = vadd.f32 %v340, %v2507
    %v2509 = vpop.f32.mrb[0].mxu0
    %2510 = vmatprep.mubr.bf16.mxu0 0
    %2511 = vmatmul.mubr.bf16.gmra.mrb[0].mxu0 %v1447
    %v2512 = vpop.f32.mrb[0].mxu0
    %v2513 = vadd.f32 %v340, %v2512
    %v2514 = vpop.f32.mrb[0].mxu0
    %v2515 = vpop.f32.mrb[0].mxu0
    %v2516 = vadd.f32 %v340, %v2515
    %v2517 = vpop.f32.mrb[0].mxu0
    %2518 = vmatprep.mubr.bf16.mxu0 0
    %2519 = vmatmul.mubr.bf16.gmra.mrb[0].mxu0 %v1450
    %v2520 = vpop.f32.mrb[0].mxu0
    %v2521 = vadd.f32 %v340, %v2520
    %v2522 = vpop.f32.mrb[0].mxu0
    %v2523 = vpop.f32.mrb[0].mxu0
    %v2524 = vadd.f32 %v340, %v2523
    %v2525 = vpop.f32.mrb[0].mxu0
    %2526 = vmatprep.mubr.bf16.mxu0 0
    %2527 = vmatmul.mubr.bf16.gmra.mrb[0].mxu0 %v1453
    %v2528 = vpop.f32.mrb[0].mxu0
    %v2529 = vadd.f32 %v340, %v2528
    %v2530 = vpop.f32.mrb[0].mxu0
    %v2531 = vpop.f32.mrb[0].mxu0
    %v2532 = vadd.f32 %v340, %v2531
    %v2533 = vpop.f32.mrb[0].mxu0
    %2534 = vmatprep.mubr.bf16.mxu0 0
    %2535 = vmatmul.mubr.bf16.gmra.mrb[0].mxu0 %v1456
    %v2536 = vpop.f32.mrb[0].mxu0
    %v2537 = vadd.f32 %v340, %v2536
    %v2538 = vpop.f32.mrb[0].mxu0
    %v2539 = vpop.f32.mrb[0].mxu0
    %v2540 = vadd.f32 %v340, %v2539
    %v2541 = vpop.f32.mrb[0].mxu0
    %2542 = vmatprep.mubr.bf16.mxu0 0
    %2543 = vmatmul.mubr.bf16.gmra.mrb[0].mxu0 %v1459
    %v2544 = vpop.f32.mrb[0].mxu0
    %v2545 = vadd.f32 %v340, %v2544
    %v2546 = vpop.f32.mrb[0].mxu0
    %v2547 = vpop.f32.mrb[0].mxu0
    %v2548 = vadd.f32 %v340, %v2547
    %v2549 = vpop.f32.mrb[0].mxu0
    %2550 = vmatprep.mubr.bf16.mxu0 0
    %2551 = vmatmul.mubr.bf16.gmra.mrb[0].mxu0 %v1462
    %v2552 = vpop.f32.mrb[0].mxu0
    %v2553 = vadd.f32 %v340, %v2552
    %v2554 = vpop.f32.mrb[0].mxu0
    %v2555 = vpop.f32.mrb[0].mxu0
    %v2556 = vadd.f32 %v340, %v2555
    %v2557 = vpop.f32.mrb[0].mxu0
    %2558 = vmatprep.mubr.bf16.mxu0 0
    %2559 = vmatmul.mubr.bf16.gmra.mrb[0].mxu0 %v1465
    %v2560 = vpop.f32.mrb[0].mxu0
    %v2561 = vadd.f32 %v340, %v2560
    %v2562 = vpop.f32.mrb[0].mxu0
    %v2563 = vpop.f32.mrb[0].mxu0
    %v2564 = vadd.f32 %v340, %v2563
    %v2565 = vpop.f32.mrb[0].mxu0
    %2566 = vmatprep.mubr.bf16.mxu0 0
    %2567 = vmatmul.mubr.bf16.gmra.mrb[0].mxu0 %v1468
    %v2568 = vpop.f32.mrb[0].mxu0
    %v2569 = vadd.f32 %v340, %v2568
    %v2570 = vpop.f32.mrb[0].mxu0
    %v2571 = vpop.f32.mrb[0].mxu0
    %v2572 = vadd.f32 %v340, %v2571
    %v2573 = vpop.f32.mrb[0].mxu0
    %2574 = vmatprep.mubr.bf16.mxu0 0
    %2575 = vmatmul.mubr.bf16.gmra.mrb[0].mxu0 %v1471
    %v2576 = vpop.f32.mrb[0].mxu0
    %v2577 = vadd.f32 %v340, %v2576
    %v2578 = vpop.f32.mrb[0].mxu0
    %v2579 = vpop.f32.mrb[0].mxu0
    %v2580 = vadd.f32 %v340, %v2579
    %v2581 = vpop.f32.mrb[0].mxu0
    %2582 = vmatprep.mubr.bf16.mxu0 0
    %2583 = vmatmul.mubr.bf16.gmra.mrb[0].mxu0 %v1474
    %v2584 = vpop.f32.mrb[0].mxu0
    %v2585 = vadd.f32 %v340, %v2584
    %v2586 = vpop.f32.mrb[0].mxu0
    %v2587 = vpop.f32.mrb[0].mxu0
    %v2588 = vadd.f32 %v340, %v2587
    %v2589 = vpop.f32.mrb[0].mxu0
    %2590 = vmatprep.mubr.bf16.mxu0 0
    %2591 = vmatmul.mubr.bf16.gmra.mrb[0].mxu0 %v1477
    %v2592 = vpop.f32.mrb[0].mxu0
    %v2593 = vadd.f32 %v340, %v2592
    %v2594 = vpop.f32.mrb[0].mxu0
    %v2595 = vpop.f32.mrb[0].mxu0
    %v2596 = vadd.f32 %v340, %v2595
    %v2597 = vpop.f32.mrb[0].mxu0
    %2598 = vmatprep.mubr.bf16.mxu0 0
    %2599 = vmatmul.mubr.bf16.gmra.mrb[0].mxu0 %v1480
    %v2600 = vpop.f32.mrb[0].mxu0
    %v2601 = vadd.f32 %v340, %v2600
    %v2602 = vpop.f32.mrb[0].mxu0
    %v2603 = vpop.f32.mrb[0].mxu0
    %v2604 = vadd.f32 %v340, %v2603
    %v2605 = vpop.f32.mrb[0].mxu0
    %2606 = vmatprep.mubr.bf16.mxu0 0
    %2607 = vmatmul.mubr.bf16.gmra.mrb[0].mxu0 %v1483
    %v2608 = vpop.f32.mrb[0].mxu0
    %v2609 = vadd.f32 %v340, %v2608
    %v2610 = vpop.f32.mrb[0].mxu0
    %v2611 = vpop.f32.mrb[0].mxu0
    %v2612 = vadd.f32 %v340, %v2611
    %v2613 = vpop.f32.mrb[0].mxu0
    %2614 = vmatprep.mubr.bf16.mxu0 0
    %2615 = vmatmul.mubr.bf16.gmra.mrb[0].mxu0 %v1486
    %v2616 = vpop.f32.mrb[0].mxu0
    %v2617 = vadd.f32 %v340, %v2616
    %v2618 = vpop.f32.mrb[0].mxu0
    %v2619 = vpop.f32.mrb[0].mxu0
    %v2620 = vadd.f32 %v340, %v2619
    %v2621 = vpop.f32.mrb[0].mxu0
    %2622 = vmatprep.mubr.bf16.mxu0 0
    %2623 = vmatmul.mubr.bf16.gmra.mrb[0].mxu0 %v1489
    %v2624 = vpop.f32.mrb[0].mxu0
    %v2625 = vadd.f32 %v340, %v2624
    %v2626 = vpop.f32.mrb[0].mxu0
    %v2627 = vpop.f32.mrb[0].mxu0
    %v2628 = vadd.f32 %v340, %v2627
    %v2629 = vpop.f32.mrb[0].mxu0
    %2630 = vmatprep.mubr.bf16.mxu0 0
    %2631 = vmatmul.mubr.bf16.gmra.mrb[0].mxu0 %v1492
    %v2632 = vpop.f32.mrb[0].mxu0
    %v2633 = vadd.f32 %v340, %v2632
    %v2634 = vpop.f32.mrb[0].mxu0
    %v2635 = vpop.f32.mrb[0].mxu0
    %v2636 = vadd.f32 %v340, %v2635
    %v2637 = vpop.f32.mrb[0].mxu0
    %2638 = vmatprep.mubr.bf16.mxu0 0
    %2639 = vmatmul.mubr.bf16.gmra.mrb[0].mxu0 %v1495
    %v2640 = vpop.f32.mrb[0].mxu0
    %v2641 = vadd.f32 %v340, %v2640
    %v2642 = vpop.f32.mrb[0].mxu0
    %v2643 = vpop.f32.mrb[0].mxu0
    %v2644 = vadd.f32 %v340, %v2643
    %v2645 = vpop.f32.mrb[0].mxu0
    %2646 = vmatprep.mubr.bf16.mxu0 0
    %2647 = vmatmul.mubr.bf16.gmra.mrb[0].mxu0 %v1498
    %v2648 = vpop.f32.mrb[0].mxu0
    %v2649 = vadd.f32 %v340, %v2648
    %v2650 = vpop.f32.mrb[0].mxu0
    %v2651 = vpop.f32.mrb[0].mxu0
    %v2652 = vadd.f32 %v340, %v2651
    %v2653 = vpop.f32.mrb[0].mxu0
    %2654 = vmatprep.mubr.bf16.mxu0 0
    %2655 = vmatmul.mubr.bf16.gmra.mrb[0].mxu0 %v1501
    %v2656 = vpop.f32.mrb[0].mxu0
    %v2657 = vadd.f32 %v340, %v2656
    %v2658 = vpop.f32.mrb[0].mxu0
    %v2659 = vpop.f32.mrb[0].mxu0
    %v2660 = vadd.f32 %v340, %v2659
    %v2661 = vpop.f32.mrb[0].mxu0
    %2662 = vmatprep.mubr.bf16.mxu0 0
    %2663 = vmatmul.mubr.bf16.gmra.mrb[0].mxu0 %v1504
    %v2664 = vpop.f32.mrb[0].mxu0
    %v2665 = vadd.f32 %v340, %v2664
    %v2666 = vpop.f32.mrb[0].mxu0
    %v2667 = vpop.f32.mrb[0].mxu0
    %v2668 = vadd.f32 %v340, %v2667
    %v2669 = vpop.f32.mrb[0].mxu0
    %2670 = vmatprep.mubr.bf16.mxu0 0
    %2671 = vmatmul.mubr.bf16.gmra.mrb[0].mxu0 %v1507
    %v2672 = vpop.f32.mrb[0].mxu0
    %v2673 = vadd.f32 %v340, %v2672
    %v2674 = vpop.f32.mrb[0].mxu0
    %v2675 = vpop.f32.mrb[0].mxu0
    %v2676 = vadd.f32 %v340, %v2675
    %v2677 = vpop.f32.mrb[0].mxu0
    %2678 = vmatprep.mubr.bf16.mxu0 0
    %2679 = vmatmul.mubr.bf16.gmra.mrb[0].mxu0 %v1510
    %v2680 = vpop.f32.mrb[0].mxu0
    %v2681 = vadd.f32 %v340, %v2680
    %v2682 = vpop.f32.mrb[0].mxu0
    %v2683 = vpop.f32.mrb[0].mxu0
    %v2684 = vadd.f32 %v340, %v2683
    %v2685 = vpop.f32.mrb[0].mxu0
    %2686 = vmatprep.mubr.bf16.mxu0 0
    %2687 = vmatmul.mubr.bf16.gmra.mrb[0].mxu0 %v1513
    %v2688 = vpop.f32.mrb[0].mxu0
    %v2689 = vadd.f32 %v340, %v2688
    %v2690 = vpop.f32.mrb[0].mxu0
    %v2691 = vpop.f32.mrb[0].mxu0
    %v2692 = vadd.f32 %v340, %v2691
    %v2693 = vpop.f32.mrb[0].mxu0
    %2694 = vmatprep.mubr.bf16.mxu0 0
    %2695 = vmatmul.mubr.bf16.gmra.mrb[0].mxu0 %v1516
    %v2696 = vpop.f32.mrb[0].mxu0
    %v2697 = vadd.f32 %v340, %v2696
    %v2698 = vpop.f32.mrb[0].mxu0
    %v2699 = vpop.f32.mrb[0].mxu0
    %v2700 = vadd.f32 %v340, %v2699
    %v2701 = vpop.f32.mrb[0].mxu0
    %2702 = vdwg.mxu0
    %v2703 = vmax.f32 %v1553, 0.0
    %v2704 = vmax.f32 %v1556, 0.0
    %v2705 = vmax.f32 %v1561, 0.0
    %v2706 = vmax.f32 %v1564, 0.0
    %v2707 = vmax.f32 %v1569, 0.0
    %v2708 = vmax.f32 %v1572, 0.0
    %v2709 = vmax.f32 %v1577, 0.0
    %v2710 = vmax.f32 %v1580, 0.0
    %v2711 = vmax.f32 %v1585, 0.0
    %v2712 = vmax.f32 %v1588, 0.0
    %v2713 = vmax.f32 %v1593, 0.0
    %v2714 = vmax.f32 %v1596, 0.0
    %v2715 = vmax.f32 %v1601, 0.0
    %v2716 = vmax.f32 %v1604, 0.0
    %v2717 = vmax.f32 %v1609, 0.0
    %v2718 = vmax.f32 %v1612, 0.0
    %v2719 = vmax.f32 %v1617, 0.0
    %v2720 = vmax.f32 %v1620, 0.0
    %v2721 = vmax.f32 %v1625, 0.0
    %v2722 = vmax.f32 %v1628, 0.0
    %v2723 = vmax.f32 %v1633, 0.0
    %v2724 = vmax.f32 %v1636, 0.0
    %v2725 = vmax.f32 %v1641, 0.0
    %v2726 = vmax.f32 %v1644, 0.0
    %v2727 = vmax.f32 %v1649, 0.0
    %v2728 = vmax.f32 %v1652, 0.0
    %v2729 = vmax.f32 %v1657, 0.0
    %v2730 = vmax.f32 %v1660, 0.0
    %v2731 = vmax.f32 %v1665, 0.0
    %v2732 = vmax.f32 %v1668, 0.0
    %v2733 = vmax.f32 %v1673, 0.0
    %v2734 = vmax.f32 %v1676, 0.0
    %v2735 = vmax.f32 %v1681, 0.0
    %v2736 = vmax.f32 %v1684, 0.0
    %v2737 = vmax.f32 %v1689, 0.0
    %v2738 = vmax.f32 %v1692, 0.0
    %v2739 = vmax.f32 %v1697, 0.0
    %v2740 = vmax.f32 %v1700, 0.0
    %v2741 = vmax.f32 %v1705, 0.0
    %v2742 = vmax.f32 %v1708, 0.0
    %v2743 = vmax.f32 %v1713, 0.0
    %v2744 = vmax.f32 %v1716, 0.0
    %v2745 = vmax.f32 %v1721, 0.0
    %v2746 = vmax.f32 %v1724, 0.0
    %v2747 = vmax.f32 %v1729, 0.0
    %v2748 = vmax.f32 %v1732, 0.0
    %v2749 = vmax.f32 %v1737, 0.0
    %v2750 = vmax.f32 %v1740, 0.0
    %v2751 = vmax.f32 %v1745, 0.0
    %v2752 = vmax.f32 %v1748, 0.0
    %v2753 = vmax.f32 %v1753, 0.0
    %v2754 = vmax.f32 %v1756, 0.0
    %v2755 = vmax.f32 %v1761, 0.0
    %v2756 = vmax.f32 %v1764, 0.0
    %v2757 = vmax.f32 %v1769, 0.0
    %v2758 = vmax.f32 %v1772, 0.0
    %v2759 = vmax.f32 %v1777, 0.0
    %v2760 = vmax.f32 %v1780, 0.0
    %v2761 = vmax.f32 %v1785, 0.0
    %v2762 = vmax.f32 %v1788, 0.0
    %v2763 = vmax.f32 %v1793, 0.0
    %v2764 = vmax.f32 %v1796, 0.0
    %v2765 = vmax.f32 %v1801, 0.0
    %v2766 = vmax.f32 %v1804, 0.0
    %v2767 = vmax.f32 %v1809, 0.0
    %v2768 = vmax.f32 %v1812, 0.0
    %v2769 = vmax.f32 %v1817, 0.0
    %v2770 = vmax.f32 %v1820, 0.0
    %v2771 = vmax.f32 %v1825, 0.0
    %v2772 = vmax.f32 %v1828, 0.0
    %v2773 = vmax.f32 %v1833, 0.0
    %v2774 = vmax.f32 %v1836, 0.0
    %v2775 = vmax.f32 %v1841, 0.0
    %v2776 = vmax.f32 %v1844, 0.0
    %v2777 = vmax.f32 %v1849, 0.0
    %v2778 = vmax.f32 %v1852, 0.0
    %v2779 = vmax.f32 %v1857, 0.0
    %v2780 = vmax.f32 %v1860, 0.0
    %v2781 = vmax.f32 %v1865, 0.0
    %v2782 = vmax.f32 %v1868, 0.0
    %v2783 = vmax.f32 %v1873, 0.0
    %v2784 = vmax.f32 %v1876, 0.0
    %v2785 = vmax.f32 %v1881, 0.0
    %v2786 = vmax.f32 %v1884, 0.0
    %v2787 = vmax.f32 %v1889, 0.0
    %v2788 = vmax.f32 %v1892, 0.0
    %v2789 = vmax.f32 %v1897, 0.0
    %v2790 = vmax.f32 %v1900, 0.0
    %v2791 = vmax.f32 %v1905, 0.0
    %v2792 = vmax.f32 %v1908, 0.0
    %v2793 = vmax.f32 %v1913, 0.0
    %v2794 = vmax.f32 %v1916, 0.0
    %v2795 = vmax.f32 %v1921, 0.0
    %v2796 = vmax.f32 %v1924, 0.0
    %v2797 = vmax.f32 %v1929, 0.0
    %v2798 = vmax.f32 %v1932, 0.0
    %v2799 = vmax.f32 %v1937, 0.0
    %v2800 = vmax.f32 %v1940, 0.0
    %v2801 = vmax.f32 %v1945, 0.0
    %v2802 = vmax.f32 %v1948, 0.0
    %v2803 = vmax.f32 %v1953, 0.0
    %v2804 = vmax.f32 %v1956, 0.0
    %v2805 = vmax.f32 %v1961, 0.0
    %v2806 = vmax.f32 %v1964, 0.0
    %v2807 = vmax.f32 %v1969, 0.0
    %v2808 = vmax.f32 %v1972, 0.0
    %v2809 = vmax.f32 %v1977, 0.0
    %v2810 = vmax.f32 %v1980, 0.0
    %v2811 = vmax.f32 %v1985, 0.0
    %v2812 = vmax.f32 %v1988, 0.0
    %v2813 = vmax.f32 %v1993, 0.0
    %v2814 = vmax.f32 %v1996, 0.0
    %v2815 = vmax.f32 %v2001, 0.0
    %v2816 = vmax.f32 %v2004, 0.0
    %v2817 = vmax.f32 %v2009, 0.0
    %v2818 = vmax.f32 %v2012, 0.0
    %v2819 = vmax.f32 %v2017, 0.0
    %v2820 = vmax.f32 %v2020, 0.0
    %v2821 = vmax.f32 %v2025, 0.0
    %v2822 = vmax.f32 %v2028, 0.0
    %v2823 = vmax.f32 %v2033, 0.0
    %v2824 = vmax.f32 %v2036, 0.0
    %v2825 = vmax.f32 %v2041, 0.0
    %v2826 = vmax.f32 %v2044, 0.0
    %v2827 = vmax.f32 %v2049, 0.0
    %v2828 = vmax.f32 %v2052, 0.0
    %v2829 = vmax.f32 %v2057, 0.0
    %v2830 = vmax.f32 %v2060, 0.0
    %v2831 = vmax.f32 %v2065, 0.0
    %v2832 = vmax.f32 %v2068, 0.0
    %v2833 = vmax.f32 %v2073, 0.0
    %v2834 = vmax.f32 %v2076, 0.0
    %v2835 = vmax.f32 %v2081, 0.0
    %v2836 = vmax.f32 %v2084, 0.0
    %v2837 = vmax.f32 %v2089, 0.0
    %v2838 = vmax.f32 %v2092, 0.0
    %v2839 = vmax.f32 %v2097, 0.0
    %v2840 = vmax.f32 %v2100, 0.0
    %v2841 = vmax.f32 %v2105, 0.0
    %v2842 = vmax.f32 %v2108, 0.0
    %v2843 = vmax.f32 %v2113, 0.0
    %v2844 = vmax.f32 %v2116, 0.0
    %v2845 = vmax.f32 %v2121, 0.0
    %v2846 = vmax.f32 %v2124, 0.0
    %v2847 = vmax.f32 %v2129, 0.0
    %v2848 = vmax.f32 %v2132, 0.0
    %v2849 = vmax.f32 %v2137, 0.0
    %v2850 = vmax.f32 %v2140, 0.0
    %v2851 = vmax.f32 %v2145, 0.0
    %v2852 = vmax.f32 %v2148, 0.0
    %v2853 = vmax.f32 %v2153, 0.0
    %v2854 = vmax.f32 %v2156, 0.0
    %v2855 = vmax.f32 %v2161, 0.0
    %v2856 = vmax.f32 %v2164, 0.0
    %v2857 = vmax.f32 %v2169, 0.0
    %v2858 = vmax.f32 %v2172, 0.0
    %v2859 = vmax.f32 %v2177, 0.0
    %v2860 = vmax.f32 %v2180, 0.0
    %v2861 = vmax.f32 %v2185, 0.0
    %v2862 = vmax.f32 %v2188, 0.0
    %v2863 = vmax.f32 %v2193, 0.0
    %v2864 = vmax.f32 %v2196, 0.0
    %v2865 = vmax.f32 %v2201, 0.0
    %v2866 = vmax.f32 %v2204, 0.0
    %v2867 = vmax.f32 %v2209, 0.0
    %v2868 = vmax.f32 %v2212, 0.0
    %v2869 = vmax.f32 %v2217, 0.0
    %v2870 = vmax.f32 %v2220, 0.0
    %v2871 = vmax.f32 %v2225, 0.0
    %v2872 = vmax.f32 %v2228, 0.0
    %v2873 = vmax.f32 %v2233, 0.0
    %v2874 = vmax.f32 %v2236, 0.0
    %v2875 = vmax.f32 %v2241, 0.0
    %v2876 = vmax.f32 %v2244, 0.0
    %v2877 = vmax.f32 %v2249, 0.0
    %v2878 = vmax.f32 %v2252, 0.0
    %v2879 = vmax.f32 %v2257, 0.0
    %v2880 = vmax.f32 %v2260, 0.0
    %v2881 = vmax.f32 %v2265, 0.0
    %v2882 = vmax.f32 %v2268, 0.0
    %v2883 = vmax.f32 %v2273, 0.0
    %v2884 = vmax.f32 %v2276, 0.0
    %v2885 = vmax.f32 %v2281, 0.0
    %v2886 = vmax.f32 %v2284, 0.0
    %v2887 = vmax.f32 %v2289, 0.0
    %v2888 = vmax.f32 %v2292, 0.0
    %v2889 = vmax.f32 %v2297, 0.0
    %v2890 = vmax.f32 %v2300, 0.0
    %v2891 = vmax.f32 %v2305, 0.0
    %v2892 = vmax.f32 %v2308, 0.0
    %v2893 = vmax.f32 %v2313, 0.0
    %v2894 = vmax.f32 %v2316, 0.0
    %v2895 = vmax.f32 %v2321, 0.0
    %v2896 = vmax.f32 %v2324, 0.0
    %v2897 = vmax.f32 %v2329, 0.0
    %v2898 = vmax.f32 %v2332, 0.0
    %v2899 = vmax.f32 %v2337, 0.0
    %v2900 = vmax.f32 %v2340, 0.0
    %v2901 = vmax.f32 %v2345, 0.0
    %v2902 = vmax.f32 %v2348, 0.0
    %v2903 = vmax.f32 %v2353, 0.0
    %v2904 = vmax.f32 %v2356, 0.0
    %v2905 = vmax.f32 %v2361, 0.0
    %v2906 = vmax.f32 %v2364, 0.0
    %v2907 = vmax.f32 %v2369, 0.0
    %v2908 = vmax.f32 %v2372, 0.0
    %v2909 = vmax.f32 %v2377, 0.0
    %v2910 = vmax.f32 %v2380, 0.0
    %v2911 = vmax.f32 %v2385, 0.0
    %v2912 = vmax.f32 %v2388, 0.0
    %v2913 = vmax.f32 %v2393, 0.0
    %v2914 = vmax.f32 %v2396, 0.0
    %v2915 = vmax.f32 %v2401, 0.0
    %v2916 = vmax.f32 %v2404, 0.0
    %v2917 = vmax.f32 %v2409, 0.0
    %v2918 = vmax.f32 %v2412, 0.0
    %v2919 = vmax.f32 %v2417, 0.0
    %v2920 = vmax.f32 %v2420, 0.0
    %v2921 = vmax.f32 %v2425, 0.0
    %v2922 = vmax.f32 %v2428, 0.0
    %v2923 = vmax.f32 %v2433, 0.0
    %v2924 = vmax.f32 %v2436, 0.0
    %v2925 = vmax.f32 %v2441, 0.0
    %v2926 = vmax.f32 %v2444, 0.0
    %v2927 = vmax.f32 %v2449, 0.0
    %v2928 = vmax.f32 %v2452, 0.0
    %v2929 = vmax.f32 %v2457, 0.0
    %v2930 = vmax.f32 %v2460, 0.0
    %v2931 = vmax.f32 %v2465, 0.0
    %v2932 = vmax.f32 %v2468, 0.0
    %v2933 = vmax.f32 %v2473, 0.0
    %v2934 = vmax.f32 %v2476, 0.0
    %v2935 = vmax.f32 %v2481, 0.0
    %v2936 = vmax.f32 %v2484, 0.0
    %v2937 = vmax.f32 %v2489, 0.0
    %v2938 = vmax.f32 %v2492, 0.0
    %v2939 = vmax.f32 %v2497, 0.0
    %v2940 = vmax.f32 %v2500, 0.0
    %v2941 = vmax.f32 %v2505, 0.0
    %v2942 = vmax.f32 %v2508, 0.0
    %v2943 = vmax.f32 %v2513, 0.0
    %v2944 = vmax.f32 %v2516, 0.0
    %v2945 = vmax.f32 %v2521, 0.0
    %v2946 = vmax.f32 %v2524, 0.0
    %v2947 = vmax.f32 %v2529, 0.0
    %v2948 = vmax.f32 %v2532, 0.0
    %v2949 = vmax.f32 %v2537, 0.0
    %v2950 = vmax.f32 %v2540, 0.0
    %v2951 = vmax.f32 %v2545, 0.0
    %v2952 = vmax.f32 %v2548, 0.0
    %v2953 = vmax.f32 %v2553, 0.0
    %v2954 = vmax.f32 %v2556, 0.0
    %v2955 = vmax.f32 %v2561, 0.0
    %v2956 = vmax.f32 %v2564, 0.0
    %v2957 = vmax.f32 %v2569, 0.0
    %v2958 = vmax.f32 %v2572, 0.0
    %v2959 = vmax.f32 %v2577, 0.0
    %v2960 = vmax.f32 %v2580, 0.0
    %v2961 = vmax.f32 %v2585, 0.0
    %v2962 = vmax.f32 %v2588, 0.0
    %v2963 = vmax.f32 %v2593, 0.0
    %v2964 = vmax.f32 %v2596, 0.0
    %v2965 = vmax.f32 %v2601, 0.0
    %v2966 = vmax.f32 %v2604, 0.0
    %v2967 = vmax.f32 %v2609, 0.0
    %v2968 = vmax.f32 %v2612, 0.0
    %v2969 = vmax.f32 %v2617, 0.0
    %v2970 = vmax.f32 %v2620, 0.0
    %v2971 = vmax.f32 %v2625, 0.0
    %v2972 = vmax.f32 %v2628, 0.0
    %v2973 = vmax.f32 %v2633, 0.0
    %v2974 = vmax.f32 %v2636, 0.0
    %v2975 = vmax.f32 %v2641, 0.0
    %v2976 = vmax.f32 %v2644, 0.0
    %v2977 = vmax.f32 %v2649, 0.0
    %v2978 = vmax.f32 %v2652, 0.0
    %v2979 = vmax.f32 %v2657, 0.0
    %v2980 = vmax.f32 %v2660, 0.0
    %v2981 = vmax.f32 %v2665, 0.0
    %v2982 = vmax.f32 %v2668, 0.0
    %v2983 = vmax.f32 %v2673, 0.0
    %v2984 = vmax.f32 %v2676, 0.0
    %v2985 = vmax.f32 %v2681, 0.0
    %v2986 = vmax.f32 %v2684, 0.0
    %v2987 = vmax.f32 %v2689, 0.0
    %v2988 = vmax.f32 %v2692, 0.0
    %v2989 = vmax.f32 %v2697, 0.0
    %v2990 = vmax.f32 %v2700, 0.0
    %v2991 = vpack.c.bf16 %v2704, %v2703
    %v2992 = vpack.c.bf16 %v2706, %v2705
    %v2993 = vpack.c.bf16 %v2708, %v2707
    %v2994 = vpack.c.bf16 %v2710, %v2709
    %v2995 = vpack.c.bf16 %v2712, %v2711
    %v2996 = vpack.c.bf16 %v2714, %v2713
    %v2997 = vpack.c.bf16 %v2716, %v2715
    %v2998 = vpack.c.bf16 %v2718, %v2717
    %v2999 = vpack.c.bf16 %v2720, %v2719
    %v3000 = vpack.c.bf16 %v2722, %v2721
    %v3001 = vpack.c.bf16 %v2724, %v2723
    %v3002 = vpack.c.bf16 %v2726, %v2725
    %v3003 = vpack.c.bf16 %v2728, %v2727
    %v3004 = vpack.c.bf16 %v2730, %v2729
    %v3005 = vpack.c.bf16 %v2732, %v2731
    %v3006 = vpack.c.bf16 %v2734, %v2733
    %v3007 = vpack.c.bf16 %v2736, %v2735
    %v3008 = vpack.c.bf16 %v2738, %v2737
    %v3009 = vpack.c.bf16 %v2740, %v2739
    %v3010 = vpack.c.bf16 %v2742, %v2741
    %v3011 = vpack.c.bf16 %v2744, %v2743
    %v3012 = vpack.c.bf16 %v2746, %v2745
    %v3013 = vpack.c.bf16 %v2748, %v2747
    %v3014 = vpack.c.bf16 %v2750, %v2749
    %v3015 = vpack.c.bf16 %v2752, %v2751
    %v3016 = vpack.c.bf16 %v2754, %v2753
    %v3017 = vpack.c.bf16 %v2756, %v2755
    %v3018 = vpack.c.bf16 %v2758, %v2757
    %v3019 = vpack.c.bf16 %v2760, %v2759
    %v3020 = vpack.c.bf16 %v2762, %v2761
    %v3021 = vpack.c.bf16 %v2764, %v2763
    %v3022 = vpack.c.bf16 %v2766, %v2765
    %v3023 = vpack.c.bf16 %v2768, %v2767
    %v3024 = vpack.c.bf16 %v2770, %v2769
    %v3025 = vpack.c.bf16 %v2772, %v2771
    %v3026 = vpack.c.bf16 %v2774, %v2773
    %v3027 = vpack.c.bf16 %v2776, %v2775
    %v3028 = vpack.c.bf16 %v2778, %v2777
    %v3029 = vpack.c.bf16 %v2780, %v2779
    %v3030 = vpack.c.bf16 %v2782, %v2781
    %v3031 = vpack.c.bf16 %v2784, %v2783
    %v3032 = vpack.c.bf16 %v2786, %v2785
    %v3033 = vpack.c.bf16 %v2788, %v2787
    %v3034 = vpack.c.bf16 %v2790, %v2789
    %v3035 = vpack.c.bf16 %v2792, %v2791
    %v3036 = vpack.c.bf16 %v2794, %v2793
    %v3037 = vpack.c.bf16 %v2796, %v2795
    %v3038 = vpack.c.bf16 %v2798, %v2797
    %v3039 = vpack.c.bf16 %v2800, %v2799
    %v3040 = vpack.c.bf16 %v2802, %v2801
    %v3041 = vpack.c.bf16 %v2804, %v2803
    %v3042 = vpack.c.bf16 %v2806, %v2805
    %v3043 = vpack.c.bf16 %v2808, %v2807
    %v3044 = vpack.c.bf16 %v2810, %v2809
    %v3045 = vpack.c.bf16 %v2812, %v2811
    %v3046 = vpack.c.bf16 %v2814, %v2813
    %v3047 = vpack.c.bf16 %v2816, %v2815
    %v3048 = vpack.c.bf16 %v2818, %v2817
    %v3049 = vpack.c.bf16 %v2820, %v2819
    %v3050 = vpack.c.bf16 %v2822, %v2821
    %v3051 = vpack.c.bf16 %v2824, %v2823
    %v3052 = vpack.c.bf16 %v2826, %v2825
    %v3053 = vpack.c.bf16 %v2828, %v2827
    %v3054 = vpack.c.bf16 %v2830, %v2829
    %v3055 = vpack.c.bf16 %v2832, %v2831
    %v3056 = vpack.c.bf16 %v2834, %v2833
    %v3057 = vpack.c.bf16 %v2836, %v2835
    %v3058 = vpack.c.bf16 %v2838, %v2837
    %v3059 = vpack.c.bf16 %v2840, %v2839
    %v3060 = vpack.c.bf16 %v2842, %v2841
    %v3061 = vpack.c.bf16 %v2844, %v2843
    %v3062 = vpack.c.bf16 %v2846, %v2845
    %v3063 = vpack.c.bf16 %v2848, %v2847
    %v3064 = vpack.c.bf16 %v2850, %v2849
    %v3065 = vpack.c.bf16 %v2852, %v2851
    %v3066 = vpack.c.bf16 %v2854, %v2853
    %v3067 = vpack.c.bf16 %v2856, %v2855
    %v3068 = vpack.c.bf16 %v2858, %v2857
    %v3069 = vpack.c.bf16 %v2860, %v2859
    %v3070 = vpack.c.bf16 %v2862, %v2861
    %v3071 = vpack.c.bf16 %v2864, %v2863
    %v3072 = vpack.c.bf16 %v2866, %v2865
    %v3073 = vpack.c.bf16 %v2868, %v2867
    %v3074 = vpack.c.bf16 %v2870, %v2869
    %v3075 = vpack.c.bf16 %v2872, %v2871
    %v3076 = vpack.c.bf16 %v2874, %v2873
    %v3077 = vpack.c.bf16 %v2876, %v2875
    %v3078 = vpack.c.bf16 %v2878, %v2877
    %v3079 = vpack.c.bf16 %v2880, %v2879
    %v3080 = vpack.c.bf16 %v2882, %v2881
    %v3081 = vpack.c.bf16 %v2884, %v2883
    %v3082 = vpack.c.bf16 %v2886, %v2885
    %v3083 = vpack.c.bf16 %v2888, %v2887
    %v3084 = vpack.c.bf16 %v2890, %v2889
    %v3085 = vpack.c.bf16 %v2892, %v2891
    %v3086 = vpack.c.bf16 %v2894, %v2893
    %v3087 = vpack.c.bf16 %v2896, %v2895
    %v3088 = vpack.c.bf16 %v2898, %v2897
    %v3089 = vpack.c.bf16 %v2900, %v2899
    %v3090 = vpack.c.bf16 %v2902, %v2901
    %v3091 = vpack.c.bf16 %v2904, %v2903
    %v3092 = vpack.c.bf16 %v2906, %v2905
    %v3093 = vpack.c.bf16 %v2908, %v2907
    %v3094 = vpack.c.bf16 %v2910, %v2909
    %v3095 = vpack.c.bf16 %v2912, %v2911
    %v3096 = vpack.c.bf16 %v2914, %v2913
    %v3097 = vpack.c.bf16 %v2916, %v2915
    %v3098 = vpack.c.bf16 %v2918, %v2917
    %v3099 = vpack.c.bf16 %v2920, %v2919
    %v3100 = vpack.c.bf16 %v2922, %v2921
    %v3101 = vpack.c.bf16 %v2924, %v2923
    %v3102 = vpack.c.bf16 %v2926, %v2925
    %v3103 = vpack.c.bf16 %v2928, %v2927
    %v3104 = vpack.c.bf16 %v2930, %v2929
    %v3105 = vpack.c.bf16 %v2932, %v2931
    %v3106 = vpack.c.bf16 %v2934, %v2933
    %v3107 = vpack.c.bf16 %v2936, %v2935
    %v3108 = vpack.c.bf16 %v2938, %v2937
    %v3109 = vpack.c.bf16 %v2940, %v2939
    %v3110 = vpack.c.bf16 %v2942, %v2941
    %v3111 = vpack.c.bf16 %v2944, %v2943
    %v3112 = vpack.c.bf16 %v2946, %v2945
    %v3113 = vpack.c.bf16 %v2948, %v2947
    %v3114 = vpack.c.bf16 %v2950, %v2949
    %v3115 = vpack.c.bf16 %v2952, %v2951
    %v3116 = vpack.c.bf16 %v2954, %v2953
    %v3117 = vpack.c.bf16 %v2956, %v2955
    %v3118 = vpack.c.bf16 %v2958, %v2957
    %v3119 = vpack.c.bf16 %v2960, %v2959
    %v3120 = vpack.c.bf16 %v2962, %v2961
    %v3121 = vpack.c.bf16 %v2964, %v2963
    %v3122 = vpack.c.bf16 %v2966, %v2965
    %v3123 = vpack.c.bf16 %v2968, %v2967
    %v3124 = vpack.c.bf16 %v2970, %v2969
    %v3125 = vpack.c.bf16 %v2972, %v2971
    %v3126 = vpack.c.bf16 %v2974, %v2973
    %v3127 = vpack.c.bf16 %v2976, %v2975
    %v3128 = vpack.c.bf16 %v2978, %v2977
    %v3129 = vpack.c.bf16 %v2980, %v2979
    %v3130 = vpack.c.bf16 %v2982, %v2981
    %v3131 = vpack.c.bf16 %v2984, %v2983
    %v3132 = vpack.c.bf16 %v2986, %v2985
    %v3133 = vpack.c.bf16 %v2988, %v2987
    %v3134 = vpack.c.bf16 %v2990, %v2989
    %v3135 = vld [vmem:[%s3] sm:$0xf]
    %v3136 = vld [vmem:[%s3 + $0x4] sm:$0xf]
    %v3137 = vld [vmem:[%s3 + $0x8] sm:$0xf]
    %v3138 = vld [vmem:[%s3 + $0xc] sm:$0xf]
    %v3139 = vld [vmem:[%s3 + $0x10] sm:$0xf]
    %v3140 = vld [vmem:[%s3 + $0x14] sm:$0xf]
    %v3141 = vld [vmem:[%s3 + $0x18] sm:$0xf]
    %v3142 = vld [vmem:[%s3 + $0x1c] sm:$0xf]
    %v3143 = vld [vmem:[%s3 + $0x20] sm:$0xf]
    %v3144 = vld [vmem:[%s3 + $0x24] sm:$0xf]
    %v3145 = vld [vmem:[%s3 + $0x28] sm:$0xf]
    %v3146 = vld [vmem:[%s3 + $0x2c] sm:$0xf]
    %v3147 = vld [vmem:[%s3 + $0x30] sm:$0xf]
    %v3148 = vld [vmem:[%s3 + $0x34] sm:$0xf]
    %v3149 = vld [vmem:[%s3 + $0x38] sm:$0xf]
    %v3150 = vld [vmem:[%s3 + $0x3c] sm:$0xf]
    %s3151 = scalar_lea.vmem %s3, 64
    %v3152 = vld [vmem:[%s3151] sm:$0xf]
    %v3153 = vld [vmem:[%s3151 + $0x4] sm:$0xf]
    %v3154 = vld [vmem:[%s3151 + $0x8] sm:$0xf]
    %v3155 = vld [vmem:[%s3151 + $0xc] sm:$0xf]
    %v3156 = vld [vmem:[%s3151 + $0x10] sm:$0xf]
    %v3157 = vld [vmem:[%s3151 + $0x14] sm:$0xf]
    %v3158 = vld [vmem:[%s3151 + $0x18] sm:$0xf]
    %v3159 = vld [vmem:[%s3151 + $0x1c] sm:$0xf]
    %v3160 = vld [vmem:[%s3151 + $0x20] sm:$0xf]
    %v3161 = vld [vmem:[%s3151 + $0x24] sm:$0xf]
    %v3162 = vld [vmem:[%s3151 + $0x28] sm:$0xf]
    %v3163 = vld [vmem:[%s3151 + $0x2c] sm:$0xf]
    %v3164 = vld [vmem:[%s3151 + $0x30] sm:$0xf]
    %v3165 = vld [vmem:[%s3151 + $0x34] sm:$0xf]
    %v3166 = vld [vmem:[%s3151 + $0x38] sm:$0xf]
    %v3167 = vld [vmem:[%s3151 + $0x3c] sm:$0xf]
    %v3184 = vunpack.c.l.b16 %v3152
    %v3185 = vunpack.c.l.b16 %v3153
    %v3186 = vunpack.c.l.b16 %v3154
    %v3187 = vunpack.c.l.b16 %v3155
    %v3188 = vunpack.c.l.b16 %v3156
    %v3189 = vunpack.c.l.b16 %v3157
    %v3190 = vunpack.c.l.b16 %v3158
    %v3191 = vunpack.c.l.b16 %v3159
    %v3192 = vunpack.c.l.b16 %v3160
    %v3193 = vunpack.c.l.b16 %v3161
    %v3194 = vunpack.c.l.b16 %v3162
    %v3195 = vunpack.c.l.b16 %v3163
    %v3196 = vunpack.c.l.b16 %v3164
    %v3197 = vunpack.c.l.b16 %v3165
    %v3198 = vunpack.c.l.b16 %v3166
    %v3199 = vunpack.c.l.b16 %v3167
    %v3200 = vpack.c.b16 %v3185, %v3184
    %v3201 = vpack.c.b16 %v3187, %v3186
    %v3202 = vpack.c.b16 %v3189, %v3188
    %v3203 = vpack.c.b16 %v3191, %v3190
    %v3204 = vpack.c.b16 %v3193, %v3192
    %v3205 = vpack.c.b16 %v3195, %v3194
    %v3206 = vpack.c.b16 %v3197, %v3196
    %v3207 = vpack.c.b16 %v3199, %v3198
    %3216 = vmatprep.subr.bf16.mxu0 0
    %3217 = vmatpush1.bf16.msra.mxu0 %v3200
    %3218 = vmatprep.subr.bf16.mxu0 0
    %3219 = vmatpush1.bf16.msra.mxu0 %v3201
    %3220 = vmatprep.subr.bf16.mxu0 0
    %3221 = vmatpush1.bf16.msra.mxu0 %v3202
    %3222 = vmatprep.subr.bf16.mxu0 0
    %3223 = vmatpush1.bf16.msra.mxu0 %v3203
    %3224 = vmatprep.subr.bf16.mxu0 0
    %3225 = vmatpush1.bf16.msra.mxu0 %v3204
    %3226 = vmatprep.subr.bf16.mxu0 0
    %3227 = vmatpush1.bf16.msra.mxu0 %v3205
    %3228 = vmatprep.subr.bf16.mxu0 0
    %3229 = vmatpush1.bf16.msra.mxu0 %v3206
    %3230 = vmatprep.subr.bf16.mxu0 0
    %3231 = vmatpush1.bf16.msra.mxu0 %v3207
    %3232 = vmatprep.subr.bf16.mxu0 0
    %3233 = vmatpush1.bf16.msra.mxu0 0
    %3234 = vmatprep.subr.bf16.mxu0 0
    %3235 = vmatpush1.bf16.msra.mxu0 0
    %3236 = vmatprep.subr.bf16.mxu0 0
    %3237 = vmatpush1.bf16.msra.mxu0 0
    %3238 = vmatprep.subr.bf16.mxu0 0
    %3239 = vmatpush1.bf16.msra.mxu0 0
    %3240 = vmatprep.subr.bf16.mxu0 0
    %3241 = vmatpush1.bf16.msra.mxu0 0
    %3242 = vmatprep.subr.bf16.mxu0 0
    %3243 = vmatpush1.bf16.msra.mxu0 0
    %3244 = vmatprep.subr.bf16.mxu0 0
    %3245 = vmatpush1.bf16.msra.mxu0 0
    %3246 = vmatprep.subr.bf16.mxu0 0
    %3247 = vmatpush1.bf16.msra.mxu0 0
    %3248 = vmatprep.mubr.bf16.mxu0 0
    %3249 = vmatmul.mubr.bf16.gmra.mrb[0].mxu0 %v3000
    %v3250 = vpop.f32.mrb[0].mxu0
    %v3251 = vadd.f32 0.0, %v3250
    %v3252 = vpop.f32.mrb[0].mxu0
    %v3253 = vpop.f32.mrb[0].mxu0
    %v3254 = vadd.f32 0.0, %v3253
    %v3255 = vpop.f32.mrb[0].mxu0
    %3256 = vmatprep.mubr.bf16.mxu0 0
    %3257 = vmatmul.mubr.bf16.gmra.mrb[0].mxu0 %v3001
    %v3258 = vpop.f32.mrb[0].mxu0
    %v3259 = vadd.f32 0.0, %v3258
    %v3260 = vpop.f32.mrb[0].mxu0
    %v3261 = vpop.f32.mrb[0].mxu0
    %v3262 = vadd.f32 0.0, %v3261
    %v3263 = vpop.f32.mrb[0].mxu0
    %3264 = vmatprep.mubr.bf16.mxu0 0
    %3265 = vmatmul.mubr.bf16.gmra.mrb[0].mxu0 %v3002
    %v3266 = vpop.f32.mrb[0].mxu0
    %v3267 = vadd.f32 0.0, %v3266
    %v3268 = vpop.f32.mrb[0].mxu0
    %v3269 = vpop.f32.mrb[0].mxu0
    %v3270 = vadd.f32 0.0, %v3269
    %v3271 = vpop.f32.mrb[0].mxu0
    %3272 = vmatprep.mubr.bf16.mxu0 0
    %3273 = vmatmul.mubr.bf16.gmra.mrb[0].mxu0 %v3003
    %v3274 = vpop.f32.mrb[0].mxu0
    %v3275 = vadd.f32 0.0, %v3274
    %v3276 = vpop.f32.mrb[0].mxu0
    %v3277 = vpop.f32.mrb[0].mxu0
    %v3278 = vadd.f32 0.0, %v3277
    %v3279 = vpop.f32.mrb[0].mxu0
    %3280 = vmatprep.mubr.bf16.mxu0 0
    %3281 = vmatmul.mubr.bf16.gmra.mrb[0].mxu0 %v3004
    %v3282 = vpop.f32.mrb[0].mxu0
    %v3283 = vadd.f32 0.0, %v3282
    %v3284 = vpop.f32.mrb[0].mxu0
    %v3285 = vpop.f32.mrb[0].mxu0
    %v3286 = vadd.f32 0.0, %v3285
    %v3287 = vpop.f32.mrb[0].mxu0
    %3288 = vmatprep.mubr.bf16.mxu0 0
    %3289 = vmatmul.mubr.bf16.gmra.mrb[0].mxu0 %v3005
    %v3290 = vpop.f32.mrb[0].mxu0
    %v3291 = vadd.f32 0.0, %v3290
    %v3292 = vpop.f32.mrb[0].mxu0
    %v3293 = vpop.f32.mrb[0].mxu0
    %v3294 = vadd.f32 0.0, %v3293
    %v3295 = vpop.f32.mrb[0].mxu0
    %3296 = vmatprep.mubr.bf16.mxu0 0
    %3297 = vmatmul.mubr.bf16.gmra.mrb[0].mxu0 %v3006
    %v3298 = vpop.f32.mrb[0].mxu0
    %v3299 = vadd.f32 0.0, %v3298
    %v3300 = vpop.f32.mrb[0].mxu0
    %v3301 = vpop.f32.mrb[0].mxu0
    %v3302 = vadd.f32 0.0, %v3301
    %v3303 = vpop.f32.mrb[0].mxu0
    %3304 = vmatprep.mubr.bf16.mxu0 0
    %3305 = vmatmul.mubr.bf16.gmra.mrb[0].mxu0 %v3007
    %v3306 = vpop.f32.mrb[0].mxu0
    %v3307 = vadd.f32 0.0, %v3306
    %v3308 = vpop.f32.mrb[0].mxu0
    %v3309 = vpop.f32.mrb[0].mxu0
    %v3310 = vadd.f32 0.0, %v3309
    %v3311 = vpop.f32.mrb[0].mxu0
    %3312 = vmatprep.mubr.bf16.mxu0 0
    %3313 = vmatmul.mubr.bf16.gmra.mrb[0].mxu0 %v3008
    %v3314 = vpop.f32.mrb[0].mxu0
    %v3315 = vadd.f32 0.0, %v3314
    %v3316 = vpop.f32.mrb[0].mxu0
    %v3317 = vpop.f32.mrb[0].mxu0
    %v3318 = vadd.f32 0.0, %v3317
    %v3319 = vpop.f32.mrb[0].mxu0
    %3320 = vdwg.mxu0
    %v3337 = vunpack.c.l.b16 %v3135
    %v3338 = vunpack.c.l.b16 %v3136
    %v3339 = vunpack.c.l.b16 %v3137
    %v3340 = vunpack.c.l.b16 %v3138
    %v3341 = vunpack.c.l.b16 %v3139
    %v3342 = vunpack.c.l.b16 %v3140
    %v3343 = vunpack.c.l.b16 %v3141
    %v3344 = vunpack.c.l.b16 %v3142
    %v3345 = vunpack.c.l.b16 %v3143
    %v3346 = vunpack.c.l.b16 %v3144
    %v3347 = vunpack.c.l.b16 %v3145
    %v3348 = vunpack.c.l.b16 %v3146
    %v3349 = vunpack.c.l.b16 %v3147
    %v3350 = vunpack.c.l.b16 %v3148
    %v3351 = vunpack.c.l.b16 %v3149
    %v3352 = vunpack.c.l.b16 %v3150
    %v3353 = vpack.c.b16 %v3338, %v3337
    %v3354 = vpack.c.b16 %v3340, %v3339
    %v3355 = vpack.c.b16 %v3342, %v3341
    %v3356 = vpack.c.b16 %v3344, %v3343
    %v3357 = vpack.c.b16 %v3346, %v3345
    %v3358 = vpack.c.b16 %v3348, %v3347
    %v3359 = vpack.c.b16 %v3350, %v3349
    %v3360 = vpack.c.b16 %v3352, %v3351
    %3369 = vmatprep.subr.bf16.mxu0 0
    %3370 = vmatpush1.bf16.msra.mxu0 %v3353
    %3371 = vmatprep.subr.bf16.mxu0 0
    %3372 = vmatpush1.bf16.msra.mxu0 %v3354
    %3373 = vmatprep.subr.bf16.mxu0 0
    %3374 = vmatpush1.bf16.msra.mxu0 %v3355
    %3375 = vmatprep.subr.bf16.mxu0 0
    %3376 = vmatpush1.bf16.msra.mxu0 %v3356
    %3377 = vmatprep.subr.bf16.mxu0 0
    %3378 = vmatpush1.bf16.msra.mxu0 %v3357
    %3379 = vmatprep.subr.bf16.mxu0 0
    %3380 = vmatpush1.bf16.msra.mxu0 %v3358
    %3381 = vmatprep.subr.bf16.mxu0 0
    %3382 = vmatpush1.bf16.msra.mxu0 %v3359
    %3383 = vmatprep.subr.bf16.mxu0 0
    %3384 = vmatpush1.bf16.msra.mxu0 %v3360
    %3385 = vmatprep.subr.bf16.mxu0 0
    %3386 = vmatpush1.bf16.msra.mxu0 0
    %3387 = vmatprep.subr.bf16.mxu0 0
    %3388 = vmatpush1.bf16.msra.mxu0 0
    %3389 = vmatprep.subr.bf16.mxu0 0
    %3390 = vmatpush1.bf16.msra.mxu0 0
    %3391 = vmatprep.subr.bf16.mxu0 0
    %3392 = vmatpush1.bf16.msra.mxu0 0
    %3393 = vmatprep.subr.bf16.mxu0 0
    %3394 = vmatpush1.bf16.msra.mxu0 0
    %3395 = vmatprep.subr.bf16.mxu0 0
    %3396 = vmatpush1.bf16.msra.mxu0 0
    %3397 = vmatprep.subr.bf16.mxu0 0
    %3398 = vmatpush1.bf16.msra.mxu0 0
    %3399 = vmatprep.subr.bf16.mxu0 0
    %3400 = vmatpush1.bf16.msra.mxu0 0
    %3401 = vmatprep.mubr.bf16.mxu0 0
    %3402 = vmatmul.mubr.bf16.gmra.mrb[0].mxu0 %v2991
    %v3403 = vpop.f32.mrb[0].mxu0
    %v3404 = vadd.f32 %v3251, %v3403
    %v3405 = vpop.f32.mrb[0].mxu0
    %v3406 = vpop.f32.mrb[0].mxu0
    %v3407 = vadd.f32 %v3254, %v3406
    %v3408 = vpop.f32.mrb[0].mxu0
    %3409 = vmatprep.mubr.bf16.mxu0 0
    %3410 = vmatmul.mubr.bf16.gmra.mrb[0].mxu0 %v2992
    %v3411 = vpop.f32.mrb[0].mxu0
    %v3412 = vadd.f32 %v3259, %v3411
    %v3413 = vpop.f32.mrb[0].mxu0
    %v3414 = vpop.f32.mrb[0].mxu0
    %v3415 = vadd.f32 %v3262, %v3414
    %v3416 = vpop.f32.mrb[0].mxu0
    %3417 = vmatprep.mubr.bf16.mxu0 0
    %3418 = vmatmul.mubr.bf16.gmra.mrb[0].mxu0 %v2993
    %v3419 = vpop.f32.mrb[0].mxu0
    %v3420 = vadd.f32 %v3267, %v3419
    %v3421 = vpop.f32.mrb[0].mxu0
    %v3422 = vpop.f32.mrb[0].mxu0
    %v3423 = vadd.f32 %v3270, %v3422
    %v3424 = vpop.f32.mrb[0].mxu0
    %3425 = vmatprep.mubr.bf16.mxu0 0
    %3426 = vmatmul.mubr.bf16.gmra.mrb[0].mxu0 %v2994
    %v3427 = vpop.f32.mrb[0].mxu0
    %v3428 = vadd.f32 %v3275, %v3427
    %v3429 = vpop.f32.mrb[0].mxu0
    %v3430 = vpop.f32.mrb[0].mxu0
    %v3431 = vadd.f32 %v3278, %v3430
    %v3432 = vpop.f32.mrb[0].mxu0
    %3433 = vmatprep.mubr.bf16.mxu0 0
    %3434 = vmatmul.mubr.bf16.gmra.mrb[0].mxu0 %v2995
    %v3435 = vpop.f32.mrb[0].mxu0
    %v3436 = vadd.f32 %v3283, %v3435
    %v3437 = vpop.f32.mrb[0].mxu0
    %v3438 = vpop.f32.mrb[0].mxu0
    %v3439 = vadd.f32 %v3286, %v3438
    %v3440 = vpop.f32.mrb[0].mxu0
    %3441 = vmatprep.mubr.bf16.mxu0 0
    %3442 = vmatmul.mubr.bf16.gmra.mrb[0].mxu0 %v2996
    %v3443 = vpop.f32.mrb[0].mxu0
    %v3444 = vadd.f32 %v3291, %v3443
    %v3445 = vpop.f32.mrb[0].mxu0
    %v3446 = vpop.f32.mrb[0].mxu0
    %v3447 = vadd.f32 %v3294, %v3446
    %v3448 = vpop.f32.mrb[0].mxu0
    %3449 = vmatprep.mubr.bf16.mxu0 0
    %3450 = vmatmul.mubr.bf16.gmra.mrb[0].mxu0 %v2997
    %v3451 = vpop.f32.mrb[0].mxu0
    %v3452 = vadd.f32 %v3299, %v3451
    %v3453 = vpop.f32.mrb[0].mxu0
    %v3454 = vpop.f32.mrb[0].mxu0
    %v3455 = vadd.f32 %v3302, %v3454
    %v3456 = vpop.f32.mrb[0].mxu0
    %3457 = vmatprep.mubr.bf16.mxu0 0
    %3458 = vmatmul.mubr.bf16.gmra.mrb[0].mxu0 %v2998
    %v3459 = vpop.f32.mrb[0].mxu0
    %v3460 = vadd.f32 %v3307, %v3459
    %v3461 = vpop.f32.mrb[0].mxu0
    %v3462 = vpop.f32.mrb[0].mxu0
    %v3463 = vadd.f32 %v3310, %v3462
    %v3464 = vpop.f32.mrb[0].mxu0
    %3465 = vmatprep.mubr.bf16.mxu0 0
    %3466 = vmatmul.mubr.bf16.gmra.mrb[0].mxu0 %v2999
    %v3467 = vpop.f32.mrb[0].mxu0
    %v3468 = vadd.f32 %v3315, %v3467
    %v3469 = vpop.f32.mrb[0].mxu0
    %v3470 = vpop.f32.mrb[0].mxu0
    %v3471 = vadd.f32 %v3318, %v3470
    %v3472 = vpop.f32.mrb[0].mxu0
    %3473 = vdwg.mxu0
    %s3474 = scalar_lea.vmem %s3, 128
    %v3475 = vld [vmem:[%s3474] sm:$0xf]
    %v3476 = vld [vmem:[%s3474 + $0x4] sm:$0xf]
    %v3477 = vld [vmem:[%s3474 + $0x8] sm:$0xf]
    %v3478 = vld [vmem:[%s3474 + $0xc] sm:$0xf]
    %v3479 = vld [vmem:[%s3474 + $0x10] sm:$0xf]
    %v3480 = vld [vmem:[%s3474 + $0x14] sm:$0xf]
    %v3481 = vld [vmem:[%s3474 + $0x18] sm:$0xf]
    %v3482 = vld [vmem:[%s3474 + $0x1c] sm:$0xf]
    %v3483 = vld [vmem:[%s3474 + $0x20] sm:$0xf]
    %v3484 = vld [vmem:[%s3474 + $0x24] sm:$0xf]
    %v3485 = vld [vmem:[%s3474 + $0x28] sm:$0xf]
    %v3486 = vld [vmem:[%s3474 + $0x2c] sm:$0xf]
    %v3487 = vld [vmem:[%s3474 + $0x30] sm:$0xf]
    %v3488 = vld [vmem:[%s3474 + $0x34] sm:$0xf]
    %v3489 = vld [vmem:[%s3474 + $0x38] sm:$0xf]
    %v3490 = vld [vmem:[%s3474 + $0x3c] sm:$0xf]
    %v3507 = vunpack.c.l.b16 %v3475
    %v3508 = vunpack.c.l.b16 %v3476
    %v3509 = vunpack.c.l.b16 %v3477
    %v3510 = vunpack.c.l.b16 %v3478
    %v3511 = vunpack.c.l.b16 %v3479
    %v3512 = vunpack.c.l.b16 %v3480
    %v3513 = vunpack.c.l.b16 %v3481
    %v3514 = vunpack.c.l.b16 %v3482
    %v3515 = vunpack.c.l.b16 %v3483
    %v3516 = vunpack.c.l.b16 %v3484
    %v3517 = vunpack.c.l.b16 %v3485
    %v3518 = vunpack.c.l.b16 %v3486
    %v3519 = vunpack.c.l.b16 %v3487
    %v3520 = vunpack.c.l.b16 %v3488
    %v3521 = vunpack.c.l.b16 %v3489
    %v3522 = vunpack.c.l.b16 %v3490
    %v3523 = vpack.c.b16 %v3508, %v3507
    %v3524 = vpack.c.b16 %v3510, %v3509
    %v3525 = vpack.c.b16 %v3512, %v3511
    %v3526 = vpack.c.b16 %v3514, %v3513
    %v3527 = vpack.c.b16 %v3516, %v3515
    %v3528 = vpack.c.b16 %v3518, %v3517
    %v3529 = vpack.c.b16 %v3520, %v3519
    %v3530 = vpack.c.b16 %v3522, %v3521
    %3539 = vmatprep.subr.bf16.mxu0 0
    %3540 = vmatpush1.bf16.msra.mxu0 %v3523
    %3541 = vmatprep.subr.bf16.mxu0 0
    %3542 = vmatpush1.bf16.msra.mxu0 %v3524
    %3543 = vmatprep.subr.bf16.mxu0 0
    %3544 = vmatpush1.bf16.msra.mxu0 %v3525
    %3545 = vmatprep.subr.bf16.mxu0 0
    %3546 = vmatpush1.bf16.msra.mxu0 %v3526
    %3547 = vmatprep.subr.bf16.mxu0 0
    %3548 = vmatpush1.bf16.msra.mxu0 %v3527
    %3549 = vmatprep.subr.bf16.mxu0 0
    %3550 = vmatpush1.bf16.msra.mxu0 %v3528
    %3551 = vmatprep.subr.bf16.mxu0 0
    %3552 = vmatpush1.bf16.msra.mxu0 %v3529
    %3553 = vmatprep.subr.bf16.mxu0 0
    %3554 = vmatpush1.bf16.msra.mxu0 %v3530
    %3555 = vmatprep.subr.bf16.mxu0 0
    %3556 = vmatpush1.bf16.msra.mxu0 0
    %3557 = vmatprep.subr.bf16.mxu0 0
    %3558 = vmatpush1.bf16.msra.mxu0 0
    %3559 = vmatprep.subr.bf16.mxu0 0
    %3560 = vmatpush1.bf16.msra.mxu0 0
    %3561 = vmatprep.subr.bf16.mxu0 0
    %3562 = vmatpush1.bf16.msra.mxu0 0
    %3563 = vmatprep.subr.bf16.mxu0 0
    %3564 = vmatpush1.bf16.msra.mxu0 0
    %3565 = vmatprep.subr.bf16.mxu0 0
    %3566 = vmatpush1.bf16.msra.mxu0 0
    %3567 = vmatprep.subr.bf16.mxu0 0
    %3568 = vmatpush1.bf16.msra.mxu0 0
    %3569 = vmatprep.subr.bf16.mxu0 0
    %3570 = vmatpush1.bf16.msra.mxu0 0
    %3571 = vmatprep.mubr.bf16.mxu0 0
    %3572 = vmatmul.mubr.bf16.gmra.mrb[0].mxu0 %v3009
    %v3573 = vpop.f32.mrb[0].mxu0
    %v3574 = vadd.f32 0.0, %v3573
    %v3575 = vpop.f32.mrb[0].mxu0
    %v3576 = vpop.f32.mrb[0].mxu0
    %v3577 = vadd.f32 0.0, %v3576
    %v3578 = vpop.f32.mrb[0].mxu0
    %3579 = vmatprep.mubr.bf16.mxu0 0
    %3580 = vmatmul.mubr.bf16.gmra.mrb[0].mxu0 %v3010
    %v3581 = vpop.f32.mrb[0].mxu0
    %v3582 = vadd.f32 0.0, %v3581
    %v3583 = vpop.f32.mrb[0].mxu0
    %v3584 = vpop.f32.mrb[0].mxu0
    %v3585 = vadd.f32 0.0, %v3584
    %v3586 = vpop.f32.mrb[0].mxu0
    %3587 = vmatprep.mubr.bf16.mxu0 0
    %3588 = vmatmul.mubr.bf16.gmra.mrb[0].mxu0 %v3011
    %v3589 = vpop.f32.mrb[0].mxu0
    %v3590 = vadd.f32 0.0, %v3589
    %v3591 = vpop.f32.mrb[0].mxu0
    %v3592 = vpop.f32.mrb[0].mxu0
    %v3593 = vadd.f32 0.0, %v3592
    %v3594 = vpop.f32.mrb[0].mxu0
    %3595 = vmatprep.mubr.bf16.mxu0 0
    %3596 = vmatmul.mubr.bf16.gmra.mrb[0].mxu0 %v3012
    %v3597 = vpop.f32.mrb[0].mxu0
    %v3598 = vadd.f32 0.0, %v3597
    %v3599 = vpop.f32.mrb[0].mxu0
    %v3600 = vpop.f32.mrb[0].mxu0
    %v3601 = vadd.f32 0.0, %v3600
    %v3602 = vpop.f32.mrb[0].mxu0
    %3603 = vmatprep.mubr.bf16.mxu0 0
    %3604 = vmatmul.mubr.bf16.gmra.mrb[0].mxu0 %v3013
    %v3605 = vpop.f32.mrb[0].mxu0
    %v3606 = vadd.f32 0.0, %v3605
    %v3607 = vpop.f32.mrb[0].mxu0
    %v3608 = vpop.f32.mrb[0].mxu0
    %v3609 = vadd.f32 0.0, %v3608
    %v3610 = vpop.f32.mrb[0].mxu0
    %3611 = vmatprep.mubr.bf16.mxu0 0
    %3612 = vmatmul.mubr.bf16.gmra.mrb[0].mxu0 %v3014
    %v3613 = vpop.f32.mrb[0].mxu0
    %v3614 = vadd.f32 0.0, %v3613
    %v3615 = vpop.f32.mrb[0].mxu0
    %v3616 = vpop.f32.mrb[0].mxu0
    %v3617 = vadd.f32 0.0, %v3616
    %v3618 = vpop.f32.mrb[0].mxu0
    %3619 = vmatprep.mubr.bf16.mxu0 0
    %3620 = vmatmul.mubr.bf16.gmra.mrb[0].mxu0 %v3015
    %v3621 = vpop.f32.mrb[0].mxu0
    %v3622 = vadd.f32 0.0, %v3621
    %v3623 = vpop.f32.mrb[0].mxu0
    %v3624 = vpop.f32.mrb[0].mxu0
    %v3625 = vadd.f32 0.0, %v3624
    %v3626 = vpop.f32.mrb[0].mxu0
    %3627 = vmatprep.mubr.bf16.mxu0 0
    %3628 = vmatmul.mubr.bf16.gmra.mrb[0].mxu0 %v3016
    %v3629 = vpop.f32.mrb[0].mxu0
    %v3630 = vadd.f32 0.0, %v3629
    %v3631 = vpop.f32.mrb[0].mxu0
    %v3632 = vpop.f32.mrb[0].mxu0
    %v3633 = vadd.f32 0.0, %v3632
    %v3634 = vpop.f32.mrb[0].mxu0
    %3635 = vmatprep.mubr.bf16.mxu0 0
    %3636 = vmatmul.mubr.bf16.gmra.mrb[0].mxu0 %v3017
    %v3637 = vpop.f32.mrb[0].mxu0
    %v3638 = vadd.f32 0.0, %v3637
    %v3639 = vpop.f32.mrb[0].mxu0
    %v3640 = vpop.f32.mrb[0].mxu0
    %v3641 = vadd.f32 0.0, %v3640
    %v3642 = vpop.f32.mrb[0].mxu0
    %3643 = vdwg.mxu0
    %v3644 = vadd.f32 %v3404, %v3574
    %v3645 = vadd.f32 %v3407, %v3577
    %v3646 = vadd.f32 %v3412, %v3582
    %v3647 = vadd.f32 %v3415, %v3585
    %v3648 = vadd.f32 %v3420, %v3590
    %v3649 = vadd.f32 %v3423, %v3593
    %v3650 = vadd.f32 %v3428, %v3598
    %v3651 = vadd.f32 %v3431, %v3601
    %v3652 = vadd.f32 %v3436, %v3606
    %v3653 = vadd.f32 %v3439, %v3609
    %v3654 = vadd.f32 %v3444, %v3614
    %v3655 = vadd.f32 %v3447, %v3617
    %v3656 = vadd.f32 %v3452, %v3622
    %v3657 = vadd.f32 %v3455, %v3625
    %v3658 = vadd.f32 %v3460, %v3630
    %v3659 = vadd.f32 %v3463, %v3633
    %v3660 = vadd.f32 %v3468, %v3638
    %v3661 = vadd.f32 %v3471, %v3641
    %s3662 = scalar_lea.vmem %s3, 192
    %v3663 = vld [vmem:[%s3662] sm:$0xf]
    %v3664 = vld [vmem:[%s3662 + $0x4] sm:$0xf]
    %v3665 = vld [vmem:[%s3662 + $0x8] sm:$0xf]
    %v3666 = vld [vmem:[%s3662 + $0xc] sm:$0xf]
    %v3667 = vld [vmem:[%s3662 + $0x10] sm:$0xf]
    %v3668 = vld [vmem:[%s3662 + $0x14] sm:$0xf]
    %v3669 = vld [vmem:[%s3662 + $0x18] sm:$0xf]
    %v3670 = vld [vmem:[%s3662 + $0x1c] sm:$0xf]
    %v3671 = vld [vmem:[%s3662 + $0x20] sm:$0xf]
    %v3672 = vld [vmem:[%s3662 + $0x24] sm:$0xf]
    %v3673 = vld [vmem:[%s3662 + $0x28] sm:$0xf]
    %v3674 = vld [vmem:[%s3662 + $0x2c] sm:$0xf]
    %v3675 = vld [vmem:[%s3662 + $0x30] sm:$0xf]
    %v3676 = vld [vmem:[%s3662 + $0x34] sm:$0xf]
    %v3677 = vld [vmem:[%s3662 + $0x38] sm:$0xf]
    %v3678 = vld [vmem:[%s3662 + $0x3c] sm:$0xf]
    %v3695 = vunpack.c.l.b16 %v3663
    %v3696 = vunpack.c.l.b16 %v3664
    %v3697 = vunpack.c.l.b16 %v3665
    %v3698 = vunpack.c.l.b16 %v3666
    %v3699 = vunpack.c.l.b16 %v3667
    %v3700 = vunpack.c.l.b16 %v3668
    %v3701 = vunpack.c.l.b16 %v3669
    %v3702 = vunpack.c.l.b16 %v3670
    %v3703 = vunpack.c.l.b16 %v3671
    %v3704 = vunpack.c.l.b16 %v3672
    %v3705 = vunpack.c.l.b16 %v3673
    %v3706 = vunpack.c.l.b16 %v3674
    %v3707 = vunpack.c.l.b16 %v3675
    %v3708 = vunpack.c.l.b16 %v3676
    %v3709 = vunpack.c.l.b16 %v3677
    %v3710 = vunpack.c.l.b16 %v3678
    %v3711 = vpack.c.b16 %v3696, %v3695
    %v3712 = vpack.c.b16 %v3698, %v3697
    %v3713 = vpack.c.b16 %v3700, %v3699
    %v3714 = vpack.c.b16 %v3702, %v3701
    %v3715 = vpack.c.b16 %v3704, %v3703
    %v3716 = vpack.c.b16 %v3706, %v3705
    %v3717 = vpack.c.b16 %v3708, %v3707
    %v3718 = vpack.c.b16 %v3710, %v3709
    %3727 = vmatprep.subr.bf16.mxu0 0
    %3728 = vmatpush1.bf16.msra.mxu0 %v3711
    %3729 = vmatprep.subr.bf16.mxu0 0
    %3730 = vmatpush1.bf16.msra.mxu0 %v3712
    %3731 = vmatprep.subr.bf16.mxu0 0
    %3732 = vmatpush1.bf16.msra.mxu0 %v3713
    %3733 = vmatprep.subr.bf16.mxu0 0
    %3734 = vmatpush1.bf16.msra.mxu0 %v3714
    %3735 = vmatprep.subr.bf16.mxu0 0
    %3736 = vmatpush1.bf16.msra.mxu0 %v3715
    %3737 = vmatprep.subr.bf16.mxu0 0
    %3738 = vmatpush1.bf16.msra.mxu0 %v3716
    %3739 = vmatprep.subr.bf16.mxu0 0
    %3740 = vmatpush1.bf16.msra.mxu0 %v3717
    %3741 = vmatprep.subr.bf16.mxu0 0
    %3742 = vmatpush1.bf16.msra.mxu0 %v3718
    %3743 = vmatprep.subr.bf16.mxu0 0
    %3744 = vmatpush1.bf16.msra.mxu0 0
    %3745 = vmatprep.subr.bf16.mxu0 0
    %3746 = vmatpush1.bf16.msra.mxu0 0
    %3747 = vmatprep.subr.bf16.mxu0 0
    %3748 = vmatpush1.bf16.msra.mxu0 0
    %3749 = vmatprep.subr.bf16.mxu0 0
    %3750 = vmatpush1.bf16.msra.mxu0 0
    %3751 = vmatprep.subr.bf16.mxu0 0
    %3752 = vmatpush1.bf16.msra.mxu0 0
    %3753 = vmatprep.subr.bf16.mxu0 0
    %3754 = vmatpush1.bf16.msra.mxu0 0
    %3755 = vmatprep.subr.bf16.mxu0 0
    %3756 = vmatpush1.bf16.msra.mxu0 0
    %3757 = vmatprep.subr.bf16.mxu0 0
    %3758 = vmatpush1.bf16.msra.mxu0 0
    %3759 = vmatprep.mubr.bf16.mxu0 0
    %3760 = vmatmul.mubr.bf16.gmra.mrb[0].mxu0 %v3018
    %v3761 = vpop.f32.mrb[0].mxu0
    %v3762 = vadd.f32 0.0, %v3761
    %v3763 = vpop.f32.mrb[0].mxu0
    %v3764 = vpop.f32.mrb[0].mxu0
    %v3765 = vadd.f32 0.0, %v3764
    %v3766 = vpop.f32.mrb[0].mxu0
    %3767 = vmatprep.mubr.bf16.mxu0 0
    %3768 = vmatmul.mubr.bf16.gmra.mrb[0].mxu0 %v3019
    %v3769 = vpop.f32.mrb[0].mxu0
    %v3770 = vadd.f32 0.0, %v3769
    %v3771 = vpop.f32.mrb[0].mxu0
    %v3772 = vpop.f32.mrb[0].mxu0
    %v3773 = vadd.f32 0.0, %v3772
    %v3774 = vpop.f32.mrb[0].mxu0
    %3775 = vmatprep.mubr.bf16.mxu0 0
    %3776 = vmatmul.mubr.bf16.gmra.mrb[0].mxu0 %v3020
    %v3777 = vpop.f32.mrb[0].mxu0
    %v3778 = vadd.f32 0.0, %v3777
    %v3779 = vpop.f32.mrb[0].mxu0
    %v3780 = vpop.f32.mrb[0].mxu0
    %v3781 = vadd.f32 0.0, %v3780
    %v3782 = vpop.f32.mrb[0].mxu0
    %3783 = vmatprep.mubr.bf16.mxu0 0
    %3784 = vmatmul.mubr.bf16.gmra.mrb[0].mxu0 %v3021
    %v3785 = vpop.f32.mrb[0].mxu0
    %v3786 = vadd.f32 0.0, %v3785
    %v3787 = vpop.f32.mrb[0].mxu0
    %v3788 = vpop.f32.mrb[0].mxu0
    %v3789 = vadd.f32 0.0, %v3788
    %v3790 = vpop.f32.mrb[0].mxu0
    %3791 = vmatprep.mubr.bf16.mxu0 0
    %3792 = vmatmul.mubr.bf16.gmra.mrb[0].mxu0 %v3022
    %v3793 = vpop.f32.mrb[0].mxu0
    %v3794 = vadd.f32 0.0, %v3793
    %v3795 = vpop.f32.mrb[0].mxu0
    %v3796 = vpop.f32.mrb[0].mxu0
    %v3797 = vadd.f32 0.0, %v3796
    %v3798 = vpop.f32.mrb[0].mxu0
    %3799 = vmatprep.mubr.bf16.mxu0 0
    %3800 = vmatmul.mubr.bf16.gmra.mrb[0].mxu0 %v3023
    %v3801 = vpop.f32.mrb[0].mxu0
    %v3802 = vadd.f32 0.0, %v3801
    %v3803 = vpop.f32.mrb[0].mxu0
    %v3804 = vpop.f32.mrb[0].mxu0
    %v3805 = vadd.f32 0.0, %v3804
    %v3806 = vpop.f32.mrb[0].mxu0
    %3807 = vmatprep.mubr.bf16.mxu0 0
    %3808 = vmatmul.mubr.bf16.gmra.mrb[0].mxu0 %v3024
    %v3809 = vpop.f32.mrb[0].mxu0
    %v3810 = vadd.f32 0.0, %v3809
    %v3811 = vpop.f32.mrb[0].mxu0
    %v3812 = vpop.f32.mrb[0].mxu0
    %v3813 = vadd.f32 0.0, %v3812
    %v3814 = vpop.f32.mrb[0].mxu0
    %3815 = vmatprep.mubr.bf16.mxu0 0
    %3816 = vmatmul.mubr.bf16.gmra.mrb[0].mxu0 %v3025
    %v3817 = vpop.f32.mrb[0].mxu0
    %v3818 = vadd.f32 0.0, %v3817
    %v3819 = vpop.f32.mrb[0].mxu0
    %v3820 = vpop.f32.mrb[0].mxu0
    %v3821 = vadd.f32 0.0, %v3820
    %v3822 = vpop.f32.mrb[0].mxu0
    %3823 = vmatprep.mubr.bf16.mxu0 0
    %3824 = vmatmul.mubr.bf16.gmra.mrb[0].mxu0 %v3026
    %v3825 = vpop.f32.mrb[0].mxu0
    %v3826 = vadd.f32 0.0, %v3825
    %v3827 = vpop.f32.mrb[0].mxu0
    %v3828 = vpop.f32.mrb[0].mxu0
    %v3829 = vadd.f32 0.0, %v3828
    %v3830 = vpop.f32.mrb[0].mxu0
    %3831 = vdwg.mxu0
    %v3832 = vadd.f32 %v3644, %v3762
    %v3833 = vadd.f32 %v3645, %v3765
    %v3834 = vadd.f32 %v3646, %v3770
    %v3835 = vadd.f32 %v3647, %v3773
    %v3836 = vadd.f32 %v3648, %v3778
    %v3837 = vadd.f32 %v3649, %v3781
    %v3838 = vadd.f32 %v3650, %v3786
    %v3839 = vadd.f32 %v3651, %v3789
    %v3840 = vadd.f32 %v3652, %v3794
    %v3841 = vadd.f32 %v3653, %v3797
    %v3842 = vadd.f32 %v3654, %v3802
    %v3843 = vadd.f32 %v3655, %v3805
    %v3844 = vadd.f32 %v3656, %v3810
    %v3845 = vadd.f32 %v3657, %v3813
    %v3846 = vadd.f32 %v3658, %v3818
    %v3847 = vadd.f32 %v3659, %v3821
    %v3848 = vadd.f32 %v3660, %v3826
    %v3849 = vadd.f32 %v3661, %v3829
    %s3850 = scalar_lea.vmem %s3, 256
    %v3851 = vld [vmem:[%s3850] sm:$0xf]
    %v3852 = vld [vmem:[%s3850 + $0x4] sm:$0xf]
    %v3853 = vld [vmem:[%s3850 + $0x8] sm:$0xf]
    %v3854 = vld [vmem:[%s3850 + $0xc] sm:$0xf]
    %v3855 = vld [vmem:[%s3850 + $0x10] sm:$0xf]
    %v3856 = vld [vmem:[%s3850 + $0x14] sm:$0xf]
    %v3857 = vld [vmem:[%s3850 + $0x18] sm:$0xf]
    %v3858 = vld [vmem:[%s3850 + $0x1c] sm:$0xf]
    %v3859 = vld [vmem:[%s3850 + $0x20] sm:$0xf]
    %v3860 = vld [vmem:[%s3850 + $0x24] sm:$0xf]
    %v3861 = vld [vmem:[%s3850 + $0x28] sm:$0xf]
    %v3862 = vld [vmem:[%s3850 + $0x2c] sm:$0xf]
    %v3863 = vld [vmem:[%s3850 + $0x30] sm:$0xf]
    %v3864 = vld [vmem:[%s3850 + $0x34] sm:$0xf]
    %v3865 = vld [vmem:[%s3850 + $0x38] sm:$0xf]
    %v3866 = vld [vmem:[%s3850 + $0x3c] sm:$0xf]
    %v3883 = vunpack.c.l.b16 %v3851
    %v3884 = vunpack.c.l.b16 %v3852
    %v3885 = vunpack.c.l.b16 %v3853
    %v3886 = vunpack.c.l.b16 %v3854
    %v3887 = vunpack.c.l.b16 %v3855
    %v3888 = vunpack.c.l.b16 %v3856
    %v3889 = vunpack.c.l.b16 %v3857
    %v3890 = vunpack.c.l.b16 %v3858
    %v3891 = vunpack.c.l.b16 %v3859
    %v3892 = vunpack.c.l.b16 %v3860
    %v3893 = vunpack.c.l.b16 %v3861
    %v3894 = vunpack.c.l.b16 %v3862
    %v3895 = vunpack.c.l.b16 %v3863
    %v3896 = vunpack.c.l.b16 %v3864
    %v3897 = vunpack.c.l.b16 %v3865
    %v3898 = vunpack.c.l.b16 %v3866
    %v3899 = vpack.c.b16 %v3884, %v3883
    %v3900 = vpack.c.b16 %v3886, %v3885
    %v3901 = vpack.c.b16 %v3888, %v3887
    %v3902 = vpack.c.b16 %v3890, %v3889
    %v3903 = vpack.c.b16 %v3892, %v3891
    %v3904 = vpack.c.b16 %v3894, %v3893
    %v3905 = vpack.c.b16 %v3896, %v3895
    %v3906 = vpack.c.b16 %v3898, %v3897
    %3915 = vmatprep.subr.bf16.mxu0 0
    %3916 = vmatpush1.bf16.msra.mxu0 %v3899
    %3917 = vmatprep.subr.bf16.mxu0 0
    %3918 = vmatpush1.bf16.msra.mxu0 %v3900
    %3919 = vmatprep.subr.bf16.mxu0 0
    %3920 = vmatpush1.bf16.msra.mxu0 %v3901
    %3921 = vmatprep.subr.bf16.mxu0 0
    %3922 = vmatpush1.bf16.msra.mxu0 %v3902
    %3923 = vmatprep.subr.bf16.mxu0 0
    %3924 = vmatpush1.bf16.msra.mxu0 %v3903
    %3925 = vmatprep.subr.bf16.mxu0 0
    %3926 = vmatpush1.bf16.msra.mxu0 %v3904
    %3927 = vmatprep.subr.bf16.mxu0 0
    %3928 = vmatpush1.bf16.msra.mxu0 %v3905
    %3929 = vmatprep.subr.bf16.mxu0 0
    %3930 = vmatpush1.bf16.msra.mxu0 %v3906
    %3931 = vmatprep.subr.bf16.mxu0 0
    %3932 = vmatpush1.bf16.msra.mxu0 0
    %3933 = vmatprep.subr.bf16.mxu0 0
    %3934 = vmatpush1.bf16.msra.mxu0 0
    %3935 = vmatprep.subr.bf16.mxu0 0
    %3936 = vmatpush1.bf16.msra.mxu0 0
    %3937 = vmatprep.subr.bf16.mxu0 0
    %3938 = vmatpush1.bf16.msra.mxu0 0
    %3939 = vmatprep.subr.bf16.mxu0 0
    %3940 = vmatpush1.bf16.msra.mxu0 0
    %3941 = vmatprep.subr.bf16.mxu0 0
    %3942 = vmatpush1.bf16.msra.mxu0 0
    %3943 = vmatprep.subr.bf16.mxu0 0
    %3944 = vmatpush1.bf16.msra.mxu0 0
    %3945 = vmatprep.subr.bf16.mxu0 0
    %3946 = vmatpush1.bf16.msra.mxu0 0
    %3947 = vmatprep.mubr.bf16.mxu0 0
    %3948 = vmatmul.mubr.bf16.gmra.mrb[0].mxu0 %v3027
    %v3949 = vpop.f32.mrb[0].mxu0
    %v3950 = vadd.f32 0.0, %v3949
    %v3951 = vpop.f32.mrb[0].mxu0
    %v3952 = vpop.f32.mrb[0].mxu0
    %v3953 = vadd.f32 0.0, %v3952
    %v3954 = vpop.f32.mrb[0].mxu0
    %3955 = vmatprep.mubr.bf16.mxu0 0
    %3956 = vmatmul.mubr.bf16.gmra.mrb[0].mxu0 %v3028
    %v3957 = vpop.f32.mrb[0].mxu0
    %v3958 = vadd.f32 0.0, %v3957
    %v3959 = vpop.f32.mrb[0].mxu0
    %v3960 = vpop.f32.mrb[0].mxu0
    %v3961 = vadd.f32 0.0, %v3960
    %v3962 = vpop.f32.mrb[0].mxu0
    %3963 = vmatprep.mubr.bf16.mxu0 0
    %3964 = vmatmul.mubr.bf16.gmra.mrb[0].mxu0 %v3029
    %v3965 = vpop.f32.mrb[0].mxu0
    %v3966 = vadd.f32 0.0, %v3965
    %v3967 = vpop.f32.mrb[0].mxu0
    %v3968 = vpop.f32.mrb[0].mxu0
    %v3969 = vadd.f32 0.0, %v3968
    %v3970 = vpop.f32.mrb[0].mxu0
    %3971 = vmatprep.mubr.bf16.mxu0 0
    %3972 = vmatmul.mubr.bf16.gmra.mrb[0].mxu0 %v3030
    %v3973 = vpop.f32.mrb[0].mxu0
    %v3974 = vadd.f32 0.0, %v3973
    %v3975 = vpop.f32.mrb[0].mxu0
    %v3976 = vpop.f32.mrb[0].mxu0
    %v3977 = vadd.f32 0.0, %v3976
    %v3978 = vpop.f32.mrb[0].mxu0
    %3979 = vmatprep.mubr.bf16.mxu0 0
    %3980 = vmatmul.mubr.bf16.gmra.mrb[0].mxu0 %v3031
    %v3981 = vpop.f32.mrb[0].mxu0
    %v3982 = vadd.f32 0.0, %v3981
    %v3983 = vpop.f32.mrb[0].mxu0
    %v3984 = vpop.f32.mrb[0].mxu0
    %v3985 = vadd.f32 0.0, %v3984
    %v3986 = vpop.f32.mrb[0].mxu0
    %3987 = vmatprep.mubr.bf16.mxu0 0
    %3988 = vmatmul.mubr.bf16.gmra.mrb[0].mxu0 %v3032
    %v3989 = vpop.f32.mrb[0].mxu0
    %v3990 = vadd.f32 0.0, %v3989
    %v3991 = vpop.f32.mrb[0].mxu0
    %v3992 = vpop.f32.mrb[0].mxu0
    %v3993 = vadd.f32 0.0, %v3992
    %v3994 = vpop.f32.mrb[0].mxu0
    %3995 = vmatprep.mubr.bf16.mxu0 0
    %3996 = vmatmul.mubr.bf16.gmra.mrb[0].mxu0 %v3033
    %v3997 = vpop.f32.mrb[0].mxu0
    %v3998 = vadd.f32 0.0, %v3997
    %v3999 = vpop.f32.mrb[0].mxu0
    %v4000 = vpop.f32.mrb[0].mxu0
    %v4001 = vadd.f32 0.0, %v4000
    %v4002 = vpop.f32.mrb[0].mxu0
    %4003 = vmatprep.mubr.bf16.mxu0 0
    %4004 = vmatmul.mubr.bf16.gmra.mrb[0].mxu0 %v3034
    %v4005 = vpop.f32.mrb[0].mxu0
    %v4006 = vadd.f32 0.0, %v4005
    %v4007 = vpop.f32.mrb[0].mxu0
    %v4008 = vpop.f32.mrb[0].mxu0
    %v4009 = vadd.f32 0.0, %v4008
    %v4010 = vpop.f32.mrb[0].mxu0
    %4011 = vmatprep.mubr.bf16.mxu0 0
    %4012 = vmatmul.mubr.bf16.gmra.mrb[0].mxu0 %v3035
    %v4013 = vpop.f32.mrb[0].mxu0
    %v4014 = vadd.f32 0.0, %v4013
    %v4015 = vpop.f32.mrb[0].mxu0
    %v4016 = vpop.f32.mrb[0].mxu0
    %v4017 = vadd.f32 0.0, %v4016
    %v4018 = vpop.f32.mrb[0].mxu0
    %4019 = vdwg.mxu0
    %v4020 = vadd.f32 %v3832, %v3950
    %v4021 = vadd.f32 %v3833, %v3953
    %v4022 = vadd.f32 %v3834, %v3958
    %v4023 = vadd.f32 %v3835, %v3961
    %v4024 = vadd.f32 %v3836, %v3966
    %v4025 = vadd.f32 %v3837, %v3969
    %v4026 = vadd.f32 %v3838, %v3974
    %v4027 = vadd.f32 %v3839, %v3977
    %v4028 = vadd.f32 %v3840, %v3982
    %v4029 = vadd.f32 %v3841, %v3985
    %v4030 = vadd.f32 %v3842, %v3990
    %v4031 = vadd.f32 %v3843, %v3993
    %v4032 = vadd.f32 %v3844, %v3998
    %v4033 = vadd.f32 %v3845, %v4001
    %v4034 = vadd.f32 %v3846, %v4006
    %v4035 = vadd.f32 %v3847, %v4009
    %v4036 = vadd.f32 %v3848, %v4014
    %v4037 = vadd.f32 %v3849, %v4017
    %s4038 = scalar_lea.vmem %s3, 320
    %v4039 = vld [vmem:[%s4038] sm:$0xf]
    %v4040 = vld [vmem:[%s4038 + $0x4] sm:$0xf]
    %v4041 = vld [vmem:[%s4038 + $0x8] sm:$0xf]
    %v4042 = vld [vmem:[%s4038 + $0xc] sm:$0xf]
    %v4043 = vld [vmem:[%s4038 + $0x10] sm:$0xf]
    %v4044 = vld [vmem:[%s4038 + $0x14] sm:$0xf]
    %v4045 = vld [vmem:[%s4038 + $0x18] sm:$0xf]
    %v4046 = vld [vmem:[%s4038 + $0x1c] sm:$0xf]
    %v4047 = vld [vmem:[%s4038 + $0x20] sm:$0xf]
    %v4048 = vld [vmem:[%s4038 + $0x24] sm:$0xf]
    %v4049 = vld [vmem:[%s4038 + $0x28] sm:$0xf]
    %v4050 = vld [vmem:[%s4038 + $0x2c] sm:$0xf]
    %v4051 = vld [vmem:[%s4038 + $0x30] sm:$0xf]
    %v4052 = vld [vmem:[%s4038 + $0x34] sm:$0xf]
    %v4053 = vld [vmem:[%s4038 + $0x38] sm:$0xf]
    %v4054 = vld [vmem:[%s4038 + $0x3c] sm:$0xf]
    %v4071 = vunpack.c.l.b16 %v4039
    %v4072 = vunpack.c.l.b16 %v4040
    %v4073 = vunpack.c.l.b16 %v4041
    %v4074 = vunpack.c.l.b16 %v4042
    %v4075 = vunpack.c.l.b16 %v4043
    %v4076 = vunpack.c.l.b16 %v4044
    %v4077 = vunpack.c.l.b16 %v4045
    %v4078 = vunpack.c.l.b16 %v4046
    %v4079 = vunpack.c.l.b16 %v4047
    %v4080 = vunpack.c.l.b16 %v4048
    %v4081 = vunpack.c.l.b16 %v4049
    %v4082 = vunpack.c.l.b16 %v4050
    %v4083 = vunpack.c.l.b16 %v4051
    %v4084 = vunpack.c.l.b16 %v4052
    %v4085 = vunpack.c.l.b16 %v4053
    %v4086 = vunpack.c.l.b16 %v4054
    %v4087 = vpack.c.b16 %v4072, %v4071
    %v4088 = vpack.c.b16 %v4074, %v4073
    %v4089 = vpack.c.b16 %v4076, %v4075
    %v4090 = vpack.c.b16 %v4078, %v4077
    %v4091 = vpack.c.b16 %v4080, %v4079
    %v4092 = vpack.c.b16 %v4082, %v4081
    %v4093 = vpack.c.b16 %v4084, %v4083
    %v4094 = vpack.c.b16 %v4086, %v4085
    %4103 = vmatprep.subr.bf16.mxu0 0
    %4104 = vmatpush1.bf16.msra.mxu0 %v4087
    %4105 = vmatprep.subr.bf16.mxu0 0
    %4106 = vmatpush1.bf16.msra.mxu0 %v4088
    %4107 = vmatprep.subr.bf16.mxu0 0
    %4108 = vmatpush1.bf16.msra.mxu0 %v4089
    %4109 = vmatprep.subr.bf16.mxu0 0
    %4110 = vmatpush1.bf16.msra.mxu0 %v4090
    %4111 = vmatprep.subr.bf16.mxu0 0
    %4112 = vmatpush1.bf16.msra.mxu0 %v4091
    %4113 = vmatprep.subr.bf16.mxu0 0
    %4114 = vmatpush1.bf16.msra.mxu0 %v4092
    %4115 = vmatprep.subr.bf16.mxu0 0
    %4116 = vmatpush1.bf16.msra.mxu0 %v4093
    %4117 = vmatprep.subr.bf16.mxu0 0
    %4118 = vmatpush1.bf16.msra.mxu0 %v4094
    %4119 = vmatprep.subr.bf16.mxu0 0
    %4120 = vmatpush1.bf16.msra.mxu0 0
    %4121 = vmatprep.subr.bf16.mxu0 0
    %4122 = vmatpush1.bf16.msra.mxu0 0
    %4123 = vmatprep.subr.bf16.mxu0 0
    %4124 = vmatpush1.bf16.msra.mxu0 0
    %4125 = vmatprep.subr.bf16.mxu0 0
    %4126 = vmatpush1.bf16.msra.mxu0 0
    %4127 = vmatprep.subr.bf16.mxu0 0
    %4128 = vmatpush1.bf16.msra.mxu0 0
    %4129 = vmatprep.subr.bf16.mxu0 0
    %4130 = vmatpush1.bf16.msra.mxu0 0
    %4131 = vmatprep.subr.bf16.mxu0 0
    %4132 = vmatpush1.bf16.msra.mxu0 0
    %4133 = vmatprep.subr.bf16.mxu0 0
    %4134 = vmatpush1.bf16.msra.mxu0 0
    %4135 = vmatprep.mubr.bf16.mxu0 0
    %4136 = vmatmul.mubr.bf16.gmra.mrb[0].mxu0 %v3036
    %v4137 = vpop.f32.mrb[0].mxu0
    %v4138 = vadd.f32 0.0, %v4137
    %v4139 = vpop.f32.mrb[0].mxu0
    %v4140 = vpop.f32.mrb[0].mxu0
    %v4141 = vadd.f32 0.0, %v4140
    %v4142 = vpop.f32.mrb[0].mxu0
    %4143 = vmatprep.mubr.bf16.mxu0 0
    %4144 = vmatmul.mubr.bf16.gmra.mrb[0].mxu0 %v3037
    %v4145 = vpop.f32.mrb[0].mxu0
    %v4146 = vadd.f32 0.0, %v4145
    %v4147 = vpop.f32.mrb[0].mxu0
    %v4148 = vpop.f32.mrb[0].mxu0
    %v4149 = vadd.f32 0.0, %v4148
    %v4150 = vpop.f32.mrb[0].mxu0
    %4151 = vmatprep.mubr.bf16.mxu0 0
    %4152 = vmatmul.mubr.bf16.gmra.mrb[0].mxu0 %v3038
    %v4153 = vpop.f32.mrb[0].mxu0
    %v4154 = vadd.f32 0.0, %v4153
    %v4155 = vpop.f32.mrb[0].mxu0
    %v4156 = vpop.f32.mrb[0].mxu0
    %v4157 = vadd.f32 0.0, %v4156
    %v4158 = vpop.f32.mrb[0].mxu0
    %4159 = vmatprep.mubr.bf16.mxu0 0
    %4160 = vmatmul.mubr.bf16.gmra.mrb[0].mxu0 %v3039
    %v4161 = vpop.f32.mrb[0].mxu0
    %v4162 = vadd.f32 0.0, %v4161
    %v4163 = vpop.f32.mrb[0].mxu0
    %v4164 = vpop.f32.mrb[0].mxu0
    %v4165 = vadd.f32 0.0, %v4164
    %v4166 = vpop.f32.mrb[0].mxu0
    %4167 = vmatprep.mubr.bf16.mxu0 0
    %4168 = vmatmul.mubr.bf16.gmra.mrb[0].mxu0 %v3040
    %v4169 = vpop.f32.mrb[0].mxu0
    %v4170 = vadd.f32 0.0, %v4169
    %v4171 = vpop.f32.mrb[0].mxu0
    %v4172 = vpop.f32.mrb[0].mxu0
    %v4173 = vadd.f32 0.0, %v4172
    %v4174 = vpop.f32.mrb[0].mxu0
    %4175 = vmatprep.mubr.bf16.mxu0 0
    %4176 = vmatmul.mubr.bf16.gmra.mrb[0].mxu0 %v3041
    %v4177 = vpop.f32.mrb[0].mxu0
    %v4178 = vadd.f32 0.0, %v4177
    %v4179 = vpop.f32.mrb[0].mxu0
    %v4180 = vpop.f32.mrb[0].mxu0
    %v4181 = vadd.f32 0.0, %v4180
    %v4182 = vpop.f32.mrb[0].mxu0
    %4183 = vmatprep.mubr.bf16.mxu0 0
    %4184 = vmatmul.mubr.bf16.gmra.mrb[0].mxu0 %v3042
    %v4185 = vpop.f32.mrb[0].mxu0
    %v4186 = vadd.f32 0.0, %v4185
    %v4187 = vpop.f32.mrb[0].mxu0
    %v4188 = vpop.f32.mrb[0].mxu0
    %v4189 = vadd.f32 0.0, %v4188
    %v4190 = vpop.f32.mrb[0].mxu0
    %4191 = vmatprep.mubr.bf16.mxu0 0
    %4192 = vmatmul.mubr.bf16.gmra.mrb[0].mxu0 %v3043
    %v4193 = vpop.f32.mrb[0].mxu0
    %v4194 = vadd.f32 0.0, %v4193
    %v4195 = vpop.f32.mrb[0].mxu0
    %v4196 = vpop.f32.mrb[0].mxu0
    %v4197 = vadd.f32 0.0, %v4196
    %v4198 = vpop.f32.mrb[0].mxu0
    %4199 = vmatprep.mubr.bf16.mxu0 0
    %4200 = vmatmul.mubr.bf16.gmra.mrb[0].mxu0 %v3044
    %v4201 = vpop.f32.mrb[0].mxu0
    %v4202 = vadd.f32 0.0, %v4201
    %v4203 = vpop.f32.mrb[0].mxu0
    %v4204 = vpop.f32.mrb[0].mxu0
    %v4205 = vadd.f32 0.0, %v4204
    %v4206 = vpop.f32.mrb[0].mxu0
    %4207 = vdwg.mxu0
    %v4208 = vadd.f32 %v4020, %v4138
    %v4209 = vadd.f32 %v4021, %v4141
    %v4210 = vadd.f32 %v4022, %v4146
    %v4211 = vadd.f32 %v4023, %v4149
    %v4212 = vadd.f32 %v4024, %v4154
    %v4213 = vadd.f32 %v4025, %v4157
    %v4214 = vadd.f32 %v4026, %v4162
    %v4215 = vadd.f32 %v4027, %v4165
    %v4216 = vadd.f32 %v4028, %v4170
    %v4217 = vadd.f32 %v4029, %v4173
    %v4218 = vadd.f32 %v4030, %v4178
    %v4219 = vadd.f32 %v4031, %v4181
    %v4220 = vadd.f32 %v4032, %v4186
    %v4221 = vadd.f32 %v4033, %v4189
    %v4222 = vadd.f32 %v4034, %v4194
    %v4223 = vadd.f32 %v4035, %v4197
    %v4224 = vadd.f32 %v4036, %v4202
    %v4225 = vadd.f32 %v4037, %v4205
    %s4226 = scalar_lea.vmem %s3, 384
    %v4227 = vld [vmem:[%s4226] sm:$0xf]
    %v4228 = vld [vmem:[%s4226 + $0x4] sm:$0xf]
    %v4229 = vld [vmem:[%s4226 + $0x8] sm:$0xf]
    %v4230 = vld [vmem:[%s4226 + $0xc] sm:$0xf]
    %v4231 = vld [vmem:[%s4226 + $0x10] sm:$0xf]
    %v4232 = vld [vmem:[%s4226 + $0x14] sm:$0xf]
    %v4233 = vld [vmem:[%s4226 + $0x18] sm:$0xf]
    %v4234 = vld [vmem:[%s4226 + $0x1c] sm:$0xf]
    %v4235 = vld [vmem:[%s4226 + $0x20] sm:$0xf]
    %v4236 = vld [vmem:[%s4226 + $0x24] sm:$0xf]
    %v4237 = vld [vmem:[%s4226 + $0x28] sm:$0xf]
    %v4238 = vld [vmem:[%s4226 + $0x2c] sm:$0xf]
    %v4239 = vld [vmem:[%s4226 + $0x30] sm:$0xf]
    %v4240 = vld [vmem:[%s4226 + $0x34] sm:$0xf]
    %v4241 = vld [vmem:[%s4226 + $0x38] sm:$0xf]
    %v4242 = vld [vmem:[%s4226 + $0x3c] sm:$0xf]
    %v4259 = vunpack.c.l.b16 %v4227
    %v4260 = vunpack.c.l.b16 %v4228
    %v4261 = vunpack.c.l.b16 %v4229
    %v4262 = vunpack.c.l.b16 %v4230
    %v4263 = vunpack.c.l.b16 %v4231
    %v4264 = vunpack.c.l.b16 %v4232
    %v4265 = vunpack.c.l.b16 %v4233
    %v4266 = vunpack.c.l.b16 %v4234
    %v4267 = vunpack.c.l.b16 %v4235
    %v4268 = vunpack.c.l.b16 %v4236
    %v4269 = vunpack.c.l.b16 %v4237
    %v4270 = vunpack.c.l.b16 %v4238
    %v4271 = vunpack.c.l.b16 %v4239
    %v4272 = vunpack.c.l.b16 %v4240
    %v4273 = vunpack.c.l.b16 %v4241
    %v4274 = vunpack.c.l.b16 %v4242
    %v4275 = vpack.c.b16 %v4260, %v4259
    %v4276 = vpack.c.b16 %v4262, %v4261
    %v4277 = vpack.c.b16 %v4264, %v4263
    %v4278 = vpack.c.b16 %v4266, %v4265
    %v4279 = vpack.c.b16 %v4268, %v4267
    %v4280 = vpack.c.b16 %v4270, %v4269
    %v4281 = vpack.c.b16 %v4272, %v4271
    %v4282 = vpack.c.b16 %v4274, %v4273
    %4291 = vmatprep.subr.bf16.mxu0 0
    %4292 = vmatpush1.bf16.msra.mxu0 %v4275
    %4293 = vmatprep.subr.bf16.mxu0 0
    %4294 = vmatpush1.bf16.msra.mxu0 %v4276
    %4295 = vmatprep.subr.bf16.mxu0 0
    %4296 = vmatpush1.bf16.msra.mxu0 %v4277
    %4297 = vmatprep.subr.bf16.mxu0 0
    %4298 = vmatpush1.bf16.msra.mxu0 %v4278
    %4299 = vmatprep.subr.bf16.mxu0 0
    %4300 = vmatpush1.bf16.msra.mxu0 %v4279
    %4301 = vmatprep.subr.bf16.mxu0 0
    %4302 = vmatpush1.bf16.msra.mxu0 %v4280
    %4303 = vmatprep.subr.bf16.mxu0 0
    %4304 = vmatpush1.bf16.msra.mxu0 %v4281
    %4305 = vmatprep.subr.bf16.mxu0 0
    %4306 = vmatpush1.bf16.msra.mxu0 %v4282
    %4307 = vmatprep.subr.bf16.mxu0 0
    %4308 = vmatpush1.bf16.msra.mxu0 0
    %4309 = vmatprep.subr.bf16.mxu0 0
    %4310 = vmatpush1.bf16.msra.mxu0 0
    %4311 = vmatprep.subr.bf16.mxu0 0
    %4312 = vmatpush1.bf16.msra.mxu0 0
    %4313 = vmatprep.subr.bf16.mxu0 0
    %4314 = vmatpush1.bf16.msra.mxu0 0
    %4315 = vmatprep.subr.bf16.mxu0 0
    %4316 = vmatpush1.bf16.msra.mxu0 0
    %4317 = vmatprep.subr.bf16.mxu0 0
    %4318 = vmatpush1.bf16.msra.mxu0 0
    %4319 = vmatprep.subr.bf16.mxu0 0
    %4320 = vmatpush1.bf16.msra.mxu0 0
    %4321 = vmatprep.subr.bf16.mxu0 0
    %4322 = vmatpush1.bf16.msra.mxu0 0
    %4323 = vmatprep.mubr.bf16.mxu0 0
    %4324 = vmatmul.mubr.bf16.gmra.mrb[0].mxu0 %v3045
    %v4325 = vpop.f32.mrb[0].mxu0
    %v4326 = vadd.f32 0.0, %v4325
    %v4327 = vpop.f32.mrb[0].mxu0
    %v4328 = vpop.f32.mrb[0].mxu0
    %v4329 = vadd.f32 0.0, %v4328
    %v4330 = vpop.f32.mrb[0].mxu0
    %4331 = vmatprep.mubr.bf16.mxu0 0
    %4332 = vmatmul.mubr.bf16.gmra.mrb[0].mxu0 %v3046
    %v4333 = vpop.f32.mrb[0].mxu0
    %v4334 = vadd.f32 0.0, %v4333
    %v4335 = vpop.f32.mrb[0].mxu0
    %v4336 = vpop.f32.mrb[0].mxu0
    %v4337 = vadd.f32 0.0, %v4336
    %v4338 = vpop.f32.mrb[0].mxu0
    %4339 = vmatprep.mubr.bf16.mxu0 0
    %4340 = vmatmul.mubr.bf16.gmra.mrb[0].mxu0 %v3047
    %v4341 = vpop.f32.mrb[0].mxu0
    %v4342 = vadd.f32 0.0, %v4341
    %v4343 = vpop.f32.mrb[0].mxu0
    %v4344 = vpop.f32.mrb[0].mxu0
    %v4345 = vadd.f32 0.0, %v4344
    %v4346 = vpop.f32.mrb[0].mxu0
    %4347 = vmatprep.mubr.bf16.mxu0 0
    %4348 = vmatmul.mubr.bf16.gmra.mrb[0].mxu0 %v3048
    %v4349 = vpop.f32.mrb[0].mxu0
    %v4350 = vadd.f32 0.0, %v4349
    %v4351 = vpop.f32.mrb[0].mxu0
    %v4352 = vpop.f32.mrb[0].mxu0
    %v4353 = vadd.f32 0.0, %v4352
    %v4354 = vpop.f32.mrb[0].mxu0
    %4355 = vmatprep.mubr.bf16.mxu0 0
    %4356 = vmatmul.mubr.bf16.gmra.mrb[0].mxu0 %v3049
    %v4357 = vpop.f32.mrb[0].mxu0
    %v4358 = vadd.f32 0.0, %v4357
    %v4359 = vpop.f32.mrb[0].mxu0
    %v4360 = vpop.f32.mrb[0].mxu0
    %v4361 = vadd.f32 0.0, %v4360
    %v4362 = vpop.f32.mrb[0].mxu0
    %4363 = vmatprep.mubr.bf16.mxu0 0
    %4364 = vmatmul.mubr.bf16.gmra.mrb[0].mxu0 %v3050
    %v4365 = vpop.f32.mrb[0].mxu0
    %v4366 = vadd.f32 0.0, %v4365
    %v4367 = vpop.f32.mrb[0].mxu0
    %v4368 = vpop.f32.mrb[0].mxu0
    %v4369 = vadd.f32 0.0, %v4368
    %v4370 = vpop.f32.mrb[0].mxu0
    %4371 = vmatprep.mubr.bf16.mxu0 0
    %4372 = vmatmul.mubr.bf16.gmra.mrb[0].mxu0 %v3051
    %v4373 = vpop.f32.mrb[0].mxu0
    %v4374 = vadd.f32 0.0, %v4373
    %v4375 = vpop.f32.mrb[0].mxu0
    %v4376 = vpop.f32.mrb[0].mxu0
    %v4377 = vadd.f32 0.0, %v4376
    %v4378 = vpop.f32.mrb[0].mxu0
    %4379 = vmatprep.mubr.bf16.mxu0 0
    %4380 = vmatmul.mubr.bf16.gmra.mrb[0].mxu0 %v3052
    %v4381 = vpop.f32.mrb[0].mxu0
    %v4382 = vadd.f32 0.0, %v4381
    %v4383 = vpop.f32.mrb[0].mxu0
    %v4384 = vpop.f32.mrb[0].mxu0
    %v4385 = vadd.f32 0.0, %v4384
    %v4386 = vpop.f32.mrb[0].mxu0
    %4387 = vmatprep.mubr.bf16.mxu0 0
    %4388 = vmatmul.mubr.bf16.gmra.mrb[0].mxu0 %v3053
    %v4389 = vpop.f32.mrb[0].mxu0
    %v4390 = vadd.f32 0.0, %v4389
    %v4391 = vpop.f32.mrb[0].mxu0
    %v4392 = vpop.f32.mrb[0].mxu0
    %v4393 = vadd.f32 0.0, %v4392
    %v4394 = vpop.f32.mrb[0].mxu0
    %4395 = vdwg.mxu0
    %v4396 = vadd.f32 %v4208, %v4326
    %v4397 = vadd.f32 %v4209, %v4329
    %v4398 = vadd.f32 %v4210, %v4334
    %v4399 = vadd.f32 %v4211, %v4337
    %v4400 = vadd.f32 %v4212, %v4342
    %v4401 = vadd.f32 %v4213, %v4345
    %v4402 = vadd.f32 %v4214, %v4350
    %v4403 = vadd.f32 %v4215, %v4353
    %v4404 = vadd.f32 %v4216, %v4358
    %v4405 = vadd.f32 %v4217, %v4361
    %v4406 = vadd.f32 %v4218, %v4366
    %v4407 = vadd.f32 %v4219, %v4369
    %v4408 = vadd.f32 %v4220, %v4374
    %v4409 = vadd.f32 %v4221, %v4377
    %v4410 = vadd.f32 %v4222, %v4382
    %v4411 = vadd.f32 %v4223, %v4385
    %v4412 = vadd.f32 %v4224, %v4390
    %v4413 = vadd.f32 %v4225, %v4393
    %s4414 = scalar_lea.vmem %s3, 448
    %v4415 = vld [vmem:[%s4414] sm:$0xf]
    %v4416 = vld [vmem:[%s4414 + $0x4] sm:$0xf]
    %v4417 = vld [vmem:[%s4414 + $0x8] sm:$0xf]
    %v4418 = vld [vmem:[%s4414 + $0xc] sm:$0xf]
    %v4419 = vld [vmem:[%s4414 + $0x10] sm:$0xf]
    %v4420 = vld [vmem:[%s4414 + $0x14] sm:$0xf]
    %v4421 = vld [vmem:[%s4414 + $0x18] sm:$0xf]
    %v4422 = vld [vmem:[%s4414 + $0x1c] sm:$0xf]
    %v4423 = vld [vmem:[%s4414 + $0x20] sm:$0xf]
    %v4424 = vld [vmem:[%s4414 + $0x24] sm:$0xf]
    %v4425 = vld [vmem:[%s4414 + $0x28] sm:$0xf]
    %v4426 = vld [vmem:[%s4414 + $0x2c] sm:$0xf]
    %v4427 = vld [vmem:[%s4414 + $0x30] sm:$0xf]
    %v4428 = vld [vmem:[%s4414 + $0x34] sm:$0xf]
    %v4429 = vld [vmem:[%s4414 + $0x38] sm:$0xf]
    %v4430 = vld [vmem:[%s4414 + $0x3c] sm:$0xf]
    %v4447 = vunpack.c.l.b16 %v4415
    %v4448 = vunpack.c.l.b16 %v4416
    %v4449 = vunpack.c.l.b16 %v4417
    %v4450 = vunpack.c.l.b16 %v4418
    %v4451 = vunpack.c.l.b16 %v4419
    %v4452 = vunpack.c.l.b16 %v4420
    %v4453 = vunpack.c.l.b16 %v4421
    %v4454 = vunpack.c.l.b16 %v4422
    %v4455 = vunpack.c.l.b16 %v4423
    %v4456 = vunpack.c.l.b16 %v4424
    %v4457 = vunpack.c.l.b16 %v4425
    %v4458 = vunpack.c.l.b16 %v4426
    %v4459 = vunpack.c.l.b16 %v4427
    %v4460 = vunpack.c.l.b16 %v4428
    %v4461 = vunpack.c.l.b16 %v4429
    %v4462 = vunpack.c.l.b16 %v4430
    %v4463 = vpack.c.b16 %v4448, %v4447
    %v4464 = vpack.c.b16 %v4450, %v4449
    %v4465 = vpack.c.b16 %v4452, %v4451
    %v4466 = vpack.c.b16 %v4454, %v4453
    %v4467 = vpack.c.b16 %v4456, %v4455
    %v4468 = vpack.c.b16 %v4458, %v4457
    %v4469 = vpack.c.b16 %v4460, %v4459
    %v4470 = vpack.c.b16 %v4462, %v4461
    %4479 = vmatprep.subr.bf16.mxu0 0
    %4480 = vmatpush1.bf16.msra.mxu0 %v4463
    %4481 = vmatprep.subr.bf16.mxu0 0
    %4482 = vmatpush1.bf16.msra.mxu0 %v4464
    %4483 = vmatprep.subr.bf16.mxu0 0
    %4484 = vmatpush1.bf16.msra.mxu0 %v4465
    %4485 = vmatprep.subr.bf16.mxu0 0
    %4486 = vmatpush1.bf16.msra.mxu0 %v4466
    %4487 = vmatprep.subr.bf16.mxu0 0
    %4488 = vmatpush1.bf16.msra.mxu0 %v4467
    %4489 = vmatprep.subr.bf16.mxu0 0
    %4490 = vmatpush1.bf16.msra.mxu0 %v4468
    %4491 = vmatprep.subr.bf16.mxu0 0
    %4492 = vmatpush1.bf16.msra.mxu0 %v4469
    %4493 = vmatprep.subr.bf16.mxu0 0
    %4494 = vmatpush1.bf16.msra.mxu0 %v4470
    %4495 = vmatprep.subr.bf16.mxu0 0
    %4496 = vmatpush1.bf16.msra.mxu0 0
    %4497 = vmatprep.subr.bf16.mxu0 0
    %4498 = vmatpush1.bf16.msra.mxu0 0
    %4499 = vmatprep.subr.bf16.mxu0 0
    %4500 = vmatpush1.bf16.msra.mxu0 0
    %4501 = vmatprep.subr.bf16.mxu0 0
    %4502 = vmatpush1.bf16.msra.mxu0 0
    %4503 = vmatprep.subr.bf16.mxu0 0
    %4504 = vmatpush1.bf16.msra.mxu0 0
    %4505 = vmatprep.subr.bf16.mxu0 0
    %4506 = vmatpush1.bf16.msra.mxu0 0
    %4507 = vmatprep.subr.bf16.mxu0 0
    %4508 = vmatpush1.bf16.msra.mxu0 0
    %4509 = vmatprep.subr.bf16.mxu0 0
    %4510 = vmatpush1.bf16.msra.mxu0 0
    %4511 = vmatprep.mubr.bf16.mxu0 0
    %4512 = vmatmul.mubr.bf16.gmra.mrb[0].mxu0 %v3054
    %v4513 = vpop.f32.mrb[0].mxu0
    %v4514 = vadd.f32 0.0, %v4513
    %v4515 = vpop.f32.mrb[0].mxu0
    %v4516 = vpop.f32.mrb[0].mxu0
    %v4517 = vadd.f32 0.0, %v4516
    %v4518 = vpop.f32.mrb[0].mxu0
    %4519 = vmatprep.mubr.bf16.mxu0 0
    %4520 = vmatmul.mubr.bf16.gmra.mrb[0].mxu0 %v3055
    %v4521 = vpop.f32.mrb[0].mxu0
    %v4522 = vadd.f32 0.0, %v4521
    %v4523 = vpop.f32.mrb[0].mxu0
    %v4524 = vpop.f32.mrb[0].mxu0
    %v4525 = vadd.f32 0.0, %v4524
    %v4526 = vpop.f32.mrb[0].mxu0
    %4527 = vmatprep.mubr.bf16.mxu0 0
    %4528 = vmatmul.mubr.bf16.gmra.mrb[0].mxu0 %v3056
    %v4529 = vpop.f32.mrb[0].mxu0
    %v4530 = vadd.f32 0.0, %v4529
    %v4531 = vpop.f32.mrb[0].mxu0
    %v4532 = vpop.f32.mrb[0].mxu0
    %v4533 = vadd.f32 0.0, %v4532
    %v4534 = vpop.f32.mrb[0].mxu0
    %4535 = vmatprep.mubr.bf16.mxu0 0
    %4536 = vmatmul.mubr.bf16.gmra.mrb[0].mxu0 %v3057
    %v4537 = vpop.f32.mrb[0].mxu0
    %v4538 = vadd.f32 0.0, %v4537
    %v4539 = vpop.f32.mrb[0].mxu0
    %v4540 = vpop.f32.mrb[0].mxu0
    %v4541 = vadd.f32 0.0, %v4540
    %v4542 = vpop.f32.mrb[0].mxu0
    %4543 = vmatprep.mubr.bf16.mxu0 0
    %4544 = vmatmul.mubr.bf16.gmra.mrb[0].mxu0 %v3058
    %v4545 = vpop.f32.mrb[0].mxu0
    %v4546 = vadd.f32 0.0, %v4545
    %v4547 = vpop.f32.mrb[0].mxu0
    %v4548 = vpop.f32.mrb[0].mxu0
    %v4549 = vadd.f32 0.0, %v4548
    %v4550 = vpop.f32.mrb[0].mxu0
    %4551 = vmatprep.mubr.bf16.mxu0 0
    %4552 = vmatmul.mubr.bf16.gmra.mrb[0].mxu0 %v3059
    %v4553 = vpop.f32.mrb[0].mxu0
    %v4554 = vadd.f32 0.0, %v4553
    %v4555 = vpop.f32.mrb[0].mxu0
    %v4556 = vpop.f32.mrb[0].mxu0
    %v4557 = vadd.f32 0.0, %v4556
    %v4558 = vpop.f32.mrb[0].mxu0
    %4559 = vmatprep.mubr.bf16.mxu0 0
    %4560 = vmatmul.mubr.bf16.gmra.mrb[0].mxu0 %v3060
    %v4561 = vpop.f32.mrb[0].mxu0
    %v4562 = vadd.f32 0.0, %v4561
    %v4563 = vpop.f32.mrb[0].mxu0
    %v4564 = vpop.f32.mrb[0].mxu0
    %v4565 = vadd.f32 0.0, %v4564
    %v4566 = vpop.f32.mrb[0].mxu0
    %4567 = vmatprep.mubr.bf16.mxu0 0
    %4568 = vmatmul.mubr.bf16.gmra.mrb[0].mxu0 %v3061
    %v4569 = vpop.f32.mrb[0].mxu0
    %v4570 = vadd.f32 0.0, %v4569
    %v4571 = vpop.f32.mrb[0].mxu0
    %v4572 = vpop.f32.mrb[0].mxu0
    %v4573 = vadd.f32 0.0, %v4572
    %v4574 = vpop.f32.mrb[0].mxu0
    %4575 = vmatprep.mubr.bf16.mxu0 0
    %4576 = vmatmul.mubr.bf16.gmra.mrb[0].mxu0 %v3062
    %v4577 = vpop.f32.mrb[0].mxu0
    %v4578 = vadd.f32 0.0, %v4577
    %v4579 = vpop.f32.mrb[0].mxu0
    %v4580 = vpop.f32.mrb[0].mxu0
    %v4581 = vadd.f32 0.0, %v4580
    %v4582 = vpop.f32.mrb[0].mxu0
    %4583 = vdwg.mxu0
    %v4584 = vadd.f32 %v4396, %v4514
    %v4585 = vadd.f32 %v4397, %v4517
    %v4586 = vadd.f32 %v4398, %v4522
    %v4587 = vadd.f32 %v4399, %v4525
    %v4588 = vadd.f32 %v4400, %v4530
    %v4589 = vadd.f32 %v4401, %v4533
    %v4590 = vadd.f32 %v4402, %v4538
    %v4591 = vadd.f32 %v4403, %v4541
    %v4592 = vadd.f32 %v4404, %v4546
    %v4593 = vadd.f32 %v4405, %v4549
    %v4594 = vadd.f32 %v4406, %v4554
    %v4595 = vadd.f32 %v4407, %v4557
    %v4596 = vadd.f32 %v4408, %v4562
    %v4597 = vadd.f32 %v4409, %v4565
    %v4598 = vadd.f32 %v4410, %v4570
    %v4599 = vadd.f32 %v4411, %v4573
    %v4600 = vadd.f32 %v4412, %v4578
    %v4601 = vadd.f32 %v4413, %v4581
    %s4602 = scalar_lea.vmem %s3, 512
    %v4603 = vld [vmem:[%s4602] sm:$0xf]
    %v4604 = vld [vmem:[%s4602 + $0x4] sm:$0xf]
    %v4605 = vld [vmem:[%s4602 + $0x8] sm:$0xf]
    %v4606 = vld [vmem:[%s4602 + $0xc] sm:$0xf]
    %v4607 = vld [vmem:[%s4602 + $0x10] sm:$0xf]
    %v4608 = vld [vmem:[%s4602 + $0x14] sm:$0xf]
    %v4609 = vld [vmem:[%s4602 + $0x18] sm:$0xf]
    %v4610 = vld [vmem:[%s4602 + $0x1c] sm:$0xf]
    %v4611 = vld [vmem:[%s4602 + $0x20] sm:$0xf]
    %v4612 = vld [vmem:[%s4602 + $0x24] sm:$0xf]
    %v4613 = vld [vmem:[%s4602 + $0x28] sm:$0xf]
    %v4614 = vld [vmem:[%s4602 + $0x2c] sm:$0xf]
    %v4615 = vld [vmem:[%s4602 + $0x30] sm:$0xf]
    %v4616 = vld [vmem:[%s4602 + $0x34] sm:$0xf]
    %v4617 = vld [vmem:[%s4602 + $0x38] sm:$0xf]
    %v4618 = vld [vmem:[%s4602 + $0x3c] sm:$0xf]
    %v4635 = vunpack.c.l.b16 %v4603
    %v4636 = vunpack.c.l.b16 %v4604
    %v4637 = vunpack.c.l.b16 %v4605
    %v4638 = vunpack.c.l.b16 %v4606
    %v4639 = vunpack.c.l.b16 %v4607
    %v4640 = vunpack.c.l.b16 %v4608
    %v4641 = vunpack.c.l.b16 %v4609
    %v4642 = vunpack.c.l.b16 %v4610
    %v4643 = vunpack.c.l.b16 %v4611
    %v4644 = vunpack.c.l.b16 %v4612
    %v4645 = vunpack.c.l.b16 %v4613
    %v4646 = vunpack.c.l.b16 %v4614
    %v4647 = vunpack.c.l.b16 %v4615
    %v4648 = vunpack.c.l.b16 %v4616
    %v4649 = vunpack.c.l.b16 %v4617
    %v4650 = vunpack.c.l.b16 %v4618
    %v4651 = vpack.c.b16 %v4636, %v4635
    %v4652 = vpack.c.b16 %v4638, %v4637
    %v4653 = vpack.c.b16 %v4640, %v4639
    %v4654 = vpack.c.b16 %v4642, %v4641
    %v4655 = vpack.c.b16 %v4644, %v4643
    %v4656 = vpack.c.b16 %v4646, %v4645
    %v4657 = vpack.c.b16 %v4648, %v4647
    %v4658 = vpack.c.b16 %v4650, %v4649
    %4667 = vmatprep.subr.bf16.mxu0 0
    %4668 = vmatpush1.bf16.msra.mxu0 %v4651
    %4669 = vmatprep.subr.bf16.mxu0 0
    %4670 = vmatpush1.bf16.msra.mxu0 %v4652
    %4671 = vmatprep.subr.bf16.mxu0 0
    %4672 = vmatpush1.bf16.msra.mxu0 %v4653
    %4673 = vmatprep.subr.bf16.mxu0 0
    %4674 = vmatpush1.bf16.msra.mxu0 %v4654
    %4675 = vmatprep.subr.bf16.mxu0 0
    %4676 = vmatpush1.bf16.msra.mxu0 %v4655
    %4677 = vmatprep.subr.bf16.mxu0 0
    %4678 = vmatpush1.bf16.msra.mxu0 %v4656
    %4679 = vmatprep.subr.bf16.mxu0 0
    %4680 = vmatpush1.bf16.msra.mxu0 %v4657
    %4681 = vmatprep.subr.bf16.mxu0 0
    %4682 = vmatpush1.bf16.msra.mxu0 %v4658
    %4683 = vmatprep.subr.bf16.mxu0 0
    %4684 = vmatpush1.bf16.msra.mxu0 0
    %4685 = vmatprep.subr.bf16.mxu0 0
    %4686 = vmatpush1.bf16.msra.mxu0 0
    %4687 = vmatprep.subr.bf16.mxu0 0
    %4688 = vmatpush1.bf16.msra.mxu0 0
    %4689 = vmatprep.subr.bf16.mxu0 0
    %4690 = vmatpush1.bf16.msra.mxu0 0
    %4691 = vmatprep.subr.bf16.mxu0 0
    %4692 = vmatpush1.bf16.msra.mxu0 0
    %4693 = vmatprep.subr.bf16.mxu0 0
    %4694 = vmatpush1.bf16.msra.mxu0 0
    %4695 = vmatprep.subr.bf16.mxu0 0
    %4696 = vmatpush1.bf16.msra.mxu0 0
    %4697 = vmatprep.subr.bf16.mxu0 0
    %4698 = vmatpush1.bf16.msra.mxu0 0
    %4699 = vmatprep.mubr.bf16.mxu0 0
    %4700 = vmatmul.mubr.bf16.gmra.mrb[0].mxu0 %v3063
    %v4701 = vpop.f32.mrb[0].mxu0
    %v4702 = vadd.f32 0.0, %v4701
    %v4703 = vpop.f32.mrb[0].mxu0
    %v4704 = vpop.f32.mrb[0].mxu0
    %v4705 = vadd.f32 0.0, %v4704
    %v4706 = vpop.f32.mrb[0].mxu0
    %4707 = vmatprep.mubr.bf16.mxu0 0
    %4708 = vmatmul.mubr.bf16.gmra.mrb[0].mxu0 %v3064
    %v4709 = vpop.f32.mrb[0].mxu0
    %v4710 = vadd.f32 0.0, %v4709
    %v4711 = vpop.f32.mrb[0].mxu0
    %v4712 = vpop.f32.mrb[0].mxu0
    %v4713 = vadd.f32 0.0, %v4712
    %v4714 = vpop.f32.mrb[0].mxu0
    %4715 = vmatprep.mubr.bf16.mxu0 0
    %4716 = vmatmul.mubr.bf16.gmra.mrb[0].mxu0 %v3065
    %v4717 = vpop.f32.mrb[0].mxu0
    %v4718 = vadd.f32 0.0, %v4717
    %v4719 = vpop.f32.mrb[0].mxu0
    %v4720 = vpop.f32.mrb[0].mxu0
    %v4721 = vadd.f32 0.0, %v4720
    %v4722 = vpop.f32.mrb[0].mxu0
    %4723 = vmatprep.mubr.bf16.mxu0 0
    %4724 = vmatmul.mubr.bf16.gmra.mrb[0].mxu0 %v3066
    %v4725 = vpop.f32.mrb[0].mxu0
    %v4726 = vadd.f32 0.0, %v4725
    %v4727 = vpop.f32.mrb[0].mxu0
    %v4728 = vpop.f32.mrb[0].mxu0
    %v4729 = vadd.f32 0.0, %v4728
    %v4730 = vpop.f32.mrb[0].mxu0
    %4731 = vmatprep.mubr.bf16.mxu0 0
    %4732 = vmatmul.mubr.bf16.gmra.mrb[0].mxu0 %v3067
    %v4733 = vpop.f32.mrb[0].mxu0
    %v4734 = vadd.f32 0.0, %v4733
    %v4735 = vpop.f32.mrb[0].mxu0
    %v4736 = vpop.f32.mrb[0].mxu0
    %v4737 = vadd.f32 0.0, %v4736
    %v4738 = vpop.f32.mrb[0].mxu0
    %4739 = vmatprep.mubr.bf16.mxu0 0
    %4740 = vmatmul.mubr.bf16.gmra.mrb[0].mxu0 %v3068
    %v4741 = vpop.f32.mrb[0].mxu0
    %v4742 = vadd.f32 0.0, %v4741
    %v4743 = vpop.f32.mrb[0].mxu0
    %v4744 = vpop.f32.mrb[0].mxu0
    %v4745 = vadd.f32 0.0, %v4744
    %v4746 = vpop.f32.mrb[0].mxu0
    %4747 = vmatprep.mubr.bf16.mxu0 0
    %4748 = vmatmul.mubr.bf16.gmra.mrb[0].mxu0 %v3069
    %v4749 = vpop.f32.mrb[0].mxu0
    %v4750 = vadd.f32 0.0, %v4749
    %v4751 = vpop.f32.mrb[0].mxu0
    %v4752 = vpop.f32.mrb[0].mxu0
    %v4753 = vadd.f32 0.0, %v4752
    %v4754 = vpop.f32.mrb[0].mxu0
    %4755 = vmatprep.mubr.bf16.mxu0 0
    %4756 = vmatmul.mubr.bf16.gmra.mrb[0].mxu0 %v3070
    %v4757 = vpop.f32.mrb[0].mxu0
    %v4758 = vadd.f32 0.0, %v4757
    %v4759 = vpop.f32.mrb[0].mxu0
    %v4760 = vpop.f32.mrb[0].mxu0
    %v4761 = vadd.f32 0.0, %v4760
    %v4762 = vpop.f32.mrb[0].mxu0
    %4763 = vmatprep.mubr.bf16.mxu0 0
    %4764 = vmatmul.mubr.bf16.gmra.mrb[0].mxu0 %v3071
    %v4765 = vpop.f32.mrb[0].mxu0
    %v4766 = vadd.f32 0.0, %v4765
    %v4767 = vpop.f32.mrb[0].mxu0
    %v4768 = vpop.f32.mrb[0].mxu0
    %v4769 = vadd.f32 0.0, %v4768
    %v4770 = vpop.f32.mrb[0].mxu0
    %4771 = vdwg.mxu0
    %v4772 = vadd.f32 %v4584, %v4702
    %v4773 = vadd.f32 %v4585, %v4705
    %v4774 = vadd.f32 %v4586, %v4710
    %v4775 = vadd.f32 %v4587, %v4713
    %v4776 = vadd.f32 %v4588, %v4718
    %v4777 = vadd.f32 %v4589, %v4721
    %v4778 = vadd.f32 %v4590, %v4726
    %v4779 = vadd.f32 %v4591, %v4729
    %v4780 = vadd.f32 %v4592, %v4734
    %v4781 = vadd.f32 %v4593, %v4737
    %v4782 = vadd.f32 %v4594, %v4742
    %v4783 = vadd.f32 %v4595, %v4745
    %v4784 = vadd.f32 %v4596, %v4750
    %v4785 = vadd.f32 %v4597, %v4753
    %v4786 = vadd.f32 %v4598, %v4758
    %v4787 = vadd.f32 %v4599, %v4761
    %v4788 = vadd.f32 %v4600, %v4766
    %v4789 = vadd.f32 %v4601, %v4769
    %s4790 = scalar_lea.vmem %s3, 576
    %v4791 = vld [vmem:[%s4790] sm:$0xf]
    %v4792 = vld [vmem:[%s4790 + $0x4] sm:$0xf]
    %v4793 = vld [vmem:[%s4790 + $0x8] sm:$0xf]
    %v4794 = vld [vmem:[%s4790 + $0xc] sm:$0xf]
    %v4795 = vld [vmem:[%s4790 + $0x10] sm:$0xf]
    %v4796 = vld [vmem:[%s4790 + $0x14] sm:$0xf]
    %v4797 = vld [vmem:[%s4790 + $0x18] sm:$0xf]
    %v4798 = vld [vmem:[%s4790 + $0x1c] sm:$0xf]
    %v4799 = vld [vmem:[%s4790 + $0x20] sm:$0xf]
    %v4800 = vld [vmem:[%s4790 + $0x24] sm:$0xf]
    %v4801 = vld [vmem:[%s4790 + $0x28] sm:$0xf]
    %v4802 = vld [vmem:[%s4790 + $0x2c] sm:$0xf]
    %v4803 = vld [vmem:[%s4790 + $0x30] sm:$0xf]
    %v4804 = vld [vmem:[%s4790 + $0x34] sm:$0xf]
    %v4805 = vld [vmem:[%s4790 + $0x38] sm:$0xf]
    %v4806 = vld [vmem:[%s4790 + $0x3c] sm:$0xf]
    %v4823 = vunpack.c.l.b16 %v4791
    %v4824 = vunpack.c.l.b16 %v4792
    %v4825 = vunpack.c.l.b16 %v4793
    %v4826 = vunpack.c.l.b16 %v4794
    %v4827 = vunpack.c.l.b16 %v4795
    %v4828 = vunpack.c.l.b16 %v4796
    %v4829 = vunpack.c.l.b16 %v4797
    %v4830 = vunpack.c.l.b16 %v4798
    %v4831 = vunpack.c.l.b16 %v4799
    %v4832 = vunpack.c.l.b16 %v4800
    %v4833 = vunpack.c.l.b16 %v4801
    %v4834 = vunpack.c.l.b16 %v4802
    %v4835 = vunpack.c.l.b16 %v4803
    %v4836 = vunpack.c.l.b16 %v4804
    %v4837 = vunpack.c.l.b16 %v4805
    %v4838 = vunpack.c.l.b16 %v4806
    %v4839 = vpack.c.b16 %v4824, %v4823
    %v4840 = vpack.c.b16 %v4826, %v4825
    %v4841 = vpack.c.b16 %v4828, %v4827
    %v4842 = vpack.c.b16 %v4830, %v4829
    %v4843 = vpack.c.b16 %v4832, %v4831
    %v4844 = vpack.c.b16 %v4834, %v4833
    %v4845 = vpack.c.b16 %v4836, %v4835
    %v4846 = vpack.c.b16 %v4838, %v4837
    %4855 = vmatprep.subr.bf16.mxu0 0
    %4856 = vmatpush1.bf16.msra.mxu0 %v4839
    %4857 = vmatprep.subr.bf16.mxu0 0
    %4858 = vmatpush1.bf16.msra.mxu0 %v4840
    %4859 = vmatprep.subr.bf16.mxu0 0
    %4860 = vmatpush1.bf16.msra.mxu0 %v4841
    %4861 = vmatprep.subr.bf16.mxu0 0
    %4862 = vmatpush1.bf16.msra.mxu0 %v4842
    %4863 = vmatprep.subr.bf16.mxu0 0
    %4864 = vmatpush1.bf16.msra.mxu0 %v4843
    %4865 = vmatprep.subr.bf16.mxu0 0
    %4866 = vmatpush1.bf16.msra.mxu0 %v4844
    %4867 = vmatprep.subr.bf16.mxu0 0
    %4868 = vmatpush1.bf16.msra.mxu0 %v4845
    %4869 = vmatprep.subr.bf16.mxu0 0
    %4870 = vmatpush1.bf16.msra.mxu0 %v4846
    %4871 = vmatprep.subr.bf16.mxu0 0
    %4872 = vmatpush1.bf16.msra.mxu0 0
    %4873 = vmatprep.subr.bf16.mxu0 0
    %4874 = vmatpush1.bf16.msra.mxu0 0
    %4875 = vmatprep.subr.bf16.mxu0 0
    %4876 = vmatpush1.bf16.msra.mxu0 0
    %4877 = vmatprep.subr.bf16.mxu0 0
    %4878 = vmatpush1.bf16.msra.mxu0 0
    %4879 = vmatprep.subr.bf16.mxu0 0
    %4880 = vmatpush1.bf16.msra.mxu0 0
    %4881 = vmatprep.subr.bf16.mxu0 0
    %4882 = vmatpush1.bf16.msra.mxu0 0
    %4883 = vmatprep.subr.bf16.mxu0 0
    %4884 = vmatpush1.bf16.msra.mxu0 0
    %4885 = vmatprep.subr.bf16.mxu0 0
    %4886 = vmatpush1.bf16.msra.mxu0 0
    %4887 = vmatprep.mubr.bf16.mxu0 0
    %4888 = vmatmul.mubr.bf16.gmra.mrb[0].mxu0 %v3072
    %v4889 = vpop.f32.mrb[0].mxu0
    %v4890 = vadd.f32 0.0, %v4889
    %v4891 = vpop.f32.mrb[0].mxu0
    %v4892 = vpop.f32.mrb[0].mxu0
    %v4893 = vadd.f32 0.0, %v4892
    %v4894 = vpop.f32.mrb[0].mxu0
    %4895 = vmatprep.mubr.bf16.mxu0 0
    %4896 = vmatmul.mubr.bf16.gmra.mrb[0].mxu0 %v3073
    %v4897 = vpop.f32.mrb[0].mxu0
    %v4898 = vadd.f32 0.0, %v4897
    %v4899 = vpop.f32.mrb[0].mxu0
    %v4900 = vpop.f32.mrb[0].mxu0
    %v4901 = vadd.f32 0.0, %v4900
    %v4902 = vpop.f32.mrb[0].mxu0
    %4903 = vmatprep.mubr.bf16.mxu0 0
    %4904 = vmatmul.mubr.bf16.gmra.mrb[0].mxu0 %v3074
    %v4905 = vpop.f32.mrb[0].mxu0
    %v4906 = vadd.f32 0.0, %v4905
    %v4907 = vpop.f32.mrb[0].mxu0
    %v4908 = vpop.f32.mrb[0].mxu0
    %v4909 = vadd.f32 0.0, %v4908
    %v4910 = vpop.f32.mrb[0].mxu0
    %4911 = vmatprep.mubr.bf16.mxu0 0
    %4912 = vmatmul.mubr.bf16.gmra.mrb[0].mxu0 %v3075
    %v4913 = vpop.f32.mrb[0].mxu0
    %v4914 = vadd.f32 0.0, %v4913
    %v4915 = vpop.f32.mrb[0].mxu0
    %v4916 = vpop.f32.mrb[0].mxu0
    %v4917 = vadd.f32 0.0, %v4916
    %v4918 = vpop.f32.mrb[0].mxu0
    %4919 = vmatprep.mubr.bf16.mxu0 0
    %4920 = vmatmul.mubr.bf16.gmra.mrb[0].mxu0 %v3076
    %v4921 = vpop.f32.mrb[0].mxu0
    %v4922 = vadd.f32 0.0, %v4921
    %v4923 = vpop.f32.mrb[0].mxu0
    %v4924 = vpop.f32.mrb[0].mxu0
    %v4925 = vadd.f32 0.0, %v4924
    %v4926 = vpop.f32.mrb[0].mxu0
    %4927 = vmatprep.mubr.bf16.mxu0 0
    %4928 = vmatmul.mubr.bf16.gmra.mrb[0].mxu0 %v3077
    %v4929 = vpop.f32.mrb[0].mxu0
    %v4930 = vadd.f32 0.0, %v4929
    %v4931 = vpop.f32.mrb[0].mxu0
    %v4932 = vpop.f32.mrb[0].mxu0
    %v4933 = vadd.f32 0.0, %v4932
    %v4934 = vpop.f32.mrb[0].mxu0
    %4935 = vmatprep.mubr.bf16.mxu0 0
    %4936 = vmatmul.mubr.bf16.gmra.mrb[0].mxu0 %v3078
    %v4937 = vpop.f32.mrb[0].mxu0
    %v4938 = vadd.f32 0.0, %v4937
    %v4939 = vpop.f32.mrb[0].mxu0
    %v4940 = vpop.f32.mrb[0].mxu0
    %v4941 = vadd.f32 0.0, %v4940
    %v4942 = vpop.f32.mrb[0].mxu0
    %4943 = vmatprep.mubr.bf16.mxu0 0
    %4944 = vmatmul.mubr.bf16.gmra.mrb[0].mxu0 %v3079
    %v4945 = vpop.f32.mrb[0].mxu0
    %v4946 = vadd.f32 0.0, %v4945
    %v4947 = vpop.f32.mrb[0].mxu0
    %v4948 = vpop.f32.mrb[0].mxu0
    %v4949 = vadd.f32 0.0, %v4948
    %v4950 = vpop.f32.mrb[0].mxu0
    %4951 = vmatprep.mubr.bf16.mxu0 0
    %4952 = vmatmul.mubr.bf16.gmra.mrb[0].mxu0 %v3080
    %v4953 = vpop.f32.mrb[0].mxu0
    %v4954 = vadd.f32 0.0, %v4953
    %v4955 = vpop.f32.mrb[0].mxu0
    %v4956 = vpop.f32.mrb[0].mxu0
    %v4957 = vadd.f32 0.0, %v4956
    %v4958 = vpop.f32.mrb[0].mxu0
    %4959 = vdwg.mxu0
    %v4960 = vadd.f32 %v4772, %v4890
    %v4961 = vadd.f32 %v4773, %v4893
    %v4962 = vadd.f32 %v4774, %v4898
    %v4963 = vadd.f32 %v4775, %v4901
    %v4964 = vadd.f32 %v4776, %v4906
    %v4965 = vadd.f32 %v4777, %v4909
    %v4966 = vadd.f32 %v4778, %v4914
    %v4967 = vadd.f32 %v4779, %v4917
    %v4968 = vadd.f32 %v4780, %v4922
    %v4969 = vadd.f32 %v4781, %v4925
    %v4970 = vadd.f32 %v4782, %v4930
    %v4971 = vadd.f32 %v4783, %v4933
    %v4972 = vadd.f32 %v4784, %v4938
    %v4973 = vadd.f32 %v4785, %v4941
    %v4974 = vadd.f32 %v4786, %v4946
    %v4975 = vadd.f32 %v4787, %v4949
    %v4976 = vadd.f32 %v4788, %v4954
    %v4977 = vadd.f32 %v4789, %v4957
    %s4978 = scalar_lea.vmem %s3, 640
    %v4979 = vld [vmem:[%s4978] sm:$0xf]
    %v4980 = vld [vmem:[%s4978 + $0x4] sm:$0xf]
    %v4981 = vld [vmem:[%s4978 + $0x8] sm:$0xf]
    %v4982 = vld [vmem:[%s4978 + $0xc] sm:$0xf]
    %v4983 = vld [vmem:[%s4978 + $0x10] sm:$0xf]
    %v4984 = vld [vmem:[%s4978 + $0x14] sm:$0xf]
    %v4985 = vld [vmem:[%s4978 + $0x18] sm:$0xf]
    %v4986 = vld [vmem:[%s4978 + $0x1c] sm:$0xf]
    %v4987 = vld [vmem:[%s4978 + $0x20] sm:$0xf]
    %v4988 = vld [vmem:[%s4978 + $0x24] sm:$0xf]
    %v4989 = vld [vmem:[%s4978 + $0x28] sm:$0xf]
    %v4990 = vld [vmem:[%s4978 + $0x2c] sm:$0xf]
    %v4991 = vld [vmem:[%s4978 + $0x30] sm:$0xf]
    %v4992 = vld [vmem:[%s4978 + $0x34] sm:$0xf]
    %v4993 = vld [vmem:[%s4978 + $0x38] sm:$0xf]
    %v4994 = vld [vmem:[%s4978 + $0x3c] sm:$0xf]
    %v5011 = vunpack.c.l.b16 %v4979
    %v5012 = vunpack.c.l.b16 %v4980
    %v5013 = vunpack.c.l.b16 %v4981
    %v5014 = vunpack.c.l.b16 %v4982
    %v5015 = vunpack.c.l.b16 %v4983
    %v5016 = vunpack.c.l.b16 %v4984
    %v5017 = vunpack.c.l.b16 %v4985
    %v5018 = vunpack.c.l.b16 %v4986
    %v5019 = vunpack.c.l.b16 %v4987
    %v5020 = vunpack.c.l.b16 %v4988
    %v5021 = vunpack.c.l.b16 %v4989
    %v5022 = vunpack.c.l.b16 %v4990
    %v5023 = vunpack.c.l.b16 %v4991
    %v5024 = vunpack.c.l.b16 %v4992
    %v5025 = vunpack.c.l.b16 %v4993
    %v5026 = vunpack.c.l.b16 %v4994
    %v5027 = vpack.c.b16 %v5012, %v5011
    %v5028 = vpack.c.b16 %v5014, %v5013
    %v5029 = vpack.c.b16 %v5016, %v5015
    %v5030 = vpack.c.b16 %v5018, %v5017
    %v5031 = vpack.c.b16 %v5020, %v5019
    %v5032 = vpack.c.b16 %v5022, %v5021
    %v5033 = vpack.c.b16 %v5024, %v5023
    %v5034 = vpack.c.b16 %v5026, %v5025
    %5043 = vmatprep.subr.bf16.mxu0 0
    %5044 = vmatpush1.bf16.msra.mxu0 %v5027
    %5045 = vmatprep.subr.bf16.mxu0 0
    %5046 = vmatpush1.bf16.msra.mxu0 %v5028
    %5047 = vmatprep.subr.bf16.mxu0 0
    %5048 = vmatpush1.bf16.msra.mxu0 %v5029
    %5049 = vmatprep.subr.bf16.mxu0 0
    %5050 = vmatpush1.bf16.msra.mxu0 %v5030
    %5051 = vmatprep.subr.bf16.mxu0 0
    %5052 = vmatpush1.bf16.msra.mxu0 %v5031
    %5053 = vmatprep.subr.bf16.mxu0 0
    %5054 = vmatpush1.bf16.msra.mxu0 %v5032
    %5055 = vmatprep.subr.bf16.mxu0 0
    %5056 = vmatpush1.bf16.msra.mxu0 %v5033
    %5057 = vmatprep.subr.bf16.mxu0 0
    %5058 = vmatpush1.bf16.msra.mxu0 %v5034
    %5059 = vmatprep.subr.bf16.mxu0 0
    %5060 = vmatpush1.bf16.msra.mxu0 0
    %5061 = vmatprep.subr.bf16.mxu0 0
    %5062 = vmatpush1.bf16.msra.mxu0 0
    %5063 = vmatprep.subr.bf16.mxu0 0
    %5064 = vmatpush1.bf16.msra.mxu0 0
    %5065 = vmatprep.subr.bf16.mxu0 0
    %5066 = vmatpush1.bf16.msra.mxu0 0
    %5067 = vmatprep.subr.bf16.mxu0 0
    %5068 = vmatpush1.bf16.msra.mxu0 0
    %5069 = vmatprep.subr.bf16.mxu0 0
    %5070 = vmatpush1.bf16.msra.mxu0 0
    %5071 = vmatprep.subr.bf16.mxu0 0
    %5072 = vmatpush1.bf16.msra.mxu0 0
    %5073 = vmatprep.subr.bf16.mxu0 0
    %5074 = vmatpush1.bf16.msra.mxu0 0
    %5075 = vmatprep.mubr.bf16.mxu0 0
    %5076 = vmatmul.mubr.bf16.gmra.mrb[0].mxu0 %v3081
    %v5077 = vpop.f32.mrb[0].mxu0
    %v5078 = vadd.f32 0.0, %v5077
    %v5079 = vpop.f32.mrb[0].mxu0
    %v5080 = vpop.f32.mrb[0].mxu0
    %v5081 = vadd.f32 0.0, %v5080
    %v5082 = vpop.f32.mrb[0].mxu0
    %5083 = vmatprep.mubr.bf16.mxu0 0
    %5084 = vmatmul.mubr.bf16.gmra.mrb[0].mxu0 %v3082
    %v5085 = vpop.f32.mrb[0].mxu0
    %v5086 = vadd.f32 0.0, %v5085
    %v5087 = vpop.f32.mrb[0].mxu0
    %v5088 = vpop.f32.mrb[0].mxu0
    %v5089 = vadd.f32 0.0, %v5088
    %v5090 = vpop.f32.mrb[0].mxu0
    %5091 = vmatprep.mubr.bf16.mxu0 0
    %5092 = vmatmul.mubr.bf16.gmra.mrb[0].mxu0 %v3083
    %v5093 = vpop.f32.mrb[0].mxu0
    %v5094 = vadd.f32 0.0, %v5093
    %v5095 = vpop.f32.mrb[0].mxu0
    %v5096 = vpop.f32.mrb[0].mxu0
    %v5097 = vadd.f32 0.0, %v5096
    %v5098 = vpop.f32.mrb[0].mxu0
    %5099 = vmatprep.mubr.bf16.mxu0 0
    %5100 = vmatmul.mubr.bf16.gmra.mrb[0].mxu0 %v3084
    %v5101 = vpop.f32.mrb[0].mxu0
    %v5102 = vadd.f32 0.0, %v5101
    %v5103 = vpop.f32.mrb[0].mxu0
    %v5104 = vpop.f32.mrb[0].mxu0
    %v5105 = vadd.f32 0.0, %v5104
    %v5106 = vpop.f32.mrb[0].mxu0
    %5107 = vmatprep.mubr.bf16.mxu0 0
    %5108 = vmatmul.mubr.bf16.gmra.mrb[0].mxu0 %v3085
    %v5109 = vpop.f32.mrb[0].mxu0
    %v5110 = vadd.f32 0.0, %v5109
    %v5111 = vpop.f32.mrb[0].mxu0
    %v5112 = vpop.f32.mrb[0].mxu0
    %v5113 = vadd.f32 0.0, %v5112
    %v5114 = vpop.f32.mrb[0].mxu0
    %5115 = vmatprep.mubr.bf16.mxu0 0
    %5116 = vmatmul.mubr.bf16.gmra.mrb[0].mxu0 %v3086
    %v5117 = vpop.f32.mrb[0].mxu0
    %v5118 = vadd.f32 0.0, %v5117
    %v5119 = vpop.f32.mrb[0].mxu0
    %v5120 = vpop.f32.mrb[0].mxu0
    %v5121 = vadd.f32 0.0, %v5120
    %v5122 = vpop.f32.mrb[0].mxu0
    %5123 = vmatprep.mubr.bf16.mxu0 0
    %5124 = vmatmul.mubr.bf16.gmra.mrb[0].mxu0 %v3087
    %v5125 = vpop.f32.mrb[0].mxu0
    %v5126 = vadd.f32 0.0, %v5125
    %v5127 = vpop.f32.mrb[0].mxu0
    %v5128 = vpop.f32.mrb[0].mxu0
    %v5129 = vadd.f32 0.0, %v5128
    %v5130 = vpop.f32.mrb[0].mxu0
    %5131 = vmatprep.mubr.bf16.mxu0 0
    %5132 = vmatmul.mubr.bf16.gmra.mrb[0].mxu0 %v3088
    %v5133 = vpop.f32.mrb[0].mxu0
    %v5134 = vadd.f32 0.0, %v5133
    %v5135 = vpop.f32.mrb[0].mxu0
    %v5136 = vpop.f32.mrb[0].mxu0
    %v5137 = vadd.f32 0.0, %v5136
    %v5138 = vpop.f32.mrb[0].mxu0
    %5139 = vmatprep.mubr.bf16.mxu0 0
    %5140 = vmatmul.mubr.bf16.gmra.mrb[0].mxu0 %v3089
    %v5141 = vpop.f32.mrb[0].mxu0
    %v5142 = vadd.f32 0.0, %v5141
    %v5143 = vpop.f32.mrb[0].mxu0
    %v5144 = vpop.f32.mrb[0].mxu0
    %v5145 = vadd.f32 0.0, %v5144
    %v5146 = vpop.f32.mrb[0].mxu0
    %5147 = vdwg.mxu0
    %v5148 = vadd.f32 %v4960, %v5078
    %v5149 = vadd.f32 %v4961, %v5081
    %v5150 = vadd.f32 %v4962, %v5086
    %v5151 = vadd.f32 %v4963, %v5089
    %v5152 = vadd.f32 %v4964, %v5094
    %v5153 = vadd.f32 %v4965, %v5097
    %v5154 = vadd.f32 %v4966, %v5102
    %v5155 = vadd.f32 %v4967, %v5105
    %v5156 = vadd.f32 %v4968, %v5110
    %v5157 = vadd.f32 %v4969, %v5113
    %v5158 = vadd.f32 %v4970, %v5118
    %v5159 = vadd.f32 %v4971, %v5121
    %v5160 = vadd.f32 %v4972, %v5126
    %v5161 = vadd.f32 %v4973, %v5129
    %v5162 = vadd.f32 %v4974, %v5134
    %v5163 = vadd.f32 %v4975, %v5137
    %v5164 = vadd.f32 %v4976, %v5142
    %v5165 = vadd.f32 %v4977, %v5145
    %s5166 = scalar_lea.vmem %s3, 704
    %v5167 = vld [vmem:[%s5166] sm:$0xf]
    %v5168 = vld [vmem:[%s5166 + $0x4] sm:$0xf]
    %v5169 = vld [vmem:[%s5166 + $0x8] sm:$0xf]
    %v5170 = vld [vmem:[%s5166 + $0xc] sm:$0xf]
    %v5171 = vld [vmem:[%s5166 + $0x10] sm:$0xf]
    %v5172 = vld [vmem:[%s5166 + $0x14] sm:$0xf]
    %v5173 = vld [vmem:[%s5166 + $0x18] sm:$0xf]
    %v5174 = vld [vmem:[%s5166 + $0x1c] sm:$0xf]
    %v5175 = vld [vmem:[%s5166 + $0x20] sm:$0xf]
    %v5176 = vld [vmem:[%s5166 + $0x24] sm:$0xf]
    %v5177 = vld [vmem:[%s5166 + $0x28] sm:$0xf]
    %v5178 = vld [vmem:[%s5166 + $0x2c] sm:$0xf]
    %v5179 = vld [vmem:[%s5166 + $0x30] sm:$0xf]
    %v5180 = vld [vmem:[%s5166 + $0x34] sm:$0xf]
    %v5181 = vld [vmem:[%s5166 + $0x38] sm:$0xf]
    %v5182 = vld [vmem:[%s5166 + $0x3c] sm:$0xf]
    %v5199 = vunpack.c.l.b16 %v5167
    %v5200 = vunpack.c.l.b16 %v5168
    %v5201 = vunpack.c.l.b16 %v5169
    %v5202 = vunpack.c.l.b16 %v5170
    %v5203 = vunpack.c.l.b16 %v5171
    %v5204 = vunpack.c.l.b16 %v5172
    %v5205 = vunpack.c.l.b16 %v5173
    %v5206 = vunpack.c.l.b16 %v5174
    %v5207 = vunpack.c.l.b16 %v5175
    %v5208 = vunpack.c.l.b16 %v5176
    %v5209 = vunpack.c.l.b16 %v5177
    %v5210 = vunpack.c.l.b16 %v5178
    %v5211 = vunpack.c.l.b16 %v5179
    %v5212 = vunpack.c.l.b16 %v5180
    %v5213 = vunpack.c.l.b16 %v5181
    %v5214 = vunpack.c.l.b16 %v5182
    %v5215 = vpack.c.b16 %v5200, %v5199
    %v5216 = vpack.c.b16 %v5202, %v5201
    %v5217 = vpack.c.b16 %v5204, %v5203
    %v5218 = vpack.c.b16 %v5206, %v5205
    %v5219 = vpack.c.b16 %v5208, %v5207
    %v5220 = vpack.c.b16 %v5210, %v5209
    %v5221 = vpack.c.b16 %v5212, %v5211
    %v5222 = vpack.c.b16 %v5214, %v5213
    %5231 = vmatprep.subr.bf16.mxu0 0
    %5232 = vmatpush1.bf16.msra.mxu0 %v5215
    %5233 = vmatprep.subr.bf16.mxu0 0
    %5234 = vmatpush1.bf16.msra.mxu0 %v5216
    %5235 = vmatprep.subr.bf16.mxu0 0
    %5236 = vmatpush1.bf16.msra.mxu0 %v5217
    %5237 = vmatprep.subr.bf16.mxu0 0
    %5238 = vmatpush1.bf16.msra.mxu0 %v5218
    %5239 = vmatprep.subr.bf16.mxu0 0
    %5240 = vmatpush1.bf16.msra.mxu0 %v5219
    %5241 = vmatprep.subr.bf16.mxu0 0
    %5242 = vmatpush1.bf16.msra.mxu0 %v5220
    %5243 = vmatprep.subr.bf16.mxu0 0
    %5244 = vmatpush1.bf16.msra.mxu0 %v5221
    %5245 = vmatprep.subr.bf16.mxu0 0
    %5246 = vmatpush1.bf16.msra.mxu0 %v5222
    %5247 = vmatprep.subr.bf16.mxu0 0
    %5248 = vmatpush1.bf16.msra.mxu0 0
    %5249 = vmatprep.subr.bf16.mxu0 0
    %5250 = vmatpush1.bf16.msra.mxu0 0
    %5251 = vmatprep.subr.bf16.mxu0 0
    %5252 = vmatpush1.bf16.msra.mxu0 0
    %5253 = vmatprep.subr.bf16.mxu0 0
    %5254 = vmatpush1.bf16.msra.mxu0 0
    %5255 = vmatprep.subr.bf16.mxu0 0
    %5256 = vmatpush1.bf16.msra.mxu0 0
    %5257 = vmatprep.subr.bf16.mxu0 0
    %5258 = vmatpush1.bf16.msra.mxu0 0
    %5259 = vmatprep.subr.bf16.mxu0 0
    %5260 = vmatpush1.bf16.msra.mxu0 0
    %5261 = vmatprep.subr.bf16.mxu0 0
    %5262 = vmatpush1.bf16.msra.mxu0 0
    %5263 = vmatprep.mubr.bf16.mxu0 0
    %5264 = vmatmul.mubr.bf16.gmra.mrb[0].mxu0 %v3090
    %v5265 = vpop.f32.mrb[0].mxu0
    %v5266 = vadd.f32 0.0, %v5265
    %v5267 = vpop.f32.mrb[0].mxu0
    %v5268 = vpop.f32.mrb[0].mxu0
    %v5269 = vadd.f32 0.0, %v5268
    %v5270 = vpop.f32.mrb[0].mxu0
    %5271 = vmatprep.mubr.bf16.mxu0 0
    %5272 = vmatmul.mubr.bf16.gmra.mrb[0].mxu0 %v3091
    %v5273 = vpop.f32.mrb[0].mxu0
    %v5274 = vadd.f32 0.0, %v5273
    %v5275 = vpop.f32.mrb[0].mxu0
    %v5276 = vpop.f32.mrb[0].mxu0
    %v5277 = vadd.f32 0.0, %v5276
    %v5278 = vpop.f32.mrb[0].mxu0
    %5279 = vmatprep.mubr.bf16.mxu0 0
    %5280 = vmatmul.mubr.bf16.gmra.mrb[0].mxu0 %v3092
    %v5281 = vpop.f32.mrb[0].mxu0
    %v5282 = vadd.f32 0.0, %v5281
    %v5283 = vpop.f32.mrb[0].mxu0
    %v5284 = vpop.f32.mrb[0].mxu0
    %v5285 = vadd.f32 0.0, %v5284
    %v5286 = vpop.f32.mrb[0].mxu0
    %5287 = vmatprep.mubr.bf16.mxu0 0
    %5288 = vmatmul.mubr.bf16.gmra.mrb[0].mxu0 %v3093
    %v5289 = vpop.f32.mrb[0].mxu0
    %v5290 = vadd.f32 0.0, %v5289
    %v5291 = vpop.f32.mrb[0].mxu0
    %v5292 = vpop.f32.mrb[0].mxu0
    %v5293 = vadd.f32 0.0, %v5292
    %v5294 = vpop.f32.mrb[0].mxu0
    %5295 = vmatprep.mubr.bf16.mxu0 0
    %5296 = vmatmul.mubr.bf16.gmra.mrb[0].mxu0 %v3094
    %v5297 = vpop.f32.mrb[0].mxu0
    %v5298 = vadd.f32 0.0, %v5297
    %v5299 = vpop.f32.mrb[0].mxu0
    %v5300 = vpop.f32.mrb[0].mxu0
    %v5301 = vadd.f32 0.0, %v5300
    %v5302 = vpop.f32.mrb[0].mxu0
    %5303 = vmatprep.mubr.bf16.mxu0 0
    %5304 = vmatmul.mubr.bf16.gmra.mrb[0].mxu0 %v3095
    %v5305 = vpop.f32.mrb[0].mxu0
    %v5306 = vadd.f32 0.0, %v5305
    %v5307 = vpop.f32.mrb[0].mxu0
    %v5308 = vpop.f32.mrb[0].mxu0
    %v5309 = vadd.f32 0.0, %v5308
    %v5310 = vpop.f32.mrb[0].mxu0
    %5311 = vmatprep.mubr.bf16.mxu0 0
    %5312 = vmatmul.mubr.bf16.gmra.mrb[0].mxu0 %v3096
    %v5313 = vpop.f32.mrb[0].mxu0
    %v5314 = vadd.f32 0.0, %v5313
    %v5315 = vpop.f32.mrb[0].mxu0
    %v5316 = vpop.f32.mrb[0].mxu0
    %v5317 = vadd.f32 0.0, %v5316
    %v5318 = vpop.f32.mrb[0].mxu0
    %5319 = vmatprep.mubr.bf16.mxu0 0
    %5320 = vmatmul.mubr.bf16.gmra.mrb[0].mxu0 %v3097
    %v5321 = vpop.f32.mrb[0].mxu0
    %v5322 = vadd.f32 0.0, %v5321
    %v5323 = vpop.f32.mrb[0].mxu0
    %v5324 = vpop.f32.mrb[0].mxu0
    %v5325 = vadd.f32 0.0, %v5324
    %v5326 = vpop.f32.mrb[0].mxu0
    %5327 = vmatprep.mubr.bf16.mxu0 0
    %5328 = vmatmul.mubr.bf16.gmra.mrb[0].mxu0 %v3098
    %v5329 = vpop.f32.mrb[0].mxu0
    %v5330 = vadd.f32 0.0, %v5329
    %v5331 = vpop.f32.mrb[0].mxu0
    %v5332 = vpop.f32.mrb[0].mxu0
    %v5333 = vadd.f32 0.0, %v5332
    %v5334 = vpop.f32.mrb[0].mxu0
    %5335 = vdwg.mxu0
    %v5336 = vadd.f32 %v5148, %v5266
    %v5337 = vadd.f32 %v5149, %v5269
    %v5338 = vadd.f32 %v5150, %v5274
    %v5339 = vadd.f32 %v5151, %v5277
    %v5340 = vadd.f32 %v5152, %v5282
    %v5341 = vadd.f32 %v5153, %v5285
    %v5342 = vadd.f32 %v5154, %v5290
    %v5343 = vadd.f32 %v5155, %v5293
    %v5344 = vadd.f32 %v5156, %v5298
    %v5345 = vadd.f32 %v5157, %v5301
    %v5346 = vadd.f32 %v5158, %v5306
    %v5347 = vadd.f32 %v5159, %v5309
    %v5348 = vadd.f32 %v5160, %v5314
    %v5349 = vadd.f32 %v5161, %v5317
    %v5350 = vadd.f32 %v5162, %v5322
    %v5351 = vadd.f32 %v5163, %v5325
    %v5352 = vadd.f32 %v5164, %v5330
    %v5353 = vadd.f32 %v5165, %v5333
    %s5354 = scalar_lea.vmem %s3, 768
    %v5355 = vld [vmem:[%s5354] sm:$0xf]
    %v5356 = vld [vmem:[%s5354 + $0x4] sm:$0xf]
    %v5357 = vld [vmem:[%s5354 + $0x8] sm:$0xf]
    %v5358 = vld [vmem:[%s5354 + $0xc] sm:$0xf]
    %v5359 = vld [vmem:[%s5354 + $0x10] sm:$0xf]
    %v5360 = vld [vmem:[%s5354 + $0x14] sm:$0xf]
    %v5361 = vld [vmem:[%s5354 + $0x18] sm:$0xf]
    %v5362 = vld [vmem:[%s5354 + $0x1c] sm:$0xf]
    %v5363 = vld [vmem:[%s5354 + $0x20] sm:$0xf]
    %v5364 = vld [vmem:[%s5354 + $0x24] sm:$0xf]
    %v5365 = vld [vmem:[%s5354 + $0x28] sm:$0xf]
    %v5366 = vld [vmem:[%s5354 + $0x2c] sm:$0xf]
    %v5367 = vld [vmem:[%s5354 + $0x30] sm:$0xf]
    %v5368 = vld [vmem:[%s5354 + $0x34] sm:$0xf]
    %v5369 = vld [vmem:[%s5354 + $0x38] sm:$0xf]
    %v5370 = vld [vmem:[%s5354 + $0x3c] sm:$0xf]
    %v5387 = vunpack.c.l.b16 %v5355
    %v5388 = vunpack.c.l.b16 %v5356
    %v5389 = vunpack.c.l.b16 %v5357
    %v5390 = vunpack.c.l.b16 %v5358
    %v5391 = vunpack.c.l.b16 %v5359
    %v5392 = vunpack.c.l.b16 %v5360
    %v5393 = vunpack.c.l.b16 %v5361
    %v5394 = vunpack.c.l.b16 %v5362
    %v5395 = vunpack.c.l.b16 %v5363
    %v5396 = vunpack.c.l.b16 %v5364
    %v5397 = vunpack.c.l.b16 %v5365
    %v5398 = vunpack.c.l.b16 %v5366
    %v5399 = vunpack.c.l.b16 %v5367
    %v5400 = vunpack.c.l.b16 %v5368
    %v5401 = vunpack.c.l.b16 %v5369
    %v5402 = vunpack.c.l.b16 %v5370
    %v5403 = vpack.c.b16 %v5388, %v5387
    %v5404 = vpack.c.b16 %v5390, %v5389
    %v5405 = vpack.c.b16 %v5392, %v5391
    %v5406 = vpack.c.b16 %v5394, %v5393
    %v5407 = vpack.c.b16 %v5396, %v5395
    %v5408 = vpack.c.b16 %v5398, %v5397
    %v5409 = vpack.c.b16 %v5400, %v5399
    %v5410 = vpack.c.b16 %v5402, %v5401
    %5419 = vmatprep.subr.bf16.mxu0 0
    %5420 = vmatpush1.bf16.msra.mxu0 %v5403
    %5421 = vmatprep.subr.bf16.mxu0 0
    %5422 = vmatpush1.bf16.msra.mxu0 %v5404
    %5423 = vmatprep.subr.bf16.mxu0 0
    %5424 = vmatpush1.bf16.msra.mxu0 %v5405
    %5425 = vmatprep.subr.bf16.mxu0 0
    %5426 = vmatpush1.bf16.msra.mxu0 %v5406
    %5427 = vmatprep.subr.bf16.mxu0 0
    %5428 = vmatpush1.bf16.msra.mxu0 %v5407
    %5429 = vmatprep.subr.bf16.mxu0 0
    %5430 = vmatpush1.bf16.msra.mxu0 %v5408
    %5431 = vmatprep.subr.bf16.mxu0 0
    %5432 = vmatpush1.bf16.msra.mxu0 %v5409
    %5433 = vmatprep.subr.bf16.mxu0 0
    %5434 = vmatpush1.bf16.msra.mxu0 %v5410
    %5435 = vmatprep.subr.bf16.mxu0 0
    %5436 = vmatpush1.bf16.msra.mxu0 0
    %5437 = vmatprep.subr.bf16.mxu0 0
    %5438 = vmatpush1.bf16.msra.mxu0 0
    %5439 = vmatprep.subr.bf16.mxu0 0
    %5440 = vmatpush1.bf16.msra.mxu0 0
    %5441 = vmatprep.subr.bf16.mxu0 0
    %5442 = vmatpush1.bf16.msra.mxu0 0
    %5443 = vmatprep.subr.bf16.mxu0 0
    %5444 = vmatpush1.bf16.msra.mxu0 0
    %5445 = vmatprep.subr.bf16.mxu0 0
    %5446 = vmatpush1.bf16.msra.mxu0 0
    %5447 = vmatprep.subr.bf16.mxu0 0
    %5448 = vmatpush1.bf16.msra.mxu0 0
    %5449 = vmatprep.subr.bf16.mxu0 0
    %5450 = vmatpush1.bf16.msra.mxu0 0
    %5451 = vmatprep.mubr.bf16.mxu0 0
    %5452 = vmatmul.mubr.bf16.gmra.mrb[0].mxu0 %v3099
    %v5453 = vpop.f32.mrb[0].mxu0
    %v5454 = vadd.f32 0.0, %v5453
    %v5455 = vpop.f32.mrb[0].mxu0
    %v5456 = vpop.f32.mrb[0].mxu0
    %v5457 = vadd.f32 0.0, %v5456
    %v5458 = vpop.f32.mrb[0].mxu0
    %5459 = vmatprep.mubr.bf16.mxu0 0
    %5460 = vmatmul.mubr.bf16.gmra.mrb[0].mxu0 %v3100
    %v5461 = vpop.f32.mrb[0].mxu0
    %v5462 = vadd.f32 0.0, %v5461
    %v5463 = vpop.f32.mrb[0].mxu0
    %v5464 = vpop.f32.mrb[0].mxu0
    %v5465 = vadd.f32 0.0, %v5464
    %v5466 = vpop.f32.mrb[0].mxu0
    %5467 = vmatprep.mubr.bf16.mxu0 0
    %5468 = vmatmul.mubr.bf16.gmra.mrb[0].mxu0 %v3101
    %v5469 = vpop.f32.mrb[0].mxu0
    %v5470 = vadd.f32 0.0, %v5469
    %v5471 = vpop.f32.mrb[0].mxu0
    %v5472 = vpop.f32.mrb[0].mxu0
    %v5473 = vadd.f32 0.0, %v5472
    %v5474 = vpop.f32.mrb[0].mxu0
    %5475 = vmatprep.mubr.bf16.mxu0 0
    %5476 = vmatmul.mubr.bf16.gmra.mrb[0].mxu0 %v3102
    %v5477 = vpop.f32.mrb[0].mxu0
    %v5478 = vadd.f32 0.0, %v5477
    %v5479 = vpop.f32.mrb[0].mxu0
    %v5480 = vpop.f32.mrb[0].mxu0
    %v5481 = vadd.f32 0.0, %v5480
    %v5482 = vpop.f32.mrb[0].mxu0
    %5483 = vmatprep.mubr.bf16.mxu0 0
    %5484 = vmatmul.mubr.bf16.gmra.mrb[0].mxu0 %v3103
    %v5485 = vpop.f32.mrb[0].mxu0
    %v5486 = vadd.f32 0.0, %v5485
    %v5487 = vpop.f32.mrb[0].mxu0
    %v5488 = vpop.f32.mrb[0].mxu0
    %v5489 = vadd.f32 0.0, %v5488
    %v5490 = vpop.f32.mrb[0].mxu0
    %5491 = vmatprep.mubr.bf16.mxu0 0
    %5492 = vmatmul.mubr.bf16.gmra.mrb[0].mxu0 %v3104
    %v5493 = vpop.f32.mrb[0].mxu0
    %v5494 = vadd.f32 0.0, %v5493
    %v5495 = vpop.f32.mrb[0].mxu0
    %v5496 = vpop.f32.mrb[0].mxu0
    %v5497 = vadd.f32 0.0, %v5496
    %v5498 = vpop.f32.mrb[0].mxu0
    %5499 = vmatprep.mubr.bf16.mxu0 0
    %5500 = vmatmul.mubr.bf16.gmra.mrb[0].mxu0 %v3105
    %v5501 = vpop.f32.mrb[0].mxu0
    %v5502 = vadd.f32 0.0, %v5501
    %v5503 = vpop.f32.mrb[0].mxu0
    %v5504 = vpop.f32.mrb[0].mxu0
    %v5505 = vadd.f32 0.0, %v5504
    %v5506 = vpop.f32.mrb[0].mxu0
    %5507 = vmatprep.mubr.bf16.mxu0 0
    %5508 = vmatmul.mubr.bf16.gmra.mrb[0].mxu0 %v3106
    %v5509 = vpop.f32.mrb[0].mxu0
    %v5510 = vadd.f32 0.0, %v5509
    %v5511 = vpop.f32.mrb[0].mxu0
    %v5512 = vpop.f32.mrb[0].mxu0
    %v5513 = vadd.f32 0.0, %v5512
    %v5514 = vpop.f32.mrb[0].mxu0
    %5515 = vmatprep.mubr.bf16.mxu0 0
    %5516 = vmatmul.mubr.bf16.gmra.mrb[0].mxu0 %v3107
    %v5517 = vpop.f32.mrb[0].mxu0
    %v5518 = vadd.f32 0.0, %v5517
    %v5519 = vpop.f32.mrb[0].mxu0
    %v5520 = vpop.f32.mrb[0].mxu0
    %v5521 = vadd.f32 0.0, %v5520
    %v5522 = vpop.f32.mrb[0].mxu0
    %5523 = vdwg.mxu0
    %v5524 = vadd.f32 %v5336, %v5454
    %v5525 = vadd.f32 %v5337, %v5457
    %v5526 = vadd.f32 %v5338, %v5462
    %v5527 = vadd.f32 %v5339, %v5465
    %v5528 = vadd.f32 %v5340, %v5470
    %v5529 = vadd.f32 %v5341, %v5473
    %v5530 = vadd.f32 %v5342, %v5478
    %v5531 = vadd.f32 %v5343, %v5481
    %v5532 = vadd.f32 %v5344, %v5486
    %v5533 = vadd.f32 %v5345, %v5489
    %v5534 = vadd.f32 %v5346, %v5494
    %v5535 = vadd.f32 %v5347, %v5497
    %v5536 = vadd.f32 %v5348, %v5502
    %v5537 = vadd.f32 %v5349, %v5505
    %v5538 = vadd.f32 %v5350, %v5510
    %v5539 = vadd.f32 %v5351, %v5513
    %v5540 = vadd.f32 %v5352, %v5518
    %v5541 = vadd.f32 %v5353, %v5521
    %s5542 = scalar_lea.vmem %s3, 832
    %v5543 = vld [vmem:[%s5542] sm:$0xf]
    %v5544 = vld [vmem:[%s5542 + $0x4] sm:$0xf]
    %v5545 = vld [vmem:[%s5542 + $0x8] sm:$0xf]
    %v5546 = vld [vmem:[%s5542 + $0xc] sm:$0xf]
    %v5547 = vld [vmem:[%s5542 + $0x10] sm:$0xf]
    %v5548 = vld [vmem:[%s5542 + $0x14] sm:$0xf]
    %v5549 = vld [vmem:[%s5542 + $0x18] sm:$0xf]
    %v5550 = vld [vmem:[%s5542 + $0x1c] sm:$0xf]
    %v5551 = vld [vmem:[%s5542 + $0x20] sm:$0xf]
    %v5552 = vld [vmem:[%s5542 + $0x24] sm:$0xf]
    %v5553 = vld [vmem:[%s5542 + $0x28] sm:$0xf]
    %v5554 = vld [vmem:[%s5542 + $0x2c] sm:$0xf]
    %v5555 = vld [vmem:[%s5542 + $0x30] sm:$0xf]
    %v5556 = vld [vmem:[%s5542 + $0x34] sm:$0xf]
    %v5557 = vld [vmem:[%s5542 + $0x38] sm:$0xf]
    %v5558 = vld [vmem:[%s5542 + $0x3c] sm:$0xf]
    %v5575 = vunpack.c.l.b16 %v5543
    %v5576 = vunpack.c.l.b16 %v5544
    %v5577 = vunpack.c.l.b16 %v5545
    %v5578 = vunpack.c.l.b16 %v5546
    %v5579 = vunpack.c.l.b16 %v5547
    %v5580 = vunpack.c.l.b16 %v5548
    %v5581 = vunpack.c.l.b16 %v5549
    %v5582 = vunpack.c.l.b16 %v5550
    %v5583 = vunpack.c.l.b16 %v5551
    %v5584 = vunpack.c.l.b16 %v5552
    %v5585 = vunpack.c.l.b16 %v5553
    %v5586 = vunpack.c.l.b16 %v5554
    %v5587 = vunpack.c.l.b16 %v5555
    %v5588 = vunpack.c.l.b16 %v5556
    %v5589 = vunpack.c.l.b16 %v5557
    %v5590 = vunpack.c.l.b16 %v5558
    %v5591 = vpack.c.b16 %v5576, %v5575
    %v5592 = vpack.c.b16 %v5578, %v5577
    %v5593 = vpack.c.b16 %v5580, %v5579
    %v5594 = vpack.c.b16 %v5582, %v5581
    %v5595 = vpack.c.b16 %v5584, %v5583
    %v5596 = vpack.c.b16 %v5586, %v5585
    %v5597 = vpack.c.b16 %v5588, %v5587
    %v5598 = vpack.c.b16 %v5590, %v5589
    %5607 = vmatprep.subr.bf16.mxu0 0
    %5608 = vmatpush1.bf16.msra.mxu0 %v5591
    %5609 = vmatprep.subr.bf16.mxu0 0
    %5610 = vmatpush1.bf16.msra.mxu0 %v5592
    %5611 = vmatprep.subr.bf16.mxu0 0
    %5612 = vmatpush1.bf16.msra.mxu0 %v5593
    %5613 = vmatprep.subr.bf16.mxu0 0
    %5614 = vmatpush1.bf16.msra.mxu0 %v5594
    %5615 = vmatprep.subr.bf16.mxu0 0
    %5616 = vmatpush1.bf16.msra.mxu0 %v5595
    %5617 = vmatprep.subr.bf16.mxu0 0
    %5618 = vmatpush1.bf16.msra.mxu0 %v5596
    %5619 = vmatprep.subr.bf16.mxu0 0
    %5620 = vmatpush1.bf16.msra.mxu0 %v5597
    %5621 = vmatprep.subr.bf16.mxu0 0
    %5622 = vmatpush1.bf16.msra.mxu0 %v5598
    %5623 = vmatprep.subr.bf16.mxu0 0
    %5624 = vmatpush1.bf16.msra.mxu0 0
    %5625 = vmatprep.subr.bf16.mxu0 0
    %5626 = vmatpush1.bf16.msra.mxu0 0
    %5627 = vmatprep.subr.bf16.mxu0 0
    %5628 = vmatpush1.bf16.msra.mxu0 0
    %5629 = vmatprep.subr.bf16.mxu0 0
    %5630 = vmatpush1.bf16.msra.mxu0 0
    %5631 = vmatprep.subr.bf16.mxu0 0
    %5632 = vmatpush1.bf16.msra.mxu0 0
    %5633 = vmatprep.subr.bf16.mxu0 0
    %5634 = vmatpush1.bf16.msra.mxu0 0
    %5635 = vmatprep.subr.bf16.mxu0 0
    %5636 = vmatpush1.bf16.msra.mxu0 0
    %5637 = vmatprep.subr.bf16.mxu0 0
    %5638 = vmatpush1.bf16.msra.mxu0 0
    %5639 = vmatprep.mubr.bf16.mxu0 0
    %5640 = vmatmul.mubr.bf16.gmra.mrb[0].mxu0 %v3108
    %v5641 = vpop.f32.mrb[0].mxu0
    %v5642 = vadd.f32 0.0, %v5641
    %v5643 = vpop.f32.mrb[0].mxu0
    %v5644 = vpop.f32.mrb[0].mxu0
    %v5645 = vadd.f32 0.0, %v5644
    %v5646 = vpop.f32.mrb[0].mxu0
    %5647 = vmatprep.mubr.bf16.mxu0 0
    %5648 = vmatmul.mubr.bf16.gmra.mrb[0].mxu0 %v3109
    %v5649 = vpop.f32.mrb[0].mxu0
    %v5650 = vadd.f32 0.0, %v5649
    %v5651 = vpop.f32.mrb[0].mxu0
    %v5652 = vpop.f32.mrb[0].mxu0
    %v5653 = vadd.f32 0.0, %v5652
    %v5654 = vpop.f32.mrb[0].mxu0
    %5655 = vmatprep.mubr.bf16.mxu0 0
    %5656 = vmatmul.mubr.bf16.gmra.mrb[0].mxu0 %v3110
    %v5657 = vpop.f32.mrb[0].mxu0
    %v5658 = vadd.f32 0.0, %v5657
    %v5659 = vpop.f32.mrb[0].mxu0
    %v5660 = vpop.f32.mrb[0].mxu0
    %v5661 = vadd.f32 0.0, %v5660
    %v5662 = vpop.f32.mrb[0].mxu0
    %5663 = vmatprep.mubr.bf16.mxu0 0
    %5664 = vmatmul.mubr.bf16.gmra.mrb[0].mxu0 %v3111
    %v5665 = vpop.f32.mrb[0].mxu0
    %v5666 = vadd.f32 0.0, %v5665
    %v5667 = vpop.f32.mrb[0].mxu0
    %v5668 = vpop.f32.mrb[0].mxu0
    %v5669 = vadd.f32 0.0, %v5668
    %v5670 = vpop.f32.mrb[0].mxu0
    %5671 = vmatprep.mubr.bf16.mxu0 0
    %5672 = vmatmul.mubr.bf16.gmra.mrb[0].mxu0 %v3112
    %v5673 = vpop.f32.mrb[0].mxu0
    %v5674 = vadd.f32 0.0, %v5673
    %v5675 = vpop.f32.mrb[0].mxu0
    %v5676 = vpop.f32.mrb[0].mxu0
    %v5677 = vadd.f32 0.0, %v5676
    %v5678 = vpop.f32.mrb[0].mxu0
    %5679 = vmatprep.mubr.bf16.mxu0 0
    %5680 = vmatmul.mubr.bf16.gmra.mrb[0].mxu0 %v3113
    %v5681 = vpop.f32.mrb[0].mxu0
    %v5682 = vadd.f32 0.0, %v5681
    %v5683 = vpop.f32.mrb[0].mxu0
    %v5684 = vpop.f32.mrb[0].mxu0
    %v5685 = vadd.f32 0.0, %v5684
    %v5686 = vpop.f32.mrb[0].mxu0
    %5687 = vmatprep.mubr.bf16.mxu0 0
    %5688 = vmatmul.mubr.bf16.gmra.mrb[0].mxu0 %v3114
    %v5689 = vpop.f32.mrb[0].mxu0
    %v5690 = vadd.f32 0.0, %v5689
    %v5691 = vpop.f32.mrb[0].mxu0
    %v5692 = vpop.f32.mrb[0].mxu0
    %v5693 = vadd.f32 0.0, %v5692
    %v5694 = vpop.f32.mrb[0].mxu0
    %5695 = vmatprep.mubr.bf16.mxu0 0
    %5696 = vmatmul.mubr.bf16.gmra.mrb[0].mxu0 %v3115
    %v5697 = vpop.f32.mrb[0].mxu0
    %v5698 = vadd.f32 0.0, %v5697
    %v5699 = vpop.f32.mrb[0].mxu0
    %v5700 = vpop.f32.mrb[0].mxu0
    %v5701 = vadd.f32 0.0, %v5700
    %v5702 = vpop.f32.mrb[0].mxu0
    %5703 = vmatprep.mubr.bf16.mxu0 0
    %5704 = vmatmul.mubr.bf16.gmra.mrb[0].mxu0 %v3116
    %v5705 = vpop.f32.mrb[0].mxu0
    %v5706 = vadd.f32 0.0, %v5705
    %v5707 = vpop.f32.mrb[0].mxu0
    %v5708 = vpop.f32.mrb[0].mxu0
    %v5709 = vadd.f32 0.0, %v5708
    %v5710 = vpop.f32.mrb[0].mxu0
    %5711 = vdwg.mxu0
    %v5712 = vadd.f32 %v5524, %v5642
    %v5713 = vadd.f32 %v5525, %v5645
    %v5714 = vadd.f32 %v5526, %v5650
    %v5715 = vadd.f32 %v5527, %v5653
    %v5716 = vadd.f32 %v5528, %v5658
    %v5717 = vadd.f32 %v5529, %v5661
    %v5718 = vadd.f32 %v5530, %v5666
    %v5719 = vadd.f32 %v5531, %v5669
    %v5720 = vadd.f32 %v5532, %v5674
    %v5721 = vadd.f32 %v5533, %v5677
    %v5722 = vadd.f32 %v5534, %v5682
    %v5723 = vadd.f32 %v5535, %v5685
    %v5724 = vadd.f32 %v5536, %v5690
    %v5725 = vadd.f32 %v5537, %v5693
    %v5726 = vadd.f32 %v5538, %v5698
    %v5727 = vadd.f32 %v5539, %v5701
    %v5728 = vadd.f32 %v5540, %v5706
    %v5729 = vadd.f32 %v5541, %v5709
    %s5730 = scalar_lea.vmem %s3, 896
    %v5731 = vld [vmem:[%s5730] sm:$0xf]
    %v5732 = vld [vmem:[%s5730 + $0x4] sm:$0xf]
    %v5733 = vld [vmem:[%s5730 + $0x8] sm:$0xf]
    %v5734 = vld [vmem:[%s5730 + $0xc] sm:$0xf]
    %v5735 = vld [vmem:[%s5730 + $0x10] sm:$0xf]
    %v5736 = vld [vmem:[%s5730 + $0x14] sm:$0xf]
    %v5737 = vld [vmem:[%s5730 + $0x18] sm:$0xf]
    %v5738 = vld [vmem:[%s5730 + $0x1c] sm:$0xf]
    %v5739 = vld [vmem:[%s5730 + $0x20] sm:$0xf]
    %v5740 = vld [vmem:[%s5730 + $0x24] sm:$0xf]
    %v5741 = vld [vmem:[%s5730 + $0x28] sm:$0xf]
    %v5742 = vld [vmem:[%s5730 + $0x2c] sm:$0xf]
    %v5743 = vld [vmem:[%s5730 + $0x30] sm:$0xf]
    %v5744 = vld [vmem:[%s5730 + $0x34] sm:$0xf]
    %v5745 = vld [vmem:[%s5730 + $0x38] sm:$0xf]
    %v5746 = vld [vmem:[%s5730 + $0x3c] sm:$0xf]
    %v5763 = vunpack.c.l.b16 %v5731
    %v5764 = vunpack.c.l.b16 %v5732
    %v5765 = vunpack.c.l.b16 %v5733
    %v5766 = vunpack.c.l.b16 %v5734
    %v5767 = vunpack.c.l.b16 %v5735
    %v5768 = vunpack.c.l.b16 %v5736
    %v5769 = vunpack.c.l.b16 %v5737
    %v5770 = vunpack.c.l.b16 %v5738
    %v5771 = vunpack.c.l.b16 %v5739
    %v5772 = vunpack.c.l.b16 %v5740
    %v5773 = vunpack.c.l.b16 %v5741
    %v5774 = vunpack.c.l.b16 %v5742
    %v5775 = vunpack.c.l.b16 %v5743
    %v5776 = vunpack.c.l.b16 %v5744
    %v5777 = vunpack.c.l.b16 %v5745
    %v5778 = vunpack.c.l.b16 %v5746
    %v5779 = vpack.c.b16 %v5764, %v5763
    %v5780 = vpack.c.b16 %v5766, %v5765
    %v5781 = vpack.c.b16 %v5768, %v5767
    %v5782 = vpack.c.b16 %v5770, %v5769
    %v5783 = vpack.c.b16 %v5772, %v5771
    %v5784 = vpack.c.b16 %v5774, %v5773
    %v5785 = vpack.c.b16 %v5776, %v5775
    %v5786 = vpack.c.b16 %v5778, %v5777
    %5795 = vmatprep.subr.bf16.mxu0 0
    %5796 = vmatpush1.bf16.msra.mxu0 %v5779
    %5797 = vmatprep.subr.bf16.mxu0 0
    %5798 = vmatpush1.bf16.msra.mxu0 %v5780
    %5799 = vmatprep.subr.bf16.mxu0 0
    %5800 = vmatpush1.bf16.msra.mxu0 %v5781
    %5801 = vmatprep.subr.bf16.mxu0 0
    %5802 = vmatpush1.bf16.msra.mxu0 %v5782
    %5803 = vmatprep.subr.bf16.mxu0 0
    %5804 = vmatpush1.bf16.msra.mxu0 %v5783
    %5805 = vmatprep.subr.bf16.mxu0 0
    %5806 = vmatpush1.bf16.msra.mxu0 %v5784
    %5807 = vmatprep.subr.bf16.mxu0 0
    %5808 = vmatpush1.bf16.msra.mxu0 %v5785
    %5809 = vmatprep.subr.bf16.mxu0 0
    %5810 = vmatpush1.bf16.msra.mxu0 %v5786
    %5811 = vmatprep.subr.bf16.mxu0 0
    %5812 = vmatpush1.bf16.msra.mxu0 0
    %5813 = vmatprep.subr.bf16.mxu0 0
    %5814 = vmatpush1.bf16.msra.mxu0 0
    %5815 = vmatprep.subr.bf16.mxu0 0
    %5816 = vmatpush1.bf16.msra.mxu0 0
    %5817 = vmatprep.subr.bf16.mxu0 0
    %5818 = vmatpush1.bf16.msra.mxu0 0
    %5819 = vmatprep.subr.bf16.mxu0 0
    %5820 = vmatpush1.bf16.msra.mxu0 0
    %5821 = vmatprep.subr.bf16.mxu0 0
    %5822 = vmatpush1.bf16.msra.mxu0 0
    %5823 = vmatprep.subr.bf16.mxu0 0
    %5824 = vmatpush1.bf16.msra.mxu0 0
    %5825 = vmatprep.subr.bf16.mxu0 0
    %5826 = vmatpush1.bf16.msra.mxu0 0
    %5827 = vmatprep.mubr.bf16.mxu0 0
    %5828 = vmatmul.mubr.bf16.gmra.mrb[0].mxu0 %v3117
    %v5829 = vpop.f32.mrb[0].mxu0
    %v5830 = vadd.f32 0.0, %v5829
    %v5831 = vpop.f32.mrb[0].mxu0
    %v5832 = vpop.f32.mrb[0].mxu0
    %v5833 = vadd.f32 0.0, %v5832
    %v5834 = vpop.f32.mrb[0].mxu0
    %5835 = vmatprep.mubr.bf16.mxu0 0
    %5836 = vmatmul.mubr.bf16.gmra.mrb[0].mxu0 %v3118
    %v5837 = vpop.f32.mrb[0].mxu0
    %v5838 = vadd.f32 0.0, %v5837
    %v5839 = vpop.f32.mrb[0].mxu0
    %v5840 = vpop.f32.mrb[0].mxu0
    %v5841 = vadd.f32 0.0, %v5840
    %v5842 = vpop.f32.mrb[0].mxu0
    %5843 = vmatprep.mubr.bf16.mxu0 0
    %5844 = vmatmul.mubr.bf16.gmra.mrb[0].mxu0 %v3119
    %v5845 = vpop.f32.mrb[0].mxu0
    %v5846 = vadd.f32 0.0, %v5845
    %v5847 = vpop.f32.mrb[0].mxu0
    %v5848 = vpop.f32.mrb[0].mxu0
    %v5849 = vadd.f32 0.0, %v5848
    %v5850 = vpop.f32.mrb[0].mxu0
    %5851 = vmatprep.mubr.bf16.mxu0 0
    %5852 = vmatmul.mubr.bf16.gmra.mrb[0].mxu0 %v3120
    %v5853 = vpop.f32.mrb[0].mxu0
    %v5854 = vadd.f32 0.0, %v5853
    %v5855 = vpop.f32.mrb[0].mxu0
    %v5856 = vpop.f32.mrb[0].mxu0
    %v5857 = vadd.f32 0.0, %v5856
    %v5858 = vpop.f32.mrb[0].mxu0
    %5859 = vmatprep.mubr.bf16.mxu0 0
    %5860 = vmatmul.mubr.bf16.gmra.mrb[0].mxu0 %v3121
    %v5861 = vpop.f32.mrb[0].mxu0
    %v5862 = vadd.f32 0.0, %v5861
    %v5863 = vpop.f32.mrb[0].mxu0
    %v5864 = vpop.f32.mrb[0].mxu0
    %v5865 = vadd.f32 0.0, %v5864
    %v5866 = vpop.f32.mrb[0].mxu0
    %5867 = vmatprep.mubr.bf16.mxu0 0
    %5868 = vmatmul.mubr.bf16.gmra.mrb[0].mxu0 %v3122
    %v5869 = vpop.f32.mrb[0].mxu0
    %v5870 = vadd.f32 0.0, %v5869
    %v5871 = vpop.f32.mrb[0].mxu0
    %v5872 = vpop.f32.mrb[0].mxu0
    %v5873 = vadd.f32 0.0, %v5872
    %v5874 = vpop.f32.mrb[0].mxu0
    %5875 = vmatprep.mubr.bf16.mxu0 0
    %5876 = vmatmul.mubr.bf16.gmra.mrb[0].mxu0 %v3123
    %v5877 = vpop.f32.mrb[0].mxu0
    %v5878 = vadd.f32 0.0, %v5877
    %v5879 = vpop.f32.mrb[0].mxu0
    %v5880 = vpop.f32.mrb[0].mxu0
    %v5881 = vadd.f32 0.0, %v5880
    %v5882 = vpop.f32.mrb[0].mxu0
    %5883 = vmatprep.mubr.bf16.mxu0 0
    %5884 = vmatmul.mubr.bf16.gmra.mrb[0].mxu0 %v3124
    %v5885 = vpop.f32.mrb[0].mxu0
    %v5886 = vadd.f32 0.0, %v5885
    %v5887 = vpop.f32.mrb[0].mxu0
    %v5888 = vpop.f32.mrb[0].mxu0
    %v5889 = vadd.f32 0.0, %v5888
    %v5890 = vpop.f32.mrb[0].mxu0
    %5891 = vmatprep.mubr.bf16.mxu0 0
    %5892 = vmatmul.mubr.bf16.gmra.mrb[0].mxu0 %v3125
    %v5893 = vpop.f32.mrb[0].mxu0
    %v5894 = vadd.f32 0.0, %v5893
    %v5895 = vpop.f32.mrb[0].mxu0
    %v5896 = vpop.f32.mrb[0].mxu0
    %v5897 = vadd.f32 0.0, %v5896
    %v5898 = vpop.f32.mrb[0].mxu0
    %5899 = vdwg.mxu0
    %v5900 = vadd.f32 %v5712, %v5830
    %v5901 = vadd.f32 %v5713, %v5833
    %v5902 = vadd.f32 %v5714, %v5838
    %v5903 = vadd.f32 %v5715, %v5841
    %v5904 = vadd.f32 %v5716, %v5846
    %v5905 = vadd.f32 %v5717, %v5849
    %v5906 = vadd.f32 %v5718, %v5854
    %v5907 = vadd.f32 %v5719, %v5857
    %v5908 = vadd.f32 %v5720, %v5862
    %v5909 = vadd.f32 %v5721, %v5865
    %v5910 = vadd.f32 %v5722, %v5870
    %v5911 = vadd.f32 %v5723, %v5873
    %v5912 = vadd.f32 %v5724, %v5878
    %v5913 = vadd.f32 %v5725, %v5881
    %v5914 = vadd.f32 %v5726, %v5886
    %v5915 = vadd.f32 %v5727, %v5889
    %v5916 = vadd.f32 %v5728, %v5894
    %v5917 = vadd.f32 %v5729, %v5897
    %s5918 = scalar_lea.vmem %s3, 960
    %v5919 = vld [vmem:[%s5918] sm:$0xf]
    %v5920 = vld [vmem:[%s5918 + $0x4] sm:$0xf]
    %v5921 = vld [vmem:[%s5918 + $0x8] sm:$0xf]
    %v5922 = vld [vmem:[%s5918 + $0xc] sm:$0xf]
    %v5923 = vld [vmem:[%s5918 + $0x10] sm:$0xf]
    %v5924 = vld [vmem:[%s5918 + $0x14] sm:$0xf]
    %v5925 = vld [vmem:[%s5918 + $0x18] sm:$0xf]
    %v5926 = vld [vmem:[%s5918 + $0x1c] sm:$0xf]
    %v5927 = vld [vmem:[%s5918 + $0x20] sm:$0xf]
    %v5928 = vld [vmem:[%s5918 + $0x24] sm:$0xf]
    %v5929 = vld [vmem:[%s5918 + $0x28] sm:$0xf]
    %v5930 = vld [vmem:[%s5918 + $0x2c] sm:$0xf]
    %v5931 = vld [vmem:[%s5918 + $0x30] sm:$0xf]
    %v5932 = vld [vmem:[%s5918 + $0x34] sm:$0xf]
    %v5933 = vld [vmem:[%s5918 + $0x38] sm:$0xf]
    %v5934 = vld [vmem:[%s5918 + $0x3c] sm:$0xf]
    %v5951 = vunpack.c.l.b16 %v5919
    %v5952 = vunpack.c.l.b16 %v5920
    %v5953 = vunpack.c.l.b16 %v5921
    %v5954 = vunpack.c.l.b16 %v5922
    %v5955 = vunpack.c.l.b16 %v5923
    %v5956 = vunpack.c.l.b16 %v5924
    %v5957 = vunpack.c.l.b16 %v5925
    %v5958 = vunpack.c.l.b16 %v5926
    %v5959 = vunpack.c.l.b16 %v5927
    %v5960 = vunpack.c.l.b16 %v5928
    %v5961 = vunpack.c.l.b16 %v5929
    %v5962 = vunpack.c.l.b16 %v5930
    %v5963 = vunpack.c.l.b16 %v5931
    %v5964 = vunpack.c.l.b16 %v5932
    %v5965 = vunpack.c.l.b16 %v5933
    %v5966 = vunpack.c.l.b16 %v5934
    %v5967 = vpack.c.b16 %v5952, %v5951
    %v5968 = vpack.c.b16 %v5954, %v5953
    %v5969 = vpack.c.b16 %v5956, %v5955
    %v5970 = vpack.c.b16 %v5958, %v5957
    %v5971 = vpack.c.b16 %v5960, %v5959
    %v5972 = vpack.c.b16 %v5962, %v5961
    %v5973 = vpack.c.b16 %v5964, %v5963
    %v5974 = vpack.c.b16 %v5966, %v5965
    %5983 = vmatprep.subr.bf16.mxu0 0
    %5984 = vmatpush1.bf16.msra.mxu0 %v5967
    %5985 = vmatprep.subr.bf16.mxu0 0
    %5986 = vmatpush1.bf16.msra.mxu0 %v5968
    %5987 = vmatprep.subr.bf16.mxu0 0
    %5988 = vmatpush1.bf16.msra.mxu0 %v5969
    %5989 = vmatprep.subr.bf16.mxu0 0
    %5990 = vmatpush1.bf16.msra.mxu0 %v5970
    %5991 = vmatprep.subr.bf16.mxu0 0
    %5992 = vmatpush1.bf16.msra.mxu0 %v5971
    %5993 = vmatprep.subr.bf16.mxu0 0
    %5994 = vmatpush1.bf16.msra.mxu0 %v5972
    %5995 = vmatprep.subr.bf16.mxu0 0
    %5996 = vmatpush1.bf16.msra.mxu0 %v5973
    %5997 = vmatprep.subr.bf16.mxu0 0
    %5998 = vmatpush1.bf16.msra.mxu0 %v5974
    %5999 = vmatprep.subr.bf16.mxu0 0
    %6000 = vmatpush1.bf16.msra.mxu0 0
    %6001 = vmatprep.subr.bf16.mxu0 0
    %6002 = vmatpush1.bf16.msra.mxu0 0
    %6003 = vmatprep.subr.bf16.mxu0 0
    %6004 = vmatpush1.bf16.msra.mxu0 0
    %6005 = vmatprep.subr.bf16.mxu0 0
    %6006 = vmatpush1.bf16.msra.mxu0 0
    %6007 = vmatprep.subr.bf16.mxu0 0
    %6008 = vmatpush1.bf16.msra.mxu0 0
    %6009 = vmatprep.subr.bf16.mxu0 0
    %6010 = vmatpush1.bf16.msra.mxu0 0
    %6011 = vmatprep.subr.bf16.mxu0 0
    %6012 = vmatpush1.bf16.msra.mxu0 0
    %6013 = vmatprep.subr.bf16.mxu0 0
    %6014 = vmatpush1.bf16.msra.mxu0 0
    %6015 = vmatprep.mubr.bf16.mxu0 0
    %6016 = vmatmul.mubr.bf16.gmra.mrb[0].mxu0 %v3126
    %v6017 = vpop.f32.mrb[0].mxu0
    %v6018 = vadd.f32 0.0, %v6017
    %v6019 = vpop.f32.mrb[0].mxu0
    %v6020 = vpop.f32.mrb[0].mxu0
    %v6021 = vadd.f32 0.0, %v6020
    %v6022 = vpop.f32.mrb[0].mxu0
    %6023 = vmatprep.mubr.bf16.mxu0 0
    %6024 = vmatmul.mubr.bf16.gmra.mrb[0].mxu0 %v3127
    %v6025 = vpop.f32.mrb[0].mxu0
    %v6026 = vadd.f32 0.0, %v6025
    %v6027 = vpop.f32.mrb[0].mxu0
    %v6028 = vpop.f32.mrb[0].mxu0
    %v6029 = vadd.f32 0.0, %v6028
    %v6030 = vpop.f32.mrb[0].mxu0
    %6031 = vmatprep.mubr.bf16.mxu0 0
    %6032 = vmatmul.mubr.bf16.gmra.mrb[0].mxu0 %v3128
    %v6033 = vpop.f32.mrb[0].mxu0
    %v6034 = vadd.f32 0.0, %v6033
    %v6035 = vpop.f32.mrb[0].mxu0
    %v6036 = vpop.f32.mrb[0].mxu0
    %v6037 = vadd.f32 0.0, %v6036
    %v6038 = vpop.f32.mrb[0].mxu0
    %6039 = vmatprep.mubr.bf16.mxu0 0
    %6040 = vmatmul.mubr.bf16.gmra.mrb[0].mxu0 %v3129
    %v6041 = vpop.f32.mrb[0].mxu0
    %v6042 = vadd.f32 0.0, %v6041
    %v6043 = vpop.f32.mrb[0].mxu0
    %v6044 = vpop.f32.mrb[0].mxu0
    %v6045 = vadd.f32 0.0, %v6044
    %v6046 = vpop.f32.mrb[0].mxu0
    %6047 = vmatprep.mubr.bf16.mxu0 0
    %6048 = vmatmul.mubr.bf16.gmra.mrb[0].mxu0 %v3130
    %v6049 = vpop.f32.mrb[0].mxu0
    %v6050 = vadd.f32 0.0, %v6049
    %v6051 = vpop.f32.mrb[0].mxu0
    %v6052 = vpop.f32.mrb[0].mxu0
    %v6053 = vadd.f32 0.0, %v6052
    %v6054 = vpop.f32.mrb[0].mxu0
    %6055 = vmatprep.mubr.bf16.mxu0 0
    %6056 = vmatmul.mubr.bf16.gmra.mrb[0].mxu0 %v3131
    %v6057 = vpop.f32.mrb[0].mxu0
    %v6058 = vadd.f32 0.0, %v6057
    %v6059 = vpop.f32.mrb[0].mxu0
    %v6060 = vpop.f32.mrb[0].mxu0
    %v6061 = vadd.f32 0.0, %v6060
    %v6062 = vpop.f32.mrb[0].mxu0
    %6063 = vmatprep.mubr.bf16.mxu0 0
    %6064 = vmatmul.mubr.bf16.gmra.mrb[0].mxu0 %v3132
    %v6065 = vpop.f32.mrb[0].mxu0
    %v6066 = vadd.f32 0.0, %v6065
    %v6067 = vpop.f32.mrb[0].mxu0
    %v6068 = vpop.f32.mrb[0].mxu0
    %v6069 = vadd.f32 0.0, %v6068
    %v6070 = vpop.f32.mrb[0].mxu0
    %6071 = vmatprep.mubr.bf16.mxu0 0
    %6072 = vmatmul.mubr.bf16.gmra.mrb[0].mxu0 %v3133
    %v6073 = vpop.f32.mrb[0].mxu0
    %v6074 = vadd.f32 0.0, %v6073
    %v6075 = vpop.f32.mrb[0].mxu0
    %v6076 = vpop.f32.mrb[0].mxu0
    %v6077 = vadd.f32 0.0, %v6076
    %v6078 = vpop.f32.mrb[0].mxu0
    %6079 = vmatprep.mubr.bf16.mxu0 0
    %6080 = vmatmul.mubr.bf16.gmra.mrb[0].mxu0 %v3134
    %v6081 = vpop.f32.mrb[0].mxu0
    %v6082 = vadd.f32 0.0, %v6081
    %v6083 = vpop.f32.mrb[0].mxu0
    %v6084 = vpop.f32.mrb[0].mxu0
    %v6085 = vadd.f32 0.0, %v6084
    %v6086 = vpop.f32.mrb[0].mxu0
    %6087 = vdwg.mxu0
    %v6088 = vadd.f32 %v5900, %v6018
    %v6089 = vadd.f32 %v5901, %v6021
    %v6090 = vadd.f32 %v5902, %v6026
    %v6091 = vadd.f32 %v5903, %v6029
    %v6092 = vadd.f32 %v5904, %v6034
    %v6093 = vadd.f32 %v5905, %v6037
    %v6094 = vadd.f32 %v5906, %v6042
    %v6095 = vadd.f32 %v5907, %v6045
    %v6096 = vadd.f32 %v5908, %v6050
    %v6097 = vadd.f32 %v5909, %v6053
    %v6098 = vadd.f32 %v5910, %v6058
    %v6099 = vadd.f32 %v5911, %v6061
    %v6100 = vadd.f32 %v5912, %v6066
    %v6101 = vadd.f32 %v5913, %v6069
    %v6102 = vadd.f32 %v5914, %v6074
    %v6103 = vadd.f32 %v5915, %v6077
    %v6104 = vadd.f32 %v5916, %v6082
    %v6105 = vadd.f32 %v5917, %v6085
    %v6106 = vld [vmem:[%s10 + $0x1] sm:$0x1]
    %v6107 = vlaneseq
    %v6108 = vshrl.u32 %v6107, 7
    %v6109 = vsub.s32 0, %v6108
    %v6110 = vrot.slane %v6106, %v6109
    %v6111 = vadd.f32 %v6088, %v6110
    %v6112 = vadd.f32 %v6089, %v6110
    %v6113 = vadd.f32 %v6090, %v6110
    %v6114 = vadd.f32 %v6091, %v6110
    %v6115 = vadd.f32 %v6092, %v6110
    %v6116 = vadd.f32 %v6093, %v6110
    %v6117 = vadd.f32 %v6094, %v6110
    %v6118 = vadd.f32 %v6095, %v6110
    %v6119 = vadd.f32 %v6096, %v6110
    %v6120 = vadd.f32 %v6097, %v6110
    %v6121 = vadd.f32 %v6098, %v6110
    %v6122 = vadd.f32 %v6099, %v6110
    %v6123 = vadd.f32 %v6100, %v6110
    %v6124 = vadd.f32 %v6101, %v6110
    %v6125 = vadd.f32 %v6102, %v6110
    %v6126 = vadd.f32 %v6103, %v6110
    %v6127 = vadd.f32 %v6104, %v6110
    %v6128 = vadd.f32 %v6105, %v6110
    %v6129 = vmax.f32 %v6111, 0.0
    %v6130 = vmax.f32 %v6112, 0.0
    %v6131 = vmax.f32 %v6113, 0.0
    %v6132 = vmax.f32 %v6114, 0.0
    %v6133 = vmax.f32 %v6115, 0.0
    %v6134 = vmax.f32 %v6116, 0.0
    %v6135 = vmax.f32 %v6117, 0.0
    %v6136 = vmax.f32 %v6118, 0.0
    %v6137 = vmax.f32 %v6119, 0.0
    %v6138 = vmax.f32 %v6120, 0.0
    %v6139 = vmax.f32 %v6121, 0.0
    %v6140 = vmax.f32 %v6122, 0.0
    %v6141 = vmax.f32 %v6123, 0.0
    %v6142 = vmax.f32 %v6124, 0.0
    %v6143 = vmax.f32 %v6125, 0.0
    %v6144 = vmax.f32 %v6126, 0.0
    %v6145 = vmax.f32 %v6127, 0.0
    %v6146 = vmax.f32 %v6128, 0.0
    %v6147 = vpack.c.bf16 %v6130, %v6129
    %v6148 = vpack.c.bf16 %v6132, %v6131
    %v6149 = vpack.c.bf16 %v6134, %v6133
    %v6150 = vpack.c.bf16 %v6136, %v6135
    %v6151 = vpack.c.bf16 %v6138, %v6137
    %v6152 = vpack.c.bf16 %v6140, %v6139
    %v6153 = vpack.c.bf16 %v6142, %v6141
    %v6154 = vpack.c.bf16 %v6144, %v6143
    %v6155 = vpack.c.bf16 %v6146, %v6145
    %v6156 = vld [vmem:[%s4] sm:$0xf]
    %v6157 = vld [vmem:[%s4 + $0x4] sm:$0xf]
    %v6158 = vld [vmem:[%s4 + $0x8] sm:$0xf]
    %v6159 = vld [vmem:[%s4 + $0xc] sm:$0xf]
    %v6160 = vld [vmem:[%s4 + $0x10] sm:$0xf]
    %v6161 = vld [vmem:[%s4 + $0x14] sm:$0xf]
    %v6162 = vld [vmem:[%s4 + $0x18] sm:$0xf]
    %v6163 = vld [vmem:[%s4 + $0x1c] sm:$0xf]
    %v6164 = vld [vmem:[%s4 + $0x20] sm:$0xf]
    %v6165 = vld [vmem:[%s4 + $0x24] sm:$0xf]
    %v6166 = vld [vmem:[%s4 + $0x28] sm:$0xf]
    %v6167 = vld [vmem:[%s4 + $0x2c] sm:$0xf]
    %v6168 = vld [vmem:[%s4 + $0x30] sm:$0xf]
    %v6169 = vld [vmem:[%s4 + $0x34] sm:$0xf]
    %v6170 = vld [vmem:[%s4 + $0x38] sm:$0xf]
    %v6171 = vld [vmem:[%s4 + $0x3c] sm:$0xf]
    %s6172 = scalar_lea.vmem %s4, 64
    %v6173 = vld [vmem:[%s6172] sm:$0xf]
    %v6174 = vld [vmem:[%s6172 + $0x4] sm:$0xf]
    %v6175 = vld [vmem:[%s6172 + $0x8] sm:$0xf]
    %v6176 = vld [vmem:[%s6172 + $0xc] sm:$0xf]
    %v6177 = vld [vmem:[%s6172 + $0x10] sm:$0xf]
    %v6178 = vld [vmem:[%s6172 + $0x14] sm:$0xf]
    %v6179 = vld [vmem:[%s6172 + $0x18] sm:$0xf]
    %v6180 = vld [vmem:[%s6172 + $0x1c] sm:$0xf]
    %v6181 = vld [vmem:[%s6172 + $0x20] sm:$0xf]
    %v6182 = vld [vmem:[%s6172 + $0x24] sm:$0xf]
    %v6183 = vld [vmem:[%s6172 + $0x28] sm:$0xf]
    %v6184 = vld [vmem:[%s6172 + $0x2c] sm:$0xf]
    %v6185 = vld [vmem:[%s6172 + $0x30] sm:$0xf]
    %v6186 = vld [vmem:[%s6172 + $0x34] sm:$0xf]
    %v6187 = vld [vmem:[%s6172 + $0x38] sm:$0xf]
    %v6188 = vld [vmem:[%s6172 + $0x3c] sm:$0xf]
    %v6205 = vunpack.c.l.b16 %v6173
    %v6206 = vunpack.c.l.b16 %v6174
    %v6207 = vunpack.c.l.b16 %v6175
    %v6208 = vunpack.c.l.b16 %v6176
    %v6209 = vunpack.c.l.b16 %v6177
    %v6210 = vunpack.c.l.b16 %v6178
    %v6211 = vunpack.c.l.b16 %v6179
    %v6212 = vunpack.c.l.b16 %v6180
    %v6213 = vunpack.c.l.b16 %v6181
    %v6214 = vunpack.c.l.b16 %v6182
    %v6215 = vunpack.c.l.b16 %v6183
    %v6216 = vunpack.c.l.b16 %v6184
    %v6217 = vunpack.c.l.b16 %v6185
    %v6218 = vunpack.c.l.b16 %v6186
    %v6219 = vunpack.c.l.b16 %v6187
    %v6220 = vunpack.c.l.b16 %v6188
    %v6221 = vpack.c.b16 %v6206, %v6205
    %v6222 = vpack.c.b16 %v6208, %v6207
    %v6223 = vpack.c.b16 %v6210, %v6209
    %v6224 = vpack.c.b16 %v6212, %v6211
    %v6225 = vpack.c.b16 %v6214, %v6213
    %v6226 = vpack.c.b16 %v6216, %v6215
    %v6227 = vpack.c.b16 %v6218, %v6217
    %v6228 = vpack.c.b16 %v6220, %v6219
    %6237 = vmatprep.subr.bf16.mxu0 0
    %6238 = vmatpush1.bf16.msra.mxu0 %v6221
    %6239 = vmatprep.subr.bf16.mxu0 0
    %6240 = vmatpush1.bf16.msra.mxu0 %v6222
    %6241 = vmatprep.subr.bf16.mxu0 0
    %6242 = vmatpush1.bf16.msra.mxu0 %v6223
    %6243 = vmatprep.subr.bf16.mxu0 0
    %6244 = vmatpush1.bf16.msra.mxu0 %v6224
    %6245 = vmatprep.subr.bf16.mxu0 0
    %6246 = vmatpush1.bf16.msra.mxu0 %v6225
    %6247 = vmatprep.subr.bf16.mxu0 0
    %6248 = vmatpush1.bf16.msra.mxu0 %v6226
    %6249 = vmatprep.subr.bf16.mxu0 0
    %6250 = vmatpush1.bf16.msra.mxu0 %v6227
    %6251 = vmatprep.subr.bf16.mxu0 0
    %6252 = vmatpush1.bf16.msra.mxu0 %v6228
    %6253 = vmatprep.subr.bf16.mxu0 0
    %6254 = vmatpush1.bf16.msra.mxu0 0
    %6255 = vmatprep.subr.bf16.mxu0 0
    %6256 = vmatpush1.bf16.msra.mxu0 0
    %6257 = vmatprep.subr.bf16.mxu0 0
    %6258 = vmatpush1.bf16.msra.mxu0 0
    %6259 = vmatprep.subr.bf16.mxu0 0
    %6260 = vmatpush1.bf16.msra.mxu0 0
    %6261 = vmatprep.subr.bf16.mxu0 0
    %6262 = vmatpush1.bf16.msra.mxu0 0
    %6263 = vmatprep.subr.bf16.mxu0 0
    %6264 = vmatpush1.bf16.msra.mxu0 0
    %6265 = vmatprep.subr.bf16.mxu0 0
    %6266 = vmatpush1.bf16.msra.mxu0 0
    %6267 = vmatprep.subr.bf16.mxu0 0
    %6268 = vmatpush1.bf16.msra.mxu0 0
    %6269 = vmatprep.mubr.bf16.mxu0 0
    %6270 = vmatmul.mubr.bf16.gmra.mrb[0].mxu0 %v6148
    %v6271 = vpop.f32.mrb[0].mxu0
    %v6272 = vadd.f32 0.0, %v6271
    %v6273 = vpop.f32.mrb[0].mxu0
    %v6274 = vpop.f32.mrb[0].mxu0
    %v6275 = vpop.f32.mrb[0].mxu0
    %6276 = vdwg.mxu0
    %v6293 = vunpack.c.l.b16 %v6156
    %v6294 = vunpack.c.l.b16 %v6157
    %v6295 = vunpack.c.l.b16 %v6158
    %v6296 = vunpack.c.l.b16 %v6159
    %v6297 = vunpack.c.l.b16 %v6160
    %v6298 = vunpack.c.l.b16 %v6161
    %v6299 = vunpack.c.l.b16 %v6162
    %v6300 = vunpack.c.l.b16 %v6163
    %v6301 = vunpack.c.l.b16 %v6164
    %v6302 = vunpack.c.l.b16 %v6165
    %v6303 = vunpack.c.l.b16 %v6166
    %v6304 = vunpack.c.l.b16 %v6167
    %v6305 = vunpack.c.l.b16 %v6168
    %v6306 = vunpack.c.l.b16 %v6169
    %v6307 = vunpack.c.l.b16 %v6170
    %v6308 = vunpack.c.l.b16 %v6171
    %v6309 = vpack.c.b16 %v6294, %v6293
    %v6310 = vpack.c.b16 %v6296, %v6295
    %v6311 = vpack.c.b16 %v6298, %v6297
    %v6312 = vpack.c.b16 %v6300, %v6299
    %v6313 = vpack.c.b16 %v6302, %v6301
    %v6314 = vpack.c.b16 %v6304, %v6303
    %v6315 = vpack.c.b16 %v6306, %v6305
    %v6316 = vpack.c.b16 %v6308, %v6307
    %6325 = vmatprep.subr.bf16.mxu0 0
    %6326 = vmatpush1.bf16.msra.mxu0 %v6309
    %6327 = vmatprep.subr.bf16.mxu0 0
    %6328 = vmatpush1.bf16.msra.mxu0 %v6310
    %6329 = vmatprep.subr.bf16.mxu0 0
    %6330 = vmatpush1.bf16.msra.mxu0 %v6311
    %6331 = vmatprep.subr.bf16.mxu0 0
    %6332 = vmatpush1.bf16.msra.mxu0 %v6312
    %6333 = vmatprep.subr.bf16.mxu0 0
    %6334 = vmatpush1.bf16.msra.mxu0 %v6313
    %6335 = vmatprep.subr.bf16.mxu0 0
    %6336 = vmatpush1.bf16.msra.mxu0 %v6314
    %6337 = vmatprep.subr.bf16.mxu0 0
    %6338 = vmatpush1.bf16.msra.mxu0 %v6315
    %6339 = vmatprep.subr.bf16.mxu0 0
    %6340 = vmatpush1.bf16.msra.mxu0 %v6316
    %6341 = vmatprep.subr.bf16.mxu0 0
    %6342 = vmatpush1.bf16.msra.mxu0 0
    %6343 = vmatprep.subr.bf16.mxu0 0
    %6344 = vmatpush1.bf16.msra.mxu0 0
    %6345 = vmatprep.subr.bf16.mxu0 0
    %6346 = vmatpush1.bf16.msra.mxu0 0
    %6347 = vmatprep.subr.bf16.mxu0 0
    %6348 = vmatpush1.bf16.msra.mxu0 0
    %6349 = vmatprep.subr.bf16.mxu0 0
    %6350 = vmatpush1.bf16.msra.mxu0 0
    %6351 = vmatprep.subr.bf16.mxu0 0
    %6352 = vmatpush1.bf16.msra.mxu0 0
    %6353 = vmatprep.subr.bf16.mxu0 0
    %6354 = vmatpush1.bf16.msra.mxu0 0
    %6355 = vmatprep.subr.bf16.mxu0 0
    %6356 = vmatpush1.bf16.msra.mxu0 0
    %6357 = vmatprep.mubr.bf16.mxu0 0
    %6358 = vmatmul.mubr.bf16.gmra.mrb[0].mxu0 %v6147
    %v6359 = vpop.f32.mrb[0].mxu0
    %v6360 = vadd.f32 %v6272, %v6359
    %v6361 = vpop.f32.mrb[0].mxu0
    %v6362 = vpop.f32.mrb[0].mxu0
    %v6363 = vpop.f32.mrb[0].mxu0
    %6364 = vdwg.mxu0
    %s6365 = scalar_lea.vmem %s4, 128
    %v6366 = vld [vmem:[%s6365] sm:$0xf]
    %v6367 = vld [vmem:[%s6365 + $0x4] sm:$0xf]
    %v6368 = vld [vmem:[%s6365 + $0x8] sm:$0xf]
    %v6369 = vld [vmem:[%s6365 + $0xc] sm:$0xf]
    %v6370 = vld [vmem:[%s6365 + $0x10] sm:$0xf]
    %v6371 = vld [vmem:[%s6365 + $0x14] sm:$0xf]
    %v6372 = vld [vmem:[%s6365 + $0x18] sm:$0xf]
    %v6373 = vld [vmem:[%s6365 + $0x1c] sm:$0xf]
    %v6374 = vld [vmem:[%s6365 + $0x20] sm:$0xf]
    %v6375 = vld [vmem:[%s6365 + $0x24] sm:$0xf]
    %v6376 = vld [vmem:[%s6365 + $0x28] sm:$0xf]
    %v6377 = vld [vmem:[%s6365 + $0x2c] sm:$0xf]
    %v6378 = vld [vmem:[%s6365 + $0x30] sm:$0xf]
    %v6379 = vld [vmem:[%s6365 + $0x34] sm:$0xf]
    %v6380 = vld [vmem:[%s6365 + $0x38] sm:$0xf]
    %v6381 = vld [vmem:[%s6365 + $0x3c] sm:$0xf]
    %v6398 = vunpack.c.l.b16 %v6366
    %v6399 = vunpack.c.l.b16 %v6367
    %v6400 = vunpack.c.l.b16 %v6368
    %v6401 = vunpack.c.l.b16 %v6369
    %v6402 = vunpack.c.l.b16 %v6370
    %v6403 = vunpack.c.l.b16 %v6371
    %v6404 = vunpack.c.l.b16 %v6372
    %v6405 = vunpack.c.l.b16 %v6373
    %v6406 = vunpack.c.l.b16 %v6374
    %v6407 = vunpack.c.l.b16 %v6375
    %v6408 = vunpack.c.l.b16 %v6376
    %v6409 = vunpack.c.l.b16 %v6377
    %v6410 = vunpack.c.l.b16 %v6378
    %v6411 = vunpack.c.l.b16 %v6379
    %v6412 = vunpack.c.l.b16 %v6380
    %v6413 = vunpack.c.l.b16 %v6381
    %v6414 = vpack.c.b16 %v6399, %v6398
    %v6415 = vpack.c.b16 %v6401, %v6400
    %v6416 = vpack.c.b16 %v6403, %v6402
    %v6417 = vpack.c.b16 %v6405, %v6404
    %v6418 = vpack.c.b16 %v6407, %v6406
    %v6419 = vpack.c.b16 %v6409, %v6408
    %v6420 = vpack.c.b16 %v6411, %v6410
    %v6421 = vpack.c.b16 %v6413, %v6412
    %6430 = vmatprep.subr.bf16.mxu0 0
    %6431 = vmatpush1.bf16.msra.mxu0 %v6414
    %6432 = vmatprep.subr.bf16.mxu0 0
    %6433 = vmatpush1.bf16.msra.mxu0 %v6415
    %6434 = vmatprep.subr.bf16.mxu0 0
    %6435 = vmatpush1.bf16.msra.mxu0 %v6416
    %6436 = vmatprep.subr.bf16.mxu0 0
    %6437 = vmatpush1.bf16.msra.mxu0 %v6417
    %6438 = vmatprep.subr.bf16.mxu0 0
    %6439 = vmatpush1.bf16.msra.mxu0 %v6418
    %6440 = vmatprep.subr.bf16.mxu0 0
    %6441 = vmatpush1.bf16.msra.mxu0 %v6419
    %6442 = vmatprep.subr.bf16.mxu0 0
    %6443 = vmatpush1.bf16.msra.mxu0 %v6420
    %6444 = vmatprep.subr.bf16.mxu0 0
    %6445 = vmatpush1.bf16.msra.mxu0 %v6421
    %6446 = vmatprep.subr.bf16.mxu0 0
    %6447 = vmatpush1.bf16.msra.mxu0 0
    %6448 = vmatprep.subr.bf16.mxu0 0
    %6449 = vmatpush1.bf16.msra.mxu0 0
    %6450 = vmatprep.subr.bf16.mxu0 0
    %6451 = vmatpush1.bf16.msra.mxu0 0
    %6452 = vmatprep.subr.bf16.mxu0 0
    %6453 = vmatpush1.bf16.msra.mxu0 0
    %6454 = vmatprep.subr.bf16.mxu0 0
    %6455 = vmatpush1.bf16.msra.mxu0 0
    %6456 = vmatprep.subr.bf16.mxu0 0
    %6457 = vmatpush1.bf16.msra.mxu0 0
    %6458 = vmatprep.subr.bf16.mxu0 0
    %6459 = vmatpush1.bf16.msra.mxu0 0
    %6460 = vmatprep.subr.bf16.mxu0 0
    %6461 = vmatpush1.bf16.msra.mxu0 0
    %6462 = vmatprep.mubr.bf16.mxu0 0
    %6463 = vmatmul.mubr.bf16.gmra.mrb[0].mxu0 %v6149
    %v6464 = vpop.f32.mrb[0].mxu0
    %v6465 = vadd.f32 0.0, %v6464
    %v6466 = vpop.f32.mrb[0].mxu0
    %v6467 = vpop.f32.mrb[0].mxu0
    %v6468 = vpop.f32.mrb[0].mxu0
    %6469 = vdwg.mxu0
    %v6470 = vadd.f32 %v6360, %v6465
    %s6471 = scalar_lea.vmem %s4, 192
    %v6472 = vld [vmem:[%s6471] sm:$0xf]
    %v6473 = vld [vmem:[%s6471 + $0x4] sm:$0xf]
    %v6474 = vld [vmem:[%s6471 + $0x8] sm:$0xf]
    %v6475 = vld [vmem:[%s6471 + $0xc] sm:$0xf]
    %v6476 = vld [vmem:[%s6471 + $0x10] sm:$0xf]
    %v6477 = vld [vmem:[%s6471 + $0x14] sm:$0xf]
    %v6478 = vld [vmem:[%s6471 + $0x18] sm:$0xf]
    %v6479 = vld [vmem:[%s6471 + $0x1c] sm:$0xf]
    %v6480 = vld [vmem:[%s6471 + $0x20] sm:$0xf]
    %v6481 = vld [vmem:[%s6471 + $0x24] sm:$0xf]
    %v6482 = vld [vmem:[%s6471 + $0x28] sm:$0xf]
    %v6483 = vld [vmem:[%s6471 + $0x2c] sm:$0xf]
    %v6484 = vld [vmem:[%s6471 + $0x30] sm:$0xf]
    %v6485 = vld [vmem:[%s6471 + $0x34] sm:$0xf]
    %v6486 = vld [vmem:[%s6471 + $0x38] sm:$0xf]
    %v6487 = vld [vmem:[%s6471 + $0x3c] sm:$0xf]
    %v6504 = vunpack.c.l.b16 %v6472
    %v6505 = vunpack.c.l.b16 %v6473
    %v6506 = vunpack.c.l.b16 %v6474
    %v6507 = vunpack.c.l.b16 %v6475
    %v6508 = vunpack.c.l.b16 %v6476
    %v6509 = vunpack.c.l.b16 %v6477
    %v6510 = vunpack.c.l.b16 %v6478
    %v6511 = vunpack.c.l.b16 %v6479
    %v6512 = vunpack.c.l.b16 %v6480
    %v6513 = vunpack.c.l.b16 %v6481
    %v6514 = vunpack.c.l.b16 %v6482
    %v6515 = vunpack.c.l.b16 %v6483
    %v6516 = vunpack.c.l.b16 %v6484
    %v6517 = vunpack.c.l.b16 %v6485
    %v6518 = vunpack.c.l.b16 %v6486
    %v6519 = vunpack.c.l.b16 %v6487
    %v6520 = vpack.c.b16 %v6505, %v6504
    %v6521 = vpack.c.b16 %v6507, %v6506
    %v6522 = vpack.c.b16 %v6509, %v6508
    %v6523 = vpack.c.b16 %v6511, %v6510
    %v6524 = vpack.c.b16 %v6513, %v6512
    %v6525 = vpack.c.b16 %v6515, %v6514
    %v6526 = vpack.c.b16 %v6517, %v6516
    %v6527 = vpack.c.b16 %v6519, %v6518
    %6536 = vmatprep.subr.bf16.mxu0 0
    %6537 = vmatpush1.bf16.msra.mxu0 %v6520
    %6538 = vmatprep.subr.bf16.mxu0 0
    %6539 = vmatpush1.bf16.msra.mxu0 %v6521
    %6540 = vmatprep.subr.bf16.mxu0 0
    %6541 = vmatpush1.bf16.msra.mxu0 %v6522
    %6542 = vmatprep.subr.bf16.mxu0 0
    %6543 = vmatpush1.bf16.msra.mxu0 %v6523
    %6544 = vmatprep.subr.bf16.mxu0 0
    %6545 = vmatpush1.bf16.msra.mxu0 %v6524
    %6546 = vmatprep.subr.bf16.mxu0 0
    %6547 = vmatpush1.bf16.msra.mxu0 %v6525
    %6548 = vmatprep.subr.bf16.mxu0 0
    %6549 = vmatpush1.bf16.msra.mxu0 %v6526
    %6550 = vmatprep.subr.bf16.mxu0 0
    %6551 = vmatpush1.bf16.msra.mxu0 %v6527
    %6552 = vmatprep.subr.bf16.mxu0 0
    %6553 = vmatpush1.bf16.msra.mxu0 0
    %6554 = vmatprep.subr.bf16.mxu0 0
    %6555 = vmatpush1.bf16.msra.mxu0 0
    %6556 = vmatprep.subr.bf16.mxu0 0
    %6557 = vmatpush1.bf16.msra.mxu0 0
    %6558 = vmatprep.subr.bf16.mxu0 0
    %6559 = vmatpush1.bf16.msra.mxu0 0
    %6560 = vmatprep.subr.bf16.mxu0 0
    %6561 = vmatpush1.bf16.msra.mxu0 0
    %6562 = vmatprep.subr.bf16.mxu0 0
    %6563 = vmatpush1.bf16.msra.mxu0 0
    %6564 = vmatprep.subr.bf16.mxu0 0
    %6565 = vmatpush1.bf16.msra.mxu0 0
    %6566 = vmatprep.subr.bf16.mxu0 0
    %6567 = vmatpush1.bf16.msra.mxu0 0
    %6568 = vmatprep.mubr.bf16.mxu0 0
    %6569 = vmatmul.mubr.bf16.gmra.mrb[0].mxu0 %v6150
    %v6570 = vpop.f32.mrb[0].mxu0
    %v6571 = vadd.f32 0.0, %v6570
    %v6572 = vpop.f32.mrb[0].mxu0
    %v6573 = vpop.f32.mrb[0].mxu0
    %v6574 = vpop.f32.mrb[0].mxu0
    %6575 = vdwg.mxu0
    %v6576 = vadd.f32 %v6470, %v6571
    %s6577 = scalar_lea.vmem %s4, 256
    %v6578 = vld [vmem:[%s6577] sm:$0xf]
    %v6579 = vld [vmem:[%s6577 + $0x4] sm:$0xf]
    %v6580 = vld [vmem:[%s6577 + $0x8] sm:$0xf]
    %v6581 = vld [vmem:[%s6577 + $0xc] sm:$0xf]
    %v6582 = vld [vmem:[%s6577 + $0x10] sm:$0xf]
    %v6583 = vld [vmem:[%s6577 + $0x14] sm:$0xf]
    %v6584 = vld [vmem:[%s6577 + $0x18] sm:$0xf]
    %v6585 = vld [vmem:[%s6577 + $0x1c] sm:$0xf]
    %v6586 = vld [vmem:[%s6577 + $0x20] sm:$0xf]
    %v6587 = vld [vmem:[%s6577 + $0x24] sm:$0xf]
    %v6588 = vld [vmem:[%s6577 + $0x28] sm:$0xf]
    %v6589 = vld [vmem:[%s6577 + $0x2c] sm:$0xf]
    %v6590 = vld [vmem:[%s6577 + $0x30] sm:$0xf]
    %v6591 = vld [vmem:[%s6577 + $0x34] sm:$0xf]
    %v6592 = vld [vmem:[%s6577 + $0x38] sm:$0xf]
    %v6593 = vld [vmem:[%s6577 + $0x3c] sm:$0xf]
    %v6610 = vunpack.c.l.b16 %v6578
    %v6611 = vunpack.c.l.b16 %v6579
    %v6612 = vunpack.c.l.b16 %v6580
    %v6613 = vunpack.c.l.b16 %v6581
    %v6614 = vunpack.c.l.b16 %v6582
    %v6615 = vunpack.c.l.b16 %v6583
    %v6616 = vunpack.c.l.b16 %v6584
    %v6617 = vunpack.c.l.b16 %v6585
    %v6618 = vunpack.c.l.b16 %v6586
    %v6619 = vunpack.c.l.b16 %v6587
    %v6620 = vunpack.c.l.b16 %v6588
    %v6621 = vunpack.c.l.b16 %v6589
    %v6622 = vunpack.c.l.b16 %v6590
    %v6623 = vunpack.c.l.b16 %v6591
    %v6624 = vunpack.c.l.b16 %v6592
    %v6625 = vunpack.c.l.b16 %v6593
    %v6626 = vpack.c.b16 %v6611, %v6610
    %v6627 = vpack.c.b16 %v6613, %v6612
    %v6628 = vpack.c.b16 %v6615, %v6614
    %v6629 = vpack.c.b16 %v6617, %v6616
    %v6630 = vpack.c.b16 %v6619, %v6618
    %v6631 = vpack.c.b16 %v6621, %v6620
    %v6632 = vpack.c.b16 %v6623, %v6622
    %v6633 = vpack.c.b16 %v6625, %v6624
    %6642 = vmatprep.subr.bf16.mxu0 0
    %6643 = vmatpush1.bf16.msra.mxu0 %v6626
    %6644 = vmatprep.subr.bf16.mxu0 0
    %6645 = vmatpush1.bf16.msra.mxu0 %v6627
    %6646 = vmatprep.subr.bf16.mxu0 0
    %6647 = vmatpush1.bf16.msra.mxu0 %v6628
    %6648 = vmatprep.subr.bf16.mxu0 0
    %6649 = vmatpush1.bf16.msra.mxu0 %v6629
    %6650 = vmatprep.subr.bf16.mxu0 0
    %6651 = vmatpush1.bf16.msra.mxu0 %v6630
    %6652 = vmatprep.subr.bf16.mxu0 0
    %6653 = vmatpush1.bf16.msra.mxu0 %v6631
    %6654 = vmatprep.subr.bf16.mxu0 0
    %6655 = vmatpush1.bf16.msra.mxu0 %v6632
    %6656 = vmatprep.subr.bf16.mxu0 0
    %6657 = vmatpush1.bf16.msra.mxu0 %v6633
    %6658 = vmatprep.subr.bf16.mxu0 0
    %6659 = vmatpush1.bf16.msra.mxu0 0
    %6660 = vmatprep.subr.bf16.mxu0 0
    %6661 = vmatpush1.bf16.msra.mxu0 0
    %6662 = vmatprep.subr.bf16.mxu0 0
    %6663 = vmatpush1.bf16.msra.mxu0 0
    %6664 = vmatprep.subr.bf16.mxu0 0
    %6665 = vmatpush1.bf16.msra.mxu0 0
    %6666 = vmatprep.subr.bf16.mxu0 0
    %6667 = vmatpush1.bf16.msra.mxu0 0
    %6668 = vmatprep.subr.bf16.mxu0 0
    %6669 = vmatpush1.bf16.msra.mxu0 0
    %6670 = vmatprep.subr.bf16.mxu0 0
    %6671 = vmatpush1.bf16.msra.mxu0 0
    %6672 = vmatprep.subr.bf16.mxu0 0
    %6673 = vmatpush1.bf16.msra.mxu0 0
    %6674 = vmatprep.mubr.bf16.mxu0 0
    %6675 = vmatmul.mubr.bf16.gmra.mrb[0].mxu0 %v6151
    %v6676 = vpop.f32.mrb[0].mxu0
    %v6677 = vadd.f32 0.0, %v6676
    %v6678 = vpop.f32.mrb[0].mxu0
    %v6679 = vpop.f32.mrb[0].mxu0
    %v6680 = vpop.f32.mrb[0].mxu0
    %6681 = vdwg.mxu0
    %v6682 = vadd.f32 %v6576, %v6677
    %s6683 = scalar_lea.vmem %s4, 320
    %v6684 = vld [vmem:[%s6683] sm:$0xf]
    %v6685 = vld [vmem:[%s6683 + $0x4] sm:$0xf]
    %v6686 = vld [vmem:[%s6683 + $0x8] sm:$0xf]
    %v6687 = vld [vmem:[%s6683 + $0xc] sm:$0xf]
    %v6688 = vld [vmem:[%s6683 + $0x10] sm:$0xf]
    %v6689 = vld [vmem:[%s6683 + $0x14] sm:$0xf]
    %v6690 = vld [vmem:[%s6683 + $0x18] sm:$0xf]
    %v6691 = vld [vmem:[%s6683 + $0x1c] sm:$0xf]
    %v6692 = vld [vmem:[%s6683 + $0x20] sm:$0xf]
    %v6693 = vld [vmem:[%s6683 + $0x24] sm:$0xf]
    %v6694 = vld [vmem:[%s6683 + $0x28] sm:$0xf]
    %v6695 = vld [vmem:[%s6683 + $0x2c] sm:$0xf]
    %v6696 = vld [vmem:[%s6683 + $0x30] sm:$0xf]
    %v6697 = vld [vmem:[%s6683 + $0x34] sm:$0xf]
    %v6698 = vld [vmem:[%s6683 + $0x38] sm:$0xf]
    %v6699 = vld [vmem:[%s6683 + $0x3c] sm:$0xf]
    %v6716 = vunpack.c.l.b16 %v6684
    %v6717 = vunpack.c.l.b16 %v6685
    %v6718 = vunpack.c.l.b16 %v6686
    %v6719 = vunpack.c.l.b16 %v6687
    %v6720 = vunpack.c.l.b16 %v6688
    %v6721 = vunpack.c.l.b16 %v6689
    %v6722 = vunpack.c.l.b16 %v6690
    %v6723 = vunpack.c.l.b16 %v6691
    %v6724 = vunpack.c.l.b16 %v6692
    %v6725 = vunpack.c.l.b16 %v6693
    %v6726 = vunpack.c.l.b16 %v6694
    %v6727 = vunpack.c.l.b16 %v6695
    %v6728 = vunpack.c.l.b16 %v6696
    %v6729 = vunpack.c.l.b16 %v6697
    %v6730 = vunpack.c.l.b16 %v6698
    %v6731 = vunpack.c.l.b16 %v6699
    %v6732 = vpack.c.b16 %v6717, %v6716
    %v6733 = vpack.c.b16 %v6719, %v6718
    %v6734 = vpack.c.b16 %v6721, %v6720
    %v6735 = vpack.c.b16 %v6723, %v6722
    %v6736 = vpack.c.b16 %v6725, %v6724
    %v6737 = vpack.c.b16 %v6727, %v6726
    %v6738 = vpack.c.b16 %v6729, %v6728
    %v6739 = vpack.c.b16 %v6731, %v6730
    %6748 = vmatprep.subr.bf16.mxu0 0
    %6749 = vmatpush1.bf16.msra.mxu0 %v6732
    %6750 = vmatprep.subr.bf16.mxu0 0
    %6751 = vmatpush1.bf16.msra.mxu0 %v6733
    %6752 = vmatprep.subr.bf16.mxu0 0
    %6753 = vmatpush1.bf16.msra.mxu0 %v6734
    %6754 = vmatprep.subr.bf16.mxu0 0
    %6755 = vmatpush1.bf16.msra.mxu0 %v6735
    %6756 = vmatprep.subr.bf16.mxu0 0
    %6757 = vmatpush1.bf16.msra.mxu0 %v6736
    %6758 = vmatprep.subr.bf16.mxu0 0
    %6759 = vmatpush1.bf16.msra.mxu0 %v6737
    %6760 = vmatprep.subr.bf16.mxu0 0
    %6761 = vmatpush1.bf16.msra.mxu0 %v6738
    %6762 = vmatprep.subr.bf16.mxu0 0
    %6763 = vmatpush1.bf16.msra.mxu0 %v6739
    %6764 = vmatprep.subr.bf16.mxu0 0
    %6765 = vmatpush1.bf16.msra.mxu0 0
    %6766 = vmatprep.subr.bf16.mxu0 0
    %6767 = vmatpush1.bf16.msra.mxu0 0
    %6768 = vmatprep.subr.bf16.mxu0 0
    %6769 = vmatpush1.bf16.msra.mxu0 0
    %6770 = vmatprep.subr.bf16.mxu0 0
    %6771 = vmatpush1.bf16.msra.mxu0 0
    %6772 = vmatprep.subr.bf16.mxu0 0
    %6773 = vmatpush1.bf16.msra.mxu0 0
    %6774 = vmatprep.subr.bf16.mxu0 0
    %6775 = vmatpush1.bf16.msra.mxu0 0
    %6776 = vmatprep.subr.bf16.mxu0 0
    %6777 = vmatpush1.bf16.msra.mxu0 0
    %6778 = vmatprep.subr.bf16.mxu0 0
    %6779 = vmatpush1.bf16.msra.mxu0 0
    %6780 = vmatprep.mubr.bf16.mxu0 0
    %6781 = vmatmul.mubr.bf16.gmra.mrb[0].mxu0 %v6152
    %v6782 = vpop.f32.mrb[0].mxu0
    %v6783 = vadd.f32 0.0, %v6782
    %v6784 = vpop.f32.mrb[0].mxu0
    %v6785 = vpop.f32.mrb[0].mxu0
    %v6786 = vpop.f32.mrb[0].mxu0
    %6787 = vdwg.mxu0
    %v6788 = vadd.f32 %v6682, %v6783
    %s6789 = scalar_lea.vmem %s4, 384
    %v6790 = vld [vmem:[%s6789] sm:$0xf]
    %v6791 = vld [vmem:[%s6789 + $0x4] sm:$0xf]
    %v6792 = vld [vmem:[%s6789 + $0x8] sm:$0xf]
    %v6793 = vld [vmem:[%s6789 + $0xc] sm:$0xf]
    %v6794 = vld [vmem:[%s6789 + $0x10] sm:$0xf]
    %v6795 = vld [vmem:[%s6789 + $0x14] sm:$0xf]
    %v6796 = vld [vmem:[%s6789 + $0x18] sm:$0xf]
    %v6797 = vld [vmem:[%s6789 + $0x1c] sm:$0xf]
    %v6798 = vld [vmem:[%s6789 + $0x20] sm:$0xf]
    %v6799 = vld [vmem:[%s6789 + $0x24] sm:$0xf]
    %v6800 = vld [vmem:[%s6789 + $0x28] sm:$0xf]
    %v6801 = vld [vmem:[%s6789 + $0x2c] sm:$0xf]
    %v6802 = vld [vmem:[%s6789 + $0x30] sm:$0xf]
    %v6803 = vld [vmem:[%s6789 + $0x34] sm:$0xf]
    %v6804 = vld [vmem:[%s6789 + $0x38] sm:$0xf]
    %v6805 = vld [vmem:[%s6789 + $0x3c] sm:$0xf]
    %v6822 = vunpack.c.l.b16 %v6790
    %v6823 = vunpack.c.l.b16 %v6791
    %v6824 = vunpack.c.l.b16 %v6792
    %v6825 = vunpack.c.l.b16 %v6793
    %v6826 = vunpack.c.l.b16 %v6794
    %v6827 = vunpack.c.l.b16 %v6795
    %v6828 = vunpack.c.l.b16 %v6796
    %v6829 = vunpack.c.l.b16 %v6797
    %v6830 = vunpack.c.l.b16 %v6798
    %v6831 = vunpack.c.l.b16 %v6799
    %v6832 = vunpack.c.l.b16 %v6800
    %v6833 = vunpack.c.l.b16 %v6801
    %v6834 = vunpack.c.l.b16 %v6802
    %v6835 = vunpack.c.l.b16 %v6803
    %v6836 = vunpack.c.l.b16 %v6804
    %v6837 = vunpack.c.l.b16 %v6805
    %v6838 = vpack.c.b16 %v6823, %v6822
    %v6839 = vpack.c.b16 %v6825, %v6824
    %v6840 = vpack.c.b16 %v6827, %v6826
    %v6841 = vpack.c.b16 %v6829, %v6828
    %v6842 = vpack.c.b16 %v6831, %v6830
    %v6843 = vpack.c.b16 %v6833, %v6832
    %v6844 = vpack.c.b16 %v6835, %v6834
    %v6845 = vpack.c.b16 %v6837, %v6836
    %6854 = vmatprep.subr.bf16.mxu0 0
    %6855 = vmatpush1.bf16.msra.mxu0 %v6838
    %6856 = vmatprep.subr.bf16.mxu0 0
    %6857 = vmatpush1.bf16.msra.mxu0 %v6839
    %6858 = vmatprep.subr.bf16.mxu0 0
    %6859 = vmatpush1.bf16.msra.mxu0 %v6840
    %6860 = vmatprep.subr.bf16.mxu0 0
    %6861 = vmatpush1.bf16.msra.mxu0 %v6841
    %6862 = vmatprep.subr.bf16.mxu0 0
    %6863 = vmatpush1.bf16.msra.mxu0 %v6842
    %6864 = vmatprep.subr.bf16.mxu0 0
    %6865 = vmatpush1.bf16.msra.mxu0 %v6843
    %6866 = vmatprep.subr.bf16.mxu0 0
    %6867 = vmatpush1.bf16.msra.mxu0 %v6844
    %6868 = vmatprep.subr.bf16.mxu0 0
    %6869 = vmatpush1.bf16.msra.mxu0 %v6845
    %6870 = vmatprep.subr.bf16.mxu0 0
    %6871 = vmatpush1.bf16.msra.mxu0 0
    %6872 = vmatprep.subr.bf16.mxu0 0
    %6873 = vmatpush1.bf16.msra.mxu0 0
    %6874 = vmatprep.subr.bf16.mxu0 0
    %6875 = vmatpush1.bf16.msra.mxu0 0
    %6876 = vmatprep.subr.bf16.mxu0 0
    %6877 = vmatpush1.bf16.msra.mxu0 0
    %6878 = vmatprep.subr.bf16.mxu0 0
    %6879 = vmatpush1.bf16.msra.mxu0 0
    %6880 = vmatprep.subr.bf16.mxu0 0
    %6881 = vmatpush1.bf16.msra.mxu0 0
    %6882 = vmatprep.subr.bf16.mxu0 0
    %6883 = vmatpush1.bf16.msra.mxu0 0
    %6884 = vmatprep.subr.bf16.mxu0 0
    %6885 = vmatpush1.bf16.msra.mxu0 0
    %6886 = vmatprep.mubr.bf16.mxu0 0
    %6887 = vmatmul.mubr.bf16.gmra.mrb[0].mxu0 %v6153
    %v6888 = vpop.f32.mrb[0].mxu0
    %v6889 = vadd.f32 0.0, %v6888
    %v6890 = vpop.f32.mrb[0].mxu0
    %v6891 = vpop.f32.mrb[0].mxu0
    %v6892 = vpop.f32.mrb[0].mxu0
    %6893 = vdwg.mxu0
    %v6894 = vadd.f32 %v6788, %v6889
    %s6895 = scalar_lea.vmem %s4, 448
    %v6896 = vld [vmem:[%s6895] sm:$0xf]
    %v6897 = vld [vmem:[%s6895 + $0x4] sm:$0xf]
    %v6898 = vld [vmem:[%s6895 + $0x8] sm:$0xf]
    %v6899 = vld [vmem:[%s6895 + $0xc] sm:$0xf]
    %v6900 = vld [vmem:[%s6895 + $0x10] sm:$0xf]
    %v6901 = vld [vmem:[%s6895 + $0x14] sm:$0xf]
    %v6902 = vld [vmem:[%s6895 + $0x18] sm:$0xf]
    %v6903 = vld [vmem:[%s6895 + $0x1c] sm:$0xf]
    %v6904 = vld [vmem:[%s6895 + $0x20] sm:$0xf]
    %v6905 = vld [vmem:[%s6895 + $0x24] sm:$0xf]
    %v6906 = vld [vmem:[%s6895 + $0x28] sm:$0xf]
    %v6907 = vld [vmem:[%s6895 + $0x2c] sm:$0xf]
    %v6908 = vld [vmem:[%s6895 + $0x30] sm:$0xf]
    %v6909 = vld [vmem:[%s6895 + $0x34] sm:$0xf]
    %v6910 = vld [vmem:[%s6895 + $0x38] sm:$0xf]
    %v6911 = vld [vmem:[%s6895 + $0x3c] sm:$0xf]
    %v6928 = vunpack.c.l.b16 %v6896
    %v6929 = vunpack.c.l.b16 %v6897
    %v6930 = vunpack.c.l.b16 %v6898
    %v6931 = vunpack.c.l.b16 %v6899
    %v6932 = vunpack.c.l.b16 %v6900
    %v6933 = vunpack.c.l.b16 %v6901
    %v6934 = vunpack.c.l.b16 %v6902
    %v6935 = vunpack.c.l.b16 %v6903
    %v6936 = vunpack.c.l.b16 %v6904
    %v6937 = vunpack.c.l.b16 %v6905
    %v6938 = vunpack.c.l.b16 %v6906
    %v6939 = vunpack.c.l.b16 %v6907
    %v6940 = vunpack.c.l.b16 %v6908
    %v6941 = vunpack.c.l.b16 %v6909
    %v6942 = vunpack.c.l.b16 %v6910
    %v6943 = vunpack.c.l.b16 %v6911
    %v6944 = vpack.c.b16 %v6929, %v6928
    %v6945 = vpack.c.b16 %v6931, %v6930
    %v6946 = vpack.c.b16 %v6933, %v6932
    %v6947 = vpack.c.b16 %v6935, %v6934
    %v6948 = vpack.c.b16 %v6937, %v6936
    %v6949 = vpack.c.b16 %v6939, %v6938
    %v6950 = vpack.c.b16 %v6941, %v6940
    %v6951 = vpack.c.b16 %v6943, %v6942
    %6960 = vmatprep.subr.bf16.mxu0 0
    %6961 = vmatpush1.bf16.msra.mxu0 %v6944
    %6962 = vmatprep.subr.bf16.mxu0 0
    %6963 = vmatpush1.bf16.msra.mxu0 %v6945
    %6964 = vmatprep.subr.bf16.mxu0 0
    %6965 = vmatpush1.bf16.msra.mxu0 %v6946
    %6966 = vmatprep.subr.bf16.mxu0 0
    %6967 = vmatpush1.bf16.msra.mxu0 %v6947
    %6968 = vmatprep.subr.bf16.mxu0 0
    %6969 = vmatpush1.bf16.msra.mxu0 %v6948
    %6970 = vmatprep.subr.bf16.mxu0 0
    %6971 = vmatpush1.bf16.msra.mxu0 %v6949
    %6972 = vmatprep.subr.bf16.mxu0 0
    %6973 = vmatpush1.bf16.msra.mxu0 %v6950
    %6974 = vmatprep.subr.bf16.mxu0 0
    %6975 = vmatpush1.bf16.msra.mxu0 %v6951
    %6976 = vmatprep.subr.bf16.mxu0 0
    %6977 = vmatpush1.bf16.msra.mxu0 0
    %6978 = vmatprep.subr.bf16.mxu0 0
    %6979 = vmatpush1.bf16.msra.mxu0 0
    %6980 = vmatprep.subr.bf16.mxu0 0
    %6981 = vmatpush1.bf16.msra.mxu0 0
    %6982 = vmatprep.subr.bf16.mxu0 0
    %6983 = vmatpush1.bf16.msra.mxu0 0
    %6984 = vmatprep.subr.bf16.mxu0 0
    %6985 = vmatpush1.bf16.msra.mxu0 0
    %6986 = vmatprep.subr.bf16.mxu0 0
    %6987 = vmatpush1.bf16.msra.mxu0 0
    %6988 = vmatprep.subr.bf16.mxu0 0
    %6989 = vmatpush1.bf16.msra.mxu0 0
    %6990 = vmatprep.subr.bf16.mxu0 0
    %6991 = vmatpush1.bf16.msra.mxu0 0
    %6992 = vmatprep.mubr.bf16.mxu0 0
    %6993 = vmatmul.mubr.bf16.gmra.mrb[0].mxu0 %v6154
    %v6994 = vpop.f32.mrb[0].mxu0
    %v6995 = vadd.f32 0.0, %v6994
    %v6996 = vpop.f32.mrb[0].mxu0
    %v6997 = vpop.f32.mrb[0].mxu0
    %v6998 = vpop.f32.mrb[0].mxu0
    %6999 = vdwg.mxu0
    %v7000 = vadd.f32 %v6894, %v6995
    %s7001 = scalar_lea.vmem %s4, 512
    %v7002 = vld [vmem:[%s7001] sm:$0xf]
    %v7003 = vld [vmem:[%s7001 + $0x4] sm:$0xf]
    %v7004 = vld [vmem:[%s7001 + $0x8] sm:$0xf]
    %v7005 = vld [vmem:[%s7001 + $0xc] sm:$0xf]
    %v7006 = vld [vmem:[%s7001 + $0x10] sm:$0xf]
    %v7007 = vld [vmem:[%s7001 + $0x14] sm:$0xf]
    %v7008 = vld [vmem:[%s7001 + $0x18] sm:$0xf]
    %v7009 = vld [vmem:[%s7001 + $0x1c] sm:$0xf]
    %v7010 = vld [vmem:[%s7001 + $0x20] sm:$0xf]
    %v7011 = vld [vmem:[%s7001 + $0x24] sm:$0xf]
    %v7012 = vld [vmem:[%s7001 + $0x28] sm:$0xf]
    %v7013 = vld [vmem:[%s7001 + $0x2c] sm:$0xf]
    %v7014 = vld [vmem:[%s7001 + $0x30] sm:$0xf]
    %v7015 = vld [vmem:[%s7001 + $0x34] sm:$0xf]
    %v7016 = vld [vmem:[%s7001 + $0x38] sm:$0xf]
    %v7017 = vld [vmem:[%s7001 + $0x3c] sm:$0xf]
    %v7034 = vunpack.c.l.b16 %v7002
    %v7035 = vunpack.c.l.b16 %v7003
    %v7036 = vunpack.c.l.b16 %v7004
    %v7037 = vunpack.c.l.b16 %v7005
    %v7038 = vunpack.c.l.b16 %v7006
    %v7039 = vunpack.c.l.b16 %v7007
    %v7040 = vunpack.c.l.b16 %v7008
    %v7041 = vunpack.c.l.b16 %v7009
    %v7042 = vunpack.c.l.b16 %v7010
    %v7043 = vunpack.c.l.b16 %v7011
    %v7044 = vunpack.c.l.b16 %v7012
    %v7045 = vunpack.c.l.b16 %v7013
    %v7046 = vunpack.c.l.b16 %v7014
    %v7047 = vunpack.c.l.b16 %v7015
    %v7048 = vunpack.c.l.b16 %v7016
    %v7049 = vunpack.c.l.b16 %v7017
    %v7050 = vpack.c.b16 %v7035, %v7034
    %v7051 = vpack.c.b16 %v7037, %v7036
    %v7052 = vpack.c.b16 %v7039, %v7038
    %v7053 = vpack.c.b16 %v7041, %v7040
    %v7054 = vpack.c.b16 %v7043, %v7042
    %v7055 = vpack.c.b16 %v7045, %v7044
    %v7056 = vpack.c.b16 %v7047, %v7046
    %v7057 = vpack.c.b16 %v7049, %v7048
    %7066 = vmatprep.subr.bf16.mxu0 0
    %7067 = vmatpush1.bf16.msra.mxu0 %v7050
    %7068 = vmatprep.subr.bf16.mxu0 0
    %7069 = vmatpush1.bf16.msra.mxu0 %v7051
    %7070 = vmatprep.subr.bf16.mxu0 0
    %7071 = vmatpush1.bf16.msra.mxu0 %v7052
    %7072 = vmatprep.subr.bf16.mxu0 0
    %7073 = vmatpush1.bf16.msra.mxu0 %v7053
    %7074 = vmatprep.subr.bf16.mxu0 0
    %7075 = vmatpush1.bf16.msra.mxu0 %v7054
    %7076 = vmatprep.subr.bf16.mxu0 0
    %7077 = vmatpush1.bf16.msra.mxu0 %v7055
    %7078 = vmatprep.subr.bf16.mxu0 0
    %7079 = vmatpush1.bf16.msra.mxu0 %v7056
    %7080 = vmatprep.subr.bf16.mxu0 0
    %7081 = vmatpush1.bf16.msra.mxu0 %v7057
    %7082 = vmatprep.subr.bf16.mxu0 0
    %7083 = vmatpush1.bf16.msra.mxu0 0
    %7084 = vmatprep.subr.bf16.mxu0 0
    %7085 = vmatpush1.bf16.msra.mxu0 0
    %7086 = vmatprep.subr.bf16.mxu0 0
    %7087 = vmatpush1.bf16.msra.mxu0 0
    %7088 = vmatprep.subr.bf16.mxu0 0
    %7089 = vmatpush1.bf16.msra.mxu0 0
    %7090 = vmatprep.subr.bf16.mxu0 0
    %7091 = vmatpush1.bf16.msra.mxu0 0
    %7092 = vmatprep.subr.bf16.mxu0 0
    %7093 = vmatpush1.bf16.msra.mxu0 0
    %7094 = vmatprep.subr.bf16.mxu0 0
    %7095 = vmatpush1.bf16.msra.mxu0 0
    %7096 = vmatprep.subr.bf16.mxu0 0
    %7097 = vmatpush1.bf16.msra.mxu0 0
    %7098 = vmatprep.mubr.bf16.mxu0 0
    %7099 = vmatmul.mubr.bf16.gmra.mrb[0].mxu0 %v6155
    %v7100 = vpop.f32.mrb[0].mxu0
    %v7101 = vadd.f32 0.0, %v7100
    %v7102 = vpop.f32.mrb[0].mxu0
    %v7103 = vpop.f32.mrb[0].mxu0
    %v7104 = vpop.f32.mrb[0].mxu0
    %7105 = vdwg.mxu0
    %v7106 = vadd.f32 %v7000, %v7101
    %v7107 = vld [vmem:[%s10 + $0x2] sm:$0x1]
    %v7108 = vlaneseq
    %v7109 = vshrl.u32 %v7108, 7
    %v7110 = vsub.s32 0, %v7109
    %v7111 = vrot.slane %v7107, %v7110
    %v7112 = vadd.f32 %v7106, %v7111
    %v7113 = vpack.c.bf16 %v7112, %v7112
    %v7114 = vld [vmem:[%s5] sm:$0xf]
    %v7115 = vld [vmem:[%s5 + $0x4] sm:$0xf]
    %v7116 = vld [vmem:[%s5 + $0x8] sm:$0xf]
    %v7117 = vld [vmem:[%s5 + $0xc] sm:$0xf]
    %v7118 = vld [vmem:[%s5 + $0x10] sm:$0xf]
    %v7119 = vld [vmem:[%s5 + $0x14] sm:$0xf]
    %v7120 = vld [vmem:[%s5 + $0x18] sm:$0xf]
    %v7121 = vld [vmem:[%s5 + $0x1c] sm:$0xf]
    %v7122 = vld [vmem:[%s5 + $0x20] sm:$0xf]
    %v7123 = vld [vmem:[%s5 + $0x24] sm:$0xf]
    %v7124 = vld [vmem:[%s5 + $0x28] sm:$0xf]
    %v7125 = vld [vmem:[%s5 + $0x2c] sm:$0xf]
    %v7126 = vld [vmem:[%s5 + $0x30] sm:$0xf]
    %v7127 = vld [vmem:[%s5 + $0x34] sm:$0xf]
    %v7128 = vld [vmem:[%s5 + $0x38] sm:$0xf]
    %v7129 = vld [vmem:[%s5 + $0x3c] sm:$0xf]
    %s7130 = scalar_lea.vmem %s5, 64
    %v7131 = vld [vmem:[%s7130] sm:$0xf]
    %v7132 = vld [vmem:[%s7130 + $0x4] sm:$0xf]
    %v7133 = vld [vmem:[%s7130 + $0x8] sm:$0xf]
    %v7134 = vld [vmem:[%s7130 + $0xc] sm:$0xf]
    %v7135 = vld [vmem:[%s7130 + $0x10] sm:$0xf]
    %v7136 = vld [vmem:[%s7130 + $0x14] sm:$0xf]
    %v7137 = vld [vmem:[%s7130 + $0x18] sm:$0xf]
    %v7138 = vld [vmem:[%s7130 + $0x1c] sm:$0xf]
    %v7139 = vld [vmem:[%s7130 + $0x20] sm:$0xf]
    %v7140 = vld [vmem:[%s7130 + $0x24] sm:$0xf]
    %v7141 = vld [vmem:[%s7130 + $0x28] sm:$0xf]
    %v7142 = vld [vmem:[%s7130 + $0x2c] sm:$0xf]
    %v7143 = vld [vmem:[%s7130 + $0x30] sm:$0xf]
    %v7144 = vld [vmem:[%s7130 + $0x34] sm:$0xf]
    %v7145 = vld [vmem:[%s7130 + $0x38] sm:$0xf]
    %v7146 = vld [vmem:[%s7130 + $0x3c] sm:$0xf]
    %v7148 = vrot.slane %v7113, 1
    %v7166 = vunpack.c.l.b16 %v7131
    %v7167 = vunpack.c.l.b16 %v7132
    %v7168 = vunpack.c.l.b16 %v7133
    %v7169 = vunpack.c.l.b16 %v7134
    %v7170 = vunpack.c.l.b16 %v7135
    %v7171 = vunpack.c.l.b16 %v7136
    %v7172 = vunpack.c.l.b16 %v7137
    %v7173 = vunpack.c.l.b16 %v7138
    %v7174 = vunpack.c.l.b16 %v7139
    %v7175 = vunpack.c.l.b16 %v7140
    %v7176 = vunpack.c.l.b16 %v7141
    %v7177 = vunpack.c.l.b16 %v7142
    %v7178 = vunpack.c.l.b16 %v7143
    %v7179 = vunpack.c.l.b16 %v7144
    %v7180 = vunpack.c.l.b16 %v7145
    %v7181 = vunpack.c.l.b16 %v7146
    %v7182 = vpack.c.b16 %v7167, %v7166
    %v7183 = vpack.c.b16 %v7169, %v7168
    %v7184 = vpack.c.b16 %v7171, %v7170
    %v7185 = vpack.c.b16 %v7173, %v7172
    %v7186 = vpack.c.b16 %v7175, %v7174
    %v7187 = vpack.c.b16 %v7177, %v7176
    %v7188 = vpack.c.b16 %v7179, %v7178
    %v7189 = vpack.c.b16 %v7181, %v7180
    %7198 = vmatprep.subr.bf16.mxu0 0
    %7199 = vmatpush1.bf16.msra.mxu0 %v7182
    %7200 = vmatprep.subr.bf16.mxu0 0
    %7201 = vmatpush1.bf16.msra.mxu0 %v7183
    %7202 = vmatprep.subr.bf16.mxu0 0
    %7203 = vmatpush1.bf16.msra.mxu0 %v7184
    %7204 = vmatprep.subr.bf16.mxu0 0
    %7205 = vmatpush1.bf16.msra.mxu0 %v7185
    %7206 = vmatprep.subr.bf16.mxu0 0
    %7207 = vmatpush1.bf16.msra.mxu0 %v7186
    %7208 = vmatprep.subr.bf16.mxu0 0
    %7209 = vmatpush1.bf16.msra.mxu0 %v7187
    %7210 = vmatprep.subr.bf16.mxu0 0
    %7211 = vmatpush1.bf16.msra.mxu0 %v7188
    %7212 = vmatprep.subr.bf16.mxu0 0
    %7213 = vmatpush1.bf16.msra.mxu0 %v7189
    %7214 = vmatprep.subr.bf16.mxu0 0
    %7215 = vmatpush1.bf16.msra.mxu0 0
    %7216 = vmatprep.subr.bf16.mxu0 0
    %7217 = vmatpush1.bf16.msra.mxu0 0
    %7218 = vmatprep.subr.bf16.mxu0 0
    %7219 = vmatpush1.bf16.msra.mxu0 0
    %7220 = vmatprep.subr.bf16.mxu0 0
    %7221 = vmatpush1.bf16.msra.mxu0 0
    %7222 = vmatprep.subr.bf16.mxu0 0
    %7223 = vmatpush1.bf16.msra.mxu0 0
    %7224 = vmatprep.subr.bf16.mxu0 0
    %7225 = vmatpush1.bf16.msra.mxu0 0
    %7226 = vmatprep.subr.bf16.mxu0 0
    %7227 = vmatpush1.bf16.msra.mxu0 0
    %7228 = vmatprep.subr.bf16.mxu0 0
    %7229 = vmatpush1.bf16.msra.mxu0 0
    %7230 = vmatprep.mubr.bf16.mxu0 0
    %7231 = vmatmul.mubr.bf16.gmra.mrb[0].mxu0 %v7148
    %v7232 = vpop.f32.mrb[0].mxu0
    %v7233 = vadd.f32 0.0, %v7232
    %v7234 = vpop.f32.mrb[0].mxu0
    %v7235 = vpop.f32.mrb[0].mxu0
    %v7236 = vpop.f32.mrb[0].mxu0
    %7237 = vdwg.mxu0
    %v7254 = vunpack.c.l.b16 %v7114
    %v7255 = vunpack.c.l.b16 %v7115
    %v7256 = vunpack.c.l.b16 %v7116
    %v7257 = vunpack.c.l.b16 %v7117
    %v7258 = vunpack.c.l.b16 %v7118
    %v7259 = vunpack.c.l.b16 %v7119
    %v7260 = vunpack.c.l.b16 %v7120
    %v7261 = vunpack.c.l.b16 %v7121
    %v7262 = vunpack.c.l.b16 %v7122
    %v7263 = vunpack.c.l.b16 %v7123
    %v7264 = vunpack.c.l.b16 %v7124
    %v7265 = vunpack.c.l.b16 %v7125
    %v7266 = vunpack.c.l.b16 %v7126
    %v7267 = vunpack.c.l.b16 %v7127
    %v7268 = vunpack.c.l.b16 %v7128
    %v7269 = vunpack.c.l.b16 %v7129
    %v7270 = vpack.c.b16 %v7255, %v7254
    %v7271 = vpack.c.b16 %v7257, %v7256
    %v7272 = vpack.c.b16 %v7259, %v7258
    %v7273 = vpack.c.b16 %v7261, %v7260
    %v7274 = vpack.c.b16 %v7263, %v7262
    %v7275 = vpack.c.b16 %v7265, %v7264
    %v7276 = vpack.c.b16 %v7267, %v7266
    %v7277 = vpack.c.b16 %v7269, %v7268
    %7286 = vmatprep.subr.bf16.mxu0 0
    %7287 = vmatpush1.bf16.msra.mxu0 %v7270
    %7288 = vmatprep.subr.bf16.mxu0 0
    %7289 = vmatpush1.bf16.msra.mxu0 %v7271
    %7290 = vmatprep.subr.bf16.mxu0 0
    %7291 = vmatpush1.bf16.msra.mxu0 %v7272
    %7292 = vmatprep.subr.bf16.mxu0 0
    %7293 = vmatpush1.bf16.msra.mxu0 %v7273
    %7294 = vmatprep.subr.bf16.mxu0 0
    %7295 = vmatpush1.bf16.msra.mxu0 %v7274
    %7296 = vmatprep.subr.bf16.mxu0 0
    %7297 = vmatpush1.bf16.msra.mxu0 %v7275
    %7298 = vmatprep.subr.bf16.mxu0 0
    %7299 = vmatpush1.bf16.msra.mxu0 %v7276
    %7300 = vmatprep.subr.bf16.mxu0 0
    %7301 = vmatpush1.bf16.msra.mxu0 %v7277
    %7302 = vmatprep.subr.bf16.mxu0 0
    %7303 = vmatpush1.bf16.msra.mxu0 0
    %7304 = vmatprep.subr.bf16.mxu0 0
    %7305 = vmatpush1.bf16.msra.mxu0 0
    %7306 = vmatprep.subr.bf16.mxu0 0
    %7307 = vmatpush1.bf16.msra.mxu0 0
    %7308 = vmatprep.subr.bf16.mxu0 0
    %7309 = vmatpush1.bf16.msra.mxu0 0
    %7310 = vmatprep.subr.bf16.mxu0 0
    %7311 = vmatpush1.bf16.msra.mxu0 0
    %7312 = vmatprep.subr.bf16.mxu0 0
    %7313 = vmatpush1.bf16.msra.mxu0 0
    %7314 = vmatprep.subr.bf16.mxu0 0
    %7315 = vmatpush1.bf16.msra.mxu0 0
    %7316 = vmatprep.subr.bf16.mxu0 0
    %7317 = vmatpush1.bf16.msra.mxu0 0
    %7318 = vmatprep.mubr.bf16.mxu0 0
    %7319 = vmatmul.mubr.bf16.gmra.mrb[0].mxu0 %v7113
    %v7320 = vpop.f32.mrb[0].mxu0
    %v7321 = vadd.f32 %v7233, %v7320
    %v7322 = vpop.f32.mrb[0].mxu0
    %v7323 = vpop.f32.mrb[0].mxu0
    %v7324 = vpop.f32.mrb[0].mxu0
    %7325 = vdwg.mxu0
    %s7326 = scalar_lea.vmem %s5, 128
    %v7327 = vld [vmem:[%s7326] sm:$0xf]
    %v7328 = vld [vmem:[%s7326 + $0x4] sm:$0xf]
    %v7329 = vld [vmem:[%s7326 + $0x8] sm:$0xf]
    %v7330 = vld [vmem:[%s7326 + $0xc] sm:$0xf]
    %v7331 = vld [vmem:[%s7326 + $0x10] sm:$0xf]
    %v7332 = vld [vmem:[%s7326 + $0x14] sm:$0xf]
    %v7333 = vld [vmem:[%s7326 + $0x18] sm:$0xf]
    %v7334 = vld [vmem:[%s7326 + $0x1c] sm:$0xf]
    %v7335 = vld [vmem:[%s7326 + $0x20] sm:$0xf]
    %v7336 = vld [vmem:[%s7326 + $0x24] sm:$0xf]
    %v7337 = vld [vmem:[%s7326 + $0x28] sm:$0xf]
    %v7338 = vld [vmem:[%s7326 + $0x2c] sm:$0xf]
    %v7339 = vld [vmem:[%s7326 + $0x30] sm:$0xf]
    %v7340 = vld [vmem:[%s7326 + $0x34] sm:$0xf]
    %v7341 = vld [vmem:[%s7326 + $0x38] sm:$0xf]
    %v7342 = vld [vmem:[%s7326 + $0x3c] sm:$0xf]
    %v7343 = vrot.slane %v7113, 2
    %v7361 = vunpack.c.l.b16 %v7327
    %v7362 = vunpack.c.l.b16 %v7328
    %v7363 = vunpack.c.l.b16 %v7329
    %v7364 = vunpack.c.l.b16 %v7330
    %v7365 = vunpack.c.l.b16 %v7331
    %v7366 = vunpack.c.l.b16 %v7332
    %v7367 = vunpack.c.l.b16 %v7333
    %v7368 = vunpack.c.l.b16 %v7334
    %v7369 = vunpack.c.l.b16 %v7335
    %v7370 = vunpack.c.l.b16 %v7336
    %v7371 = vunpack.c.l.b16 %v7337
    %v7372 = vunpack.c.l.b16 %v7338
    %v7373 = vunpack.c.l.b16 %v7339
    %v7374 = vunpack.c.l.b16 %v7340
    %v7375 = vunpack.c.l.b16 %v7341
    %v7376 = vunpack.c.l.b16 %v7342
    %v7377 = vpack.c.b16 %v7362, %v7361
    %v7378 = vpack.c.b16 %v7364, %v7363
    %v7379 = vpack.c.b16 %v7366, %v7365
    %v7380 = vpack.c.b16 %v7368, %v7367
    %v7381 = vpack.c.b16 %v7370, %v7369
    %v7382 = vpack.c.b16 %v7372, %v7371
    %v7383 = vpack.c.b16 %v7374, %v7373
    %v7384 = vpack.c.b16 %v7376, %v7375
    %7393 = vmatprep.subr.bf16.mxu0 0
    %7394 = vmatpush1.bf16.msra.mxu0 %v7377
    %7395 = vmatprep.subr.bf16.mxu0 0
    %7396 = vmatpush1.bf16.msra.mxu0 %v7378
    %7397 = vmatprep.subr.bf16.mxu0 0
    %7398 = vmatpush1.bf16.msra.mxu0 %v7379
    %7399 = vmatprep.subr.bf16.mxu0 0
    %7400 = vmatpush1.bf16.msra.mxu0 %v7380
    %7401 = vmatprep.subr.bf16.mxu0 0
    %7402 = vmatpush1.bf16.msra.mxu0 %v7381
    %7403 = vmatprep.subr.bf16.mxu0 0
    %7404 = vmatpush1.bf16.msra.mxu0 %v7382
    %7405 = vmatprep.subr.bf16.mxu0 0
    %7406 = vmatpush1.bf16.msra.mxu0 %v7383
    %7407 = vmatprep.subr.bf16.mxu0 0
    %7408 = vmatpush1.bf16.msra.mxu0 %v7384
    %7409 = vmatprep.subr.bf16.mxu0 0
    %7410 = vmatpush1.bf16.msra.mxu0 0
    %7411 = vmatprep.subr.bf16.mxu0 0
    %7412 = vmatpush1.bf16.msra.mxu0 0
    %7413 = vmatprep.subr.bf16.mxu0 0
    %7414 = vmatpush1.bf16.msra.mxu0 0
    %7415 = vmatprep.subr.bf16.mxu0 0
    %7416 = vmatpush1.bf16.msra.mxu0 0
    %7417 = vmatprep.subr.bf16.mxu0 0
    %7418 = vmatpush1.bf16.msra.mxu0 0
    %7419 = vmatprep.subr.bf16.mxu0 0
    %7420 = vmatpush1.bf16.msra.mxu0 0
    %7421 = vmatprep.subr.bf16.mxu0 0
    %7422 = vmatpush1.bf16.msra.mxu0 0
    %7423 = vmatprep.subr.bf16.mxu0 0
    %7424 = vmatpush1.bf16.msra.mxu0 0
    %7425 = vmatprep.mubr.bf16.mxu0 0
    %7426 = vmatmul.mubr.bf16.gmra.mrb[0].mxu0 %v7343
    %v7427 = vpop.f32.mrb[0].mxu0
    %v7428 = vadd.f32 0.0, %v7427
    %v7429 = vpop.f32.mrb[0].mxu0
    %v7430 = vpop.f32.mrb[0].mxu0
    %v7431 = vpop.f32.mrb[0].mxu0
    %7432 = vdwg.mxu0
    %v7433 = vadd.f32 %v7321, %v7428
    %s7434 = scalar_lea.vmem %s5, 192
    %v7435 = vld [vmem:[%s7434] sm:$0xf]
    %v7436 = vld [vmem:[%s7434 + $0x4] sm:$0xf]
    %v7437 = vld [vmem:[%s7434 + $0x8] sm:$0xf]
    %v7438 = vld [vmem:[%s7434 + $0xc] sm:$0xf]
    %v7439 = vld [vmem:[%s7434 + $0x10] sm:$0xf]
    %v7440 = vld [vmem:[%s7434 + $0x14] sm:$0xf]
    %v7441 = vld [vmem:[%s7434 + $0x18] sm:$0xf]
    %v7442 = vld [vmem:[%s7434 + $0x1c] sm:$0xf]
    %v7443 = vld [vmem:[%s7434 + $0x20] sm:$0xf]
    %v7444 = vld [vmem:[%s7434 + $0x24] sm:$0xf]
    %v7445 = vld [vmem:[%s7434 + $0x28] sm:$0xf]
    %v7446 = vld [vmem:[%s7434 + $0x2c] sm:$0xf]
    %v7447 = vld [vmem:[%s7434 + $0x30] sm:$0xf]
    %v7448 = vld [vmem:[%s7434 + $0x34] sm:$0xf]
    %v7449 = vld [vmem:[%s7434 + $0x38] sm:$0xf]
    %v7450 = vld [vmem:[%s7434 + $0x3c] sm:$0xf]
    %v7451 = vrot.slane %v7113, 3
    %v7469 = vunpack.c.l.b16 %v7435
    %v7470 = vunpack.c.l.b16 %v7436
    %v7471 = vunpack.c.l.b16 %v7437
    %v7472 = vunpack.c.l.b16 %v7438
    %v7473 = vunpack.c.l.b16 %v7439
    %v7474 = vunpack.c.l.b16 %v7440
    %v7475 = vunpack.c.l.b16 %v7441
    %v7476 = vunpack.c.l.b16 %v7442
    %v7477 = vunpack.c.l.b16 %v7443
    %v7478 = vunpack.c.l.b16 %v7444
    %v7479 = vunpack.c.l.b16 %v7445
    %v7480 = vunpack.c.l.b16 %v7446
    %v7481 = vunpack.c.l.b16 %v7447
    %v7482 = vunpack.c.l.b16 %v7448
    %v7483 = vunpack.c.l.b16 %v7449
    %v7484 = vunpack.c.l.b16 %v7450
    %v7485 = vpack.c.b16 %v7470, %v7469
    %v7486 = vpack.c.b16 %v7472, %v7471
    %v7487 = vpack.c.b16 %v7474, %v7473
    %v7488 = vpack.c.b16 %v7476, %v7475
    %v7489 = vpack.c.b16 %v7478, %v7477
    %v7490 = vpack.c.b16 %v7480, %v7479
    %v7491 = vpack.c.b16 %v7482, %v7481
    %v7492 = vpack.c.b16 %v7484, %v7483
    %7501 = vmatprep.subr.bf16.mxu0 0
    %7502 = vmatpush1.bf16.msra.mxu0 %v7485
    %7503 = vmatprep.subr.bf16.mxu0 0
    %7504 = vmatpush1.bf16.msra.mxu0 %v7486
    %7505 = vmatprep.subr.bf16.mxu0 0
    %7506 = vmatpush1.bf16.msra.mxu0 %v7487
    %7507 = vmatprep.subr.bf16.mxu0 0
    %7508 = vmatpush1.bf16.msra.mxu0 %v7488
    %7509 = vmatprep.subr.bf16.mxu0 0
    %7510 = vmatpush1.bf16.msra.mxu0 %v7489
    %7511 = vmatprep.subr.bf16.mxu0 0
    %7512 = vmatpush1.bf16.msra.mxu0 %v7490
    %7513 = vmatprep.subr.bf16.mxu0 0
    %7514 = vmatpush1.bf16.msra.mxu0 %v7491
    %7515 = vmatprep.subr.bf16.mxu0 0
    %7516 = vmatpush1.bf16.msra.mxu0 %v7492
    %7517 = vmatprep.subr.bf16.mxu0 0
    %7518 = vmatpush1.bf16.msra.mxu0 0
    %7519 = vmatprep.subr.bf16.mxu0 0
    %7520 = vmatpush1.bf16.msra.mxu0 0
    %7521 = vmatprep.subr.bf16.mxu0 0
    %7522 = vmatpush1.bf16.msra.mxu0 0
    %7523 = vmatprep.subr.bf16.mxu0 0
    %7524 = vmatpush1.bf16.msra.mxu0 0
    %7525 = vmatprep.subr.bf16.mxu0 0
    %7526 = vmatpush1.bf16.msra.mxu0 0
    %7527 = vmatprep.subr.bf16.mxu0 0
    %7528 = vmatpush1.bf16.msra.mxu0 0
    %7529 = vmatprep.subr.bf16.mxu0 0
    %7530 = vmatpush1.bf16.msra.mxu0 0
    %7531 = vmatprep.subr.bf16.mxu0 0
    %7532 = vmatpush1.bf16.msra.mxu0 0
    %7533 = vmatprep.mubr.bf16.mxu0 0
    %7534 = vmatmul.mubr.bf16.gmra.mrb[0].mxu0 %v7451
    %v7535 = vpop.f32.mrb[0].mxu0
    %v7536 = vadd.f32 0.0, %v7535
    %v7537 = vpop.f32.mrb[0].mxu0
    %v7538 = vpop.f32.mrb[0].mxu0
    %v7539 = vpop.f32.mrb[0].mxu0
    %7540 = vdwg.mxu0
    %v7541 = vadd.f32 %v7433, %v7536
    %v7542 = vld [vmem:[%s10 + $0x3] sm:$0x1]
    %v7543 = vlaneseq
    %v7544 = vshrl.u32 %v7543, 7
    %v7545 = vsub.s32 0, %v7544
    %v7546 = vrot.slane %v7542, %v7545
    %v7547 = vadd.f32 %v7541, %v7546
    %v7548 = vmax.f32 %v7547, 0.0
    %v7549 = vpack.c.bf16 %v7548, %v7548
    %v7550 = vld [vmem:[%s6] sm:$0xf]
    %v7551 = vld [vmem:[%s6 + $0x4] sm:$0xf]
    %v7552 = vld [vmem:[%s6 + $0x8] sm:$0xf]
    %v7553 = vld [vmem:[%s6 + $0xc] sm:$0xf]
    %v7554 = vld [vmem:[%s6 + $0x10] sm:$0xf]
    %v7555 = vld [vmem:[%s6 + $0x14] sm:$0xf]
    %v7556 = vld [vmem:[%s6 + $0x18] sm:$0xf]
    %v7557 = vld [vmem:[%s6 + $0x1c] sm:$0xf]
    %v7558 = vld [vmem:[%s6 + $0x20] sm:$0xf]
    %v7559 = vld [vmem:[%s6 + $0x24] sm:$0xf]
    %v7560 = vld [vmem:[%s6 + $0x28] sm:$0xf]
    %v7561 = vld [vmem:[%s6 + $0x2c] sm:$0xf]
    %v7562 = vld [vmem:[%s6 + $0x30] sm:$0xf]
    %v7563 = vld [vmem:[%s6 + $0x34] sm:$0xf]
    %v7564 = vld [vmem:[%s6 + $0x38] sm:$0xf]
    %v7565 = vld [vmem:[%s6 + $0x3c] sm:$0xf]
    %v7566 = vld [vmem:[%s1] sm:$0x1]
    %v7567 = vld [vmem:[%s7] sm:$0xf]
    %v7568 = vld [vmem:[%s7 + $0x4] sm:$0xf]
    %v7569 = vld [vmem:[%s7 + $0x8] sm:$0xf]
    %v7570 = vld [vmem:[%s7 + $0xc] sm:$0xf]
    %v7571 = vld [vmem:[%s7 + $0x10] sm:$0xf]
    %v7572 = vld [vmem:[%s7 + $0x14] sm:$0xf]
    %v7573 = vld [vmem:[%s7 + $0x18] sm:$0xf]
    %v7574 = vld [vmem:[%s7 + $0x1c] sm:$0xf]
    %v7575 = vld [vmem:[%s7 + $0x20] sm:$0xf]
    %v7576 = vld [vmem:[%s7 + $0x24] sm:$0xf]
    %v7577 = vld [vmem:[%s7 + $0x28] sm:$0xf]
    %v7578 = vld [vmem:[%s7 + $0x2c] sm:$0xf]
    %v7579 = vld [vmem:[%s7 + $0x30] sm:$0xf]
    %v7580 = vld [vmem:[%s7 + $0x34] sm:$0xf]
    %v7581 = vld [vmem:[%s7 + $0x38] sm:$0xf]
    %v7582 = vld [vmem:[%s7 + $0x3c] sm:$0xf]
    %v7599 = vunpack.c.l.b16 %v7567
    %v7600 = vunpack.c.l.b16 %v7568
    %v7601 = vunpack.c.l.b16 %v7569
    %v7602 = vunpack.c.l.b16 %v7570
    %v7603 = vunpack.c.l.b16 %v7571
    %v7604 = vunpack.c.l.b16 %v7572
    %v7605 = vunpack.c.l.b16 %v7573
    %v7606 = vunpack.c.l.b16 %v7574
    %v7607 = vunpack.c.l.b16 %v7575
    %v7608 = vunpack.c.l.b16 %v7576
    %v7609 = vunpack.c.l.b16 %v7577
    %v7610 = vunpack.c.l.b16 %v7578
    %v7611 = vunpack.c.l.b16 %v7579
    %v7612 = vunpack.c.l.b16 %v7580
    %v7613 = vunpack.c.l.b16 %v7581
    %v7614 = vunpack.c.l.b16 %v7582
    %v7615 = vpack.c.b16 %v7600, %v7599
    %v7616 = vpack.c.b16 %v7602, %v7601
    %v7617 = vpack.c.b16 %v7604, %v7603
    %v7618 = vpack.c.b16 %v7606, %v7605
    %v7619 = vpack.c.b16 %v7608, %v7607
    %v7620 = vpack.c.b16 %v7610, %v7609
    %v7621 = vpack.c.b16 %v7612, %v7611
    %v7622 = vpack.c.b16 %v7614, %v7613
    %7631 = vmatprep.subr.bf16.mxu0 0
    %7632 = vmatpush1.bf16.msra.mxu0 %v7615
    %7633 = vmatprep.subr.bf16.mxu0 0
    %7634 = vmatpush1.bf16.msra.mxu0 %v7616
    %7635 = vmatprep.subr.bf16.mxu0 0
    %7636 = vmatpush1.bf16.msra.mxu0 %v7617
    %7637 = vmatprep.subr.bf16.mxu0 0
    %7638 = vmatpush1.bf16.msra.mxu0 %v7618
    %7639 = vmatprep.subr.bf16.mxu0 0
    %7640 = vmatpush1.bf16.msra.mxu0 %v7619
    %7641 = vmatprep.subr.bf16.mxu0 0
    %7642 = vmatpush1.bf16.msra.mxu0 %v7620
    %7643 = vmatprep.subr.bf16.mxu0 0
    %7644 = vmatpush1.bf16.msra.mxu0 %v7621
    %7645 = vmatprep.subr.bf16.mxu0 0
    %7646 = vmatpush1.bf16.msra.mxu0 %v7622
    %7647 = vmatprep.subr.bf16.mxu0 0
    %7648 = vmatpush1.bf16.msra.mxu0 0
    %7649 = vmatprep.subr.bf16.mxu0 0
    %7650 = vmatpush1.bf16.msra.mxu0 0
    %7651 = vmatprep.subr.bf16.mxu0 0
    %7652 = vmatpush1.bf16.msra.mxu0 0
    %7653 = vmatprep.subr.bf16.mxu0 0
    %7654 = vmatpush1.bf16.msra.mxu0 0
    %7655 = vmatprep.subr.bf16.mxu0 0
    %7656 = vmatpush1.bf16.msra.mxu0 0
    %7657 = vmatprep.subr.bf16.mxu0 0
    %7658 = vmatpush1.bf16.msra.mxu0 0
    %7659 = vmatprep.subr.bf16.mxu0 0
    %7660 = vmatpush1.bf16.msra.mxu0 0
    %7661 = vmatprep.subr.bf16.mxu0 0
    %7662 = vmatpush1.bf16.msra.mxu0 0
    %7663 = vmatprep.mubr.bf16.mxu0 0
    %7664 = vmatmul.mubr.bf16.gmra.mrb[0].mxu0 %v7566
    %v7665 = vpop.f32.mrb[0].mxu0
    %v7666 = vadd.f32 0.0, %v7665
    %v7667 = vpop.f32.mrb[0].mxu0
    %v7668 = vpop.f32.mrb[0].mxu0
    %v7669 = vpop.f32.mrb[0].mxu0
    %7670 = vdwg.mxu0
    %v7687 = vunpack.c.l.b16 %v7550
    %v7688 = vunpack.c.l.b16 %v7551
    %v7689 = vunpack.c.l.b16 %v7552
    %v7690 = vunpack.c.l.b16 %v7553
    %v7691 = vunpack.c.l.b16 %v7554
    %v7692 = vunpack.c.l.b16 %v7555
    %v7693 = vunpack.c.l.b16 %v7556
    %v7694 = vunpack.c.l.b16 %v7557
    %v7695 = vunpack.c.l.b16 %v7558
    %v7696 = vunpack.c.l.b16 %v7559
    %v7697 = vunpack.c.l.b16 %v7560
    %v7698 = vunpack.c.l.b16 %v7561
    %v7699 = vunpack.c.l.b16 %v7562
    %v7700 = vunpack.c.l.b16 %v7563
    %v7701 = vunpack.c.l.b16 %v7564
    %v7702 = vunpack.c.l.b16 %v7565
    %v7703 = vpack.c.b16 %v7688, %v7687
    %v7704 = vpack.c.b16 %v7690, %v7689
    %v7705 = vpack.c.b16 %v7692, %v7691
    %v7706 = vpack.c.b16 %v7694, %v7693
    %v7707 = vpack.c.b16 %v7696, %v7695
    %v7708 = vpack.c.b16 %v7698, %v7697
    %v7709 = vpack.c.b16 %v7700, %v7699
    %v7710 = vpack.c.b16 %v7702, %v7701
    %7719 = vmatprep.subr.bf16.mxu0 0
    %7720 = vmatpush1.bf16.msra.mxu0 %v7703
    %7721 = vmatprep.subr.bf16.mxu0 0
    %7722 = vmatpush1.bf16.msra.mxu0 %v7704
    %7723 = vmatprep.subr.bf16.mxu0 0
    %7724 = vmatpush1.bf16.msra.mxu0 %v7705
    %7725 = vmatprep.subr.bf16.mxu0 0
    %7726 = vmatpush1.bf16.msra.mxu0 %v7706
    %7727 = vmatprep.subr.bf16.mxu0 0
    %7728 = vmatpush1.bf16.msra.mxu0 %v7707
    %7729 = vmatprep.subr.bf16.mxu0 0
    %7730 = vmatpush1.bf16.msra.mxu0 %v7708
    %7731 = vmatprep.subr.bf16.mxu0 0
    %7732 = vmatpush1.bf16.msra.mxu0 %v7709
    %7733 = vmatprep.subr.bf16.mxu0 0
    %7734 = vmatpush1.bf16.msra.mxu0 %v7710
    %7735 = vmatprep.subr.bf16.mxu0 0
    %7736 = vmatpush1.bf16.msra.mxu0 0
    %7737 = vmatprep.subr.bf16.mxu0 0
    %7738 = vmatpush1.bf16.msra.mxu0 0
    %7739 = vmatprep.subr.bf16.mxu0 0
    %7740 = vmatpush1.bf16.msra.mxu0 0
    %7741 = vmatprep.subr.bf16.mxu0 0
    %7742 = vmatpush1.bf16.msra.mxu0 0
    %7743 = vmatprep.subr.bf16.mxu0 0
    %7744 = vmatpush1.bf16.msra.mxu0 0
    %7745 = vmatprep.subr.bf16.mxu0 0
    %7746 = vmatpush1.bf16.msra.mxu0 0
    %7747 = vmatprep.subr.bf16.mxu0 0
    %7748 = vmatpush1.bf16.msra.mxu0 0
    %7749 = vmatprep.subr.bf16.mxu0 0
    %7750 = vmatpush1.bf16.msra.mxu0 0
    %7751 = vmatprep.mubr.bf16.mxu0 0
    %7752 = vmatmul.mubr.bf16.gmra.mrb[0].mxu0 %v7549
    %v7753 = vpop.f32.mrb[0].mxu0
    %v7754 = vadd.f32 %v7666, %v7753
    %v7755 = vpop.f32.mrb[0].mxu0
    %v7756 = vpop.f32.mrb[0].mxu0
    %v7757 = vpop.f32.mrb[0].mxu0
    %7758 = vdwg.mxu0
    %v7759 = vld [vmem:[%s10 + $0x4] sm:$0x1]
    %v7760 = vlaneseq
    %v7761 = vshrl.u32 %v7760, 7
    %v7762 = vsub.s32 0, %v7761
    %v7763 = vrot.slane %v7759, %v7762
    %v7764 = vadd.f32 %v7754, %v7763
    %v7765 = vmax.f32 %v7764, 0.0
    %v7766 = vpack.c.bf16 %v7765, %v7765
    %v7767 = vld [vmem:[%s8] sm:$0xf]
    %v7768 = vld [vmem:[%s8 + $0x4] sm:$0xf]
    %v7769 = vld [vmem:[%s8 + $0x8] sm:$0xf]
    %v7770 = vld [vmem:[%s8 + $0xc] sm:$0xf]
    %v7771 = vld [vmem:[%s8 + $0x10] sm:$0xf]
    %v7772 = vld [vmem:[%s8 + $0x14] sm:$0xf]
    %v7773 = vld [vmem:[%s8 + $0x18] sm:$0xf]
    %v7774 = vld [vmem:[%s8 + $0x1c] sm:$0xf]
    %v7775 = vld [vmem:[%s8 + $0x20] sm:$0xf]
    %v7776 = vld [vmem:[%s8 + $0x24] sm:$0xf]
    %v7777 = vld [vmem:[%s8 + $0x28] sm:$0xf]
    %v7778 = vld [vmem:[%s8 + $0x2c] sm:$0xf]
    %v7779 = vld [vmem:[%s8 + $0x30] sm:$0xf]
    %v7780 = vld [vmem:[%s8 + $0x34] sm:$0xf]
    %v7781 = vld [vmem:[%s8 + $0x38] sm:$0xf]
    %v7782 = vld [vmem:[%s8 + $0x3c] sm:$0xf]
    %v7783 = vld [vmem:[%s10 + $0x6] sm:$0x1]
    %v7784 = vlaneseq
    %v7785 = vshrl.u32 %v7784, 7
    %v7786 = vsub.s32 0, %v7785
    %v7787 = vrot.slane %v7783, %v7786
    %v7804 = vunpack.c.l.b16 %v7767
    %v7805 = vunpack.c.l.b16 %v7768
    %v7806 = vunpack.c.l.b16 %v7769
    %v7807 = vunpack.c.l.b16 %v7770
    %v7808 = vunpack.c.l.b16 %v7771
    %v7809 = vunpack.c.l.b16 %v7772
    %v7810 = vunpack.c.l.b16 %v7773
    %v7811 = vunpack.c.l.b16 %v7774
    %v7812 = vunpack.c.l.b16 %v7775
    %v7813 = vunpack.c.l.b16 %v7776
    %v7814 = vunpack.c.l.b16 %v7777
    %v7815 = vunpack.c.l.b16 %v7778
    %v7816 = vunpack.c.l.b16 %v7779
    %v7817 = vunpack.c.l.b16 %v7780
    %v7818 = vunpack.c.l.b16 %v7781
    %v7819 = vunpack.c.l.b16 %v7782
    %v7820 = vpack.c.b16 %v7805, %v7804
    %v7821 = vpack.c.b16 %v7807, %v7806
    %v7822 = vpack.c.b16 %v7809, %v7808
    %v7823 = vpack.c.b16 %v7811, %v7810
    %v7824 = vpack.c.b16 %v7813, %v7812
    %v7825 = vpack.c.b16 %v7815, %v7814
    %v7826 = vpack.c.b16 %v7817, %v7816
    %v7827 = vpack.c.b16 %v7819, %v7818
    %7836 = vmatprep.subr.bf16.mxu0 0
    %7837 = vmatpush1.bf16.msra.mxu0 %v7820
    %7838 = vmatprep.subr.bf16.mxu0 0
    %7839 = vmatpush1.bf16.msra.mxu0 %v7821
    %7840 = vmatprep.subr.bf16.mxu0 0
    %7841 = vmatpush1.bf16.msra.mxu0 %v7822
    %7842 = vmatprep.subr.bf16.mxu0 0
    %7843 = vmatpush1.bf16.msra.mxu0 %v7823
    %7844 = vmatprep.subr.bf16.mxu0 0
    %7845 = vmatpush1.bf16.msra.mxu0 %v7824
    %7846 = vmatprep.subr.bf16.mxu0 0
    %7847 = vmatpush1.bf16.msra.mxu0 %v7825
    %7848 = vmatprep.subr.bf16.mxu0 0
    %7849 = vmatpush1.bf16.msra.mxu0 %v7826
    %7850 = vmatprep.subr.bf16.mxu0 0
    %7851 = vmatpush1.bf16.msra.mxu0 %v7827
    %7852 = vmatprep.subr.bf16.mxu0 0
    %7853 = vmatpush1.bf16.msra.mxu0 0
    %7854 = vmatprep.subr.bf16.mxu0 0
    %7855 = vmatpush1.bf16.msra.mxu0 0
    %7856 = vmatprep.subr.bf16.mxu0 0
    %7857 = vmatpush1.bf16.msra.mxu0 0
    %7858 = vmatprep.subr.bf16.mxu0 0
    %7859 = vmatpush1.bf16.msra.mxu0 0
    %7860 = vmatprep.subr.bf16.mxu0 0
    %7861 = vmatpush1.bf16.msra.mxu0 0
    %7862 = vmatprep.subr.bf16.mxu0 0
    %7863 = vmatpush1.bf16.msra.mxu0 0
    %7864 = vmatprep.subr.bf16.mxu0 0
    %7865 = vmatpush1.bf16.msra.mxu0 0
    %7866 = vmatprep.subr.bf16.mxu0 0
    %7867 = vmatpush1.bf16.msra.mxu0 0
    %7868 = vmatprep.mubr.bf16.mxu0 0
    %7869 = vmatmul.mubr.bf16.gmra.mrb[0].mxu0 %v7766
    %v7870 = vpop.f32.mrb[0].mxu0
    %v7871 = vadd.f32 %v7787, %v7870
    %v7872 = vpop.f32.mrb[0].mxu0
    %v7873 = vpop.f32.mrb[0].mxu0
    %v7874 = vpop.f32.mrb[0].mxu0
    %7875 = vdwg.mxu0
    %v7876 = vmax.f32 %v7871, 0.0
    %v7877 = vpack.c.bf16 %v7876, %v7876
    %v7878 = vld [vmem:[%s9] sm:$0xf]
    %v7879 = vld [vmem:[%s9 + $0x4] sm:$0xf]
    %v7880 = vld [vmem:[%s9 + $0x8] sm:$0xf]
    %v7881 = vld [vmem:[%s9 + $0xc] sm:$0xf]
    %v7882 = vld [vmem:[%s9 + $0x10] sm:$0xf]
    %v7883 = vld [vmem:[%s9 + $0x14] sm:$0xf]
    %v7884 = vld [vmem:[%s9 + $0x18] sm:$0xf]
    %v7885 = vld [vmem:[%s9 + $0x1c] sm:$0xf]
    %v7886 = vld [vmem:[%s9 + $0x20] sm:$0xf]
    %v7887 = vld [vmem:[%s9 + $0x24] sm:$0xf]
    %v7888 = vld [vmem:[%s9 + $0x28] sm:$0xf]
    %v7889 = vld [vmem:[%s9 + $0x2c] sm:$0xf]
    %v7890 = vld [vmem:[%s9 + $0x30] sm:$0xf]
    %v7891 = vld [vmem:[%s9 + $0x34] sm:$0xf]
    %v7892 = vld [vmem:[%s9 + $0x38] sm:$0xf]
    %v7893 = vld [vmem:[%s9 + $0x3c] sm:$0xf]
    %v7894 = vld [vmem:[%s10 + $0x5] sm:$0x1]
    %v7895 = vlaneseq
    %v7896 = vshrl.u32 %v7895, 7
    %v7897 = vsub.s32 0, %v7896
    %v7898 = vrot.slane %v7894, %v7897
    %v7915 = vunpack.c.l.b16 %v7878
    %v7916 = vunpack.c.l.b16 %v7879
    %v7917 = vunpack.c.l.b16 %v7880
    %v7918 = vunpack.c.l.b16 %v7881
    %v7919 = vunpack.c.l.b16 %v7882
    %v7920 = vunpack.c.l.b16 %v7883
    %v7921 = vunpack.c.l.b16 %v7884
    %v7922 = vunpack.c.l.b16 %v7885
    %v7923 = vunpack.c.l.b16 %v7886
    %v7924 = vunpack.c.l.b16 %v7887
    %v7925 = vunpack.c.l.b16 %v7888
    %v7926 = vunpack.c.l.b16 %v7889
    %v7927 = vunpack.c.l.b16 %v7890
    %v7928 = vunpack.c.l.b16 %v7891
    %v7929 = vunpack.c.l.b16 %v7892
    %v7930 = vunpack.c.l.b16 %v7893
    %v7931 = vpack.c.b16 %v7916, %v7915
    %v7932 = vpack.c.b16 %v7918, %v7917
    %v7933 = vpack.c.b16 %v7920, %v7919
    %v7934 = vpack.c.b16 %v7922, %v7921
    %v7935 = vpack.c.b16 %v7924, %v7923
    %v7936 = vpack.c.b16 %v7926, %v7925
    %v7937 = vpack.c.b16 %v7928, %v7927
    %v7938 = vpack.c.b16 %v7930, %v7929
    %7947 = vmatprep.subr.bf16.mxu0 0
    %7948 = vmatpush1.bf16.msra.mxu0 %v7931
    %7949 = vmatprep.subr.bf16.mxu0 0
    %7950 = vmatpush1.bf16.msra.mxu0 %v7932
    %7951 = vmatprep.subr.bf16.mxu0 0
    %7952 = vmatpush1.bf16.msra.mxu0 %v7933
    %7953 = vmatprep.subr.bf16.mxu0 0
    %7954 = vmatpush1.bf16.msra.mxu0 %v7934
    %7955 = vmatprep.subr.bf16.mxu0 0
    %7956 = vmatpush1.bf16.msra.mxu0 %v7935
    %7957 = vmatprep.subr.bf16.mxu0 0
    %7958 = vmatpush1.bf16.msra.mxu0 %v7936
    %7959 = vmatprep.subr.bf16.mxu0 0
    %7960 = vmatpush1.bf16.msra.mxu0 %v7937
    %7961 = vmatprep.subr.bf16.mxu0 0
    %7962 = vmatpush1.bf16.msra.mxu0 %v7938
    %7963 = vmatprep.subr.bf16.mxu0 0
    %7964 = vmatpush1.bf16.msra.mxu0 0
    %7965 = vmatprep.subr.bf16.mxu0 0
    %7966 = vmatpush1.bf16.msra.mxu0 0
    %7967 = vmatprep.subr.bf16.mxu0 0
    %7968 = vmatpush1.bf16.msra.mxu0 0
    %7969 = vmatprep.subr.bf16.mxu0 0
    %7970 = vmatpush1.bf16.msra.mxu0 0
    %7971 = vmatprep.subr.bf16.mxu0 0
    %7972 = vmatpush1.bf16.msra.mxu0 0
    %7973 = vmatprep.subr.bf16.mxu0 0
    %7974 = vmatpush1.bf16.msra.mxu0 0
    %7975 = vmatprep.subr.bf16.mxu0 0
    %7976 = vmatpush1.bf16.msra.mxu0 0
    %7977 = vmatprep.subr.bf16.mxu0 0
    %7978 = vmatpush1.bf16.msra.mxu0 0
    %7979 = vmatprep.mubr.bf16.mxu0 0
    %7980 = vmatmul.mubr.bf16.gmra.mrb[0].mxu0 %v7877
    %v7981 = vpop.f32.mrb[0].mxu0
    %v7982 = vadd.f32 %v7898, %v7981
    %v7983 = vpop.f32.mrb[0].mxu0
    %v7984 = vpop.f32.mrb[0].mxu0
    %v7985 = vpop.f32.mrb[0].mxu0
    %7986 = vdwg.mxu0
    %7987 = vst [vmem:[#allocation2] sm:$0x3] %v7982
    // Predicated region
    $region46: #{cnn_rnn_forward.1} parent=1 // pred_check
      _
    $region47: #{cnn_rnn_forward.1} parent=1 // pred_check_branch
      %7989 = sbr.rel (0) target = $region49
    $region48: #{cnn_rnn_forward.1} parent=1 // pred_region
      %s7991 = ssub.s32 32, 32
      %7992 = vsyncadd [#allocation3], %s7991
      %s7994 = sshll.u32 [#allocation2], 4
      %s7995 = int_to_ptr.vmem [resolvable:$true] %s7994
      %7997 = dma.vmem_to_hbm [thread:$0]  %s7995, 32, %s11, [#allocation3]
    $region49: #{cnn_rnn_forward.1} parent=1 // pred_fallthru
      _
    // Predicated region
    $region50: #{cnn_rnn_forward.1} parent=1 // pred_check
      _
    $region51: #{cnn_rnn_forward.1} parent=1 // pred_check_branch
      %7999 = sbr.rel (0) target = $region53
    $region52: #{cnn_rnn_forward.1} parent=1 // pred_region
      %8000 = dma.done [#allocation3], 32
    $region53: #{cnn_rnn_forward.1} parent=1 // pred_fallthru
      _
    %8001 = vsyncpa [#allocation3], 1

</llo_original>
